<compile_context>
chip_gen: v7x
topology: tpu7x:2x2x1
jax: 0.10.0
libtpu: 0.0.40
codegen_flags: <defaults>
</compile_context>

<pallas_src>
import functools

import jax
import jax.numpy as jnp
from jax.experimental import pallas as pl
from jax.experimental.pallas import tpu as pltpu

LANE = 128
SUB = 16                       # sublane rounding (packed-bf16 friendly)
_MXU_IN_DTYPE = jnp.bfloat16   # native MXU input dtype; accumulation stays f32
_ACT_DTYPE = jnp.bfloat16      # storage dtype of intermediate activations


# ----------------------------- small helpers -------------------------------

def _round_up(x, m):
    return (x + m - 1) // m * m


def _m_tiling(m, max_tile=2048):
    """(padded_rows, row_tile): tile is a multiple of SUB dividing padded_rows."""
    if m <= max_tile:
        mp = _round_up(m, SUB)
        return mp, mp
    t = max_tile - (max_tile % SUB)
    while t >= SUB:
        if m % t == 0:
            return m, t
        t -= SUB
    return _round_up(m, max_tile), max_tile


def _lane_tile(d, max_tile=512):
    for t in (512, 256, 128):
        if t <= max_tile and d % t == 0:
            return t
    return d  # d is always a multiple of LANE here


# ----------------------------- Pallas kernels -------------------------------

def _mm_kernel(*refs, prologue):
    """Tiled matmul: out = [relu(x*scale+shift)] @ w + b, with per-row-tile
    partial BN statistics (sum, sumsq) of `out` emitted on the last K step."""
    if prologue:
        x_ref, s_ref, t_ref, w_ref, b_ref, o_ref, st_ref, acc_ref = refs
    else:
        x_ref, w_ref, b_ref, o_ref, st_ref, acc_ref = refs
    k = pl.program_id(2)

    @pl.when(k == 0)
    def _():
        acc_ref[...] = jnp.zeros_like(acc_ref)

    x = x_ref[...]
    if prologue:  # producer BN affine + ReLU fused into this conv's prologue
        xa = x.astype(jnp.float32) * s_ref[...] + t_ref[...]
        x = jnp.maximum(xa, 0.0).astype(_MXU_IN_DTYPE)
    else:
        x = x.astype(_MXU_IN_DTYPE)
    acc_ref[...] += jnp.dot(x, w_ref[...], preferred_element_type=jnp.float32)

    @pl.when(k == pl.num_programs(2) - 1)
    def _():
        out = acc_ref[...] + b_ref[...]
        o_ref[...] = out.astype(o_ref.dtype)
        s1 = jnp.sum(out, axis=0, keepdims=True)
        s2 = jnp.sum(out * out, axis=0, keepdims=True)
        st_ref[...] = jnp.concatenate([s1, s2], axis=0)[None]


def _conv3x3_kernel(x_ref, s_ref, t_ref, w_ref, b_ref, o_ref, st_ref, acc_ref,
                    *, wreal):
    # x_ref : (1, ho, wpad, Cin) bf16 — raw producer output, W zero-padded
    #         (1 left, 1+extra right); H is NOT padded (handled below).
    # s/t   : (1, Cin) f32 — producer BN scale/shift (fused prologue)
    # w_ref : (3, 3*Cin, TCout) bf16 — taps with the dx shift folded into K
    # b_ref : (1, TCout) f32 ; o_ref: (1, ho, wo_pad, TCout) bf16
    # st_ref: (1, 2, TCout) f32 ; acc_ref: (ho*wo_pad, TCout) f32 scratch
    ho, wpad, cin = x_ref.shape[1], x_ref.shape[2], x_ref.shape[3]
    wo_pad = o_ref.shape[2]
    tco = o_ref.shape[3]

    x = x_ref[0].astype(jnp.float32)                      # (ho, wpad, Cin)
    a = jnp.maximum(x * s_ref[0] + t_ref[0], 0.0)         # fused BN1 + ReLU
    # zero conv-padding / sublane-padding columns (BN shift is nonzero there)
    cc = jax.lax.broadcasted_iota(jnp.int32, (wpad, cin), 0)
    a = jnp.where((cc >= 1) & (cc <= wreal), a, 0.0)

    # fold the dx (W) shift into the contraction dim: K = 3*Cin, 3 matmuls (dy)
    acat = jnp.concatenate(
        [a[:, 0:wo_pad, :], a[:, 1:1 + wo_pad, :], a[:, 2:2 + wo_pad, :]],
        axis=-1).astype(_MXU_IN_DTYPE)                    # (ho, wo_pad, 3*Cin)
    flat = acat.reshape(ho * wo_pad, 3 * cin)
    nlo = (ho - 1) * wo_pad
    # dy = 1 (no H shift): contributes to every output row
    acc_ref[...] = jnp.dot(flat, w_ref[1], preferred_element_type=jnp.float32)
    # dy = 0: input row r -> output row r+1
    acc_ref[wo_pad:wo_pad + nlo, :] += jnp.dot(
        flat[0:nlo, :], w_ref[0], preferred_element_type=jnp.float32)
    # dy = 2: input row r+1 -> output row r
    acc_ref[0:nlo, :] += jnp.dot(
        flat[wo_pad:wo_pad + nlo, :], w_ref[2], preferred_element_type=jnp.float32)

    out = (acc_ref[...] + b_ref[...]).reshape(ho, wo_pad, tco)
    # zero the sublane-padding columns so downstream consumers see exact zeros
    vc = jax.lax.broadcasted_iota(jnp.int32, (wo_pad, tco), 0) < wreal
    out = jnp.where(vc, out, 0.0)
    o_ref[...] = out.reshape(1, ho, wo_pad, tco).astype(o_ref.dtype)

    flat_o = out.reshape(ho * wo_pad, tco)
    s1 = jnp.sum(flat_o, axis=0, keepdims=True)
    s2 = jnp.sum(flat_o * flat_o, axis=0, keepdims=True)
    st_ref[...] = jnp.concatenate([s1, s2], axis=0)[None]


def _bn_add_relu_kernel(x_ref, skip_ref, s_ref, t_ref, o_ref):
    # x_ref: (1, Hm, Wm, C) main path (pre-BN3, still in the +1-border frame);
    # skip/o: (1, H, W, C). Centre crop offset is (1, 1).
    hs, ws = skip_ref.shape[1], skip_ref.shape[2]
    # TODO(synk): the W offset of 1 is a sublane-misaligned in-VMEM slice; for
    # very large maps move the crop into the BlockSpec / row-tile the grid.
    x = x_ref[0, 1:1 + hs, 1:1 + ws, :].astype(jnp.float32)
    y = x * s_ref[0] + t_ref[0]
    o_ref[0] = jnp.maximum(y + skip_ref[0].astype(jnp.float32), 0.0)


# ------------------------------ op wrappers ---------------------------------

def matmul_bn_fused(x, w, b, *, scale=None, shift=None, out_dtype=_ACT_DTYPE,
                    max_tm=2048):
    """x:(M,K) bf16, w:(K,N), b:(N,). Optional fused producer-BN prologue
    (scale/shift per K channel). Returns (out (M,N), partial_stats (gm,2,N) f32,
    n_pad_rows)."""
    m, kdim = x.shape
    ncols = w.shape[1]
    m_pad, tm = _m_tiling(m, max_tm)
    tk = _lane_tile(kdim, 512)
    tn = _lane_tile(ncols, 256)
    prologue = scale is not None
    if m_pad != m:
        x = jnp.pad(x, ((0, m_pad - m), (0, 0)))
    gm, gn, gk = m_pad // tm, ncols // tn, kdim // tk

    in_specs = [pl.BlockSpec((tm, tk), lambda i, j, l: (i, l))]
    args = [x]
    if prologue:
        in_specs += [pl.BlockSpec((1, tk), lambda i, j, l: (0, l)),
                     pl.BlockSpec((1, tk), lambda i, j, l: (0, l))]
        args += [scale.reshape(1, kdim).astype(jnp.float32),
                 shift.reshape(1, kdim).astype(jnp.float32)]
    in_specs += [pl.BlockSpec((tk, tn), lambda i, j, l: (l, j)),
                 pl.BlockSpec((1, tn), lambda i, j, l: (0, j))]
    args += [w.astype(_MXU_IN_DTYPE), b.reshape(1, ncols).astype(jnp.float32)]

    flops = 2 * m_pad * kdim * ncols + (4 * m_pad * kdim if prologue else 0)
    bytes_accessed = int(x.dtype.itemsize * m_pad * kdim + 2 * kdim * ncols
                         + jnp.dtype(out_dtype).itemsize * m_pad * ncols
                         + 4 * (gm * 2 * ncols + 2 * ncols))
    out, stats = pl.pallas_call(
        functools.partial(_mm_kernel, prologue=prologue),
        out_shape=(jax.ShapeDtypeStruct((m_pad, ncols), out_dtype),
                   jax.ShapeDtypeStruct((gm, 2, ncols), jnp.float32)),
        grid=(gm, gn, gk),
        in_specs=in_specs,
        out_specs=(pl.BlockSpec((tm, tn), lambda i, j, l: (i, j)),
                   pl.BlockSpec((1, 2, tn), lambda i, j, l: (i, 0, j))),
        scratch_shapes=[pltpu.VMEM((tm, tn), jnp.float32)],
        compiler_params=pltpu.CompilerParams(
            dimension_semantics=("parallel", "parallel", "arbitrary")),
        cost_estimate=pl.CostEstimate(flops=flops, transcendentals=0,
                                      bytes_accessed=bytes_accessed),
    )(*args)
    if m_pad != m:
        out = out[:m]
    return out, stats, m_pad - m


def conv3x3_bn_fused(xpad, wcat, b, scale, shift, *, wreal):
    """xpad: (N, ho, wpad, Cin) bf16 W-zero-padded raw producer output;
    wcat: (3, 3*Cin, Cout); b: (Cout,); scale/shift: producer BN (Cin,).
    Returns (out (N, ho, wo_pad, Cout) bf16, stats (N, 2, Cout) f32)."""
    n, ho, wpad, cin = xpad.shape
    cout = wcat.shape[2]
    wo_pad = wpad - 2
    tco = _lane_tile(cout, 256)
    flops = 2 * n * ho * wo_pad * 9 * cin * cout
    bytes_accessed = int(2 * n * ho * wpad * cin + 2 * 9 * cin * cout
                         + 2 * n * ho * wo_pad * cout + 4 * n * 2 * cout)
    return pl.pallas_call(
        functools.partial(_conv3x3_kernel, wreal=wreal),
        out_shape=(jax.ShapeDtypeStruct((n, ho, wo_pad, cout), _ACT_DTYPE),
                   jax.ShapeDtypeStruct((n, 2, cout), jnp.float32)),
        grid=(n, cout // tco),
        in_specs=[pl.BlockSpec((1, ho, wpad, cin), lambda i, j: (i, 0, 0, 0)),
                  pl.BlockSpec((1, cin), lambda i, j: (0, 0)),
                  pl.BlockSpec((1, cin), lambda i, j: (0, 0)),
                  pl.BlockSpec((3, 3 * cin, tco), lambda i, j: (0, 0, j)),
                  pl.BlockSpec((1, tco), lambda i, j: (0, j))],
        out_specs=(pl.BlockSpec((1, ho, wo_pad, tco), lambda i, j: (i, 0, 0, j)),
                   pl.BlockSpec((1, 2, tco), lambda i, j: (i, 0, j))),
        scratch_shapes=[pltpu.VMEM((ho * wo_pad, tco), jnp.float32)],
        compiler_params=pltpu.CompilerParams(
            dimension_semantics=("parallel", "parallel")),
        cost_estimate=pl.CostEstimate(flops=flops, transcendentals=0,
                                      bytes_accessed=bytes_accessed),
    )(xpad, scale.reshape(1, cin).astype(jnp.float32),
      shift.reshape(1, cin).astype(jnp.float32),
      wcat.astype(_MXU_IN_DTYPE), b.reshape(1, cout).astype(jnp.float32))


def bn_add_relu(main, skip, scale, shift):
    """Fused: BN3 apply + centre-crop main (offset 1,1) + residual add + ReLU."""
    n, hm, wm, c = main.shape
    _, hs, ws, _ = skip.shape
    bytes_accessed = int(2 * n * hm * wm * c + 8 * n * hs * ws * c + 8 * c)
    return pl.pallas_call(
        _bn_add_relu_kernel,
        out_shape=jax.ShapeDtypeStruct((n, hs, ws, c), jnp.float32),
        grid=(n,),
        in_specs=[pl.BlockSpec((1, hm, wm, c), lambda i: (i, 0, 0, 0)),
                  pl.BlockSpec((1, hs, ws, c), lambda i: (i, 0, 0, 0)),
                  pl.BlockSpec((1, c), lambda i: (0, 0)),
                  pl.BlockSpec((1, c), lambda i: (0, 0))],
        out_specs=pl.BlockSpec((1, hs, ws, c), lambda i: (i, 0, 0, 0)),
        compiler_params=pltpu.CompilerParams(dimension_semantics=("parallel",)),
        cost_estimate=pl.CostEstimate(flops=4 * n * hs * ws * c,
                                      transcendentals=0,
                                      bytes_accessed=bytes_accessed),
    )(main, skip, scale.reshape(1, c).astype(jnp.float32),
      shift.reshape(1, c).astype(jnp.float32))


def _bn_scale_shift(partials, gamma, beta, count, eps, *,
                    fake_rows=0, fake_value=None, extra_rows=0, extra_value=None):
    """Finish BN from per-tile [sum; sumsq]. fake_*: accumulated rows that must
    not count (each equal to fake_value, e.g. sublane-padding rows); extra_*:
    virtual rows (each equal to extra_value) that must count but were never
    materialised (the pad=1 border of the 1x1 convs)."""
    s = jnp.sum(partials, axis=0)                          # (2, C)
    s1, s2 = s[0], s[1]
    if fake_rows:
        s1 = s1 - fake_rows * fake_value
        s2 = s2 - fake_rows * fake_value * fake_value
    if extra_rows:
        s1 = s1 + extra_rows * extra_value
        s2 = s2 + extra_rows * extra_value * extra_value
    mean = s1 / count
    # TODO(synk): E[x^2]-E[x]^2 in f32; move to a centred second pass if
    # activation mean/std ratios ever become extreme.
    var = jnp.maximum(s2 / count - mean * mean, 0.0)
    inv = jax.lax.rsqrt(var + eps)
    scale = gamma * inv
    shift = beta - mean * scale
    return scale, shift


# ------------------------------ param plumbing ------------------------------

def _prep_1x1(w_torch, cin_p, cout_p):
    # torch (Cout, Cin, 1, 1) -> (Cin_p, Cout_p)
    w = jnp.transpose(w_torch[:, :, 0, 0], (1, 0))
    return jnp.pad(w, ((0, cin_p - w.shape[0]), (0, cout_p - w.shape[1])))


def _prep_3x3(w_torch, cin_p, cout_p):
    # torch (Cout, Cin, 3, 3) -> (3, 3*Cin_p, Cout_p); K index = dx*Cin_p + ci
    cout, cin = w_torch.shape[0], w_torch.shape[1]
    w = jnp.transpose(w_torch, (2, 3, 1, 0))               # (3, 3, Cin, Cout)
    w = jnp.pad(w, ((0, 0), (0, 0), (0, cin_p - cin), (0, cout_p - cout)))
    return w.reshape(3, 3 * cin_p, cout_p)


def _pad_vec(v, cp):
    return jnp.pad(v, (0, cp - v.shape[0]))


def init_bottleneck_params(key, in_channels, out_channels):
    ks = jax.random.split(key, 6)

    def kaiming(k, shape):  # kaiming_normal_, fan_in, gain=sqrt(2)
        fan_in = shape[1] * shape[2] * shape[3]
        return jax.random.normal(k, shape, jnp.float32) * jnp.sqrt(2.0 / fan_in)

    return {
        "w1": kaiming(ks[0], (in_channels, in_channels, 1, 1)),
        "b1": jax.random.normal(ks[1], (in_channels,), jnp.float32) * 0.01,
        "w2": kaiming(ks[2], (in_channels, in_channels, 3, 3)),
        "b2": jax.random.normal(ks[3], (in_channels,), jnp.float32) * 0.01,
        "w3": kaiming(ks[4], (out_channels, in_channels, 1, 1)),
        "b3": jax.random.normal(ks[5], (out_channels,), jnp.float32) * 0.01,
        "g1": jnp.ones((in_channels,), jnp.float32),
        "be1": jnp.zeros((in_channels,), jnp.float32),
        "g2": jnp.ones((in_channels,), jnp.float32),
        "be2": jnp.zeros((in_channels,), jnp.float32),
        "g3": jnp.ones((out_channels,), jnp.float32),
        "be3": jnp.zeros((out_channels,), jnp.float32),
    }


# ------------------------------ Bottleneck ----------------------------------

def bottleneck_forward(x_nchw, params, *, stride=1, eps=1e-5):
    if stride != 1:
        # TODO(synk): strided variant (strided convs + 1x1-conv skip path) not
        # ported to the fused v3 kernels; the reference default is stride=1.
        raise NotImplementedError("bottleneck_forward: only stride=1 is supported")

    n, cin, h, w = x_nchw.shape
    cout = params["w3"].shape[0]
    if cin != cout:
        raise ValueError("stride=1 identity skip requires in_channels == out_channels")
    cin_p = _round_up(cin, LANE)
    cout_p = _round_up(cout, LANE)

    # NCHW -> NHWC, channels zero-padded once to a lane-dense multiple of 128.
    x_f32 = jnp.transpose(x_nchw, (0, 2, 3, 1)).astype(jnp.float32)
    x_f32 = jnp.pad(x_f32, ((0, 0), (0, 0), (0, 0), (0, cin_p - cin)))

    w1 = _prep_1x1(params["w1"], cin_p, cin_p)
    w2 = _prep_3x3(params["w2"], cin_p, cin_p)
    w3 = _prep_1x1(params["w3"], cin_p, cout_p)
    b1 = _pad_vec(params["b1"], cin_p)
    b2 = _pad_vec(params["b2"], cin_p)
    b3 = _pad_vec(params["b3"], cout_p)
    g1, be1 = _pad_vec(params["g1"], cin_p), _pad_vec(params["be1"], cin_p)
    g2, be2 = _pad_vec(params["g2"], cin_p), _pad_vec(params["be2"], cin_p)
    g3, be3 = _pad_vec(params["g3"], cout_p), _pad_vec(params["be3"], cout_p)

    hp1, wp1 = h + 2, w + 2            # frame after the pad=1 1x1 convs

    # conv1: 1x1 (pad=1) as a flat matmul, BN1 sum/sumsq fused in.
    x1 = jnp.pad(x_f32, ((0, 0), (1, 1), (1, 1), (0, 0))).astype(_ACT_DTYPE)
    m1 = n * hp1 * wp1
    y1, p1, pad1 = matmul_bn_fused(x1.reshape(m1, cin_p), w1, b1)
    scale1, shift1 = _bn_scale_shift(p1, g1, be1, float(m1), eps,
                                     fake_rows=pad1, fake_value=b1)

    # conv2: 3x3 (pad=1); BN1 affine+ReLU fused into the prologue,
    # BN2 sum/sumsq fused into the epilogue.
    wo_pad = _round_up(wp1, SUB)
    x2 = jnp.pad(y1.reshape(n, hp1, wp1, cin_p),
                 ((0, 0), (0, 0), (1, 1 + wo_pad - wp1), (0, 0)))
    y2, p2 = conv3x3_bn_fused(x2, w2, b2, scale1, shift1, wreal=wp1)
    m2_real = n * hp1 * wp1
    scale2, shift2 = _bn_scale_shift(p2, g2, be2, float(m2_real), eps)

    # conv3: 1x1 (pad=1) as a flat matmul; BN2 affine+ReLU fused into the
    # prologue, BN3 sum/sumsq fused into the epilogue.
    m3 = n * hp1 * wo_pad
    y3, p3, pad3 = matmul_bn_fused(y2.reshape(m3, cin_p), w3, b3,
                                   scale=scale2, shift=shift2)
    # Rows whose conv2 activation is exactly zero (sublane-padding columns and
    # row-tile padding) all produce the same constant; remove them from stats.
    v_fake = jnp.dot(jnp.maximum(shift2, 0.0).astype(_MXU_IN_DTYPE),
                     w3.astype(_MXU_IN_DTYPE),
                     preferred_element_type=jnp.float32) + b3
    fake3 = (m3 + pad3) - m2_real
    # The pad=1 border of conv3 (value = b3) is never materialised; add it back
    # analytically so BN3 statistics cover the reference-style padded map.
    border3 = n * ((hp1 + 2) * (wp1 + 2) - hp1 * wp1)
    count3 = float(n * (hp1 + 2) * (wp1 + 2))
    scale3, shift3 = _bn_scale_shift(p3, g3, be3, count3, eps,
                                     fake_rows=fake3, fake_value=v_fake,
                                     extra_rows=border3, extra_value=b3)

    # fused: BN3 apply + centre crop + residual add + output ReLU
    out = bn_add_relu(y3.reshape(n, hp1, wo_pad, cout_p), x_f32, scale3, shift3)

    out = out[:, :, :, :cout]                    # drop channel padding
    return jnp.transpose(out, (0, 3, 1, 2))      # back to NCHW


if __name__ == "__main__":
    key = jax.random.PRNGKey(0)
    kx, kp = jax.random.split(key)

    in_channels = 4
    out_channels = 4          # stride=1 -> identity skip requires Cin == Cout
    x = jax.random.normal(kx, (2, in_channels, 16, 16), jnp.float32)
    params = init_bottleneck_params(kp, in_channels, out_channels)

    fwd = jax.jit(functools.partial(bottleneck_forward, stride=1))
    out = fwd(x, params)
    jax.block_until_ready(out)
    assert out.shape == (2, out_channels, 16, 16)
    assert bool(jnp.all(jnp.isfinite(out)))
    print("KERNEL_OK")
</pallas_src>

<mosaic_0001>
module attributes {stable_mosaic.version = 11 : i64} {
  func.func @_mm_kernel(%arg0: i32, %arg1: i32, %arg2: i32, %arg3: memref<656x128xbf16, #tpu.memory_space<vmem>>, %arg4: memref<128x128xbf16, #tpu.memory_space<vmem>>, %arg5: memref<1x128xf32, #tpu.memory_space<vmem>>, %arg6: memref<656x128xbf16, #tpu.memory_space<vmem>>, %arg7: memref<1x2x128xf32, #tpu.memory_space<vmem>>, %arg8: memref<656x128xf32, #tpu.memory_space<vmem>>) attributes {dimension_semantics = [#tpu.dimension_semantics<parallel>, #tpu.dimension_semantics<parallel>, #tpu.dimension_semantics<arbitrary>], iteration_bounds = array<i64: 1, 1, 1>, scalar_prefetch = 0 : i64, scratch_operands = 1 : i64, tpu.core_type = #tpu.core_type<tc>, window_params = [{transform_indices = @transform_0, window_bounds = array<i64: 656, 128>}, {transform_indices = @transform_1, window_bounds = array<i64: 128, 128>}, {transform_indices = @transform_2, window_bounds = array<i64: 1, 128>}, {transform_indices = @transform_3, window_bounds = array<i64: 656, 128>}, {transform_indices = @transform_4, window_bounds = array<i64: 1, 2, 128>}]} {
    %c0_i32 = arith.constant 0 : i32
    %0 = arith.cmpi eq, %arg2, %c0_i32 : i32
    %1 = arith.extui %0 : i1 to i32
    %c0_i32_0 = arith.constant 0 : i32
    %2 = arith.cmpi ne, %1, %c0_i32_0 : i32
    scf.if %2 {
      %cst_10 = arith.constant 0.000000e+00 : f32
      %12 = vector.broadcast %cst_10 : f32 to vector<656x128xf32>
      %c0_11 = arith.constant 0 : index
      %c0_12 = arith.constant 0 : index
      %13 = vector.load %arg8[%c0_11, %c0_12] : memref<656x128xf32, #tpu.memory_space<vmem>>, vector<656x128xf32>
      tpu.vector_store %arg8[%c0_11, %c0_12], %12 {strides = array<i32>} : memref<656x128xf32, #tpu.memory_space<vmem>>, vector<656x128xf32>,
    } else {
    }
    %c0 = arith.constant 0 : index
    %c0_1 = arith.constant 0 : index
    %3 = vector.load %arg3[%c0, %c0_1] : memref<656x128xbf16, #tpu.memory_space<vmem>>, vector<656x128xbf16>
    %c0_2 = arith.constant 0 : index
    %c0_3 = arith.constant 0 : index
    %4 = vector.load %arg8[%c0_2, %c0_3] : memref<656x128xf32, #tpu.memory_space<vmem>>, vector<656x128xf32>
    %c0_4 = arith.constant 0 : index
    %c0_5 = arith.constant 0 : index
    %5 = vector.load %arg4[%c0_4, %c0_5] : memref<128x128xbf16, #tpu.memory_space<vmem>>, vector<128x128xbf16>
    %cst = arith.constant dense<0.000000e+00> : vector<656x128xf32>
    %6 = tpu.matmul %3, %5, %cst {dimension_numbers = #tpu.dot_dimension_numbers<[1], [0], [0], [1], [0, 0, 1, 1], [], []>} : vector<656x128xbf16>, vector<128x128xbf16>, vector<656x128xf32> -> vector<656x128xf32>
    %7 = arith.addf %4, %6 : vector<656x128xf32>
    %c0_6 = arith.constant 0 : index
    %c0_7 = arith.constant 0 : index
    %8 = vector.load %arg8[%c0_6, %c0_7] : memref<656x128xf32, #tpu.memory_space<vmem>>, vector<656x128xf32>
    tpu.vector_store %arg8[%c0_6, %c0_7], %7 {strides = array<i32>} : memref<656x128xf32, #tpu.memory_space<vmem>>, vector<656x128xf32>,
    %c0_i32_8 = arith.constant 0 : i32
    %9 = arith.cmpi eq, %arg2, %c0_i32_8 : i32
    %10 = arith.extui %9 : i1 to i32
    %c0_i32_9 = arith.constant 0 : i32
    %11 = arith.cmpi ne, %10, %c0_i32_9 : i32
    scf.if %11 {
      %c0_10 = arith.constant 0 : index
      %c0_11 = arith.constant 0 : index
      %12 = vector.load %arg8[%c0_10, %c0_11] : memref<656x128xf32, #tpu.memory_space<vmem>>, vector<656x128xf32>
      %c0_12 = arith.constant 0 : index
      %c0_13 = arith.constant 0 : index
      %13 = vector.load %arg5[%c0_12, %c0_13] : memref<1x128xf32, #tpu.memory_space<vmem>>, vector<1x128xf32>
      %14 = vector.broadcast %13 : vector<1x128xf32> to vector<656x128xf32>
      %15 = arith.addf %12, %14 : vector<656x128xf32>
      %16 = arith.truncf %15 : vector<656x128xf32> to vector<656x128xbf16>
      %c0_14 = arith.constant 0 : index
      %c0_15 = arith.constant 0 : index
      %17 = vector.load %arg6[%c0_14, %c0_15] : memref<656x128xbf16, #tpu.memory_space<vmem>>, vector<656x128xbf16>
      tpu.vector_store %arg6[%c0_14, %c0_15], %16 {strides = array<i32>} : memref<656x128xbf16, #tpu.memory_space<vmem>>, vector<656x128xbf16>,
      %cst_16 = arith.constant dense<0.000000e+00> : vector<128xf32>
      %18 = vector.multi_reduction <add>, %15, %cst_16 [0] : vector<656x128xf32> to vector<128xf32>
      %19 = vector.shape_cast %18 : vector<128xf32> to vector<1x128xf32>
      %20 = arith.mulf %15, %15 : vector<656x128xf32>
      %cst_17 = arith.constant dense<0.000000e+00> : vector<128xf32>
      %21 = vector.multi_reduction <add>, %20, %cst_17 [0] : vector<656x128xf32> to vector<128xf32>
      %22 = vector.shape_cast %21 : vector<128xf32> to vector<1x128xf32>
      %23 = tpu.concatenate %19, %22 in 0 : vector<1x128xf32>, vector<1x128xf32> -> vector<2x128xf32>
      %24 = vector.shape_cast %23 : vector<2x128xf32> to vector<1x2x128xf32>
      %c0_18 = arith.constant 0 : index
      %c0_19 = arith.constant 0 : index
      %c0_20 = arith.constant 0 : index
      %25 = vector.load %arg7[%c0_18, %c0_19, %c0_20] : memref<1x2x128xf32, #tpu.memory_space<vmem>>, vector<1x2x128xf32>
      tpu.vector_store %arg7[%c0_18, %c0_19, %c0_20], %24 {strides = array<i32>} : memref<1x2x128xf32, #tpu.memory_space<vmem>>, vector<1x2x128xf32>,
    } else {
    }
    return
  }
  func.func @transform_0(%arg0: i32, %arg1: i32, %arg2: i32) -> (i32, i32) {
    %c0_i32 = arith.constant 0 : i32
    return %arg0, %arg2 : i32, i32
  }
  func.func @transform_1(%arg0: i32, %arg1: i32, %arg2: i32) -> (i32, i32) {
    %c0_i32 = arith.constant 0 : i32
    return %arg2, %arg1 : i32, i32
  }
  func.func @transform_2(%arg0: i32, %arg1: i32, %arg2: i32) -> (i32, i32) {
    %c0_i32 = arith.constant 0 : i32
    %c0_i32_0 = arith.constant 0 : i32
    return %c0_i32, %arg1 : i32, i32
  }
  func.func @transform_3(%arg0: i32, %arg1: i32, %arg2: i32) -> (i32, i32) {
    %c0_i32 = arith.constant 0 : i32
    return %arg0, %arg1 : i32, i32
  }
  func.func @transform_4(%arg0: i32, %arg1: i32, %arg2: i32) -> (i32, i32, i32) {
    %c0_i32 = arith.constant 0 : i32
    %c0_i32_0 = arith.constant 0 : i32
    return %arg0, %c0_i32, %arg1 : i32, i32, i32
  }
}

module attributes {stable_mosaic.version = 11 : i64} {
  func.func @_conv3x3_kernel(%arg0: i32, %arg1: i32, %arg2: memref<1x18x34x128xbf16, #tpu.memory_space<vmem>>, %arg3: memref<1x128xf32, #tpu.memory_space<vmem>>, %arg4: memref<1x128xf32, #tpu.memory_space<vmem>>, %arg5: memref<3x384x128xbf16, #tpu.memory_space<vmem>>, %arg6: memref<1x128xf32, #tpu.memory_space<vmem>>, %arg7: memref<1x18x32x128xbf16, #tpu.memory_space<vmem>>, %arg8: memref<1x2x128xf32, #tpu.memory_space<vmem>>, %arg9: memref<576x128xf32, #tpu.memory_space<vmem>>) attributes {dimension_semantics = [#tpu.dimension_semantics<parallel>, #tpu.dimension_semantics<parallel>], iteration_bounds = array<i64: 2, 1>, scalar_prefetch = 0 : i64, scratch_operands = 1 : i64, tpu.core_type = #tpu.core_type<tc>, window_params = [{transform_indices = @transform_0, window_bounds = array<i64: 1, 18, 34, 128>}, {pipeline_mode = #tpu.pipeline_mode<synchronous>, transform_indices = @transform_1, window_bounds = array<i64: 1, 128>}, {pipeline_mode = #tpu.pipeline_mode<synchronous>, transform_indices = @transform_2, window_bounds = array<i64: 1, 128>}, {transform_indices = @transform_3, window_bounds = array<i64: 3, 384, 128>}, {transform_indices = @transform_4, window_bounds = array<i64: 1, 128>}, {transform_indices = @transform_5, window_bounds = array<i64: 1, 18, 32, 128>}, {transform_indices = @transform_6, window_bounds = array<i64: 1, 2, 128>}]} {
    %c0 = arith.constant 0 : index
    %c0_0 = arith.constant 0 : index
    %c0_1 = arith.constant 0 : index
    %c0_2 = arith.constant 0 : index
    %0 = vector.load %arg2[%c0, %c0_0, %c0_1, %c0_2] : memref<1x18x34x128xbf16, #tpu.memory_space<vmem>>, vector<1x18x34x128xbf16>
    %1 = vector.shape_cast %0 : vector<1x18x34x128xbf16> to vector<18x34x128xbf16>
    %2 = arith.extf %1 : vector<18x34x128xbf16> to vector<18x34x128xf32>
    %c0_3 = arith.constant 0 : index
    %c0_4 = arith.constant 0 : index
    %3 = vector.load %arg3[%c0_3, %c0_4] : memref<1x128xf32, #tpu.memory_space<vmem>>, vector<1x128xf32>
    %4 = vector.shape_cast %3 : vector<1x128xf32> to vector<128xf32>
    %5 = vector.shape_cast %4 : vector<128xf32> to vector<1x1x128xf32>
    %6 = vector.broadcast %5 : vector<1x1x128xf32> to vector<18x34x128xf32>
    %7 = arith.mulf %2, %6 : vector<18x34x128xf32>
    %c0_5 = arith.constant 0 : index
    %c0_6 = arith.constant 0 : index
    %8 = vector.load %arg4[%c0_5, %c0_6] : memref<1x128xf32, #tpu.memory_space<vmem>>, vector<1x128xf32>
    %9 = vector.shape_cast %8 : vector<1x128xf32> to vector<128xf32>
    %10 = vector.shape_cast %9 : vector<128xf32> to vector<1x1x128xf32>
    %11 = vector.broadcast %10 : vector<1x1x128xf32> to vector<18x34x128xf32>
    %12 = arith.addf %7, %11 : vector<18x34x128xf32>
    %cst = arith.constant 0.000000e+00 : f32
    %13 = vector.broadcast %cst : f32 to vector<18x34x128xf32>
    %14 = arith.maximumf %12, %13 : vector<18x34x128xf32>
    %15 = tpu.iota {dimensions = array<i32: 0>} : vector<34x128xi32>
    %c1_i32 = arith.constant 1 : i32
    %16 = vector.broadcast %c1_i32 : i32 to vector<34x128xi32>
    %17 = arith.cmpi sge, %15, %16 : vector<34x128xi32>
    %c18_i32 = arith.constant 18 : i32
    %18 = vector.broadcast %c18_i32 : i32 to vector<34x128xi32>
    %19 = arith.cmpi sle, %15, %18 : vector<34x128xi32>
    %20 = arith.andi %17, %19 : vector<34x128xi1>
    %cst_7 = arith.constant 0.000000e+00 : f32
    %21 = vector.shape_cast %20 : vector<34x128xi1> to vector<1x34x128xi1>
    %22 = vector.broadcast %21 : vector<1x34x128xi1> to vector<18x34x128xi1>
    %23 = vector.broadcast %cst_7 : f32 to vector<18x34x128xf32>
    %24 = arith.select %22, %14, %23 : vector<18x34x128xi1>, vector<18x34x128xf32>
    %25 = vector.extract_strided_slice %24 {offsets = [0, 0, 0], sizes = [18, 32, 128], strides = [1, 1, 1]} : vector<18x34x128xf32> to vector<18x32x128xf32>
    %26 = vector.extract_strided_slice %24 {offsets = [0, 1, 0], sizes = [18, 32, 128], strides = [1, 1, 1]} : vector<18x34x128xf32> to vector<18x32x128xf32>
    %27 = vector.extract_strided_slice %24 {offsets = [0, 2, 0], sizes = [18, 32, 128], strides = [1, 1, 1]} : vector<18x34x128xf32> to vector<18x32x128xf32>
    %28 = tpu.concatenate %25, %26, %27 in 2 : vector<18x32x128xf32>, vector<18x32x128xf32>, vector<18x32x128xf32> -> vector<18x32x384xf32>
    %29 = arith.truncf %28 : vector<18x32x384xf32> to vector<18x32x384xbf16>
    %30 = vector.shape_cast %29 : vector<18x32x384xbf16> to vector<576x384xbf16>
    %c1 = arith.constant 1 : index
    %c0_8 = arith.constant 0 : index
    %c0_9 = arith.constant 0 : index
    %31 = vector.load %arg5[%c1, %c0_8, %c0_9] : memref<3x384x128xbf16, #tpu.memory_space<vmem>>, vector<1x384x128xbf16>
    %32 = vector.shape_cast %31 : vector<1x384x128xbf16> to vector<384x128xbf16>
    %cst_10 = arith.constant dense<0.000000e+00> : vector<576x128xf32>
    %33 = tpu.matmul %30, %32, %cst_10 {dimension_numbers = #tpu.dot_dimension_numbers<[1], [0], [0], [1], [0, 0, 1, 1], [], []>} : vector<576x384xbf16>, vector<384x128xbf16>, vector<576x128xf32> -> vector<576x128xf32>
    %c0_11 = arith.constant 0 : index
    %c0_12 = arith.constant 0 : index
    %34 = vector.load %arg9[%c0_11, %c0_12] : memref<576x128xf32, #tpu.memory_space<vmem>>, vector<576x128xf32>
    tpu.vector_store %arg9[%c0_11, %c0_12], %33 {strides = array<i32>} : memref<576x128xf32, #tpu.memory_space<vmem>>, vector<576x128xf32>,
    %c32 = arith.constant 32 : index
    %c0_13 = arith.constant 0 : index
    %35 = vector.load %arg9[%c32, %c0_13] : memref<576x128xf32, #tpu.memory_space<vmem>>, vector<544x128xf32>
    %36 = vector.extract_strided_slice %30 {offsets = [0, 0], sizes = [544, 384], strides = [1, 1]} : vector<576x384xbf16> to vector<544x384xbf16>
    %c0_14 = arith.constant 0 : index
    %c0_15 = arith.constant 0 : index
    %c0_16 = arith.constant 0 : index
    %37 = vector.load %arg5[%c0_14, %c0_15, %c0_16] : memref<3x384x128xbf16, #tpu.memory_space<vmem>>, vector<1x384x128xbf16>
    %38 = vector.shape_cast %37 : vector<1x384x128xbf16> to vector<384x128xbf16>
    %cst_17 = arith.constant dense<0.000000e+00> : vector<544x128xf32>
    %39 = tpu.matmul %36, %38, %cst_17 {dimension_numbers = #tpu.dot_dimension_numbers<[1], [0], [0], [1], [0, 0, 1, 1], [], []>} : vector<544x384xbf16>, vector<384x128xbf16>, vector<544x128xf32> -> vector<544x128xf32>
    %40 = arith.addf %35, %39 : vector<544x128xf32>
    %c32_18 = arith.constant 32 : index
    %c0_19 = arith.constant 0 : index
    %41 = vector.load %arg9[%c32_18, %c0_19] : memref<576x128xf32, #tpu.memory_space<vmem>>, vector<544x128xf32>
    tpu.vector_store %arg9[%c32_18, %c0_19], %40 {strides = array<i32>} : memref<576x128xf32, #tpu.memory_space<vmem>>, vector<544x128xf32>,
    %c0_20 = arith.constant 0 : index
    %c0_21 = arith.constant 0 : index
    %42 = vector.load %arg9[%c0_20, %c0_21] : memref<576x128xf32, #tpu.memory_space<vmem>>, vector<544x128xf32>
    %43 = vector.extract_strided_slice %30 {offsets = [32, 0], sizes = [544, 384], strides = [1, 1]} : vector<576x384xbf16> to vector<544x384xbf16>
    %c2 = arith.constant 2 : index
    %c0_22 = arith.constant 0 : index
    %c0_23 = arith.constant 0 : index
    %44 = vector.load %arg5[%c2, %c0_22, %c0_23] : memref<3x384x128xbf16, #tpu.memory_space<vmem>>, vector<1x384x128xbf16>
    %45 = vector.shape_cast %44 : vector<1x384x128xbf16> to vector<384x128xbf16>
    %cst_24 = arith.constant dense<0.000000e+00> : vector<544x128xf32>
    %46 = tpu.matmul %43, %45, %cst_24 {dimension_numbers = #tpu.dot_dimension_numbers<[1], [0], [0], [1], [0, 0, 1, 1], [], []>} : vector<544x384xbf16>, vector<384x128xbf16>, vector<544x128xf32> -> vector<544x128xf32>
    %47 = arith.addf %42, %46 : vector<544x128xf32>
    %c0_25 = arith.constant 0 : index
    %c0_26 = arith.constant 0 : index
    %48 = vector.load %arg9[%c0_25, %c0_26] : memref<576x128xf32, #tpu.memory_space<vmem>>, vector<544x128xf32>
    tpu.vector_store %arg9[%c0_25, %c0_26], %47 {strides = array<i32>} : memref<576x128xf32, #tpu.memory_space<vmem>>, vector<544x128xf32>,
    %c0_27 = arith.constant 0 : index
    %c0_28 = arith.constant 0 : index
    %49 = vector.load %arg9[%c0_27, %c0_28] : memref<576x128xf32, #tpu.memory_space<vmem>>, vector<576x128xf32>
    %c0_29 = arith.constant 0 : index
    %c0_30 = arith.constant 0 : index
    %50 = vector.load %arg6[%c0_29, %c0_30] : memref<1x128xf32, #tpu.memory_space<vmem>>, vector<1x128xf32>
    %51 = vector.broadcast %50 : vector<1x128xf32> to vector<576x128xf32>
    %52 = arith.addf %49, %51 : vector<576x128xf32>
    %53 = vector.shape_cast %52 : vector<576x128xf32> to vector<18x32x128xf32>
    %54 = tpu.iota {dimensions = array<i32: 0>} : vector<32x128xi32>
    %c18_i32_31 = arith.constant 18 : i32
    %55 = vector.broadcast %c18_i32_31 : i32 to vector<32x128xi32>
    %56 = arith.cmpi slt, %54, %55 : vector<32x128xi32>
    %cst_32 = arith.constant 0.000000e+00 : f32
    %57 = vector.shape_cast %56 : vector<32x128xi1> to vector<1x32x128xi1>
    %58 = vector.broadcast %57 : vector<1x32x128xi1> to vector<18x32x128xi1>
    %59 = vector.broadcast %cst_32 : f32 to vector<18x32x128xf32>
    %60 = arith.select %58, %53, %59 : vector<18x32x128xi1>, vector<18x32x128xf32>
    %61 = vector.shape_cast %60 : vector<18x32x128xf32> to vector<1x18x32x128xf32>
    %62 = arith.truncf %61 : vector<1x18x32x128xf32> to vector<1x18x32x128xbf16>
    %c0_33 = arith.constant 0 : index
    %c0_34 = arith.constant 0 : index
    %c0_35 = arith.constant 0 : index
    %c0_36 = arith.constant 0 : index
    %63 = vector.load %arg7[%c0_33, %c0_34, %c0_35, %c0_36] : memref<1x18x32x128xbf16, #tpu.memory_space<vmem>>, vector<1x18x32x128xbf16>
    tpu.vector_store %arg7[%c0_33, %c0_34, %c0_35, %c0_36], %62 {strides = array<i32>} : memref<1x18x32x128xbf16, #tpu.memory_space<vmem>>, vector<1x18x32x128xbf16>,
    %64 = vector.shape_cast %60 : vector<18x32x128xf32> to vector<576x128xf32>
    %cst_37 = arith.constant dense<0.000000e+00> : vector<128xf32>
    %65 = vector.multi_reduction <add>, %64, %cst_37 [0] : vector<576x128xf32> to vector<128xf32>
    %66 = vector.shape_cast %65 : vector<128xf32> to vector<1x128xf32>
    %67 = arith.mulf %64, %64 : vector<576x128xf32>
    %cst_38 = arith.constant dense<0.000000e+00> : vector<128xf32>
    %68 = vector.multi_reduction <add>, %67, %cst_38 [0] : vector<576x128xf32> to vector<128xf32>
    %69 = vector.shape_cast %68 : vector<128xf32> to vector<1x128xf32>
    %70 = tpu.concatenate %66, %69 in 0 : vector<1x128xf32>, vector<1x128xf32> -> vector<2x128xf32>
    %71 = vector.shape_cast %70 : vector<2x128xf32> to vector<1x2x128xf32>
    %c0_39 = arith.constant 0 : index
    %c0_40 = arith.constant 0 : index
    %c0_41 = arith.constant 0 : index
    %72 = vector.load %arg8[%c0_39, %c0_40, %c0_41] : memref<1x2x128xf32, #tpu.memory_space<vmem>>, vector<1x2x128xf32>
    tpu.vector_store %arg8[%c0_39, %c0_40, %c0_41], %71 {strides = array<i32>} : memref<1x2x128xf32, #tpu.memory_space<vmem>>, vector<1x2x128xf32>,
    return
  }
  func.func @transform_0(%arg0: i32, %arg1: i32) -> (i32, i32, i32, i32) {
    %c0_i32 = arith.constant 0 : i32
    %c0_i32_0 = arith.constant 0 : i32
    %c0_i32_1 = arith.constant 0 : i32
    %c0_i32_2 = arith.constant 0 : i32
    return %arg0, %c0_i32, %c0_i32_0, %c0_i32_1 : i32, i32, i32, i32
  }
  func.func @transform_1(%arg0: i32, %arg1: i32) -> (i32, i32) {
    %c0_i32 = arith.constant 0 : i32
    %c0_i32_0 = arith.constant 0 : i32
    %c0_i32_1 = arith.constant 0 : i32
    return %c0_i32, %c0_i32_0 : i32, i32
  }
  func.func @transform_2(%arg0: i32, %arg1: i32) -> (i32, i32) {
    %c0_i32 = arith.constant 0 : i32
    %c0_i32_0 = arith.constant 0 : i32
    %c0_i32_1 = arith.constant 0 : i32
    return %c0_i32, %c0_i32_0 : i32, i32
  }
  func.func @transform_3(%arg0: i32, %arg1: i32) -> (i32, i32, i32) {
    %c0_i32 = arith.constant 0 : i32
    %c0_i32_0 = arith.constant 0 : i32
    %c0_i32_1 = arith.constant 0 : i32
    return %c0_i32, %c0_i32_0, %arg1 : i32, i32, i32
  }
  func.func @transform_4(%arg0: i32, %arg1: i32) -> (i32, i32) {
    %c0_i32 = arith.constant 0 : i32
    %c0_i32_0 = arith.constant 0 : i32
    return %c0_i32, %arg1 : i32, i32
  }
  func.func @transform_5(%arg0: i32, %arg1: i32) -> (i32, i32, i32, i32) {
    %c0_i32 = arith.constant 0 : i32
    %c0_i32_0 = arith.constant 0 : i32
    %c0_i32_1 = arith.constant 0 : i32
    return %arg0, %c0_i32, %c0_i32_0, %arg1 : i32, i32, i32, i32
  }
  func.func @transform_6(%arg0: i32, %arg1: i32) -> (i32, i32, i32) {
    %c0_i32 = arith.constant 0 : i32
    %c0_i32_0 = arith.constant 0 : i32
    return %arg0, %c0_i32, %arg1 : i32, i32, i32
  }
}

module attributes {stable_mosaic.version = 11 : i64} {
  func.func @_mm_kernel(%arg0: i32, %arg1: i32, %arg2: i32, %arg3: memref<1152x128xbf16, #tpu.memory_space<vmem>>, %arg4: memref<1x128xf32, #tpu.memory_space<vmem>>, %arg5: memref<1x128xf32, #tpu.memory_space<vmem>>, %arg6: memref<128x128xbf16, #tpu.memory_space<vmem>>, %arg7: memref<1x128xf32, #tpu.memory_space<vmem>>, %arg8: memref<1152x128xbf16, #tpu.memory_space<vmem>>, %arg9: memref<1x2x128xf32, #tpu.memory_space<vmem>>, %arg10: memref<1152x128xf32, #tpu.memory_space<vmem>>) attributes {dimension_semantics = [#tpu.dimension_semantics<parallel>, #tpu.dimension_semantics<parallel>, #tpu.dimension_semantics<arbitrary>], iteration_bounds = array<i64: 1, 1, 1>, scalar_prefetch = 0 : i64, scratch_operands = 1 : i64, tpu.core_type = #tpu.core_type<tc>, window_params = [{transform_indices = @transform_0, window_bounds = array<i64: 1152, 128>}, {transform_indices = @transform_1, window_bounds = array<i64: 1, 128>}, {transform_indices = @transform_2, window_bounds = array<i64: 1, 128>}, {transform_indices = @transform_3, window_bounds = array<i64: 128, 128>}, {transform_indices = @transform_4, window_bounds = array<i64: 1, 128>}, {transform_indices = @transform_5, window_bounds = array<i64: 1152, 128>}, {transform_indices = @transform_6, window_bounds = array<i64: 1, 2, 128>}]} {
    %c0_i32 = arith.constant 0 : i32
    %0 = arith.cmpi eq, %arg2, %c0_i32 : i32
    %1 = arith.extui %0 : i1 to i32
    %c0_i32_0 = arith.constant 0 : i32
    %2 = arith.cmpi ne, %1, %c0_i32_0 : i32
    scf.if %2 {
      %cst_15 = arith.constant 0.000000e+00 : f32
      %22 = vector.broadcast %cst_15 : f32 to vector<1152x128xf32>
      %c0_16 = arith.constant 0 : index
      %c0_17 = arith.constant 0 : index
      %23 = vector.load %arg10[%c0_16, %c0_17] : memref<1152x128xf32, #tpu.memory_space<vmem>>, vector<1152x128xf32>
      tpu.vector_store %arg10[%c0_16, %c0_17], %22 {strides = array<i32>} : memref<1152x128xf32, #tpu.memory_space<vmem>>, vector<1152x128xf32>,
    } else {
    }
    %c0 = arith.constant 0 : index
    %c0_1 = arith.constant 0 : index
    %3 = vector.load %arg3[%c0, %c0_1] : memref<1152x128xbf16, #tpu.memory_space<vmem>>, vector<1152x128xbf16>
    %4 = arith.extf %3 : vector<1152x128xbf16> to vector<1152x128xf32>
    %c0_2 = arith.constant 0 : index
    %c0_3 = arith.constant 0 : index
    %5 = vector.load %arg4[%c0_2, %c0_3] : memref<1x128xf32, #tpu.memory_space<vmem>>, vector<1x128xf32>
    %6 = vector.broadcast %5 : vector<1x128xf32> to vector<1152x128xf32>
    %7 = arith.mulf %4, %6 : vector<1152x128xf32>
    %c0_4 = arith.constant 0 : index
    %c0_5 = arith.constant 0 : index
    %8 = vector.load %arg5[%c0_4, %c0_5] : memref<1x128xf32, #tpu.memory_space<vmem>>, vector<1x128xf32>
    %9 = vector.broadcast %8 : vector<1x128xf32> to vector<1152x128xf32>
    %10 = arith.addf %7, %9 : vector<1152x128xf32>
    %cst = arith.constant 0.000000e+00 : f32
    %11 = vector.broadcast %cst : f32 to vector<1152x128xf32>
    %12 = arith.maximumf %10, %11 : vector<1152x128xf32>
    %13 = arith.truncf %12 : vector<1152x128xf32> to vector<1152x128xbf16>
    %c0_6 = arith.constant 0 : index
    %c0_7 = arith.constant 0 : index
    %14 = vector.load %arg10[%c0_6, %c0_7] : memref<1152x128xf32, #tpu.memory_space<vmem>>, vector<1152x128xf32>
    %c0_8 = arith.constant 0 : index
    %c0_9 = arith.constant 0 : index
    %15 = vector.load %arg6[%c0_8, %c0_9] : memref<128x128xbf16, #tpu.memory_space<vmem>>, vector<128x128xbf16>
    %cst_10 = arith.constant dense<0.000000e+00> : vector<1152x128xf32>
    %16 = tpu.matmul %13, %15, %cst_10 {dimension_numbers = #tpu.dot_dimension_numbers<[1], [0], [0], [1], [0, 0, 1, 1], [], []>} : vector<1152x128xbf16>, vector<128x128xbf16>, vector<1152x128xf32> -> vector<1152x128xf32>
    %17 = arith.addf %14, %16 : vector<1152x128xf32>
    %c0_11 = arith.constant 0 : index
    %c0_12 = arith.constant 0 : index
    %18 = vector.load %arg10[%c0_11, %c0_12] : memref<1152x128xf32, #tpu.memory_space<vmem>>, vector<1152x128xf32>
    tpu.vector_store %arg10[%c0_11, %c0_12], %17 {strides = array<i32>} : memref<1152x128xf32, #tpu.memory_space<vmem>>, vector<1152x128xf32>,
    %c0_i32_13 = arith.constant 0 : i32
    %19 = arith.cmpi eq, %arg2, %c0_i32_13 : i32
    %20 = arith.extui %19 : i1 to i32
    %c0_i32_14 = arith.constant 0 : i32
    %21 = arith.cmpi ne, %20, %c0_i32_14 : i32
    scf.if %21 {
      %c0_15 = arith.constant 0 : index
      %c0_16 = arith.constant 0 : index
      %22 = vector.load %arg10[%c0_15, %c0_16] : memref<1152x128xf32, #tpu.memory_space<vmem>>, vector<1152x128xf32>
      %c0_17 = arith.constant 0 : index
      %c0_18 = arith.constant 0 : index
      %23 = vector.load %arg7[%c0_17, %c0_18] : memref<1x128xf32, #tpu.memory_space<vmem>>, vector<1x128xf32>
      %24 = vector.broadcast %23 : vector<1x128xf32> to vector<1152x128xf32>
      %25 = arith.addf %22, %24 : vector<1152x128xf32>
      %26 = arith.truncf %25 : vector<1152x128xf32> to vector<1152x128xbf16>
      %c0_19 = arith.constant 0 : index
      %c0_20 = arith.constant 0 : index
      %27 = vector.load %arg8[%c0_19, %c0_20] : memref<1152x128xbf16, #tpu.memory_space<vmem>>, vector<1152x128xbf16>
      tpu.vector_store %arg8[%c0_19, %c0_20], %26 {strides = array<i32>} : memref<1152x128xbf16, #tpu.memory_space<vmem>>, vector<1152x128xbf16>,
      %cst_21 = arith.constant dense<0.000000e+00> : vector<128xf32>
      %28 = vector.multi_reduction <add>, %25, %cst_21 [0] : vector<1152x128xf32> to vector<128xf32>
      %29 = vector.shape_cast %28 : vector<128xf32> to vector<1x128xf32>
      %30 = arith.mulf %25, %25 : vector<1152x128xf32>
      %cst_22 = arith.constant dense<0.000000e+00> : vector<128xf32>
      %31 = vector.multi_reduction <add>, %30, %cst_22 [0] : vector<1152x128xf32> to vector<128xf32>
      %32 = vector.shape_cast %31 : vector<128xf32> to vector<1x128xf32>
      %33 = tpu.concatenate %29, %32 in 0 : vector<1x128xf32>, vector<1x128xf32> -> vector<2x128xf32>
      %34 = vector.shape_cast %33 : vector<2x128xf32> to vector<1x2x128xf32>
      %c0_23 = arith.constant 0 : index
      %c0_24 = arith.constant 0 : index
      %c0_25 = arith.constant 0 : index
      %35 = vector.load %arg9[%c0_23, %c0_24, %c0_25] : memref<1x2x128xf32, #tpu.memory_space<vmem>>, vector<1x2x128xf32>
      tpu.vector_store %arg9[%c0_23, %c0_24, %c0_25], %34 {strides = array<i32>} : memref<1x2x128xf32, #tpu.memory_space<vmem>>, vector<1x2x128xf32>,
    } else {
    }
    return
  }
  func.func @transform_0(%arg0: i32, %arg1: i32, %arg2: i32) -> (i32, i32) {
    %c0_i32 = arith.constant 0 : i32
    return %arg0, %arg2 : i32, i32
  }
  func.func @transform_1(%arg0: i32, %arg1: i32, %arg2: i32) -> (i32, i32) {
    %c0_i32 = arith.constant 0 : i32
    %c0_i32_0 = arith.constant 0 : i32
    return %c0_i32, %arg2 : i32, i32
  }
  func.func @transform_2(%arg0: i32, %arg1: i32, %arg2: i32) -> (i32, i32) {
    %c0_i32 = arith.constant 0 : i32
    %c0_i32_0 = arith.constant 0 : i32
    return %c0_i32, %arg2 : i32, i32
  }
  func.func @transform_3(%arg0: i32, %arg1: i32, %arg2: i32) -> (i32, i32) {
    %c0_i32 = arith.constant 0 : i32
    return %arg2, %arg1 : i32, i32
  }
  func.func @transform_4(%arg0: i32, %arg1: i32, %arg2: i32) -> (i32, i32) {
    %c0_i32 = arith.constant 0 : i32
    %c0_i32_0 = arith.constant 0 : i32
    return %c0_i32, %arg1 : i32, i32
  }
  func.func @transform_5(%arg0: i32, %arg1: i32, %arg2: i32) -> (i32, i32) {
    %c0_i32 = arith.constant 0 : i32
    return %arg0, %arg1 : i32, i32
  }
  func.func @transform_6(%arg0: i32, %arg1: i32, %arg2: i32) -> (i32, i32, i32) {
    %c0_i32 = arith.constant 0 : i32
    %c0_i32_0 = arith.constant 0 : i32
    return %arg0, %c0_i32, %arg1 : i32, i32, i32
  }
}

module attributes {stable_mosaic.version = 11 : i64} {
  func.func @_bn_add_relu_kernel(%arg0: i32, %arg1: memref<1x18x32x128xbf16, #tpu.memory_space<vmem>>, %arg2: memref<1x16x16x128xf32, #tpu.memory_space<vmem>>, %arg3: memref<1x128xf32, #tpu.memory_space<vmem>>, %arg4: memref<1x128xf32, #tpu.memory_space<vmem>>, %arg5: memref<1x16x16x128xf32, #tpu.memory_space<vmem>>) attributes {dimension_semantics = [#tpu.dimension_semantics<parallel>], iteration_bounds = array<i64: 2>, scalar_prefetch = 0 : i64, scratch_operands = 0 : i64, tpu.core_type = #tpu.core_type<tc>, window_params = [{transform_indices = @transform_0, window_bounds = array<i64: 1, 18, 32, 128>}, {transform_indices = @transform_1, window_bounds = array<i64: 1, 16, 16, 128>}, {pipeline_mode = #tpu.pipeline_mode<synchronous>, transform_indices = @transform_2, window_bounds = array<i64: 1, 128>}, {pipeline_mode = #tpu.pipeline_mode<synchronous>, transform_indices = @transform_3, window_bounds = array<i64: 1, 128>}, {transform_indices = @transform_4, window_bounds = array<i64: 1, 16, 16, 128>}]} {
    %c0 = arith.constant 0 : index
    %c1 = arith.constant 1 : index
    %c1_0 = arith.constant 1 : index
    %c0_1 = arith.constant 0 : index
    %0 = vector.load %arg1[%c0, %c1, %c1_0, %c0_1] : memref<1x18x32x128xbf16, #tpu.memory_space<vmem>>, vector<1x16x16x128xbf16>
    %1 = vector.shape_cast %0 : vector<1x16x16x128xbf16> to vector<16x16x128xbf16>
    %2 = arith.extf %1 : vector<16x16x128xbf16> to vector<16x16x128xf32>
    %c0_2 = arith.constant 0 : index
    %c0_3 = arith.constant 0 : index
    %3 = vector.load %arg3[%c0_2, %c0_3] : memref<1x128xf32, #tpu.memory_space<vmem>>, vector<1x128xf32>
    %4 = vector.shape_cast %3 : vector<1x128xf32> to vector<128xf32>
    %5 = vector.shape_cast %4 : vector<128xf32> to vector<1x1x128xf32>
    %6 = vector.broadcast %5 : vector<1x1x128xf32> to vector<16x16x128xf32>
    %7 = arith.mulf %2, %6 : vector<16x16x128xf32>
    %c0_4 = arith.constant 0 : index
    %c0_5 = arith.constant 0 : index
    %8 = vector.load %arg4[%c0_4, %c0_5] : memref<1x128xf32, #tpu.memory_space<vmem>>, vector<1x128xf32>
    %9 = vector.shape_cast %8 : vector<1x128xf32> to vector<128xf32>
    %10 = vector.shape_cast %9 : vector<128xf32> to vector<1x1x128xf32>
    %11 = vector.broadcast %10 : vector<1x1x128xf32> to vector<16x16x128xf32>
    %12 = arith.addf %7, %11 : vector<16x16x128xf32>
    %c0_6 = arith.constant 0 : index
    %c0_7 = arith.constant 0 : index
    %c0_8 = arith.constant 0 : index
    %c0_9 = arith.constant 0 : index
    %13 = vector.load %arg2[%c0_6, %c0_7, %c0_8, %c0_9] : memref<1x16x16x128xf32, #tpu.memory_space<vmem>>, vector<1x16x16x128xf32>
    %14 = vector.shape_cast %13 : vector<1x16x16x128xf32> to vector<16x16x128xf32>
    %15 = arith.addf %12, %14 : vector<16x16x128xf32>
    %cst = arith.constant 0.000000e+00 : f32
    %16 = vector.broadcast %cst : f32 to vector<16x16x128xf32>
    %17 = arith.maximumf %15, %16 : vector<16x16x128xf32>
    %c0_10 = arith.constant 0 : index
    %c0_11 = arith.constant 0 : index
    %c0_12 = arith.constant 0 : index
    %c0_13 = arith.constant 0 : index
    %18 = vector.load %arg5[%c0_10, %c0_11, %c0_12, %c0_13] : memref<1x16x16x128xf32, #tpu.memory_space<vmem>>, vector<1x16x16x128xf32>
    %19 = vector.shape_cast %18 : vector<1x16x16x128xf32> to vector<16x16x128xf32>
    %20 = vector.shape_cast %17 : vector<16x16x128xf32> to vector<1x16x16x128xf32>
    tpu.vector_store %arg5[%c0_10, %c0_11, %c0_12, %c0_13], %20 {strides = array<i32>} : memref<1x16x16x128xf32, #tpu.memory_space<vmem>>, vector<1x16x16x128xf32>,
    return
  }
  func.func @transform_0(%arg0: i32) -> (i32, i32, i32, i32) {
    %c0_i32 = arith.constant 0 : i32
    %c0_i32_0 = arith.constant 0 : i32
    %c0_i32_1 = arith.constant 0 : i32
    %c0_i32_2 = arith.constant 0 : i32
    return %arg0, %c0_i32, %c0_i32_0, %c0_i32_1 : i32, i32, i32, i32
  }
  func.func @transform_1(%arg0: i32) -> (i32, i32, i32, i32) {
    %c0_i32 = arith.constant 0 : i32
    %c0_i32_0 = arith.constant 0 : i32
    %c0_i32_1 = arith.constant 0 : i32
    %c0_i32_2 = arith.constant 0 : i32
    return %arg0, %c0_i32, %c0_i32_0, %c0_i32_1 : i32, i32, i32, i32
  }
  func.func @transform_2(%arg0: i32) -> (i32, i32) {
    %c0_i32 = arith.constant 0 : i32
    %c0_i32_0 = arith.constant 0 : i32
    %c0_i32_1 = arith.constant 0 : i32
    return %c0_i32, %c0_i32_0 : i32, i32
  }
  func.func @transform_3(%arg0: i32) -> (i32, i32) {
    %c0_i32 = arith.constant 0 : i32
    %c0_i32_0 = arith.constant 0 : i32
    %c0_i32_1 = arith.constant 0 : i32
    return %c0_i32, %c0_i32_0 : i32, i32
  }
  func.func @transform_4(%arg0: i32) -> (i32, i32, i32, i32) {
    %c0_i32 = arith.constant 0 : i32
    %c0_i32_0 = arith.constant 0 : i32
    %c0_i32_1 = arith.constant 0 : i32
    %c0_i32_2 = arith.constant 0 : i32
    return %arg0, %c0_i32, %c0_i32_0, %c0_i32_1 : i32, i32, i32, i32
  }
}

</mosaic_0001>

<llo_original>
// kernel: bottleneck_forward.7
$region0: #{bottleneck_forward.7}
  #allocation0 [shape = 'u32[]', space=smem, size = 0x4, offset = 0x4, fixed_abs, tag = 'smem constant byte address 0x4 - core index']
  #allocation1 [shape = 'u32[144,128]{1,0:T(1,128)}', space=vmem, size = 0x12000, scoped, tag = 'internal scratch']
  %s0 = inlined_call_operand.vmem [shape: bf16[2,18,32,128], index: 0, kind: input, shape index: {}]
  %s1 = inlined_call_operand.vmem [shape: f32[2,16,16,128], index: 1, kind: input, shape index: {}]
  %s2 = inlined_call_operand.vmem [shape: f32[1,128], index: 2, kind: input, shape index: {}]
  %s3 = inlined_call_operand.vmem [shape: f32[1,128], index: 3, kind: input, shape index: {}]
  %s4 = inlined_call_operand.vmem [shape: f32[2,16,16,128], index: 4, kind: output, shape index: {}]
  %s5 = sld [smem:[#allocation0]]
  $region49: #{bottleneck_forward.7} parent=0
    _
  %s7 = ssub.s32 1, %s5
  %s8 = scalar_select 0, %s7, %s5
  loop: start=0, step=1, limit=4
  $region2: #{bottleneck_forward.7} parent=0 // loop_pre_header
    _
  $region3: #{bottleneck_forward.7} parent=0 // loop_header
    %s10 = sphi 0, %s14
    %p11 = scmp.ge.s32.totalorder %s10, 4
    %s20 = sphi 0, %s22
    %s23 = sphi 0, %s20
    %s24 = sphi 0, %s23
    %s40 = sphi 0, %s24
    %s46 = sphi 0, %s48
    %s49 = sphi 0, %s46
    %s50 = sphi 0, %s49
    %s66 = sphi 0, %s50
    %s70 = sphi 0, %s70
    %s72 = sphi 0, %s70
    %s73 = sphi 0, %s72
    %s87 = sphi 0, %s73
    %s91 = sphi 0, %s91
    %s93 = sphi 0, %s91
    %s94 = sphi 0, %s93
    %s108 = sphi 0, %s94
    %s114 = sphi 0, %s116
    %s117 = sphi 0, %s114
    %s118 = sphi 0, %s117
    %s134 = sphi 0, %s118
  $region4: #{bottleneck_forward.7} parent=0 // loop_header_branch
    %13 = sbr.rel (%p11) target = $region8
  $region5: #{bottleneck_forward.7} parent=0 // loop_body
    %s15 = ssub.s32 %s10, 1
    %s16 = ssub.s32 %s10, 2
    %s17 = sadd.s32 %s10, 1
    %s18 = ssub.s32 %s10, %s17
    %p19 = scmp.eq.s32.totalorder %s18, 0
    %s21 = sadd.s32 %s20, 1
    %s22 = scalar_select %p19, %s20, %s21
    %p25 = pneg %p19
    %p26 = scmp.eq.s32.totalorder %s10, 1
    %p27 = por %p25, %p26
    %p28 = scmp.ne.s32.totalorder %s20, %s23
    %p29 = scmp.eq.s32.totalorder %s10, 0
    %p30 = por %p28, %p29
    %p31 = scmp.ne.s32.totalorder %s20, %s23
    %p32 = scmp.eq.s32.totalorder %s15, 1
    %p33 = por %p31, %p32
    %p34 = scmp.ne.s32.totalorder %s23, %s24
    %p35 = scmp.eq.s32.totalorder %s15, 0
    %p36 = por %p34, %p35
    %p37 = scmp.ne.s32.totalorder %s23, %s24
    %p38 = scmp.eq.s32.totalorder %s16, 1
    %p39 = por %p37, %p38
    %p41 = scmp.ne.s32.totalorder %s24, %s40
    %p42 = scmp.eq.s32.totalorder %s16, 0
    %p43 = por %p41, %p42
    %s44 = ssub.s32 %s10, %s17
    %p45 = scmp.eq.s32.totalorder %s44, 0
    %s47 = sadd.s32 %s46, 1
    %s48 = scalar_select %p45, %s46, %s47
    %p51 = pneg %p45
    %p52 = scmp.eq.s32.totalorder %s10, 1
    %p53 = por %p51, %p52
    %p54 = scmp.ne.s32.totalorder %s46, %s49
    %p55 = scmp.eq.s32.totalorder %s10, 0
    %p56 = por %p54, %p55
    %p57 = scmp.ne.s32.totalorder %s46, %s49
    %p58 = scmp.eq.s32.totalorder %s15, 1
    %p59 = por %p57, %p58
    %p60 = scmp.ne.s32.totalorder %s49, %s50
    %p61 = scmp.eq.s32.totalorder %s15, 0
    %p62 = por %p60, %p61
    %p63 = scmp.ne.s32.totalorder %s49, %s50
    %p64 = scmp.eq.s32.totalorder %s16, 1
    %p65 = por %p63, %p64
    %p67 = scmp.ne.s32.totalorder %s50, %s66
    %p68 = scmp.eq.s32.totalorder %s16, 0
    %p69 = por %p67, %p68
    %s71 = sadd.s32 %s70, 1
    %p74 = scmp.eq.s32.totalorder %s10, 1
    %p75 = scmp.ne.s32.totalorder %s70, %s72
    %p76 = scmp.eq.s32.totalorder %s10, 0
    %p77 = por %p75, %p76
    %p78 = scmp.ne.s32.totalorder %s70, %s72
    %p79 = scmp.eq.s32.totalorder %s15, 1
    %p80 = por %p78, %p79
    %p81 = scmp.ne.s32.totalorder %s72, %s73
    %p82 = scmp.eq.s32.totalorder %s15, 0
    %p83 = por %p81, %p82
    %p84 = scmp.ne.s32.totalorder %s72, %s73
    %p85 = scmp.eq.s32.totalorder %s16, 1
    %p86 = por %p84, %p85
    %p88 = scmp.ne.s32.totalorder %s73, %s87
    %p89 = scmp.eq.s32.totalorder %s16, 0
    %p90 = por %p88, %p89
    %s92 = sadd.s32 %s91, 1
    %p95 = scmp.eq.s32.totalorder %s10, 1
    %p96 = scmp.ne.s32.totalorder %s91, %s93
    %p97 = scmp.eq.s32.totalorder %s10, 0
    %p98 = por %p96, %p97
    %p99 = scmp.ne.s32.totalorder %s91, %s93
    %p100 = scmp.eq.s32.totalorder %s15, 1
    %p101 = por %p99, %p100
    %p102 = scmp.ne.s32.totalorder %s93, %s94
    %p103 = scmp.eq.s32.totalorder %s15, 0
    %p104 = por %p102, %p103
    %p105 = scmp.ne.s32.totalorder %s93, %s94
    %p106 = scmp.eq.s32.totalorder %s16, 1
    %p107 = por %p105, %p106
    %p109 = scmp.ne.s32.totalorder %s94, %s108
    %p110 = scmp.eq.s32.totalorder %s16, 0
    %p111 = por %p109, %p110
    %s112 = ssub.s32 %s10, %s17
    %p113 = scmp.eq.s32.totalorder %s112, 0
    %s115 = sadd.s32 %s114, 1
    %s116 = scalar_select %p113, %s114, %s115
    %p119 = pneg %p113
    %p120 = scmp.eq.s32.totalorder %s10, 1
    %p121 = por %p119, %p120
    %p122 = scmp.ne.s32.totalorder %s114, %s117
    %p123 = scmp.eq.s32.totalorder %s10, 0
    %p124 = por %p122, %p123
    %p125 = scmp.ne.s32.totalorder %s114, %s117
    %p126 = scmp.eq.s32.totalorder %s15, 1
    %p127 = por %p125, %p126
    %p128 = scmp.ne.s32.totalorder %s117, %s118
    %p129 = scmp.eq.s32.totalorder %s15, 0
    %p130 = por %p128, %p129
    %p131 = scmp.ne.s32.totalorder %s117, %s118
    %p132 = scmp.eq.s32.totalorder %s16, 1
    %p133 = por %p131, %p132
    %p135 = scmp.ne.s32.totalorder %s118, %s134
    %p136 = scmp.eq.s32.totalorder %s16, 0
    %p137 = por %p135, %p136
    %p138 = scmp.le.s32.totalorder 1, %s10
    %p139 = scmp.lt.s32.totalorder %s10, 3
    %p140 = pnand %p138, %p139
    %p141 = pneg %p140
    // Predicated region
    $region9: #{bottleneck_forward.7} parent=5 // pred_check
      _
    $region10: #{bottleneck_forward.7} parent=5 // pred_check_branch
      %143 = sbr.rel (%p140) target = $region12
    $region11: #{bottleneck_forward.7} parent=5 // pred_region
      %s144 = ssub.s32 %s10, 1
      // Predicated region
      $region13: #{bottleneck_forward.7} parent=11 // pred_check
        %p145 = pneg %p83
      $region14: #{bottleneck_forward.7} parent=11 // pred_check_branch
        %147 = sbr.rel (%p145) target = $region16
      $region15: #{bottleneck_forward.7} parent=11 // pred_region
        _
      $region16: #{bottleneck_forward.7} parent=11 // pred_fallthru
        _
      // Predicated region
      $region17: #{bottleneck_forward.7} parent=11 // pred_check
        %p148 = pneg %p104
      $region18: #{bottleneck_forward.7} parent=11 // pred_check_branch
        %150 = sbr.rel (%p148) target = $region20
      $region19: #{bottleneck_forward.7} parent=11 // pred_region
        _
      $region20: #{bottleneck_forward.7} parent=11 // pred_fallthru
        _
    $region12: #{bottleneck_forward.7} parent=5 // pred_fallthru
      _
    %p151 = scmp.lt.s32.totalorder %s10, 2
    // Predicated region
    $region21: #{bottleneck_forward.7} parent=5 // pred_check
      %p152 = pneg %p151
    $region22: #{bottleneck_forward.7} parent=5 // pred_check_branch
      %154 = sbr.rel (%p152) target = $region24
    $region23: #{bottleneck_forward.7} parent=5 // pred_region
      // Predicated region
      $region25: #{bottleneck_forward.7} parent=23 // pred_check
        %p155 = pneg %p30
      $region26: #{bottleneck_forward.7} parent=23 // pred_check_branch
        %157 = sbr.rel (%p155) target = $region28
      $region27: #{bottleneck_forward.7} parent=23 // pred_region
        %p158 = scmp.lt.s32.totalorder %s10, 1
        %s159 = scalar_select %p158, %s10, 1
        %s160 = smul.addr %s159, 72
        %s161 = smul.addr %s160, 4
        %s162 = scalar_lea.vmem %s0, %s161
      $region28: #{bottleneck_forward.7} parent=23 // pred_fallthru
        _
      // Predicated region
      $region29: #{bottleneck_forward.7} parent=23 // pred_check
        %p163 = pneg %p56
      $region30: #{bottleneck_forward.7} parent=23 // pred_check_branch
        %165 = sbr.rel (%p163) target = $region32
      $region31: #{bottleneck_forward.7} parent=23 // pred_region
        %p166 = scmp.lt.s32.totalorder %s10, 1
        %s167 = scalar_select %p166, %s10, 1
        %s168 = smul.addr %s167, 32
        %s169 = smul.addr %s168, 8
        %s170 = scalar_lea.vmem %s1, %s169
      $region32: #{bottleneck_forward.7} parent=23 // pred_fallthru
        _
    $region24: #{bottleneck_forward.7} parent=5 // pred_fallthru
      _
    %p171 = scmp.le.s32.totalorder 1, %s10
    %p172 = scmp.lt.s32.totalorder %s10, 3
    %p173 = pnand %p171, %p172
    %p174 = pneg %p173
    // Predicated region
    $region33: #{bottleneck_forward.7} parent=5 // pred_check
      _
    $region34: #{bottleneck_forward.7} parent=5 // pred_check_branch
      %176 = sbr.rel (%p173) target = $region36
    $region35: #{bottleneck_forward.7} parent=5 // pred_region
      %s177 = ssub.s32 %s10, 1
      %p178 = scmp.lt.s32.totalorder %s15, 1
      %s179 = scalar_select %p178, %s15, 1
      %s180 = smul.addr %s179, 72
      %s181 = smul.addr %s180, 4
      %s182 = scalar_lea.vmem %s0, %s181
      %p183 = pneg %p36
      %p184 = pneg %p33
      %p185 = scmp.lt.s32.totalorder %s15, 1
      %s186 = scalar_select %p185, %s15, 1
      %s187 = smul.addr %s186, 32
      %s188 = smul.addr %s187, 8
      %s189 = scalar_lea.vmem %s1, %s188
      %p190 = pneg %p62
      %p191 = pneg %p59
      %p192 = pneg %p83
      %p193 = pneg %p80
      %p194 = pneg %p104
      %p195 = pneg %p101
      %p196 = pneg %p130
      %p197 = pneg %p127
      %p198 = scmp.lt.s32.totalorder %s15, 1
      %s199 = scalar_select %p198, %s15, 1
      %s200 = smul.addr %s199, 32
      %s201 = smul.addr %s200, 8
      %s202 = scalar_lea.vmem %s4, %s201
      %p203 = scmp.lt.s32.totalorder %s15, 1
      %s204 = scalar_select %p203, %s15, 1
      %s205 = smul.addr %s204, 72
      %s206 = smul.addr %s205, 4
      %s207 = scalar_lea.vmem %s0, %s206
      %p208 = scmp.lt.s32.totalorder %s15, 1
      %s209 = scalar_select %p208, %s15, 1
      %s210 = smul.addr %s209, 32
      %s211 = smul.addr %s210, 8
      %s212 = scalar_lea.vmem %s1, %s211
      %p213 = scmp.lt.s32.totalorder %s15, 1
      %s214 = scalar_select %p213, %s15, 1
      %s215 = smul.addr %s214, 32
      %s216 = smul.addr %s215, 8
      %s217 = scalar_lea.vmem %s4, %s216
      %s218 = scalar_lea.vmem %s207, 16
      %v219 = vld [vmem:[%s218] sm:$0xf]
      %v220 = vld [vmem:[%s218 + $0x4] sm:$0xf]
      %v221 = vld [vmem:[%s218 + $0x8] sm:$0x1]
      %v222 = vld [vmem:[%s218 + $0x10] sm:$0xf]
      %v223 = vld [vmem:[%s218 + $0x14] sm:$0xf]
      %v224 = vld [vmem:[%s218 + $0x18] sm:$0x1]
      %v225 = vld [vmem:[%s218 + $0x20] sm:$0xf]
      %v226 = vld [vmem:[%s218 + $0x24] sm:$0xf]
      %v227 = vld [vmem:[%s218 + $0x28] sm:$0x1]
      %v228 = vld [vmem:[%s218 + $0x30] sm:$0xf]
      %v229 = vld [vmem:[%s218 + $0x34] sm:$0xf]
      %v230 = vld [vmem:[%s218 + $0x38] sm:$0x1]
      %v231 = vld [vmem:[%s218 + $0x40] sm:$0xf]
      %v232 = vld [vmem:[%s218 + $0x44] sm:$0xf]
      %v233 = vld [vmem:[%s218 + $0x48] sm:$0x1]
      %v234 = vld [vmem:[%s218 + $0x50] sm:$0xf]
      %v235 = vld [vmem:[%s218 + $0x54] sm:$0xf]
      %v236 = vld [vmem:[%s218 + $0x58] sm:$0x1]
      %v237 = vld [vmem:[%s218 + $0x60] sm:$0xf]
      %v238 = vld [vmem:[%s218 + $0x64] sm:$0xf]
      %v239 = vld [vmem:[%s218 + $0x68] sm:$0x1]
      %v240 = vld [vmem:[%s218 + $0x70] sm:$0xf]
      %v241 = vld [vmem:[%s218 + $0x74] sm:$0xf]
      %v242 = vld [vmem:[%s218 + $0x78] sm:$0x1]
      %v243 = vld [vmem:[%s218 + $0x80] sm:$0xf]
      %v244 = vld [vmem:[%s218 + $0x84] sm:$0xf]
      %v245 = vld [vmem:[%s218 + $0x88] sm:$0x1]
      %v246 = vld [vmem:[%s218 + $0x90] sm:$0xf]
      %v247 = vld [vmem:[%s218 + $0x94] sm:$0xf]
      %v248 = vld [vmem:[%s218 + $0x98] sm:$0x1]
      %v249 = vld [vmem:[%s218 + $0xa0] sm:$0xf]
      %v250 = vld [vmem:[%s218 + $0xa4] sm:$0xf]
      %v251 = vld [vmem:[%s218 + $0xa8] sm:$0x1]
      %v252 = vld [vmem:[%s218 + $0xb0] sm:$0xf]
      %v253 = vld [vmem:[%s218 + $0xb4] sm:$0xf]
      %v254 = vld [vmem:[%s218 + $0xb8] sm:$0x1]
      %v255 = vld [vmem:[%s218 + $0xc0] sm:$0xf]
      %v256 = vld [vmem:[%s218 + $0xc4] sm:$0xf]
      %v257 = vld [vmem:[%s218 + $0xc8] sm:$0x1]
      %v258 = vld [vmem:[%s218 + $0xd0] sm:$0xf]
      %v259 = vld [vmem:[%s218 + $0xd4] sm:$0xf]
      %v260 = vld [vmem:[%s218 + $0xd8] sm:$0x1]
      %v261 = vld [vmem:[%s218 + $0xe0] sm:$0xf]
      %v262 = vld [vmem:[%s218 + $0xe4] sm:$0xf]
      %v263 = vld [vmem:[%s218 + $0xe8] sm:$0x1]
      %v264 = vld [vmem:[%s218 + $0xf0] sm:$0xf]
      %v265 = vld [vmem:[%s218 + $0xf4] sm:$0xf]
      %v266 = vld [vmem:[%s218 + $0xf8] sm:$0x1]
      %v267 = vunpack.c.l.bf16 %v219
      %v268 = vunpack.c.l.bf16 %v220
      %v269 = vunpack.c.l.bf16 %v221
      %v270 = vunpack.c.l.bf16 %v222
      %v271 = vunpack.c.l.bf16 %v223
      %v272 = vunpack.c.l.bf16 %v224
      %v273 = vunpack.c.l.bf16 %v225
      %v274 = vunpack.c.l.bf16 %v226
      %v275 = vunpack.c.l.bf16 %v227
      %v276 = vunpack.c.l.bf16 %v228
      %v277 = vunpack.c.l.bf16 %v229
      %v278 = vunpack.c.l.bf16 %v230
      %v279 = vunpack.c.l.bf16 %v231
      %v280 = vunpack.c.l.bf16 %v232
      %v281 = vunpack.c.l.bf16 %v233
      %v282 = vunpack.c.l.bf16 %v234
      %v283 = vunpack.c.l.bf16 %v235
      %v284 = vunpack.c.l.bf16 %v236
      %v285 = vunpack.c.l.bf16 %v237
      %v286 = vunpack.c.l.bf16 %v238
      %v287 = vunpack.c.l.bf16 %v239
      %v288 = vunpack.c.l.bf16 %v240
      %v289 = vunpack.c.l.bf16 %v241
      %v290 = vunpack.c.l.bf16 %v242
      %v291 = vunpack.c.l.bf16 %v243
      %v292 = vunpack.c.l.bf16 %v244
      %v293 = vunpack.c.l.bf16 %v245
      %v294 = vunpack.c.l.bf16 %v246
      %v295 = vunpack.c.l.bf16 %v247
      %v296 = vunpack.c.l.bf16 %v248
      %v297 = vunpack.c.l.bf16 %v249
      %v298 = vunpack.c.l.bf16 %v250
      %v299 = vunpack.c.l.bf16 %v251
      %v300 = vunpack.c.l.bf16 %v252
      %v301 = vunpack.c.l.bf16 %v253
      %v302 = vunpack.c.l.bf16 %v254
      %v303 = vunpack.c.l.bf16 %v255
      %v304 = vunpack.c.l.bf16 %v256
      %v305 = vunpack.c.l.bf16 %v257
      %v306 = vunpack.c.l.bf16 %v258
      %v307 = vunpack.c.l.bf16 %v259
      %v308 = vunpack.c.l.bf16 %v260
      %v309 = vunpack.c.l.bf16 %v261
      %v310 = vunpack.c.l.bf16 %v262
      %v311 = vunpack.c.l.bf16 %v263
      %v312 = vunpack.c.l.bf16 %v264
      %v313 = vunpack.c.l.bf16 %v265
      %v314 = vunpack.c.l.bf16 %v266
      %v315 = vld [vmem:[%s2] sm:$0x1]
      %v317 = vlaneseq
      %v318 = vshrl.u32 %v317, 7
      %v319 = vsub.s32 0, %v318
      %v320 = vrot.slane %v315, %v319
      %v322 = vmul.f32 %v267, %v320
      %v323 = vmul.f32 %v268, %v320
      %v324 = vmul.f32 %v269, %v320
      %v325 = vmul.f32 %v270, %v320
      %v326 = vmul.f32 %v271, %v320
      %v327 = vmul.f32 %v272, %v320
      %v328 = vmul.f32 %v273, %v320
      %v329 = vmul.f32 %v274, %v320
      %v330 = vmul.f32 %v275, %v320
      %v331 = vmul.f32 %v276, %v320
      %v332 = vmul.f32 %v277, %v320
      %v333 = vmul.f32 %v278, %v320
      %v334 = vmul.f32 %v279, %v320
      %v335 = vmul.f32 %v280, %v320
      %v336 = vmul.f32 %v281, %v320
      %v337 = vmul.f32 %v282, %v320
      %v338 = vmul.f32 %v283, %v320
      %v339 = vmul.f32 %v284, %v320
      %v340 = vmul.f32 %v285, %v320
      %v341 = vmul.f32 %v286, %v320
      %v342 = vmul.f32 %v287, %v320
      %v343 = vmul.f32 %v288, %v320
      %v344 = vmul.f32 %v289, %v320
      %v345 = vmul.f32 %v290, %v320
      %v346 = vmul.f32 %v291, %v320
      %v347 = vmul.f32 %v292, %v320
      %v348 = vmul.f32 %v293, %v320
      %v349 = vmul.f32 %v294, %v320
      %v350 = vmul.f32 %v295, %v320
      %v351 = vmul.f32 %v296, %v320
      %v352 = vmul.f32 %v297, %v320
      %v353 = vmul.f32 %v298, %v320
      %v354 = vmul.f32 %v299, %v320
      %v355 = vmul.f32 %v300, %v320
      %v356 = vmul.f32 %v301, %v320
      %v357 = vmul.f32 %v302, %v320
      %v358 = vmul.f32 %v303, %v320
      %v359 = vmul.f32 %v304, %v320
      %v360 = vmul.f32 %v305, %v320
      %v361 = vmul.f32 %v306, %v320
      %v362 = vmul.f32 %v307, %v320
      %v363 = vmul.f32 %v308, %v320
      %v364 = vmul.f32 %v309, %v320
      %v365 = vmul.f32 %v310, %v320
      %v366 = vmul.f32 %v311, %v320
      %v367 = vmul.f32 %v312, %v320
      %v368 = vmul.f32 %v313, %v320
      %v369 = vmul.f32 %v314, %v320
      %v370 = vld [vmem:[%s3] sm:$0x1]
      %v372 = vlaneseq
      %v373 = vshrl.u32 %v372, 7
      %v374 = vsub.s32 0, %v373
      %v375 = vrot.slane %v370, %v374
      %v377 = vadd.f32 %v322, %v375
      %v378 = vadd.f32 %v323, %v375
      %v379 = vadd.f32 %v324, %v375
      %v380 = vadd.f32 %v325, %v375
      %v381 = vadd.f32 %v326, %v375
      %v382 = vadd.f32 %v327, %v375
      %v383 = vadd.f32 %v328, %v375
      %v384 = vadd.f32 %v329, %v375
      %v385 = vadd.f32 %v330, %v375
      %v386 = vadd.f32 %v331, %v375
      %v387 = vadd.f32 %v332, %v375
      %v388 = vadd.f32 %v333, %v375
      %v389 = vadd.f32 %v334, %v375
      %v390 = vadd.f32 %v335, %v375
      %v391 = vadd.f32 %v336, %v375
      %v392 = vadd.f32 %v337, %v375
      %v393 = vadd.f32 %v338, %v375
      %v394 = vadd.f32 %v339, %v375
      %v395 = vadd.f32 %v340, %v375
      %v396 = vadd.f32 %v341, %v375
      %v397 = vadd.f32 %v342, %v375
      %v398 = vadd.f32 %v343, %v375
      %v399 = vadd.f32 %v344, %v375
      %v400 = vadd.f32 %v345, %v375
      %v401 = vadd.f32 %v346, %v375
      %v402 = vadd.f32 %v347, %v375
      %v403 = vadd.f32 %v348, %v375
      %v404 = vadd.f32 %v349, %v375
      %v405 = vadd.f32 %v350, %v375
      %v406 = vadd.f32 %v351, %v375
      %v407 = vadd.f32 %v352, %v375
      %v408 = vadd.f32 %v353, %v375
      %v409 = vadd.f32 %v354, %v375
      %v410 = vadd.f32 %v355, %v375
      %v411 = vadd.f32 %v356, %v375
      %v412 = vadd.f32 %v357, %v375
      %v413 = vadd.f32 %v358, %v375
      %v414 = vadd.f32 %v359, %v375
      %v415 = vadd.f32 %v360, %v375
      %v416 = vadd.f32 %v361, %v375
      %v417 = vadd.f32 %v362, %v375
      %v418 = vadd.f32 %v363, %v375
      %v419 = vadd.f32 %v364, %v375
      %v420 = vadd.f32 %v365, %v375
      %v421 = vadd.f32 %v366, %v375
      %v422 = vadd.f32 %v367, %v375
      %v423 = vadd.f32 %v368, %v375
      %v424 = vadd.f32 %v369, %v375
      %v425 = vld [vmem:[%s212] sm:$0xff]
      %v426 = vld [vmem:[%s212 + $0x8] sm:$0xff]
      %v427 = vld [vmem:[%s212 + $0x10] sm:$0xff]
      %v428 = vld [vmem:[%s212 + $0x18] sm:$0xff]
      %v429 = vld [vmem:[%s212 + $0x20] sm:$0xff]
      %v430 = vld [vmem:[%s212 + $0x28] sm:$0xff]
      %v431 = vld [vmem:[%s212 + $0x30] sm:$0xff]
      %v432 = vld [vmem:[%s212 + $0x38] sm:$0xff]
      %v433 = vld [vmem:[%s212 + $0x40] sm:$0xff]
      %v434 = vld [vmem:[%s212 + $0x48] sm:$0xff]
      %v435 = vld [vmem:[%s212 + $0x50] sm:$0xff]
      %v436 = vld [vmem:[%s212 + $0x58] sm:$0xff]
      %v437 = vld [vmem:[%s212 + $0x60] sm:$0xff]
      %v438 = vld [vmem:[%s212 + $0x68] sm:$0xff]
      %v439 = vld [vmem:[%s212 + $0x70] sm:$0xff]
      %v440 = vld [vmem:[%s212 + $0x78] sm:$0xff]
      %v441 = vld [vmem:[%s212 + $0x80] sm:$0xff]
      %v442 = vld [vmem:[%s212 + $0x88] sm:$0xff]
      %v443 = vld [vmem:[%s212 + $0x90] sm:$0xff]
      %v444 = vld [vmem:[%s212 + $0x98] sm:$0xff]
      %v445 = vld [vmem:[%s212 + $0xa0] sm:$0xff]
      %v446 = vld [vmem:[%s212 + $0xa8] sm:$0xff]
      %v447 = vld [vmem:[%s212 + $0xb0] sm:$0xff]
      %v448 = vld [vmem:[%s212 + $0xb8] sm:$0xff]
      %v449 = vld [vmem:[%s212 + $0xc0] sm:$0xff]
      %v450 = vld [vmem:[%s212 + $0xc8] sm:$0xff]
      %v451 = vld [vmem:[%s212 + $0xd0] sm:$0xff]
      %v452 = vld [vmem:[%s212 + $0xd8] sm:$0xff]
      %v453 = vld [vmem:[%s212 + $0xe0] sm:$0xff]
      %v454 = vld [vmem:[%s212 + $0xe8] sm:$0xff]
      %v455 = vld [vmem:[%s212 + $0xf0] sm:$0xff]
      %v456 = vld [vmem:[%s212 + $0xf8] sm:$0xff]
      %vm489 = vcmask 1040384
      %v490 = vrot.slane %v425, 7
      %v491 = vrot.slane %v426, 7
      %v492 = vsel %vm489, %v490, %v491
      %v493 = vrot.slane %v427, 7
      %v494 = vrot.slane %v428, 7
      %v495 = vsel %vm489, %v493, %v494
      %v496 = vrot.slane %v429, 7
      %v497 = vrot.slane %v430, 7
      %v498 = vsel %vm489, %v496, %v497
      %v499 = vrot.slane %v431, 7
      %v500 = vrot.slane %v432, 7
      %v501 = vsel %vm489, %v499, %v500
      %v502 = vrot.slane %v433, 7
      %v503 = vrot.slane %v434, 7
      %v504 = vsel %vm489, %v502, %v503
      %v505 = vrot.slane %v435, 7
      %v506 = vrot.slane %v436, 7
      %v507 = vsel %vm489, %v505, %v506
      %v508 = vrot.slane %v437, 7
      %v509 = vrot.slane %v438, 7
      %v510 = vsel %vm489, %v508, %v509
      %v511 = vrot.slane %v439, 7
      %v512 = vrot.slane %v440, 7
      %v513 = vsel %vm489, %v511, %v512
      %v514 = vrot.slane %v441, 7
      %v515 = vrot.slane %v442, 7
      %v516 = vsel %vm489, %v514, %v515
      %v517 = vrot.slane %v443, 7
      %v518 = vrot.slane %v444, 7
      %v519 = vsel %vm489, %v517, %v518
      %v520 = vrot.slane %v445, 7
      %v521 = vrot.slane %v446, 7
      %v522 = vsel %vm489, %v520, %v521
      %v523 = vrot.slane %v447, 7
      %v524 = vrot.slane %v448, 7
      %v525 = vsel %vm489, %v523, %v524
      %v526 = vrot.slane %v449, 7
      %v527 = vrot.slane %v450, 7
      %v528 = vsel %vm489, %v526, %v527
      %v529 = vrot.slane %v451, 7
      %v530 = vrot.slane %v452, 7
      %v531 = vsel %vm489, %v529, %v530
      %v532 = vrot.slane %v453, 7
      %v533 = vrot.slane %v454, 7
      %v534 = vsel %vm489, %v532, %v533
      %v535 = vrot.slane %v455, 7
      %v536 = vrot.slane %v456, 7
      %v537 = vsel %vm489, %v535, %v536
      %v586 = vadd.f32 %v377, %v490
      %v587 = vadd.f32 %v378, %v492
      %v588 = vadd.f32 %v379, %v491
      %v589 = vadd.f32 %v380, %v493
      %v590 = vadd.f32 %v381, %v495
      %v591 = vadd.f32 %v382, %v494
      %v592 = vadd.f32 %v383, %v496
      %v593 = vadd.f32 %v384, %v498
      %v594 = vadd.f32 %v385, %v497
      %v595 = vadd.f32 %v386, %v499
      %v596 = vadd.f32 %v387, %v501
      %v597 = vadd.f32 %v388, %v500
      %v598 = vadd.f32 %v389, %v502
      %v599 = vadd.f32 %v390, %v504
      %v600 = vadd.f32 %v391, %v503
      %v601 = vadd.f32 %v392, %v505
      %v602 = vadd.f32 %v393, %v507
      %v603 = vadd.f32 %v394, %v506
      %v604 = vadd.f32 %v395, %v508
      %v605 = vadd.f32 %v396, %v510
      %v606 = vadd.f32 %v397, %v509
      %v607 = vadd.f32 %v398, %v511
      %v608 = vadd.f32 %v399, %v513
      %v609 = vadd.f32 %v400, %v512
      %v610 = vadd.f32 %v401, %v514
      %v611 = vadd.f32 %v402, %v516
      %v612 = vadd.f32 %v403, %v515
      %v613 = vadd.f32 %v404, %v517
      %v614 = vadd.f32 %v405, %v519
      %v615 = vadd.f32 %v406, %v518
      %v616 = vadd.f32 %v407, %v520
      %v617 = vadd.f32 %v408, %v522
      %v618 = vadd.f32 %v409, %v521
      %v619 = vadd.f32 %v410, %v523
      %v620 = vadd.f32 %v411, %v525
      %v621 = vadd.f32 %v412, %v524
      %v622 = vadd.f32 %v413, %v526
      %v623 = vadd.f32 %v414, %v528
      %v624 = vadd.f32 %v415, %v527
      %v625 = vadd.f32 %v416, %v529
      %v626 = vadd.f32 %v417, %v531
      %v627 = vadd.f32 %v418, %v530
      %v628 = vadd.f32 %v419, %v532
      %v629 = vadd.f32 %v420, %v534
      %v630 = vadd.f32 %v421, %v533
      %v631 = vadd.f32 %v422, %v535
      %v632 = vadd.f32 %v423, %v537
      %v633 = vadd.f32 %v424, %v536
      %v634 = vmax.f32 %v586, 0.0
      %v635 = vmax.f32 %v587, 0.0
      %v636 = vmax.f32 %v588, 0.0
      %v637 = vmax.f32 %v589, 0.0
      %v638 = vmax.f32 %v590, 0.0
      %v639 = vmax.f32 %v591, 0.0
      %v640 = vmax.f32 %v592, 0.0
      %v641 = vmax.f32 %v593, 0.0
      %v642 = vmax.f32 %v594, 0.0
      %v643 = vmax.f32 %v595, 0.0
      %v644 = vmax.f32 %v596, 0.0
      %v645 = vmax.f32 %v597, 0.0
      %v646 = vmax.f32 %v598, 0.0
      %v647 = vmax.f32 %v599, 0.0
      %v648 = vmax.f32 %v600, 0.0
      %v649 = vmax.f32 %v601, 0.0
      %v650 = vmax.f32 %v602, 0.0
      %v651 = vmax.f32 %v603, 0.0
      %v652 = vmax.f32 %v604, 0.0
      %v653 = vmax.f32 %v605, 0.0
      %v654 = vmax.f32 %v606, 0.0
      %v655 = vmax.f32 %v607, 0.0
      %v656 = vmax.f32 %v608, 0.0
      %v657 = vmax.f32 %v609, 0.0
      %v658 = vmax.f32 %v610, 0.0
      %v659 = vmax.f32 %v611, 0.0
      %v660 = vmax.f32 %v612, 0.0
      %v661 = vmax.f32 %v613, 0.0
      %v662 = vmax.f32 %v614, 0.0
      %v663 = vmax.f32 %v615, 0.0
      %v664 = vmax.f32 %v616, 0.0
      %v665 = vmax.f32 %v617, 0.0
      %v666 = vmax.f32 %v618, 0.0
      %v667 = vmax.f32 %v619, 0.0
      %v668 = vmax.f32 %v620, 0.0
      %v669 = vmax.f32 %v621, 0.0
      %v670 = vmax.f32 %v622, 0.0
      %v671 = vmax.f32 %v623, 0.0
      %v672 = vmax.f32 %v624, 0.0
      %v673 = vmax.f32 %v625, 0.0
      %v674 = vmax.f32 %v626, 0.0
      %v675 = vmax.f32 %v627, 0.0
      %v676 = vmax.f32 %v628, 0.0
      %v677 = vmax.f32 %v629, 0.0
      %v678 = vmax.f32 %v630, 0.0
      %v679 = vmax.f32 %v631, 0.0
      %v680 = vmax.f32 %v632, 0.0
      %v681 = vmax.f32 %v633, 0.0
      %682 = vst [vmem:[%s217 - $0x1] sm:$0xfe] %v634
      %683 = vst [vmem:[%s217 + $0x7] sm:$0xff] %v635
      %684 = vst [vmem:[%s217 + $0xf] sm:$0x1] %v636
      %685 = vst [vmem:[%s217 + $0xf] sm:$0xfe] %v637
      %686 = vst [vmem:[%s217 + $0x17] sm:$0xff] %v638
      %687 = vst [vmem:[%s217 + $0x1f] sm:$0x1] %v639
      %688 = vst [vmem:[%s217 + $0x1f] sm:$0xfe] %v640
      %689 = vst [vmem:[%s217 + $0x27] sm:$0xff] %v641
      %690 = vst [vmem:[%s217 + $0x2f] sm:$0x1] %v642
      %691 = vst [vmem:[%s217 + $0x2f] sm:$0xfe] %v643
      %692 = vst [vmem:[%s217 + $0x37] sm:$0xff] %v644
      %693 = vst [vmem:[%s217 + $0x3f] sm:$0x1] %v645
      %694 = vst [vmem:[%s217 + $0x3f] sm:$0xfe] %v646
      %695 = vst [vmem:[%s217 + $0x47] sm:$0xff] %v647
      %696 = vst [vmem:[%s217 + $0x4f] sm:$0x1] %v648
      %697 = vst [vmem:[%s217 + $0x4f] sm:$0xfe] %v649
      %698 = vst [vmem:[%s217 + $0x57] sm:$0xff] %v650
      %699 = vst [vmem:[%s217 + $0x5f] sm:$0x1] %v651
      %700 = vst [vmem:[%s217 + $0x5f] sm:$0xfe] %v652
      %701 = vst [vmem:[%s217 + $0x67] sm:$0xff] %v653
      %702 = vst [vmem:[%s217 + $0x6f] sm:$0x1] %v654
      %703 = vst [vmem:[%s217 + $0x6f] sm:$0xfe] %v655
      %704 = vst [vmem:[%s217 + $0x77] sm:$0xff] %v656
      %705 = vst [vmem:[%s217 + $0x7f] sm:$0x1] %v657
      %706 = vst [vmem:[%s217 + $0x7f] sm:$0xfe] %v658
      %707 = vst [vmem:[%s217 + $0x87] sm:$0xff] %v659
      %708 = vst [vmem:[%s217 + $0x8f] sm:$0x1] %v660
      %709 = vst [vmem:[%s217 + $0x8f] sm:$0xfe] %v661
      %710 = vst [vmem:[%s217 + $0x97] sm:$0xff] %v662
      %711 = vst [vmem:[%s217 + $0x9f] sm:$0x1] %v663
      %712 = vst [vmem:[%s217 + $0x9f] sm:$0xfe] %v664
      %713 = vst [vmem:[%s217 + $0xa7] sm:$0xff] %v665
      %714 = vst [vmem:[%s217 + $0xaf] sm:$0x1] %v666
      %715 = vst [vmem:[%s217 + $0xaf] sm:$0xfe] %v667
      %716 = vst [vmem:[%s217 + $0xb7] sm:$0xff] %v668
      %717 = vst [vmem:[%s217 + $0xbf] sm:$0x1] %v669
      %718 = vst [vmem:[%s217 + $0xbf] sm:$0xfe] %v670
      %719 = vst [vmem:[%s217 + $0xc7] sm:$0xff] %v671
      %720 = vst [vmem:[%s217 + $0xcf] sm:$0x1] %v672
      %721 = vst [vmem:[%s217 + $0xcf] sm:$0xfe] %v673
      %722 = vst [vmem:[%s217 + $0xd7] sm:$0xff] %v674
      %723 = vst [vmem:[%s217 + $0xdf] sm:$0x1] %v675
      %724 = vst [vmem:[%s217 + $0xdf] sm:$0xfe] %v676
      %725 = vst [vmem:[%s217 + $0xe7] sm:$0xff] %v677
      %726 = vst [vmem:[%s217 + $0xef] sm:$0x1] %v678
      %727 = vst [vmem:[%s217 + $0xef] sm:$0xfe] %v679
      %728 = vst [vmem:[%s217 + $0xf7] sm:$0xff] %v680
      %729 = vst [vmem:[%s217 + $0xff] sm:$0x1] %v681
      %p730 = scmp.lt.s32.totalorder %s15, 1
      %s731 = scalar_select %p730, %s15, 1
      %s732 = smul.addr %s731, 32
      %s733 = smul.addr %s732, 8
      %s734 = scalar_lea.vmem %s4, %s733
      // Predicated region
      $region37: #{bottleneck_forward.7} parent=35 // pred_check
        %p735 = pneg %p127
      $region38: #{bottleneck_forward.7} parent=35 // pred_check_branch
        %737 = sbr.rel (%p735) target = $region40
      $region39: #{bottleneck_forward.7} parent=35 // pred_region
        _
      $region40: #{bottleneck_forward.7} parent=35 // pred_fallthru
        _
    $region36: #{bottleneck_forward.7} parent=5 // pred_fallthru
      _
    %p738 = scmp.le.s32.totalorder 2, %s10
    // Predicated region
    $region41: #{bottleneck_forward.7} parent=5 // pred_check
      %p739 = pneg %p738
    $region42: #{bottleneck_forward.7} parent=5 // pred_check_branch
      %741 = sbr.rel (%p739) target = $region44
    $region43: #{bottleneck_forward.7} parent=5 // pred_region
      %s742 = ssub.s32 %s10, 2
      // Predicated region
      $region45: #{bottleneck_forward.7} parent=43 // pred_check
        %p743 = pneg %p133
      $region46: #{bottleneck_forward.7} parent=43 // pred_check_branch
        %745 = sbr.rel (%p743) target = $region48
      $region47: #{bottleneck_forward.7} parent=43 // pred_region
        %p746 = scmp.lt.s32.totalorder %s16, 1
        %s747 = scalar_select %p746, %s16, 1
        %s748 = smul.addr %s747, 32
        %s749 = smul.addr %s748, 8
        %s750 = scalar_lea.vmem %s4, %s749
      $region48: #{bottleneck_forward.7} parent=43 // pred_fallthru
        _
    $region44: #{bottleneck_forward.7} parent=5 // pred_fallthru
      _
  $region6: #{bottleneck_forward.7} parent=0 // loop_footer
    %s14 = sadd.s32 1, %s10
  $region7: #{bottleneck_forward.7} parent=0 // loop_footer_branch
    %9 = sbr.rel target = $region3
  $region8: #{bottleneck_forward.7} parent=0 // loop_exit
    _

// kernel: bottleneck_forward.4
$region0: #{bottleneck_forward.4}
  #allocation0 [shape = 'u32[]', space=smem, size = 0x4, offset = 0x4, fixed_abs, tag = 'smem constant byte address 0x4 - core index']
  #allocation1 [shape = 'u32[144,128]{1,0:T(1,128)}', space=vmem, size = 0x12000, scoped, tag = 'internal scratch']
  #allocation2 [shape = 'f32[656,128]{1,0:T(8,128)}', space=vmem, size = 0x52000, scoped, tag = 'scratch operand']
  %s0 = inlined_call_operand.vmem [shape: bf16[656,128], index: 0, kind: input, shape index: {}]
  %s1 = inlined_call_operand.vmem [shape: bf16[128,128], index: 1, kind: input, shape index: {}]
  %s2 = inlined_call_operand.vmem [shape: f32[1,128], index: 2, kind: input, shape index: {}]
  %s3 = inlined_call_operand.vmem [shape: bf16[656,128], index: 3, kind: output, shape index: {0}]
  %s4 = inlined_call_operand.vmem [shape: f32[1,2,128], index: 4, kind: output, shape index: {1}]
  %5 = xla_tuple %s3, %s4
  %s6 = sld [smem:[#allocation0]]
  $region38: #{bottleneck_forward.4} parent=0
    _
  %s8 = ssub.s32 1, %s6
  %s9 = scalar_select 0, %s8, %s6
  // Predicated region
  $region2: #{bottleneck_forward.4} parent=0 // pred_check
    _
  $region3: #{bottleneck_forward.4} parent=0 // pred_check_branch
    %11 = sbr.rel (0) target = $region5
  $region4: #{bottleneck_forward.4} parent=0 // pred_region
    _
  $region5: #{bottleneck_forward.4} parent=0 // pred_fallthru
    _
  // Predicated region
  $region6: #{bottleneck_forward.4} parent=0 // pred_check
    _
  $region7: #{bottleneck_forward.4} parent=0 // pred_check_branch
    %13 = sbr.rel (0) target = $region9
  $region8: #{bottleneck_forward.4} parent=0 // pred_region
    _
  $region9: #{bottleneck_forward.4} parent=0 // pred_fallthru
    _
  // Predicated region
  $region10: #{bottleneck_forward.4} parent=0 // pred_check
    _
  $region11: #{bottleneck_forward.4} parent=0 // pred_check_branch
    %15 = sbr.rel (0) target = $region13
  $region12: #{bottleneck_forward.4} parent=0 // pred_region
    _
  $region13: #{bottleneck_forward.4} parent=0 // pred_fallthru
    _
  %p17 = scmp.eq.s32.totalorder 0, 0
  // Predicated region
  $region14: #{bottleneck_forward.4} parent=0 // pred_check
    %p18 = pneg %p17
  $region15: #{bottleneck_forward.4} parent=0 // pred_check_branch
    %20 = sbr.rel (%p18) target = $region17
  $region16: #{bottleneck_forward.4} parent=0 // pred_region
    %21 = vst [vmem:[#allocation2] sm:$0xff] 0.0
    %22 = vst [vmem:[#allocation2 + $0x8] sm:$0xff] 0.0
    %23 = vst [vmem:[#allocation2 + $0x10] sm:$0xff] 0.0
    %24 = vst [vmem:[#allocation2 + $0x18] sm:$0xff] 0.0
    %25 = vst [vmem:[#allocation2 + $0x20] sm:$0xff] 0.0
    %26 = vst [vmem:[#allocation2 + $0x28] sm:$0xff] 0.0
    %27 = vst [vmem:[#allocation2 + $0x30] sm:$0xff] 0.0
    %28 = vst [vmem:[#allocation2 + $0x38] sm:$0xff] 0.0
    %29 = vst [vmem:[#allocation2 + $0x40] sm:$0xff] 0.0
    %30 = vst [vmem:[#allocation2 + $0x48] sm:$0xff] 0.0
    %31 = vst [vmem:[#allocation2 + $0x50] sm:$0xff] 0.0
    %32 = vst [vmem:[#allocation2 + $0x58] sm:$0xff] 0.0
    %33 = vst [vmem:[#allocation2 + $0x60] sm:$0xff] 0.0
    %34 = vst [vmem:[#allocation2 + $0x68] sm:$0xff] 0.0
    %35 = vst [vmem:[#allocation2 + $0x70] sm:$0xff] 0.0
    %36 = vst [vmem:[#allocation2 + $0x78] sm:$0xff] 0.0
    %37 = vst [vmem:[#allocation2 + $0x80] sm:$0xff] 0.0
    %38 = vst [vmem:[#allocation2 + $0x88] sm:$0xff] 0.0
    %39 = vst [vmem:[#allocation2 + $0x90] sm:$0xff] 0.0
    %40 = vst [vmem:[#allocation2 + $0x98] sm:$0xff] 0.0
    %41 = vst [vmem:[#allocation2 + $0xa0] sm:$0xff] 0.0
    %42 = vst [vmem:[#allocation2 + $0xa8] sm:$0xff] 0.0
    %43 = vst [vmem:[#allocation2 + $0xb0] sm:$0xff] 0.0
    %44 = vst [vmem:[#allocation2 + $0xb8] sm:$0xff] 0.0
    %45 = vst [vmem:[#allocation2 + $0xc0] sm:$0xff] 0.0
    %46 = vst [vmem:[#allocation2 + $0xc8] sm:$0xff] 0.0
    %47 = vst [vmem:[#allocation2 + $0xd0] sm:$0xff] 0.0
    %48 = vst [vmem:[#allocation2 + $0xd8] sm:$0xff] 0.0
    %49 = vst [vmem:[#allocation2 + $0xe0] sm:$0xff] 0.0
    %50 = vst [vmem:[#allocation2 + $0xe8] sm:$0xff] 0.0
    %51 = vst [vmem:[#allocation2 + $0xf0] sm:$0xff] 0.0
    %52 = vst [vmem:[#allocation2 + $0xf8] sm:$0xff] 0.0
    %53 = vst [vmem:[#allocation2 + $0x100] sm:$0xff] 0.0
    %54 = vst [vmem:[#allocation2 + $0x108] sm:$0xff] 0.0
    %55 = vst [vmem:[#allocation2 + $0x110] sm:$0xff] 0.0
    %56 = vst [vmem:[#allocation2 + $0x118] sm:$0xff] 0.0
    %57 = vst [vmem:[#allocation2 + $0x120] sm:$0xff] 0.0
    %58 = vst [vmem:[#allocation2 + $0x128] sm:$0xff] 0.0
    %59 = vst [vmem:[#allocation2 + $0x130] sm:$0xff] 0.0
    %60 = vst [vmem:[#allocation2 + $0x138] sm:$0xff] 0.0
    %61 = vst [vmem:[#allocation2 + $0x140] sm:$0xff] 0.0
    %62 = vst [vmem:[#allocation2 + $0x148] sm:$0xff] 0.0
    %63 = vst [vmem:[#allocation2 + $0x150] sm:$0xff] 0.0
    %64 = vst [vmem:[#allocation2 + $0x158] sm:$0xff] 0.0
    %65 = vst [vmem:[#allocation2 + $0x160] sm:$0xff] 0.0
    %66 = vst [vmem:[#allocation2 + $0x168] sm:$0xff] 0.0
    %67 = vst [vmem:[#allocation2 + $0x170] sm:$0xff] 0.0
    %68 = vst [vmem:[#allocation2 + $0x178] sm:$0xff] 0.0
    %69 = vst [vmem:[#allocation2 + $0x180] sm:$0xff] 0.0
    %70 = vst [vmem:[#allocation2 + $0x188] sm:$0xff] 0.0
    %71 = vst [vmem:[#allocation2 + $0x190] sm:$0xff] 0.0
    %72 = vst [vmem:[#allocation2 + $0x198] sm:$0xff] 0.0
    %73 = vst [vmem:[#allocation2 + $0x1a0] sm:$0xff] 0.0
    %74 = vst [vmem:[#allocation2 + $0x1a8] sm:$0xff] 0.0
    %75 = vst [vmem:[#allocation2 + $0x1b0] sm:$0xff] 0.0
    %76 = vst [vmem:[#allocation2 + $0x1b8] sm:$0xff] 0.0
    %77 = vst [vmem:[#allocation2 + $0x1c0] sm:$0xff] 0.0
    %78 = vst [vmem:[#allocation2 + $0x1c8] sm:$0xff] 0.0
    %79 = vst [vmem:[#allocation2 + $0x1d0] sm:$0xff] 0.0
    %80 = vst [vmem:[#allocation2 + $0x1d8] sm:$0xff] 0.0
    %81 = vst [vmem:[#allocation2 + $0x1e0] sm:$0xff] 0.0
    %82 = vst [vmem:[#allocation2 + $0x1e8] sm:$0xff] 0.0
    %83 = vst [vmem:[#allocation2 + $0x1f0] sm:$0xff] 0.0
    %84 = vst [vmem:[#allocation2 + $0x1f8] sm:$0xff] 0.0
    %85 = vst [vmem:[#allocation2 + $0x200] sm:$0xff] 0.0
    %86 = vst [vmem:[#allocation2 + $0x208] sm:$0xff] 0.0
    %87 = vst [vmem:[#allocation2 + $0x210] sm:$0xff] 0.0
    %88 = vst [vmem:[#allocation2 + $0x218] sm:$0xff] 0.0
    %89 = vst [vmem:[#allocation2 + $0x220] sm:$0xff] 0.0
    %90 = vst [vmem:[#allocation2 + $0x228] sm:$0xff] 0.0
    %91 = vst [vmem:[#allocation2 + $0x230] sm:$0xff] 0.0
    %92 = vst [vmem:[#allocation2 + $0x238] sm:$0xff] 0.0
    %93 = vst [vmem:[#allocation2 + $0x240] sm:$0xff] 0.0
    %94 = vst [vmem:[#allocation2 + $0x248] sm:$0xff] 0.0
    %95 = vst [vmem:[#allocation2 + $0x250] sm:$0xff] 0.0
    %96 = vst [vmem:[#allocation2 + $0x258] sm:$0xff] 0.0
    %97 = vst [vmem:[#allocation2 + $0x260] sm:$0xff] 0.0
    %98 = vst [vmem:[#allocation2 + $0x268] sm:$0xff] 0.0
    %99 = vst [vmem:[#allocation2 + $0x270] sm:$0xff] 0.0
    %100 = vst [vmem:[#allocation2 + $0x278] sm:$0xff] 0.0
    %101 = vst [vmem:[#allocation2 + $0x280] sm:$0xff] 0.0
    %102 = vst [vmem:[#allocation2 + $0x288] sm:$0xff] 0.0
  $region17: #{bottleneck_forward.4} parent=0 // pred_fallthru
    _
  %v103 = vld [vmem:[%s0] sm:$0xf]
  %v104 = vld [vmem:[%s0 + $0x4] sm:$0xf]
  %v105 = vld [vmem:[%s0 + $0x8] sm:$0xf]
  %v106 = vld [vmem:[%s0 + $0xc] sm:$0xf]
  %v107 = vld [vmem:[%s0 + $0x10] sm:$0xf]
  %v108 = vld [vmem:[%s0 + $0x14] sm:$0xf]
  %v109 = vld [vmem:[%s0 + $0x18] sm:$0xf]
  %v110 = vld [vmem:[%s0 + $0x1c] sm:$0xf]
  %v111 = vld [vmem:[%s0 + $0x20] sm:$0xf]
  %v112 = vld [vmem:[%s0 + $0x24] sm:$0xf]
  %v113 = vld [vmem:[%s0 + $0x28] sm:$0xf]
  %v114 = vld [vmem:[%s0 + $0x2c] sm:$0xf]
  %v115 = vld [vmem:[%s0 + $0x30] sm:$0xf]
  %v116 = vld [vmem:[%s0 + $0x34] sm:$0xf]
  %v117 = vld [vmem:[%s0 + $0x38] sm:$0xf]
  %v118 = vld [vmem:[%s0 + $0x3c] sm:$0xf]
  %v119 = vld [vmem:[%s0 + $0x40] sm:$0xf]
  %v120 = vld [vmem:[%s0 + $0x44] sm:$0xf]
  %v121 = vld [vmem:[%s0 + $0x48] sm:$0xf]
  %v122 = vld [vmem:[%s0 + $0x4c] sm:$0xf]
  %v123 = vld [vmem:[%s0 + $0x50] sm:$0xf]
  %v124 = vld [vmem:[%s0 + $0x54] sm:$0xf]
  %v125 = vld [vmem:[%s0 + $0x58] sm:$0xf]
  %v126 = vld [vmem:[%s0 + $0x5c] sm:$0xf]
  %v127 = vld [vmem:[%s0 + $0x60] sm:$0xf]
  %v128 = vld [vmem:[%s0 + $0x64] sm:$0xf]
  %v129 = vld [vmem:[%s0 + $0x68] sm:$0xf]
  %v130 = vld [vmem:[%s0 + $0x6c] sm:$0xf]
  %v131 = vld [vmem:[%s0 + $0x70] sm:$0xf]
  %v132 = vld [vmem:[%s0 + $0x74] sm:$0xf]
  %v133 = vld [vmem:[%s0 + $0x78] sm:$0xf]
  %v134 = vld [vmem:[%s0 + $0x7c] sm:$0xf]
  %v135 = vld [vmem:[%s0 + $0x80] sm:$0xf]
  %v136 = vld [vmem:[%s0 + $0x84] sm:$0xf]
  %v137 = vld [vmem:[%s0 + $0x88] sm:$0xf]
  %v138 = vld [vmem:[%s0 + $0x8c] sm:$0xf]
  %v139 = vld [vmem:[%s0 + $0x90] sm:$0xf]
  %v140 = vld [vmem:[%s0 + $0x94] sm:$0xf]
  %v141 = vld [vmem:[%s0 + $0x98] sm:$0xf]
  %v142 = vld [vmem:[%s0 + $0x9c] sm:$0xf]
  %v143 = vld [vmem:[%s0 + $0xa0] sm:$0xf]
  %v144 = vld [vmem:[%s0 + $0xa4] sm:$0xf]
  %v145 = vld [vmem:[%s0 + $0xa8] sm:$0xf]
  %v146 = vld [vmem:[%s0 + $0xac] sm:$0xf]
  %v147 = vld [vmem:[%s0 + $0xb0] sm:$0xf]
  %v148 = vld [vmem:[%s0 + $0xb4] sm:$0xf]
  %v149 = vld [vmem:[%s0 + $0xb8] sm:$0xf]
  %v150 = vld [vmem:[%s0 + $0xbc] sm:$0xf]
  %v151 = vld [vmem:[%s0 + $0xc0] sm:$0xf]
  %v152 = vld [vmem:[%s0 + $0xc4] sm:$0xf]
  %v153 = vld [vmem:[%s0 + $0xc8] sm:$0xf]
  %v154 = vld [vmem:[%s0 + $0xcc] sm:$0xf]
  %v155 = vld [vmem:[%s0 + $0xd0] sm:$0xf]
  %v156 = vld [vmem:[%s0 + $0xd4] sm:$0xf]
  %v157 = vld [vmem:[%s0 + $0xd8] sm:$0xf]
  %v158 = vld [vmem:[%s0 + $0xdc] sm:$0xf]
  %v159 = vld [vmem:[%s0 + $0xe0] sm:$0xf]
  %v160 = vld [vmem:[%s0 + $0xe4] sm:$0xf]
  %v161 = vld [vmem:[%s0 + $0xe8] sm:$0xf]
  %v162 = vld [vmem:[%s0 + $0xec] sm:$0xf]
  %v163 = vld [vmem:[%s0 + $0xf0] sm:$0xf]
  %v164 = vld [vmem:[%s0 + $0xf4] sm:$0xf]
  %v165 = vld [vmem:[%s0 + $0xf8] sm:$0xf]
  %v166 = vld [vmem:[%s0 + $0xfc] sm:$0xf]
  %v167 = vld [vmem:[%s0 + $0x100] sm:$0xf]
  %v168 = vld [vmem:[%s0 + $0x104] sm:$0xf]
  %v169 = vld [vmem:[%s0 + $0x108] sm:$0xf]
  %v170 = vld [vmem:[%s0 + $0x10c] sm:$0xf]
  %v171 = vld [vmem:[%s0 + $0x110] sm:$0xf]
  %v172 = vld [vmem:[%s0 + $0x114] sm:$0xf]
  %v173 = vld [vmem:[%s0 + $0x118] sm:$0xf]
  %v174 = vld [vmem:[%s0 + $0x11c] sm:$0xf]
  %v175 = vld [vmem:[%s0 + $0x120] sm:$0xf]
  %v176 = vld [vmem:[%s0 + $0x124] sm:$0xf]
  %v177 = vld [vmem:[%s0 + $0x128] sm:$0xf]
  %v178 = vld [vmem:[%s0 + $0x12c] sm:$0xf]
  %v179 = vld [vmem:[%s0 + $0x130] sm:$0xf]
  %v180 = vld [vmem:[%s0 + $0x134] sm:$0xf]
  %v181 = vld [vmem:[%s0 + $0x138] sm:$0xf]
  %v182 = vld [vmem:[%s0 + $0x13c] sm:$0xf]
  %v183 = vld [vmem:[%s0 + $0x140] sm:$0xf]
  %v184 = vld [vmem:[%s0 + $0x144] sm:$0xf]
  %v185 = vld [vmem:[#allocation2] sm:$0xff]
  %v186 = vld [vmem:[#allocation2 + $0x8] sm:$0xff]
  %v187 = vld [vmem:[#allocation2 + $0x10] sm:$0xff]
  %v188 = vld [vmem:[#allocation2 + $0x18] sm:$0xff]
  %v189 = vld [vmem:[#allocation2 + $0x20] sm:$0xff]
  %v190 = vld [vmem:[#allocation2 + $0x28] sm:$0xff]
  %v191 = vld [vmem:[#allocation2 + $0x30] sm:$0xff]
  %v192 = vld [vmem:[#allocation2 + $0x38] sm:$0xff]
  %v193 = vld [vmem:[#allocation2 + $0x40] sm:$0xff]
  %v194 = vld [vmem:[#allocation2 + $0x48] sm:$0xff]
  %v195 = vld [vmem:[#allocation2 + $0x50] sm:$0xff]
  %v196 = vld [vmem:[#allocation2 + $0x58] sm:$0xff]
  %v197 = vld [vmem:[#allocation2 + $0x60] sm:$0xff]
  %v198 = vld [vmem:[#allocation2 + $0x68] sm:$0xff]
  %v199 = vld [vmem:[#allocation2 + $0x70] sm:$0xff]
  %v200 = vld [vmem:[#allocation2 + $0x78] sm:$0xff]
  %v201 = vld [vmem:[#allocation2 + $0x80] sm:$0xff]
  %v202 = vld [vmem:[#allocation2 + $0x88] sm:$0xff]
  %v203 = vld [vmem:[#allocation2 + $0x90] sm:$0xff]
  %v204 = vld [vmem:[#allocation2 + $0x98] sm:$0xff]
  %v205 = vld [vmem:[#allocation2 + $0xa0] sm:$0xff]
  %v206 = vld [vmem:[#allocation2 + $0xa8] sm:$0xff]
  %v207 = vld [vmem:[#allocation2 + $0xb0] sm:$0xff]
  %v208 = vld [vmem:[#allocation2 + $0xb8] sm:$0xff]
  %v209 = vld [vmem:[#allocation2 + $0xc0] sm:$0xff]
  %v210 = vld [vmem:[#allocation2 + $0xc8] sm:$0xff]
  %v211 = vld [vmem:[#allocation2 + $0xd0] sm:$0xff]
  %v212 = vld [vmem:[#allocation2 + $0xd8] sm:$0xff]
  %v213 = vld [vmem:[#allocation2 + $0xe0] sm:$0xff]
  %v214 = vld [vmem:[#allocation2 + $0xe8] sm:$0xff]
  %v215 = vld [vmem:[#allocation2 + $0xf0] sm:$0xff]
  %v216 = vld [vmem:[#allocation2 + $0xf8] sm:$0xff]
  %v217 = vld [vmem:[#allocation2 + $0x100] sm:$0xff]
  %v218 = vld [vmem:[#allocation2 + $0x108] sm:$0xff]
  %v219 = vld [vmem:[#allocation2 + $0x110] sm:$0xff]
  %v220 = vld [vmem:[#allocation2 + $0x118] sm:$0xff]
  %v221 = vld [vmem:[#allocation2 + $0x120] sm:$0xff]
  %v222 = vld [vmem:[#allocation2 + $0x128] sm:$0xff]
  %v223 = vld [vmem:[#allocation2 + $0x130] sm:$0xff]
  %v224 = vld [vmem:[#allocation2 + $0x138] sm:$0xff]
  %v225 = vld [vmem:[#allocation2 + $0x140] sm:$0xff]
  %v226 = vld [vmem:[#allocation2 + $0x148] sm:$0xff]
  %v227 = vld [vmem:[#allocation2 + $0x150] sm:$0xff]
  %v228 = vld [vmem:[#allocation2 + $0x158] sm:$0xff]
  %v229 = vld [vmem:[#allocation2 + $0x160] sm:$0xff]
  %v230 = vld [vmem:[#allocation2 + $0x168] sm:$0xff]
  %v231 = vld [vmem:[#allocation2 + $0x170] sm:$0xff]
  %v232 = vld [vmem:[#allocation2 + $0x178] sm:$0xff]
  %v233 = vld [vmem:[#allocation2 + $0x180] sm:$0xff]
  %v234 = vld [vmem:[#allocation2 + $0x188] sm:$0xff]
  %v235 = vld [vmem:[#allocation2 + $0x190] sm:$0xff]
  %v236 = vld [vmem:[#allocation2 + $0x198] sm:$0xff]
  %v237 = vld [vmem:[#allocation2 + $0x1a0] sm:$0xff]
  %v238 = vld [vmem:[#allocation2 + $0x1a8] sm:$0xff]
  %v239 = vld [vmem:[#allocation2 + $0x1b0] sm:$0xff]
  %v240 = vld [vmem:[#allocation2 + $0x1b8] sm:$0xff]
  %v241 = vld [vmem:[#allocation2 + $0x1c0] sm:$0xff]
  %v242 = vld [vmem:[#allocation2 + $0x1c8] sm:$0xff]
  %v243 = vld [vmem:[#allocation2 + $0x1d0] sm:$0xff]
  %v244 = vld [vmem:[#allocation2 + $0x1d8] sm:$0xff]
  %v245 = vld [vmem:[#allocation2 + $0x1e0] sm:$0xff]
  %v246 = vld [vmem:[#allocation2 + $0x1e8] sm:$0xff]
  %v247 = vld [vmem:[#allocation2 + $0x1f0] sm:$0xff]
  %v248 = vld [vmem:[#allocation2 + $0x1f8] sm:$0xff]
  %v249 = vld [vmem:[#allocation2 + $0x200] sm:$0xff]
  %v250 = vld [vmem:[#allocation2 + $0x208] sm:$0xff]
  %v251 = vld [vmem:[#allocation2 + $0x210] sm:$0xff]
  %v252 = vld [vmem:[#allocation2 + $0x218] sm:$0xff]
  %v253 = vld [vmem:[#allocation2 + $0x220] sm:$0xff]
  %v254 = vld [vmem:[#allocation2 + $0x228] sm:$0xff]
  %v255 = vld [vmem:[#allocation2 + $0x230] sm:$0xff]
  %v256 = vld [vmem:[#allocation2 + $0x238] sm:$0xff]
  %v257 = vld [vmem:[#allocation2 + $0x240] sm:$0xff]
  %v258 = vld [vmem:[#allocation2 + $0x248] sm:$0xff]
  %v259 = vld [vmem:[#allocation2 + $0x250] sm:$0xff]
  %v260 = vld [vmem:[#allocation2 + $0x258] sm:$0xff]
  %v261 = vld [vmem:[#allocation2 + $0x260] sm:$0xff]
  %v262 = vld [vmem:[#allocation2 + $0x268] sm:$0xff]
  %v263 = vld [vmem:[#allocation2 + $0x270] sm:$0xff]
  %v264 = vld [vmem:[#allocation2 + $0x278] sm:$0xff]
  %v265 = vld [vmem:[#allocation2 + $0x280] sm:$0xff]
  %v266 = vld [vmem:[#allocation2 + $0x288] sm:$0xff]
  %v267 = vld [vmem:[%s1] sm:$0xf]
  %v268 = vld [vmem:[%s1 + $0x4] sm:$0xf]
  %v269 = vld [vmem:[%s1 + $0x8] sm:$0xf]
  %v270 = vld [vmem:[%s1 + $0xc] sm:$0xf]
  %v271 = vld [vmem:[%s1 + $0x10] sm:$0xf]
  %v272 = vld [vmem:[%s1 + $0x14] sm:$0xf]
  %v273 = vld [vmem:[%s1 + $0x18] sm:$0xf]
  %v274 = vld [vmem:[%s1 + $0x1c] sm:$0xf]
  %v275 = vld [vmem:[%s1 + $0x20] sm:$0xf]
  %v276 = vld [vmem:[%s1 + $0x24] sm:$0xf]
  %v277 = vld [vmem:[%s1 + $0x28] sm:$0xf]
  %v278 = vld [vmem:[%s1 + $0x2c] sm:$0xf]
  %v279 = vld [vmem:[%s1 + $0x30] sm:$0xf]
  %v280 = vld [vmem:[%s1 + $0x34] sm:$0xf]
  %v281 = vld [vmem:[%s1 + $0x38] sm:$0xf]
  %v282 = vld [vmem:[%s1 + $0x3c] sm:$0xf]
  %v365 = vunpack.c.l.b16 %v103
  %v366 = vunpack.c.l.b16 %v104
  %v367 = vunpack.c.l.b16 %v105
  %v368 = vunpack.c.l.b16 %v106
  %v369 = vunpack.c.l.b16 %v107
  %v370 = vunpack.c.l.b16 %v108
  %v371 = vunpack.c.l.b16 %v109
  %v372 = vunpack.c.l.b16 %v110
  %v373 = vunpack.c.l.b16 %v111
  %v374 = vunpack.c.l.b16 %v112
  %v375 = vunpack.c.l.b16 %v113
  %v376 = vunpack.c.l.b16 %v114
  %v377 = vunpack.c.l.b16 %v115
  %v378 = vunpack.c.l.b16 %v116
  %v379 = vunpack.c.l.b16 %v117
  %v380 = vunpack.c.l.b16 %v118
  %v381 = vunpack.c.l.b16 %v119
  %v382 = vunpack.c.l.b16 %v120
  %v383 = vunpack.c.l.b16 %v121
  %v384 = vunpack.c.l.b16 %v122
  %v385 = vunpack.c.l.b16 %v123
  %v386 = vunpack.c.l.b16 %v124
  %v387 = vunpack.c.l.b16 %v125
  %v388 = vunpack.c.l.b16 %v126
  %v389 = vunpack.c.l.b16 %v127
  %v390 = vunpack.c.l.b16 %v128
  %v391 = vunpack.c.l.b16 %v129
  %v392 = vunpack.c.l.b16 %v130
  %v393 = vunpack.c.l.b16 %v131
  %v394 = vunpack.c.l.b16 %v132
  %v395 = vunpack.c.l.b16 %v133
  %v396 = vunpack.c.l.b16 %v134
  %v397 = vunpack.c.l.b16 %v135
  %v398 = vunpack.c.l.b16 %v136
  %v399 = vunpack.c.l.b16 %v137
  %v400 = vunpack.c.l.b16 %v138
  %v401 = vunpack.c.l.b16 %v139
  %v402 = vunpack.c.l.b16 %v140
  %v403 = vunpack.c.l.b16 %v141
  %v404 = vunpack.c.l.b16 %v142
  %v405 = vunpack.c.l.b16 %v143
  %v406 = vunpack.c.l.b16 %v144
  %v407 = vunpack.c.l.b16 %v145
  %v408 = vunpack.c.l.b16 %v146
  %v409 = vunpack.c.l.b16 %v147
  %v410 = vunpack.c.l.b16 %v148
  %v411 = vunpack.c.l.b16 %v149
  %v412 = vunpack.c.l.b16 %v150
  %v413 = vunpack.c.l.b16 %v151
  %v414 = vunpack.c.l.b16 %v152
  %v415 = vunpack.c.l.b16 %v153
  %v416 = vunpack.c.l.b16 %v154
  %v417 = vunpack.c.l.b16 %v155
  %v418 = vunpack.c.l.b16 %v156
  %v419 = vunpack.c.l.b16 %v157
  %v420 = vunpack.c.l.b16 %v158
  %v421 = vunpack.c.l.b16 %v159
  %v422 = vunpack.c.l.b16 %v160
  %v423 = vunpack.c.l.b16 %v161
  %v424 = vunpack.c.l.b16 %v162
  %v425 = vunpack.c.l.b16 %v163
  %v426 = vunpack.c.l.b16 %v164
  %v427 = vunpack.c.l.b16 %v165
  %v428 = vunpack.c.l.b16 %v166
  %v429 = vunpack.c.l.b16 %v167
  %v430 = vunpack.c.l.b16 %v168
  %v431 = vunpack.c.l.b16 %v169
  %v432 = vunpack.c.l.b16 %v170
  %v433 = vunpack.c.l.b16 %v171
  %v434 = vunpack.c.l.b16 %v172
  %v435 = vunpack.c.l.b16 %v173
  %v436 = vunpack.c.l.b16 %v174
  %v437 = vunpack.c.l.b16 %v175
  %v438 = vunpack.c.l.b16 %v176
  %v439 = vunpack.c.l.b16 %v177
  %v440 = vunpack.c.l.b16 %v178
  %v441 = vunpack.c.l.b16 %v179
  %v442 = vunpack.c.l.b16 %v180
  %v443 = vunpack.c.l.b16 %v181
  %v444 = vunpack.c.l.b16 %v182
  %v445 = vunpack.c.l.b16 %v183
  %v446 = vunpack.c.l.b16 %v184
  %v447 = vpack.c.b16 %v366, %v365
  %v448 = vpack.c.b16 %v368, %v367
  %v449 = vpack.c.b16 %v370, %v369
  %v450 = vpack.c.b16 %v372, %v371
  %v451 = vpack.c.b16 %v374, %v373
  %v452 = vpack.c.b16 %v376, %v375
  %v453 = vpack.c.b16 %v378, %v377
  %v454 = vpack.c.b16 %v380, %v379
  %v455 = vpack.c.b16 %v382, %v381
  %v456 = vpack.c.b16 %v384, %v383
  %v457 = vpack.c.b16 %v386, %v385
  %v458 = vpack.c.b16 %v388, %v387
  %v459 = vpack.c.b16 %v390, %v389
  %v460 = vpack.c.b16 %v392, %v391
  %v461 = vpack.c.b16 %v394, %v393
  %v462 = vpack.c.b16 %v396, %v395
  %v463 = vpack.c.b16 %v398, %v397
  %v464 = vpack.c.b16 %v400, %v399
  %v465 = vpack.c.b16 %v402, %v401
  %v466 = vpack.c.b16 %v404, %v403
  %v467 = vpack.c.b16 %v406, %v405
  %v468 = vpack.c.b16 %v408, %v407
  %v469 = vpack.c.b16 %v410, %v409
  %v470 = vpack.c.b16 %v412, %v411
  %v471 = vpack.c.b16 %v414, %v413
  %v472 = vpack.c.b16 %v416, %v415
  %v473 = vpack.c.b16 %v418, %v417
  %v474 = vpack.c.b16 %v420, %v419
  %v475 = vpack.c.b16 %v422, %v421
  %v476 = vpack.c.b16 %v424, %v423
  %v477 = vpack.c.b16 %v426, %v425
  %v478 = vpack.c.b16 %v428, %v427
  %v479 = vpack.c.b16 %v430, %v429
  %v480 = vpack.c.b16 %v432, %v431
  %v481 = vpack.c.b16 %v434, %v433
  %v482 = vpack.c.b16 %v436, %v435
  %v483 = vpack.c.b16 %v438, %v437
  %v484 = vpack.c.b16 %v440, %v439
  %v485 = vpack.c.b16 %v442, %v441
  %v486 = vpack.c.b16 %v444, %v443
  %v487 = vpack.c.b16 %v446, %v445
  %v545 = vunpack.c.l.b16 %v267
  %v546 = vunpack.c.l.b16 %v268
  %v547 = vunpack.c.l.b16 %v269
  %v548 = vunpack.c.l.b16 %v270
  %v549 = vunpack.c.l.b16 %v271
  %v550 = vunpack.c.l.b16 %v272
  %v551 = vunpack.c.l.b16 %v273
  %v552 = vunpack.c.l.b16 %v274
  %v553 = vunpack.c.l.b16 %v275
  %v554 = vunpack.c.l.b16 %v276
  %v555 = vunpack.c.l.b16 %v277
  %v556 = vunpack.c.l.b16 %v278
  %v557 = vunpack.c.l.b16 %v279
  %v558 = vunpack.c.l.b16 %v280
  %v559 = vunpack.c.l.b16 %v281
  %v560 = vunpack.c.l.b16 %v282
  %v561 = vpack.c.b16 %v546, %v545
  %v562 = vpack.c.b16 %v548, %v547
  %v563 = vpack.c.b16 %v550, %v549
  %v564 = vpack.c.b16 %v552, %v551
  %v565 = vpack.c.b16 %v554, %v553
  %v566 = vpack.c.b16 %v556, %v555
  %v567 = vpack.c.b16 %v558, %v557
  %v568 = vpack.c.b16 %v560, %v559
  %577 = vmatprep.subr.bf16.mxu0 0
  %578 = vmatpush1.bf16.msra.mxu0 %v561
  %579 = vmatprep.subr.bf16.mxu0 0
  %580 = vmatpush1.bf16.msra.mxu0 %v562
  %581 = vmatprep.subr.bf16.mxu0 0
  %582 = vmatpush1.bf16.msra.mxu0 %v563
  %583 = vmatprep.subr.bf16.mxu0 0
  %584 = vmatpush1.bf16.msra.mxu0 %v564
  %585 = vmatprep.subr.bf16.mxu0 0
  %586 = vmatpush1.bf16.msra.mxu0 %v565
  %587 = vmatprep.subr.bf16.mxu0 0
  %588 = vmatpush1.bf16.msra.mxu0 %v566
  %589 = vmatprep.subr.bf16.mxu0 0
  %590 = vmatpush1.bf16.msra.mxu0 %v567
  %591 = vmatprep.subr.bf16.mxu0 0
  %592 = vmatpush1.bf16.msra.mxu0 %v568
  %593 = vmatprep.subr.bf16.mxu0 0
  %594 = vmatpush1.bf16.msra.mxu0 0
  %595 = vmatprep.subr.bf16.mxu0 0
  %596 = vmatpush1.bf16.msra.mxu0 0
  %597 = vmatprep.subr.bf16.mxu0 0
  %598 = vmatpush1.bf16.msra.mxu0 0
  %599 = vmatprep.subr.bf16.mxu0 0
  %600 = vmatpush1.bf16.msra.mxu0 0
  %601 = vmatprep.subr.bf16.mxu0 0
  %602 = vmatpush1.bf16.msra.mxu0 0
  %603 = vmatprep.subr.bf16.mxu0 0
  %604 = vmatpush1.bf16.msra.mxu0 0
  %605 = vmatprep.subr.bf16.mxu0 0
  %606 = vmatpush1.bf16.msra.mxu0 0
  %607 = vmatprep.subr.bf16.mxu0 0
  %608 = vmatpush1.bf16.msra.mxu0 0
  %609 = vmatprep.mubr.bf16.mxu0 0
  %610 = vmatmul.mubr.bf16.gmra.mrb[0].mxu0 %v447
  %v611 = vpop.f32.mrb[0].mxu0
  %v612 = vadd.f32 0.0, %v611
  %v613 = vpop.f32.mrb[0].mxu0
  %v614 = vpop.f32.mrb[0].mxu0
  %v615 = vadd.f32 0.0, %v614
  %v616 = vpop.f32.mrb[0].mxu0
  %617 = vmatprep.mubr.bf16.mxu0 0
  %618 = vmatmul.mubr.bf16.gmra.mrb[0].mxu0 %v448
  %v619 = vpop.f32.mrb[0].mxu0
  %v620 = vadd.f32 0.0, %v619
  %v621 = vpop.f32.mrb[0].mxu0
  %v622 = vpop.f32.mrb[0].mxu0
  %v623 = vadd.f32 0.0, %v622
  %v624 = vpop.f32.mrb[0].mxu0
  %625 = vmatprep.mubr.bf16.mxu0 0
  %626 = vmatmul.mubr.bf16.gmra.mrb[0].mxu0 %v449
  %v627 = vpop.f32.mrb[0].mxu0
  %v628 = vadd.f32 0.0, %v627
  %v629 = vpop.f32.mrb[0].mxu0
  %v630 = vpop.f32.mrb[0].mxu0
  %v631 = vadd.f32 0.0, %v630
  %v632 = vpop.f32.mrb[0].mxu0
  %633 = vmatprep.mubr.bf16.mxu0 0
  %634 = vmatmul.mubr.bf16.gmra.mrb[0].mxu0 %v450
  %v635 = vpop.f32.mrb[0].mxu0
  %v636 = vadd.f32 0.0, %v635
  %v637 = vpop.f32.mrb[0].mxu0
  %v638 = vpop.f32.mrb[0].mxu0
  %v639 = vadd.f32 0.0, %v638
  %v640 = vpop.f32.mrb[0].mxu0
  %641 = vmatprep.mubr.bf16.mxu0 0
  %642 = vmatmul.mubr.bf16.gmra.mrb[0].mxu0 %v451
  %v643 = vpop.f32.mrb[0].mxu0
  %v644 = vadd.f32 0.0, %v643
  %v645 = vpop.f32.mrb[0].mxu0
  %v646 = vpop.f32.mrb[0].mxu0
  %v647 = vadd.f32 0.0, %v646
  %v648 = vpop.f32.mrb[0].mxu0
  %649 = vmatprep.mubr.bf16.mxu0 0
  %650 = vmatmul.mubr.bf16.gmra.mrb[0].mxu0 %v452
  %v651 = vpop.f32.mrb[0].mxu0
  %v652 = vadd.f32 0.0, %v651
  %v653 = vpop.f32.mrb[0].mxu0
  %v654 = vpop.f32.mrb[0].mxu0
  %v655 = vadd.f32 0.0, %v654
  %v656 = vpop.f32.mrb[0].mxu0
  %657 = vmatprep.mubr.bf16.mxu0 0
  %658 = vmatmul.mubr.bf16.gmra.mrb[0].mxu0 %v453
  %v659 = vpop.f32.mrb[0].mxu0
  %v660 = vadd.f32 0.0, %v659
  %v661 = vpop.f32.mrb[0].mxu0
  %v662 = vpop.f32.mrb[0].mxu0
  %v663 = vadd.f32 0.0, %v662
  %v664 = vpop.f32.mrb[0].mxu0
  %665 = vmatprep.mubr.bf16.mxu0 0
  %666 = vmatmul.mubr.bf16.gmra.mrb[0].mxu0 %v454
  %v667 = vpop.f32.mrb[0].mxu0
  %v668 = vadd.f32 0.0, %v667
  %v669 = vpop.f32.mrb[0].mxu0
  %v670 = vpop.f32.mrb[0].mxu0
  %v671 = vadd.f32 0.0, %v670
  %v672 = vpop.f32.mrb[0].mxu0
  %673 = vmatprep.mubr.bf16.mxu0 0
  %674 = vmatmul.mubr.bf16.gmra.mrb[0].mxu0 %v455
  %v675 = vpop.f32.mrb[0].mxu0
  %v676 = vadd.f32 0.0, %v675
  %v677 = vpop.f32.mrb[0].mxu0
  %v678 = vpop.f32.mrb[0].mxu0
  %v679 = vadd.f32 0.0, %v678
  %v680 = vpop.f32.mrb[0].mxu0
  %681 = vmatprep.mubr.bf16.mxu0 0
  %682 = vmatmul.mubr.bf16.gmra.mrb[0].mxu0 %v456
  %v683 = vpop.f32.mrb[0].mxu0
  %v684 = vadd.f32 0.0, %v683
  %v685 = vpop.f32.mrb[0].mxu0
  %v686 = vpop.f32.mrb[0].mxu0
  %v687 = vadd.f32 0.0, %v686
  %v688 = vpop.f32.mrb[0].mxu0
  %689 = vmatprep.mubr.bf16.mxu0 0
  %690 = vmatmul.mubr.bf16.gmra.mrb[0].mxu0 %v457
  %v691 = vpop.f32.mrb[0].mxu0
  %v692 = vadd.f32 0.0, %v691
  %v693 = vpop.f32.mrb[0].mxu0
  %v694 = vpop.f32.mrb[0].mxu0
  %v695 = vadd.f32 0.0, %v694
  %v696 = vpop.f32.mrb[0].mxu0
  %697 = vmatprep.mubr.bf16.mxu0 0
  %698 = vmatmul.mubr.bf16.gmra.mrb[0].mxu0 %v458
  %v699 = vpop.f32.mrb[0].mxu0
  %v700 = vadd.f32 0.0, %v699
  %v701 = vpop.f32.mrb[0].mxu0
  %v702 = vpop.f32.mrb[0].mxu0
  %v703 = vadd.f32 0.0, %v702
  %v704 = vpop.f32.mrb[0].mxu0
  %705 = vmatprep.mubr.bf16.mxu0 0
  %706 = vmatmul.mubr.bf16.gmra.mrb[0].mxu0 %v459
  %v707 = vpop.f32.mrb[0].mxu0
  %v708 = vadd.f32 0.0, %v707
  %v709 = vpop.f32.mrb[0].mxu0
  %v710 = vpop.f32.mrb[0].mxu0
  %v711 = vadd.f32 0.0, %v710
  %v712 = vpop.f32.mrb[0].mxu0
  %713 = vmatprep.mubr.bf16.mxu0 0
  %714 = vmatmul.mubr.bf16.gmra.mrb[0].mxu0 %v460
  %v715 = vpop.f32.mrb[0].mxu0
  %v716 = vadd.f32 0.0, %v715
  %v717 = vpop.f32.mrb[0].mxu0
  %v718 = vpop.f32.mrb[0].mxu0
  %v719 = vadd.f32 0.0, %v718
  %v720 = vpop.f32.mrb[0].mxu0
  %721 = vmatprep.mubr.bf16.mxu0 0
  %722 = vmatmul.mubr.bf16.gmra.mrb[0].mxu0 %v461
  %v723 = vpop.f32.mrb[0].mxu0
  %v724 = vadd.f32 0.0, %v723
  %v725 = vpop.f32.mrb[0].mxu0
  %v726 = vpop.f32.mrb[0].mxu0
  %v727 = vadd.f32 0.0, %v726
  %v728 = vpop.f32.mrb[0].mxu0
  %729 = vmatprep.mubr.bf16.mxu0 0
  %730 = vmatmul.mubr.bf16.gmra.mrb[0].mxu0 %v462
  %v731 = vpop.f32.mrb[0].mxu0
  %v732 = vadd.f32 0.0, %v731
  %v733 = vpop.f32.mrb[0].mxu0
  %v734 = vpop.f32.mrb[0].mxu0
  %v735 = vadd.f32 0.0, %v734
  %v736 = vpop.f32.mrb[0].mxu0
  %737 = vmatprep.mubr.bf16.mxu0 0
  %738 = vmatmul.mubr.bf16.gmra.mrb[0].mxu0 %v463
  %v739 = vpop.f32.mrb[0].mxu0
  %v740 = vadd.f32 0.0, %v739
  %v741 = vpop.f32.mrb[0].mxu0
  %v742 = vpop.f32.mrb[0].mxu0
  %v743 = vadd.f32 0.0, %v742
  %v744 = vpop.f32.mrb[0].mxu0
  %745 = vmatprep.mubr.bf16.mxu0 0
  %746 = vmatmul.mubr.bf16.gmra.mrb[0].mxu0 %v464
  %v747 = vpop.f32.mrb[0].mxu0
  %v748 = vadd.f32 0.0, %v747
  %v749 = vpop.f32.mrb[0].mxu0
  %v750 = vpop.f32.mrb[0].mxu0
  %v751 = vadd.f32 0.0, %v750
  %v752 = vpop.f32.mrb[0].mxu0
  %753 = vmatprep.mubr.bf16.mxu0 0
  %754 = vmatmul.mubr.bf16.gmra.mrb[0].mxu0 %v465
  %v755 = vpop.f32.mrb[0].mxu0
  %v756 = vadd.f32 0.0, %v755
  %v757 = vpop.f32.mrb[0].mxu0
  %v758 = vpop.f32.mrb[0].mxu0
  %v759 = vadd.f32 0.0, %v758
  %v760 = vpop.f32.mrb[0].mxu0
  %761 = vmatprep.mubr.bf16.mxu0 0
  %762 = vmatmul.mubr.bf16.gmra.mrb[0].mxu0 %v466
  %v763 = vpop.f32.mrb[0].mxu0
  %v764 = vadd.f32 0.0, %v763
  %v765 = vpop.f32.mrb[0].mxu0
  %v766 = vpop.f32.mrb[0].mxu0
  %v767 = vadd.f32 0.0, %v766
  %v768 = vpop.f32.mrb[0].mxu0
  %769 = vmatprep.mubr.bf16.mxu0 0
  %770 = vmatmul.mubr.bf16.gmra.mrb[0].mxu0 %v467
  %v771 = vpop.f32.mrb[0].mxu0
  %v772 = vadd.f32 0.0, %v771
  %v773 = vpop.f32.mrb[0].mxu0
  %v774 = vpop.f32.mrb[0].mxu0
  %v775 = vadd.f32 0.0, %v774
  %v776 = vpop.f32.mrb[0].mxu0
  %777 = vmatprep.mubr.bf16.mxu0 0
  %778 = vmatmul.mubr.bf16.gmra.mrb[0].mxu0 %v468
  %v779 = vpop.f32.mrb[0].mxu0
  %v780 = vadd.f32 0.0, %v779
  %v781 = vpop.f32.mrb[0].mxu0
  %v782 = vpop.f32.mrb[0].mxu0
  %v783 = vadd.f32 0.0, %v782
  %v784 = vpop.f32.mrb[0].mxu0
  %785 = vmatprep.mubr.bf16.mxu0 0
  %786 = vmatmul.mubr.bf16.gmra.mrb[0].mxu0 %v469
  %v787 = vpop.f32.mrb[0].mxu0
  %v788 = vadd.f32 0.0, %v787
  %v789 = vpop.f32.mrb[0].mxu0
  %v790 = vpop.f32.mrb[0].mxu0
  %v791 = vadd.f32 0.0, %v790
  %v792 = vpop.f32.mrb[0].mxu0
  %793 = vmatprep.mubr.bf16.mxu0 0
  %794 = vmatmul.mubr.bf16.gmra.mrb[0].mxu0 %v470
  %v795 = vpop.f32.mrb[0].mxu0
  %v796 = vadd.f32 0.0, %v795
  %v797 = vpop.f32.mrb[0].mxu0
  %v798 = vpop.f32.mrb[0].mxu0
  %v799 = vadd.f32 0.0, %v798
  %v800 = vpop.f32.mrb[0].mxu0
  %801 = vmatprep.mubr.bf16.mxu0 0
  %802 = vmatmul.mubr.bf16.gmra.mrb[0].mxu0 %v471
  %v803 = vpop.f32.mrb[0].mxu0
  %v804 = vadd.f32 0.0, %v803
  %v805 = vpop.f32.mrb[0].mxu0
  %v806 = vpop.f32.mrb[0].mxu0
  %v807 = vadd.f32 0.0, %v806
  %v808 = vpop.f32.mrb[0].mxu0
  %809 = vmatprep.mubr.bf16.mxu0 0
  %810 = vmatmul.mubr.bf16.gmra.mrb[0].mxu0 %v472
  %v811 = vpop.f32.mrb[0].mxu0
  %v812 = vadd.f32 0.0, %v811
  %v813 = vpop.f32.mrb[0].mxu0
  %v814 = vpop.f32.mrb[0].mxu0
  %v815 = vadd.f32 0.0, %v814
  %v816 = vpop.f32.mrb[0].mxu0
  %817 = vmatprep.mubr.bf16.mxu0 0
  %818 = vmatmul.mubr.bf16.gmra.mrb[0].mxu0 %v473
  %v819 = vpop.f32.mrb[0].mxu0
  %v820 = vadd.f32 0.0, %v819
  %v821 = vpop.f32.mrb[0].mxu0
  %v822 = vpop.f32.mrb[0].mxu0
  %v823 = vadd.f32 0.0, %v822
  %v824 = vpop.f32.mrb[0].mxu0
  %825 = vmatprep.mubr.bf16.mxu0 0
  %826 = vmatmul.mubr.bf16.gmra.mrb[0].mxu0 %v474
  %v827 = vpop.f32.mrb[0].mxu0
  %v828 = vadd.f32 0.0, %v827
  %v829 = vpop.f32.mrb[0].mxu0
  %v830 = vpop.f32.mrb[0].mxu0
  %v831 = vadd.f32 0.0, %v830
  %v832 = vpop.f32.mrb[0].mxu0
  %833 = vmatprep.mubr.bf16.mxu0 0
  %834 = vmatmul.mubr.bf16.gmra.mrb[0].mxu0 %v475
  %v835 = vpop.f32.mrb[0].mxu0
  %v836 = vadd.f32 0.0, %v835
  %v837 = vpop.f32.mrb[0].mxu0
  %v838 = vpop.f32.mrb[0].mxu0
  %v839 = vadd.f32 0.0, %v838
  %v840 = vpop.f32.mrb[0].mxu0
  %841 = vmatprep.mubr.bf16.mxu0 0
  %842 = vmatmul.mubr.bf16.gmra.mrb[0].mxu0 %v476
  %v843 = vpop.f32.mrb[0].mxu0
  %v844 = vadd.f32 0.0, %v843
  %v845 = vpop.f32.mrb[0].mxu0
  %v846 = vpop.f32.mrb[0].mxu0
  %v847 = vadd.f32 0.0, %v846
  %v848 = vpop.f32.mrb[0].mxu0
  %849 = vmatprep.mubr.bf16.mxu0 0
  %850 = vmatmul.mubr.bf16.gmra.mrb[0].mxu0 %v477
  %v851 = vpop.f32.mrb[0].mxu0
  %v852 = vadd.f32 0.0, %v851
  %v853 = vpop.f32.mrb[0].mxu0
  %v854 = vpop.f32.mrb[0].mxu0
  %v855 = vadd.f32 0.0, %v854
  %v856 = vpop.f32.mrb[0].mxu0
  %857 = vmatprep.mubr.bf16.mxu0 0
  %858 = vmatmul.mubr.bf16.gmra.mrb[0].mxu0 %v478
  %v859 = vpop.f32.mrb[0].mxu0
  %v860 = vadd.f32 0.0, %v859
  %v861 = vpop.f32.mrb[0].mxu0
  %v862 = vpop.f32.mrb[0].mxu0
  %v863 = vadd.f32 0.0, %v862
  %v864 = vpop.f32.mrb[0].mxu0
  %865 = vmatprep.mubr.bf16.mxu0 0
  %866 = vmatmul.mubr.bf16.gmra.mrb[0].mxu0 %v479
  %v867 = vpop.f32.mrb[0].mxu0
  %v868 = vadd.f32 0.0, %v867
  %v869 = vpop.f32.mrb[0].mxu0
  %v870 = vpop.f32.mrb[0].mxu0
  %v871 = vadd.f32 0.0, %v870
  %v872 = vpop.f32.mrb[0].mxu0
  %873 = vmatprep.mubr.bf16.mxu0 0
  %874 = vmatmul.mubr.bf16.gmra.mrb[0].mxu0 %v480
  %v875 = vpop.f32.mrb[0].mxu0
  %v876 = vadd.f32 0.0, %v875
  %v877 = vpop.f32.mrb[0].mxu0
  %v878 = vpop.f32.mrb[0].mxu0
  %v879 = vadd.f32 0.0, %v878
  %v880 = vpop.f32.mrb[0].mxu0
  %881 = vmatprep.mubr.bf16.mxu0 0
  %882 = vmatmul.mubr.bf16.gmra.mrb[0].mxu0 %v481
  %v883 = vpop.f32.mrb[0].mxu0
  %v884 = vadd.f32 0.0, %v883
  %v885 = vpop.f32.mrb[0].mxu0
  %v886 = vpop.f32.mrb[0].mxu0
  %v887 = vadd.f32 0.0, %v886
  %v888 = vpop.f32.mrb[0].mxu0
  %889 = vmatprep.mubr.bf16.mxu0 0
  %890 = vmatmul.mubr.bf16.gmra.mrb[0].mxu0 %v482
  %v891 = vpop.f32.mrb[0].mxu0
  %v892 = vadd.f32 0.0, %v891
  %v893 = vpop.f32.mrb[0].mxu0
  %v894 = vpop.f32.mrb[0].mxu0
  %v895 = vadd.f32 0.0, %v894
  %v896 = vpop.f32.mrb[0].mxu0
  %897 = vmatprep.mubr.bf16.mxu0 0
  %898 = vmatmul.mubr.bf16.gmra.mrb[0].mxu0 %v483
  %v899 = vpop.f32.mrb[0].mxu0
  %v900 = vadd.f32 0.0, %v899
  %v901 = vpop.f32.mrb[0].mxu0
  %v902 = vpop.f32.mrb[0].mxu0
  %v903 = vadd.f32 0.0, %v902
  %v904 = vpop.f32.mrb[0].mxu0
  %905 = vmatprep.mubr.bf16.mxu0 0
  %906 = vmatmul.mubr.bf16.gmra.mrb[0].mxu0 %v484
  %v907 = vpop.f32.mrb[0].mxu0
  %v908 = vadd.f32 0.0, %v907
  %v909 = vpop.f32.mrb[0].mxu0
  %v910 = vpop.f32.mrb[0].mxu0
  %v911 = vadd.f32 0.0, %v910
  %v912 = vpop.f32.mrb[0].mxu0
  %913 = vmatprep.mubr.bf16.mxu0 0
  %914 = vmatmul.mubr.bf16.gmra.mrb[0].mxu0 %v485
  %v915 = vpop.f32.mrb[0].mxu0
  %v916 = vadd.f32 0.0, %v915
  %v917 = vpop.f32.mrb[0].mxu0
  %v918 = vpop.f32.mrb[0].mxu0
  %v919 = vadd.f32 0.0, %v918
  %v920 = vpop.f32.mrb[0].mxu0
  %921 = vmatprep.mubr.bf16.mxu0 0
  %922 = vmatmul.mubr.bf16.gmra.mrb[0].mxu0 %v486
  %v923 = vpop.f32.mrb[0].mxu0
  %v924 = vadd.f32 0.0, %v923
  %v925 = vpop.f32.mrb[0].mxu0
  %v926 = vpop.f32.mrb[0].mxu0
  %v927 = vadd.f32 0.0, %v926
  %v928 = vpop.f32.mrb[0].mxu0
  %929 = vmatprep.mubr.bf16.mxu0 0
  %930 = vmatmul.mubr.bf16.gmra.mrb[0].mxu0 %v487
  %v931 = vpop.f32.mrb[0].mxu0
  %v932 = vadd.f32 0.0, %v931
  %v933 = vpop.f32.mrb[0].mxu0
  %v934 = vpop.f32.mrb[0].mxu0
  %v935 = vadd.f32 0.0, %v934
  %v936 = vpop.f32.mrb[0].mxu0
  %937 = vdwg.mxu0
  %v938 = vadd.f32 %v185, %v612
  %v939 = vadd.f32 %v186, %v615
  %v940 = vadd.f32 %v187, %v620
  %v941 = vadd.f32 %v188, %v623
  %v942 = vadd.f32 %v189, %v628
  %v943 = vadd.f32 %v190, %v631
  %v944 = vadd.f32 %v191, %v636
  %v945 = vadd.f32 %v192, %v639
  %v946 = vadd.f32 %v193, %v644
  %v947 = vadd.f32 %v194, %v647
  %v948 = vadd.f32 %v195, %v652
  %v949 = vadd.f32 %v196, %v655
  %v950 = vadd.f32 %v197, %v660
  %v951 = vadd.f32 %v198, %v663
  %v952 = vadd.f32 %v199, %v668
  %v953 = vadd.f32 %v200, %v671
  %v954 = vadd.f32 %v201, %v676
  %v955 = vadd.f32 %v202, %v679
  %v956 = vadd.f32 %v203, %v684
  %v957 = vadd.f32 %v204, %v687
  %v958 = vadd.f32 %v205, %v692
  %v959 = vadd.f32 %v206, %v695
  %v960 = vadd.f32 %v207, %v700
  %v961 = vadd.f32 %v208, %v703
  %v962 = vadd.f32 %v209, %v708
  %v963 = vadd.f32 %v210, %v711
  %v964 = vadd.f32 %v211, %v716
  %v965 = vadd.f32 %v212, %v719
  %v966 = vadd.f32 %v213, %v724
  %v967 = vadd.f32 %v214, %v727
  %v968 = vadd.f32 %v215, %v732
  %v969 = vadd.f32 %v216, %v735
  %v970 = vadd.f32 %v217, %v740
  %v971 = vadd.f32 %v218, %v743
  %v972 = vadd.f32 %v219, %v748
  %v973 = vadd.f32 %v220, %v751
  %v974 = vadd.f32 %v221, %v756
  %v975 = vadd.f32 %v222, %v759
  %v976 = vadd.f32 %v223, %v764
  %v977 = vadd.f32 %v224, %v767
  %v978 = vadd.f32 %v225, %v772
  %v979 = vadd.f32 %v226, %v775
  %v980 = vadd.f32 %v227, %v780
  %v981 = vadd.f32 %v228, %v783
  %v982 = vadd.f32 %v229, %v788
  %v983 = vadd.f32 %v230, %v791
  %v984 = vadd.f32 %v231, %v796
  %v985 = vadd.f32 %v232, %v799
  %v986 = vadd.f32 %v233, %v804
  %v987 = vadd.f32 %v234, %v807
  %v988 = vadd.f32 %v235, %v812
  %v989 = vadd.f32 %v236, %v815
  %v990 = vadd.f32 %v237, %v820
  %v991 = vadd.f32 %v238, %v823
  %v992 = vadd.f32 %v239, %v828
  %v993 = vadd.f32 %v240, %v831
  %v994 = vadd.f32 %v241, %v836
  %v995 = vadd.f32 %v242, %v839
  %v996 = vadd.f32 %v243, %v844
  %v997 = vadd.f32 %v244, %v847
  %v998 = vadd.f32 %v245, %v852
  %v999 = vadd.f32 %v246, %v855
  %v1000 = vadd.f32 %v247, %v860
  %v1001 = vadd.f32 %v248, %v863
  %v1002 = vadd.f32 %v249, %v868
  %v1003 = vadd.f32 %v250, %v871
  %v1004 = vadd.f32 %v251, %v876
  %v1005 = vadd.f32 %v252, %v879
  %v1006 = vadd.f32 %v253, %v884
  %v1007 = vadd.f32 %v254, %v887
  %v1008 = vadd.f32 %v255, %v892
  %v1009 = vadd.f32 %v256, %v895
  %v1010 = vadd.f32 %v257, %v900
  %v1011 = vadd.f32 %v258, %v903
  %v1012 = vadd.f32 %v259, %v908
  %v1013 = vadd.f32 %v260, %v911
  %v1014 = vadd.f32 %v261, %v916
  %v1015 = vadd.f32 %v262, %v919
  %v1016 = vadd.f32 %v263, %v924
  %v1017 = vadd.f32 %v264, %v927
  %v1018 = vadd.f32 %v265, %v932
  %v1019 = vadd.f32 %v266, %v935
  %1020 = vst [vmem:[#allocation2] sm:$0xff] %v938
  %1021 = vst [vmem:[#allocation2 + $0x8] sm:$0xff] %v939
  %1022 = vst [vmem:[#allocation2 + $0x10] sm:$0xff] %v940
  %1023 = vst [vmem:[#allocation2 + $0x18] sm:$0xff] %v941
  %1024 = vst [vmem:[#allocation2 + $0x20] sm:$0xff] %v942
  %1025 = vst [vmem:[#allocation2 + $0x28] sm:$0xff] %v943
  %1026 = vst [vmem:[#allocation2 + $0x30] sm:$0xff] %v944
  %1027 = vst [vmem:[#allocation2 + $0x38] sm:$0xff] %v945
  %1028 = vst [vmem:[#allocation2 + $0x40] sm:$0xff] %v946
  %1029 = vst [vmem:[#allocation2 + $0x48] sm:$0xff] %v947
  %1030 = vst [vmem:[#allocation2 + $0x50] sm:$0xff] %v948
  %1031 = vst [vmem:[#allocation2 + $0x58] sm:$0xff] %v949
  %1032 = vst [vmem:[#allocation2 + $0x60] sm:$0xff] %v950
  %1033 = vst [vmem:[#allocation2 + $0x68] sm:$0xff] %v951
  %1034 = vst [vmem:[#allocation2 + $0x70] sm:$0xff] %v952
  %1035 = vst [vmem:[#allocation2 + $0x78] sm:$0xff] %v953
  %1036 = vst [vmem:[#allocation2 + $0x80] sm:$0xff] %v954
  %1037 = vst [vmem:[#allocation2 + $0x88] sm:$0xff] %v955
  %1038 = vst [vmem:[#allocation2 + $0x90] sm:$0xff] %v956
  %1039 = vst [vmem:[#allocation2 + $0x98] sm:$0xff] %v957
  %1040 = vst [vmem:[#allocation2 + $0xa0] sm:$0xff] %v958
  %1041 = vst [vmem:[#allocation2 + $0xa8] sm:$0xff] %v959
  %1042 = vst [vmem:[#allocation2 + $0xb0] sm:$0xff] %v960
  %1043 = vst [vmem:[#allocation2 + $0xb8] sm:$0xff] %v961
  %1044 = vst [vmem:[#allocation2 + $0xc0] sm:$0xff] %v962
  %1045 = vst [vmem:[#allocation2 + $0xc8] sm:$0xff] %v963
  %1046 = vst [vmem:[#allocation2 + $0xd0] sm:$0xff] %v964
  %1047 = vst [vmem:[#allocation2 + $0xd8] sm:$0xff] %v965
  %1048 = vst [vmem:[#allocation2 + $0xe0] sm:$0xff] %v966
  %1049 = vst [vmem:[#allocation2 + $0xe8] sm:$0xff] %v967
  %1050 = vst [vmem:[#allocation2 + $0xf0] sm:$0xff] %v968
  %1051 = vst [vmem:[#allocation2 + $0xf8] sm:$0xff] %v969
  %1052 = vst [vmem:[#allocation2 + $0x100] sm:$0xff] %v970
  %1053 = vst [vmem:[#allocation2 + $0x108] sm:$0xff] %v971
  %1054 = vst [vmem:[#allocation2 + $0x110] sm:$0xff] %v972
  %1055 = vst [vmem:[#allocation2 + $0x118] sm:$0xff] %v973
  %1056 = vst [vmem:[#allocation2 + $0x120] sm:$0xff] %v974
  %1057 = vst [vmem:[#allocation2 + $0x128] sm:$0xff] %v975
  %1058 = vst [vmem:[#allocation2 + $0x130] sm:$0xff] %v976
  %1059 = vst [vmem:[#allocation2 + $0x138] sm:$0xff] %v977
  %1060 = vst [vmem:[#allocation2 + $0x140] sm:$0xff] %v978
  %1061 = vst [vmem:[#allocation2 + $0x148] sm:$0xff] %v979
  %1062 = vst [vmem:[#allocation2 + $0x150] sm:$0xff] %v980
  %1063 = vst [vmem:[#allocation2 + $0x158] sm:$0xff] %v981
  %1064 = vst [vmem:[#allocation2 + $0x160] sm:$0xff] %v982
  %1065 = vst [vmem:[#allocation2 + $0x168] sm:$0xff] %v983
  %1066 = vst [vmem:[#allocation2 + $0x170] sm:$0xff] %v984
  %1067 = vst [vmem:[#allocation2 + $0x178] sm:$0xff] %v985
  %1068 = vst [vmem:[#allocation2 + $0x180] sm:$0xff] %v986
  %1069 = vst [vmem:[#allocation2 + $0x188] sm:$0xff] %v987
  %1070 = vst [vmem:[#allocation2 + $0x190] sm:$0xff] %v988
  %1071 = vst [vmem:[#allocation2 + $0x198] sm:$0xff] %v989
  %1072 = vst [vmem:[#allocation2 + $0x1a0] sm:$0xff] %v990
  %1073 = vst [vmem:[#allocation2 + $0x1a8] sm:$0xff] %v991
  %1074 = vst [vmem:[#allocation2 + $0x1b0] sm:$0xff] %v992
  %1075 = vst [vmem:[#allocation2 + $0x1b8] sm:$0xff] %v993
  %1076 = vst [vmem:[#allocation2 + $0x1c0] sm:$0xff] %v994
  %1077 = vst [vmem:[#allocation2 + $0x1c8] sm:$0xff] %v995
  %1078 = vst [vmem:[#allocation2 + $0x1d0] sm:$0xff] %v996
  %1079 = vst [vmem:[#allocation2 + $0x1d8] sm:$0xff] %v997
  %1080 = vst [vmem:[#allocation2 + $0x1e0] sm:$0xff] %v998
  %1081 = vst [vmem:[#allocation2 + $0x1e8] sm:$0xff] %v999
  %1082 = vst [vmem:[#allocation2 + $0x1f0] sm:$0xff] %v1000
  %1083 = vst [vmem:[#allocation2 + $0x1f8] sm:$0xff] %v1001
  %1084 = vst [vmem:[#allocation2 + $0x200] sm:$0xff] %v1002
  %1085 = vst [vmem:[#allocation2 + $0x208] sm:$0xff] %v1003
  %1086 = vst [vmem:[#allocation2 + $0x210] sm:$0xff] %v1004
  %1087 = vst [vmem:[#allocation2 + $0x218] sm:$0xff] %v1005
  %1088 = vst [vmem:[#allocation2 + $0x220] sm:$0xff] %v1006
  %1089 = vst [vmem:[#allocation2 + $0x228] sm:$0xff] %v1007
  %1090 = vst [vmem:[#allocation2 + $0x230] sm:$0xff] %v1008
  %1091 = vst [vmem:[#allocation2 + $0x238] sm:$0xff] %v1009
  %1092 = vst [vmem:[#allocation2 + $0x240] sm:$0xff] %v1010
  %1093 = vst [vmem:[#allocation2 + $0x248] sm:$0xff] %v1011
  %1094 = vst [vmem:[#allocation2 + $0x250] sm:$0xff] %v1012
  %1095 = vst [vmem:[#allocation2 + $0x258] sm:$0xff] %v1013
  %1096 = vst [vmem:[#allocation2 + $0x260] sm:$0xff] %v1014
  %1097 = vst [vmem:[#allocation2 + $0x268] sm:$0xff] %v1015
  %1098 = vst [vmem:[#allocation2 + $0x270] sm:$0xff] %v1016
  %1099 = vst [vmem:[#allocation2 + $0x278] sm:$0xff] %v1017
  %1100 = vst [vmem:[#allocation2 + $0x280] sm:$0xff] %v1018
  %1101 = vst [vmem:[#allocation2 + $0x288] sm:$0xff] %v1019
  // Predicated region
  $region18: #{bottleneck_forward.4} parent=0 // pred_check
    %p1102 = pneg %p17
  $region19: #{bottleneck_forward.4} parent=0 // pred_check_branch
    %1104 = sbr.rel (%p1102) target = $region21
  $region20: #{bottleneck_forward.4} parent=0 // pred_region
    %v1105 = vld [vmem:[#allocation2] sm:$0xff]
    %v1106 = vld [vmem:[#allocation2 + $0x8] sm:$0xff]
    %v1107 = vld [vmem:[#allocation2 + $0x10] sm:$0xff]
    %v1108 = vld [vmem:[#allocation2 + $0x18] sm:$0xff]
    %v1109 = vld [vmem:[#allocation2 + $0x20] sm:$0xff]
    %v1110 = vld [vmem:[#allocation2 + $0x28] sm:$0xff]
    %v1111 = vld [vmem:[#allocation2 + $0x30] sm:$0xff]
    %v1112 = vld [vmem:[#allocation2 + $0x38] sm:$0xff]
    %v1113 = vld [vmem:[#allocation2 + $0x40] sm:$0xff]
    %v1114 = vld [vmem:[#allocation2 + $0x48] sm:$0xff]
    %v1115 = vld [vmem:[#allocation2 + $0x50] sm:$0xff]
    %v1116 = vld [vmem:[#allocation2 + $0x58] sm:$0xff]
    %v1117 = vld [vmem:[#allocation2 + $0x60] sm:$0xff]
    %v1118 = vld [vmem:[#allocation2 + $0x68] sm:$0xff]
    %v1119 = vld [vmem:[#allocation2 + $0x70] sm:$0xff]
    %v1120 = vld [vmem:[#allocation2 + $0x78] sm:$0xff]
    %v1121 = vld [vmem:[#allocation2 + $0x80] sm:$0xff]
    %v1122 = vld [vmem:[#allocation2 + $0x88] sm:$0xff]
    %v1123 = vld [vmem:[#allocation2 + $0x90] sm:$0xff]
    %v1124 = vld [vmem:[#allocation2 + $0x98] sm:$0xff]
    %v1125 = vld [vmem:[#allocation2 + $0xa0] sm:$0xff]
    %v1126 = vld [vmem:[#allocation2 + $0xa8] sm:$0xff]
    %v1127 = vld [vmem:[#allocation2 + $0xb0] sm:$0xff]
    %v1128 = vld [vmem:[#allocation2 + $0xb8] sm:$0xff]
    %v1129 = vld [vmem:[#allocation2 + $0xc0] sm:$0xff]
    %v1130 = vld [vmem:[#allocation2 + $0xc8] sm:$0xff]
    %v1131 = vld [vmem:[#allocation2 + $0xd0] sm:$0xff]
    %v1132 = vld [vmem:[#allocation2 + $0xd8] sm:$0xff]
    %v1133 = vld [vmem:[#allocation2 + $0xe0] sm:$0xff]
    %v1134 = vld [vmem:[#allocation2 + $0xe8] sm:$0xff]
    %v1135 = vld [vmem:[#allocation2 + $0xf0] sm:$0xff]
    %v1136 = vld [vmem:[#allocation2 + $0xf8] sm:$0xff]
    %v1137 = vld [vmem:[#allocation2 + $0x100] sm:$0xff]
    %v1138 = vld [vmem:[#allocation2 + $0x108] sm:$0xff]
    %v1139 = vld [vmem:[#allocation2 + $0x110] sm:$0xff]
    %v1140 = vld [vmem:[#allocation2 + $0x118] sm:$0xff]
    %v1141 = vld [vmem:[#allocation2 + $0x120] sm:$0xff]
    %v1142 = vld [vmem:[#allocation2 + $0x128] sm:$0xff]
    %v1143 = vld [vmem:[#allocation2 + $0x130] sm:$0xff]
    %v1144 = vld [vmem:[#allocation2 + $0x138] sm:$0xff]
    %v1145 = vld [vmem:[#allocation2 + $0x140] sm:$0xff]
    %v1146 = vld [vmem:[#allocation2 + $0x148] sm:$0xff]
    %v1147 = vld [vmem:[#allocation2 + $0x150] sm:$0xff]
    %v1148 = vld [vmem:[#allocation2 + $0x158] sm:$0xff]
    %v1149 = vld [vmem:[#allocation2 + $0x160] sm:$0xff]
    %v1150 = vld [vmem:[#allocation2 + $0x168] sm:$0xff]
    %v1151 = vld [vmem:[#allocation2 + $0x170] sm:$0xff]
    %v1152 = vld [vmem:[#allocation2 + $0x178] sm:$0xff]
    %v1153 = vld [vmem:[#allocation2 + $0x180] sm:$0xff]
    %v1154 = vld [vmem:[#allocation2 + $0x188] sm:$0xff]
    %v1155 = vld [vmem:[#allocation2 + $0x190] sm:$0xff]
    %v1156 = vld [vmem:[#allocation2 + $0x198] sm:$0xff]
    %v1157 = vld [vmem:[#allocation2 + $0x1a0] sm:$0xff]
    %v1158 = vld [vmem:[#allocation2 + $0x1a8] sm:$0xff]
    %v1159 = vld [vmem:[#allocation2 + $0x1b0] sm:$0xff]
    %v1160 = vld [vmem:[#allocation2 + $0x1b8] sm:$0xff]
    %v1161 = vld [vmem:[#allocation2 + $0x1c0] sm:$0xff]
    %v1162 = vld [vmem:[#allocation2 + $0x1c8] sm:$0xff]
    %v1163 = vld [vmem:[#allocation2 + $0x1d0] sm:$0xff]
    %v1164 = vld [vmem:[#allocation2 + $0x1d8] sm:$0xff]
    %v1165 = vld [vmem:[#allocation2 + $0x1e0] sm:$0xff]
    %v1166 = vld [vmem:[#allocation2 + $0x1e8] sm:$0xff]
    %v1167 = vld [vmem:[#allocation2 + $0x1f0] sm:$0xff]
    %v1168 = vld [vmem:[#allocation2 + $0x1f8] sm:$0xff]
    %v1169 = vld [vmem:[#allocation2 + $0x200] sm:$0xff]
    %v1170 = vld [vmem:[#allocation2 + $0x208] sm:$0xff]
    %v1171 = vld [vmem:[#allocation2 + $0x210] sm:$0xff]
    %v1172 = vld [vmem:[#allocation2 + $0x218] sm:$0xff]
    %v1173 = vld [vmem:[#allocation2 + $0x220] sm:$0xff]
    %v1174 = vld [vmem:[#allocation2 + $0x228] sm:$0xff]
    %v1175 = vld [vmem:[#allocation2 + $0x230] sm:$0xff]
    %v1176 = vld [vmem:[#allocation2 + $0x238] sm:$0xff]
    %v1177 = vld [vmem:[#allocation2 + $0x240] sm:$0xff]
    %v1178 = vld [vmem:[#allocation2 + $0x248] sm:$0xff]
    %v1179 = vld [vmem:[#allocation2 + $0x250] sm:$0xff]
    %v1180 = vld [vmem:[#allocation2 + $0x258] sm:$0xff]
    %v1181 = vld [vmem:[#allocation2 + $0x260] sm:$0xff]
    %v1182 = vld [vmem:[#allocation2 + $0x268] sm:$0xff]
    %v1183 = vld [vmem:[#allocation2 + $0x270] sm:$0xff]
    %v1184 = vld [vmem:[#allocation2 + $0x278] sm:$0xff]
    %v1185 = vld [vmem:[#allocation2 + $0x280] sm:$0xff]
    %v1186 = vld [vmem:[#allocation2 + $0x288] sm:$0xff]
    %v1187 = vld [vmem:[%s2] sm:$0x1]
    %v1189 = vlaneseq
    %v1190 = vshrl.u32 %v1189, 7
    %v1191 = vsub.s32 0, %v1190
    %v1192 = vrot.slane %v1187, %v1191
    %v1194 = vadd.f32 %v1105, %v1192
    %v1195 = vadd.f32 %v1106, %v1192
    %v1196 = vadd.f32 %v1107, %v1192
    %v1197 = vadd.f32 %v1108, %v1192
    %v1198 = vadd.f32 %v1109, %v1192
    %v1199 = vadd.f32 %v1110, %v1192
    %v1200 = vadd.f32 %v1111, %v1192
    %v1201 = vadd.f32 %v1112, %v1192
    %v1202 = vadd.f32 %v1113, %v1192
    %v1203 = vadd.f32 %v1114, %v1192
    %v1204 = vadd.f32 %v1115, %v1192
    %v1205 = vadd.f32 %v1116, %v1192
    %v1206 = vadd.f32 %v1117, %v1192
    %v1207 = vadd.f32 %v1118, %v1192
    %v1208 = vadd.f32 %v1119, %v1192
    %v1209 = vadd.f32 %v1120, %v1192
    %v1210 = vadd.f32 %v1121, %v1192
    %v1211 = vadd.f32 %v1122, %v1192
    %v1212 = vadd.f32 %v1123, %v1192
    %v1213 = vadd.f32 %v1124, %v1192
    %v1214 = vadd.f32 %v1125, %v1192
    %v1215 = vadd.f32 %v1126, %v1192
    %v1216 = vadd.f32 %v1127, %v1192
    %v1217 = vadd.f32 %v1128, %v1192
    %v1218 = vadd.f32 %v1129, %v1192
    %v1219 = vadd.f32 %v1130, %v1192
    %v1220 = vadd.f32 %v1131, %v1192
    %v1221 = vadd.f32 %v1132, %v1192
    %v1222 = vadd.f32 %v1133, %v1192
    %v1223 = vadd.f32 %v1134, %v1192
    %v1224 = vadd.f32 %v1135, %v1192
    %v1225 = vadd.f32 %v1136, %v1192
    %v1226 = vadd.f32 %v1137, %v1192
    %v1227 = vadd.f32 %v1138, %v1192
    %v1228 = vadd.f32 %v1139, %v1192
    %v1229 = vadd.f32 %v1140, %v1192
    %v1230 = vadd.f32 %v1141, %v1192
    %v1231 = vadd.f32 %v1142, %v1192
    %v1232 = vadd.f32 %v1143, %v1192
    %v1233 = vadd.f32 %v1144, %v1192
    %v1234 = vadd.f32 %v1145, %v1192
    %v1235 = vadd.f32 %v1146, %v1192
    %v1236 = vadd.f32 %v1147, %v1192
    %v1237 = vadd.f32 %v1148, %v1192
    %v1238 = vadd.f32 %v1149, %v1192
    %v1239 = vadd.f32 %v1150, %v1192
    %v1240 = vadd.f32 %v1151, %v1192
    %v1241 = vadd.f32 %v1152, %v1192
    %v1242 = vadd.f32 %v1153, %v1192
    %v1243 = vadd.f32 %v1154, %v1192
    %v1244 = vadd.f32 %v1155, %v1192
    %v1245 = vadd.f32 %v1156, %v1192
    %v1246 = vadd.f32 %v1157, %v1192
    %v1247 = vadd.f32 %v1158, %v1192
    %v1248 = vadd.f32 %v1159, %v1192
    %v1249 = vadd.f32 %v1160, %v1192
    %v1250 = vadd.f32 %v1161, %v1192
    %v1251 = vadd.f32 %v1162, %v1192
    %v1252 = vadd.f32 %v1163, %v1192
    %v1253 = vadd.f32 %v1164, %v1192
    %v1254 = vadd.f32 %v1165, %v1192
    %v1255 = vadd.f32 %v1166, %v1192
    %v1256 = vadd.f32 %v1167, %v1192
    %v1257 = vadd.f32 %v1168, %v1192
    %v1258 = vadd.f32 %v1169, %v1192
    %v1259 = vadd.f32 %v1170, %v1192
    %v1260 = vadd.f32 %v1171, %v1192
    %v1261 = vadd.f32 %v1172, %v1192
    %v1262 = vadd.f32 %v1173, %v1192
    %v1263 = vadd.f32 %v1174, %v1192
    %v1264 = vadd.f32 %v1175, %v1192
    %v1265 = vadd.f32 %v1176, %v1192
    %v1266 = vadd.f32 %v1177, %v1192
    %v1267 = vadd.f32 %v1178, %v1192
    %v1268 = vadd.f32 %v1179, %v1192
    %v1269 = vadd.f32 %v1180, %v1192
    %v1270 = vadd.f32 %v1181, %v1192
    %v1271 = vadd.f32 %v1182, %v1192
    %v1272 = vadd.f32 %v1183, %v1192
    %v1273 = vadd.f32 %v1184, %v1192
    %v1274 = vadd.f32 %v1185, %v1192
    %v1275 = vadd.f32 %v1186, %v1192
    %v1276 = vpack.c.bf16 %v1195, %v1194
    %v1277 = vpack.c.bf16 %v1197, %v1196
    %v1278 = vpack.c.bf16 %v1199, %v1198
    %v1279 = vpack.c.bf16 %v1201, %v1200
    %v1280 = vpack.c.bf16 %v1203, %v1202
    %v1281 = vpack.c.bf16 %v1205, %v1204
    %v1282 = vpack.c.bf16 %v1207, %v1206
    %v1283 = vpack.c.bf16 %v1209, %v1208
    %v1284 = vpack.c.bf16 %v1211, %v1210
    %v1285 = vpack.c.bf16 %v1213, %v1212
    %v1286 = vpack.c.bf16 %v1215, %v1214
    %v1287 = vpack.c.bf16 %v1217, %v1216
    %v1288 = vpack.c.bf16 %v1219, %v1218
    %v1289 = vpack.c.bf16 %v1221, %v1220
    %v1290 = vpack.c.bf16 %v1223, %v1222
    %v1291 = vpack.c.bf16 %v1225, %v1224
    %v1292 = vpack.c.bf16 %v1227, %v1226
    %v1293 = vpack.c.bf16 %v1229, %v1228
    %v1294 = vpack.c.bf16 %v1231, %v1230
    %v1295 = vpack.c.bf16 %v1233, %v1232
    %v1296 = vpack.c.bf16 %v1235, %v1234
    %v1297 = vpack.c.bf16 %v1237, %v1236
    %v1298 = vpack.c.bf16 %v1239, %v1238
    %v1299 = vpack.c.bf16 %v1241, %v1240
    %v1300 = vpack.c.bf16 %v1243, %v1242
    %v1301 = vpack.c.bf16 %v1245, %v1244
    %v1302 = vpack.c.bf16 %v1247, %v1246
    %v1303 = vpack.c.bf16 %v1249, %v1248
    %v1304 = vpack.c.bf16 %v1251, %v1250
    %v1305 = vpack.c.bf16 %v1253, %v1252
    %v1306 = vpack.c.bf16 %v1255, %v1254
    %v1307 = vpack.c.bf16 %v1257, %v1256
    %v1308 = vpack.c.bf16 %v1259, %v1258
    %v1309 = vpack.c.bf16 %v1261, %v1260
    %v1310 = vpack.c.bf16 %v1263, %v1262
    %v1311 = vpack.c.bf16 %v1265, %v1264
    %v1312 = vpack.c.bf16 %v1267, %v1266
    %v1313 = vpack.c.bf16 %v1269, %v1268
    %v1314 = vpack.c.bf16 %v1271, %v1270
    %v1315 = vpack.c.bf16 %v1273, %v1272
    %v1316 = vpack.c.bf16 %v1275, %v1274
    %v1358 = vunpack.c.l.b16 %v1276
    %v1359 = vunpack.c.h.b16 %v1276
    %v1360 = vunpack.c.l.b16 %v1277
    %v1361 = vunpack.c.h.b16 %v1277
    %v1362 = vunpack.c.l.b16 %v1278
    %v1363 = vunpack.c.h.b16 %v1278
    %v1364 = vunpack.c.l.b16 %v1279
    %v1365 = vunpack.c.h.b16 %v1279
    %v1366 = vunpack.c.l.b16 %v1280
    %v1367 = vunpack.c.h.b16 %v1280
    %v1368 = vunpack.c.l.b16 %v1281
    %v1369 = vunpack.c.h.b16 %v1281
    %v1370 = vunpack.c.l.b16 %v1282
    %v1371 = vunpack.c.h.b16 %v1282
    %v1372 = vunpack.c.l.b16 %v1283
    %v1373 = vunpack.c.h.b16 %v1283
    %v1374 = vunpack.c.l.b16 %v1284
    %v1375 = vunpack.c.h.b16 %v1284
    %v1376 = vunpack.c.l.b16 %v1285
    %v1377 = vunpack.c.h.b16 %v1285
    %v1378 = vunpack.c.l.b16 %v1286
    %v1379 = vunpack.c.h.b16 %v1286
    %v1380 = vunpack.c.l.b16 %v1287
    %v1381 = vunpack.c.h.b16 %v1287
    %v1382 = vunpack.c.l.b16 %v1288
    %v1383 = vunpack.c.h.b16 %v1288
    %v1384 = vunpack.c.l.b16 %v1289
    %v1385 = vunpack.c.h.b16 %v1289
    %v1386 = vunpack.c.l.b16 %v1290
    %v1387 = vunpack.c.h.b16 %v1290
    %v1388 = vunpack.c.l.b16 %v1291
    %v1389 = vunpack.c.h.b16 %v1291
    %v1390 = vunpack.c.l.b16 %v1292
    %v1391 = vunpack.c.h.b16 %v1292
    %v1392 = vunpack.c.l.b16 %v1293
    %v1393 = vunpack.c.h.b16 %v1293
    %v1394 = vunpack.c.l.b16 %v1294
    %v1395 = vunpack.c.h.b16 %v1294
    %v1396 = vunpack.c.l.b16 %v1295
    %v1397 = vunpack.c.h.b16 %v1295
    %v1398 = vunpack.c.l.b16 %v1296
    %v1399 = vunpack.c.h.b16 %v1296
    %v1400 = vunpack.c.l.b16 %v1297
    %v1401 = vunpack.c.h.b16 %v1297
    %v1402 = vunpack.c.l.b16 %v1298
    %v1403 = vunpack.c.h.b16 %v1298
    %v1404 = vunpack.c.l.b16 %v1299
    %v1405 = vunpack.c.h.b16 %v1299
    %v1406 = vunpack.c.l.b16 %v1300
    %v1407 = vunpack.c.h.b16 %v1300
    %v1408 = vunpack.c.l.b16 %v1301
    %v1409 = vunpack.c.h.b16 %v1301
    %v1410 = vunpack.c.l.b16 %v1302
    %v1411 = vunpack.c.h.b16 %v1302
    %v1412 = vunpack.c.l.b16 %v1303
    %v1413 = vunpack.c.h.b16 %v1303
    %v1414 = vunpack.c.l.b16 %v1304
    %v1415 = vunpack.c.h.b16 %v1304
    %v1416 = vunpack.c.l.b16 %v1305
    %v1417 = vunpack.c.h.b16 %v1305
    %v1418 = vunpack.c.l.b16 %v1306
    %v1419 = vunpack.c.h.b16 %v1306
    %v1420 = vunpack.c.l.b16 %v1307
    %v1421 = vunpack.c.h.b16 %v1307
    %v1422 = vunpack.c.l.b16 %v1308
    %v1423 = vunpack.c.h.b16 %v1308
    %v1424 = vunpack.c.l.b16 %v1309
    %v1425 = vunpack.c.h.b16 %v1309
    %v1426 = vunpack.c.l.b16 %v1310
    %v1427 = vunpack.c.h.b16 %v1310
    %v1428 = vunpack.c.l.b16 %v1311
    %v1429 = vunpack.c.h.b16 %v1311
    %v1430 = vunpack.c.l.b16 %v1312
    %v1431 = vunpack.c.h.b16 %v1312
    %v1432 = vunpack.c.l.b16 %v1313
    %v1433 = vunpack.c.h.b16 %v1313
    %v1434 = vunpack.c.l.b16 %v1314
    %v1435 = vunpack.c.h.b16 %v1314
    %v1436 = vunpack.c.l.b16 %v1315
    %v1437 = vunpack.c.h.b16 %v1315
    %v1438 = vunpack.c.l.b16 %v1316
    %v1439 = vunpack.c.h.b16 %v1316
    %v1440 = vpack.c.b16 %v1358, %v1358
    %v1441 = vpack.c.b16 %v1359, %v1359
    %v1442 = vpack.c.b16 %v1360, %v1360
    %v1443 = vpack.c.b16 %v1361, %v1361
    %v1444 = vpack.c.b16 %v1362, %v1362
    %v1445 = vpack.c.b16 %v1363, %v1363
    %v1446 = vpack.c.b16 %v1364, %v1364
    %v1447 = vpack.c.b16 %v1365, %v1365
    %v1448 = vpack.c.b16 %v1366, %v1366
    %v1449 = vpack.c.b16 %v1367, %v1367
    %v1450 = vpack.c.b16 %v1368, %v1368
    %v1451 = vpack.c.b16 %v1369, %v1369
    %v1452 = vpack.c.b16 %v1370, %v1370
    %v1453 = vpack.c.b16 %v1371, %v1371
    %v1454 = vpack.c.b16 %v1372, %v1372
    %v1455 = vpack.c.b16 %v1373, %v1373
    %v1456 = vpack.c.b16 %v1374, %v1374
    %v1457 = vpack.c.b16 %v1375, %v1375
    %v1458 = vpack.c.b16 %v1376, %v1376
    %v1459 = vpack.c.b16 %v1377, %v1377
    %v1460 = vpack.c.b16 %v1378, %v1378
    %v1461 = vpack.c.b16 %v1379, %v1379
    %v1462 = vpack.c.b16 %v1380, %v1380
    %v1463 = vpack.c.b16 %v1381, %v1381
    %v1464 = vpack.c.b16 %v1382, %v1382
    %v1465 = vpack.c.b16 %v1383, %v1383
    %v1466 = vpack.c.b16 %v1384, %v1384
    %v1467 = vpack.c.b16 %v1385, %v1385
    %v1468 = vpack.c.b16 %v1386, %v1386
    %v1469 = vpack.c.b16 %v1387, %v1387
    %v1470 = vpack.c.b16 %v1388, %v1388
    %v1471 = vpack.c.b16 %v1389, %v1389
    %v1472 = vpack.c.b16 %v1390, %v1390
    %v1473 = vpack.c.b16 %v1391, %v1391
    %v1474 = vpack.c.b16 %v1392, %v1392
    %v1475 = vpack.c.b16 %v1393, %v1393
    %v1476 = vpack.c.b16 %v1394, %v1394
    %v1477 = vpack.c.b16 %v1395, %v1395
    %v1478 = vpack.c.b16 %v1396, %v1396
    %v1479 = vpack.c.b16 %v1397, %v1397
    %v1480 = vpack.c.b16 %v1398, %v1398
    %v1481 = vpack.c.b16 %v1399, %v1399
    %v1482 = vpack.c.b16 %v1400, %v1400
    %v1483 = vpack.c.b16 %v1401, %v1401
    %v1484 = vpack.c.b16 %v1402, %v1402
    %v1485 = vpack.c.b16 %v1403, %v1403
    %v1486 = vpack.c.b16 %v1404, %v1404
    %v1487 = vpack.c.b16 %v1405, %v1405
    %v1488 = vpack.c.b16 %v1406, %v1406
    %v1489 = vpack.c.b16 %v1407, %v1407
    %v1490 = vpack.c.b16 %v1408, %v1408
    %v1491 = vpack.c.b16 %v1409, %v1409
    %v1492 = vpack.c.b16 %v1410, %v1410
    %v1493 = vpack.c.b16 %v1411, %v1411
    %v1494 = vpack.c.b16 %v1412, %v1412
    %v1495 = vpack.c.b16 %v1413, %v1413
    %v1496 = vpack.c.b16 %v1414, %v1414
    %v1497 = vpack.c.b16 %v1415, %v1415
    %v1498 = vpack.c.b16 %v1416, %v1416
    %v1499 = vpack.c.b16 %v1417, %v1417
    %v1500 = vpack.c.b16 %v1418, %v1418
    %v1501 = vpack.c.b16 %v1419, %v1419
    %v1502 = vpack.c.b16 %v1420, %v1420
    %v1503 = vpack.c.b16 %v1421, %v1421
    %v1504 = vpack.c.b16 %v1422, %v1422
    %v1505 = vpack.c.b16 %v1423, %v1423
    %v1506 = vpack.c.b16 %v1424, %v1424
    %v1507 = vpack.c.b16 %v1425, %v1425
    %v1508 = vpack.c.b16 %v1426, %v1426
    %v1509 = vpack.c.b16 %v1427, %v1427
    %v1510 = vpack.c.b16 %v1428, %v1428
    %v1511 = vpack.c.b16 %v1429, %v1429
    %v1512 = vpack.c.b16 %v1430, %v1430
    %v1513 = vpack.c.b16 %v1431, %v1431
    %v1514 = vpack.c.b16 %v1432, %v1432
    %v1515 = vpack.c.b16 %v1433, %v1433
    %v1516 = vpack.c.b16 %v1434, %v1434
    %v1517 = vpack.c.b16 %v1435, %v1435
    %v1518 = vpack.c.b16 %v1436, %v1436
    %v1519 = vpack.c.b16 %v1437, %v1437
    %v1520 = vpack.c.b16 %v1438, %v1438
    %v1521 = vpack.c.b16 %v1439, %v1439
    %1604 = vst [vmem:[%s3] sm:$0xf] %v1440
    %1605 = vst [vmem:[%s3 + $0x4] sm:$0xf] %v1441
    %1606 = vst [vmem:[%s3 + $0x8] sm:$0xf] %v1442
    %1607 = vst [vmem:[%s3 + $0xc] sm:$0xf] %v1443
    %1608 = vst [vmem:[%s3 + $0x10] sm:$0xf] %v1444
    %1609 = vst [vmem:[%s3 + $0x14] sm:$0xf] %v1445
    %1610 = vst [vmem:[%s3 + $0x18] sm:$0xf] %v1446
    %1611 = vst [vmem:[%s3 + $0x1c] sm:$0xf] %v1447
    %1612 = vst [vmem:[%s3 + $0x20] sm:$0xf] %v1448
    %1613 = vst [vmem:[%s3 + $0x24] sm:$0xf] %v1449
    %1614 = vst [vmem:[%s3 + $0x28] sm:$0xf] %v1450
    %1615 = vst [vmem:[%s3 + $0x2c] sm:$0xf] %v1451
    %1616 = vst [vmem:[%s3 + $0x30] sm:$0xf] %v1452
    %1617 = vst [vmem:[%s3 + $0x34] sm:$0xf] %v1453
    %1618 = vst [vmem:[%s3 + $0x38] sm:$0xf] %v1454
    %1619 = vst [vmem:[%s3 + $0x3c] sm:$0xf] %v1455
    %1620 = vst [vmem:[%s3 + $0x40] sm:$0xf] %v1456
    %1621 = vst [vmem:[%s3 + $0x44] sm:$0xf] %v1457
    %1622 = vst [vmem:[%s3 + $0x48] sm:$0xf] %v1458
    %1623 = vst [vmem:[%s3 + $0x4c] sm:$0xf] %v1459
    %1624 = vst [vmem:[%s3 + $0x50] sm:$0xf] %v1460
    %1625 = vst [vmem:[%s3 + $0x54] sm:$0xf] %v1461
    %1626 = vst [vmem:[%s3 + $0x58] sm:$0xf] %v1462
    %1627 = vst [vmem:[%s3 + $0x5c] sm:$0xf] %v1463
    %1628 = vst [vmem:[%s3 + $0x60] sm:$0xf] %v1464
    %1629 = vst [vmem:[%s3 + $0x64] sm:$0xf] %v1465
    %1630 = vst [vmem:[%s3 + $0x68] sm:$0xf] %v1466
    %1631 = vst [vmem:[%s3 + $0x6c] sm:$0xf] %v1467
    %1632 = vst [vmem:[%s3 + $0x70] sm:$0xf] %v1468
    %1633 = vst [vmem:[%s3 + $0x74] sm:$0xf] %v1469
    %1634 = vst [vmem:[%s3 + $0x78] sm:$0xf] %v1470
    %1635 = vst [vmem:[%s3 + $0x7c] sm:$0xf] %v1471
    %1636 = vst [vmem:[%s3 + $0x80] sm:$0xf] %v1472
    %1637 = vst [vmem:[%s3 + $0x84] sm:$0xf] %v1473
    %1638 = vst [vmem:[%s3 + $0x88] sm:$0xf] %v1474
    %1639 = vst [vmem:[%s3 + $0x8c] sm:$0xf] %v1475
    %1640 = vst [vmem:[%s3 + $0x90] sm:$0xf] %v1476
    %1641 = vst [vmem:[%s3 + $0x94] sm:$0xf] %v1477
    %1642 = vst [vmem:[%s3 + $0x98] sm:$0xf] %v1478
    %1643 = vst [vmem:[%s3 + $0x9c] sm:$0xf] %v1479
    %1644 = vst [vmem:[%s3 + $0xa0] sm:$0xf] %v1480
    %1645 = vst [vmem:[%s3 + $0xa4] sm:$0xf] %v1481
    %1646 = vst [vmem:[%s3 + $0xa8] sm:$0xf] %v1482
    %1647 = vst [vmem:[%s3 + $0xac] sm:$0xf] %v1483
    %1648 = vst [vmem:[%s3 + $0xb0] sm:$0xf] %v1484
    %1649 = vst [vmem:[%s3 + $0xb4] sm:$0xf] %v1485
    %1650 = vst [vmem:[%s3 + $0xb8] sm:$0xf] %v1486
    %1651 = vst [vmem:[%s3 + $0xbc] sm:$0xf] %v1487
    %1652 = vst [vmem:[%s3 + $0xc0] sm:$0xf] %v1488
    %1653 = vst [vmem:[%s3 + $0xc4] sm:$0xf] %v1489
    %1654 = vst [vmem:[%s3 + $0xc8] sm:$0xf] %v1490
    %1655 = vst [vmem:[%s3 + $0xcc] sm:$0xf] %v1491
    %1656 = vst [vmem:[%s3 + $0xd0] sm:$0xf] %v1492
    %1657 = vst [vmem:[%s3 + $0xd4] sm:$0xf] %v1493
    %1658 = vst [vmem:[%s3 + $0xd8] sm:$0xf] %v1494
    %1659 = vst [vmem:[%s3 + $0xdc] sm:$0xf] %v1495
    %1660 = vst [vmem:[%s3 + $0xe0] sm:$0xf] %v1496
    %1661 = vst [vmem:[%s3 + $0xe4] sm:$0xf] %v1497
    %1662 = vst [vmem:[%s3 + $0xe8] sm:$0xf] %v1498
    %1663 = vst [vmem:[%s3 + $0xec] sm:$0xf] %v1499
    %1664 = vst [vmem:[%s3 + $0xf0] sm:$0xf] %v1500
    %1665 = vst [vmem:[%s3 + $0xf4] sm:$0xf] %v1501
    %1666 = vst [vmem:[%s3 + $0xf8] sm:$0xf] %v1502
    %1667 = vst [vmem:[%s3 + $0xfc] sm:$0xf] %v1503
    %1668 = vst [vmem:[%s3 + $0x100] sm:$0xf] %v1504
    %1669 = vst [vmem:[%s3 + $0x104] sm:$0xf] %v1505
    %1670 = vst [vmem:[%s3 + $0x108] sm:$0xf] %v1506
    %1671 = vst [vmem:[%s3 + $0x10c] sm:$0xf] %v1507
    %1672 = vst [vmem:[%s3 + $0x110] sm:$0xf] %v1508
    %1673 = vst [vmem:[%s3 + $0x114] sm:$0xf] %v1509
    %1674 = vst [vmem:[%s3 + $0x118] sm:$0xf] %v1510
    %1675 = vst [vmem:[%s3 + $0x11c] sm:$0xf] %v1511
    %1676 = vst [vmem:[%s3 + $0x120] sm:$0xf] %v1512
    %1677 = vst [vmem:[%s3 + $0x124] sm:$0xf] %v1513
    %1678 = vst [vmem:[%s3 + $0x128] sm:$0xf] %v1514
    %1679 = vst [vmem:[%s3 + $0x12c] sm:$0xf] %v1515
    %1680 = vst [vmem:[%s3 + $0x130] sm:$0xf] %v1516
    %1681 = vst [vmem:[%s3 + $0x134] sm:$0xf] %v1517
    %1682 = vst [vmem:[%s3 + $0x138] sm:$0xf] %v1518
    %1683 = vst [vmem:[%s3 + $0x13c] sm:$0xf] %v1519
    %1684 = vst [vmem:[%s3 + $0x140] sm:$0xf] %v1520
    %1685 = vst [vmem:[%s3 + $0x144] sm:$0xf] %v1521
    %v1686 = vadd.f32 %v1194, %v1195
    %v1687 = vadd.f32 %v1686, %v1196
    %v1688 = vadd.f32 %v1687, %v1197
    %v1689 = vadd.f32 %v1688, %v1198
    %v1690 = vadd.f32 %v1689, %v1199
    %v1691 = vadd.f32 %v1690, %v1200
    %v1692 = vadd.f32 %v1691, %v1201
    %v1693 = vadd.f32 %v1692, %v1202
    %v1694 = vadd.f32 %v1693, %v1203
    %v1695 = vadd.f32 %v1694, %v1204
    %v1696 = vadd.f32 %v1695, %v1205
    %v1697 = vadd.f32 %v1696, %v1206
    %v1698 = vadd.f32 %v1697, %v1207
    %v1699 = vadd.f32 %v1698, %v1208
    %v1700 = vadd.f32 %v1699, %v1209
    %v1701 = vadd.f32 %v1700, %v1210
    %v1702 = vadd.f32 %v1701, %v1211
    %v1703 = vadd.f32 %v1702, %v1212
    %v1704 = vadd.f32 %v1703, %v1213
    %v1705 = vadd.f32 %v1704, %v1214
    %v1706 = vadd.f32 %v1705, %v1215
    %v1707 = vadd.f32 %v1706, %v1216
    %v1708 = vadd.f32 %v1707, %v1217
    %v1709 = vadd.f32 %v1708, %v1218
    %v1710 = vadd.f32 %v1709, %v1219
    %v1711 = vadd.f32 %v1710, %v1220
    %v1712 = vadd.f32 %v1711, %v1221
    %v1713 = vadd.f32 %v1712, %v1222
    %v1714 = vadd.f32 %v1713, %v1223
    %v1715 = vadd.f32 %v1714, %v1224
    %v1716 = vadd.f32 %v1715, %v1225
    %v1717 = vadd.f32 %v1716, %v1226
    %v1718 = vadd.f32 %v1717, %v1227
    %v1719 = vadd.f32 %v1718, %v1228
    %v1720 = vadd.f32 %v1719, %v1229
    %v1721 = vadd.f32 %v1720, %v1230
    %v1722 = vadd.f32 %v1721, %v1231
    %v1723 = vadd.f32 %v1722, %v1232
    %v1724 = vadd.f32 %v1723, %v1233
    %v1725 = vadd.f32 %v1724, %v1234
    %v1726 = vadd.f32 %v1725, %v1235
    %v1727 = vadd.f32 %v1726, %v1236
    %v1728 = vadd.f32 %v1727, %v1237
    %v1729 = vadd.f32 %v1728, %v1238
    %v1730 = vadd.f32 %v1729, %v1239
    %v1731 = vadd.f32 %v1730, %v1240
    %v1732 = vadd.f32 %v1731, %v1241
    %v1733 = vadd.f32 %v1732, %v1242
    %v1734 = vadd.f32 %v1733, %v1243
    %v1735 = vadd.f32 %v1734, %v1244
    %v1736 = vadd.f32 %v1735, %v1245
    %v1737 = vadd.f32 %v1736, %v1246
    %v1738 = vadd.f32 %v1737, %v1247
    %v1739 = vadd.f32 %v1738, %v1248
    %v1740 = vadd.f32 %v1739, %v1249
    %v1741 = vadd.f32 %v1740, %v1250
    %v1742 = vadd.f32 %v1741, %v1251
    %v1743 = vadd.f32 %v1742, %v1252
    %v1744 = vadd.f32 %v1743, %v1253
    %v1745 = vadd.f32 %v1744, %v1254
    %v1746 = vadd.f32 %v1745, %v1255
    %v1747 = vadd.f32 %v1746, %v1256
    %v1748 = vadd.f32 %v1747, %v1257
    %v1749 = vadd.f32 %v1748, %v1258
    %v1750 = vadd.f32 %v1749, %v1259
    %v1751 = vadd.f32 %v1750, %v1260
    %v1752 = vadd.f32 %v1751, %v1261
    %v1753 = vadd.f32 %v1752, %v1262
    %v1754 = vadd.f32 %v1753, %v1263
    %v1755 = vadd.f32 %v1754, %v1264
    %v1756 = vadd.f32 %v1755, %v1265
    %v1757 = vadd.f32 %v1756, %v1266
    %v1758 = vadd.f32 %v1757, %v1267
    %v1759 = vadd.f32 %v1758, %v1268
    %v1760 = vadd.f32 %v1759, %v1269
    %v1761 = vadd.f32 %v1760, %v1270
    %v1762 = vadd.f32 %v1761, %v1271
    %v1763 = vadd.f32 %v1762, %v1272
    %v1764 = vadd.f32 %v1763, %v1273
    %v1765 = vadd.f32 %v1764, %v1274
    %v1766 = vadd.f32 %v1765, %v1275
    %v1767 = vrot.slane %v1766, 4
    %v1768 = vadd.f32 %v1766, %v1767
    %v1769 = vrot.slane %v1768, 2
    %v1770 = vadd.f32 %v1768, %v1769
    %v1771 = vrot.slane %v1770, 1
    %v1772 = vadd.f32 %v1770, %v1771
    %v1773 = vmul.f32 %v1194, %v1194
    %v1774 = vmul.f32 %v1195, %v1195
    %v1775 = vmul.f32 %v1196, %v1196
    %v1776 = vmul.f32 %v1197, %v1197
    %v1777 = vmul.f32 %v1198, %v1198
    %v1778 = vmul.f32 %v1199, %v1199
    %v1779 = vmul.f32 %v1200, %v1200
    %v1780 = vmul.f32 %v1201, %v1201
    %v1781 = vmul.f32 %v1202, %v1202
    %v1782 = vmul.f32 %v1203, %v1203
    %v1783 = vmul.f32 %v1204, %v1204
    %v1784 = vmul.f32 %v1205, %v1205
    %v1785 = vmul.f32 %v1206, %v1206
    %v1786 = vmul.f32 %v1207, %v1207
    %v1787 = vmul.f32 %v1208, %v1208
    %v1788 = vmul.f32 %v1209, %v1209
    %v1789 = vmul.f32 %v1210, %v1210
    %v1790 = vmul.f32 %v1211, %v1211
    %v1791 = vmul.f32 %v1212, %v1212
    %v1792 = vmul.f32 %v1213, %v1213
    %v1793 = vmul.f32 %v1214, %v1214
    %v1794 = vmul.f32 %v1215, %v1215
    %v1795 = vmul.f32 %v1216, %v1216
    %v1796 = vmul.f32 %v1217, %v1217
    %v1797 = vmul.f32 %v1218, %v1218
    %v1798 = vmul.f32 %v1219, %v1219
    %v1799 = vmul.f32 %v1220, %v1220
    %v1800 = vmul.f32 %v1221, %v1221
    %v1801 = vmul.f32 %v1222, %v1222
    %v1802 = vmul.f32 %v1223, %v1223
    %v1803 = vmul.f32 %v1224, %v1224
    %v1804 = vmul.f32 %v1225, %v1225
    %v1805 = vmul.f32 %v1226, %v1226
    %v1806 = vmul.f32 %v1227, %v1227
    %v1807 = vmul.f32 %v1228, %v1228
    %v1808 = vmul.f32 %v1229, %v1229
    %v1809 = vmul.f32 %v1230, %v1230
    %v1810 = vmul.f32 %v1231, %v1231
    %v1811 = vmul.f32 %v1232, %v1232
    %v1812 = vmul.f32 %v1233, %v1233
    %v1813 = vmul.f32 %v1234, %v1234
    %v1814 = vmul.f32 %v1235, %v1235
    %v1815 = vmul.f32 %v1236, %v1236
    %v1816 = vmul.f32 %v1237, %v1237
    %v1817 = vmul.f32 %v1238, %v1238
    %v1818 = vmul.f32 %v1239, %v1239
    %v1819 = vmul.f32 %v1240, %v1240
    %v1820 = vmul.f32 %v1241, %v1241
    %v1821 = vmul.f32 %v1242, %v1242
    %v1822 = vmul.f32 %v1243, %v1243
    %v1823 = vmul.f32 %v1244, %v1244
    %v1824 = vmul.f32 %v1245, %v1245
    %v1825 = vmul.f32 %v1246, %v1246
    %v1826 = vmul.f32 %v1247, %v1247
    %v1827 = vmul.f32 %v1248, %v1248
    %v1828 = vmul.f32 %v1249, %v1249
    %v1829 = vmul.f32 %v1250, %v1250
    %v1830 = vmul.f32 %v1251, %v1251
    %v1831 = vmul.f32 %v1252, %v1252
    %v1832 = vmul.f32 %v1253, %v1253
    %v1833 = vmul.f32 %v1254, %v1254
    %v1834 = vmul.f32 %v1255, %v1255
    %v1835 = vmul.f32 %v1256, %v1256
    %v1836 = vmul.f32 %v1257, %v1257
    %v1837 = vmul.f32 %v1258, %v1258
    %v1838 = vmul.f32 %v1259, %v1259
    %v1839 = vmul.f32 %v1260, %v1260
    %v1840 = vmul.f32 %v1261, %v1261
    %v1841 = vmul.f32 %v1262, %v1262
    %v1842 = vmul.f32 %v1263, %v1263
    %v1843 = vmul.f32 %v1264, %v1264
    %v1844 = vmul.f32 %v1265, %v1265
    %v1845 = vmul.f32 %v1266, %v1266
    %v1846 = vmul.f32 %v1267, %v1267
    %v1847 = vmul.f32 %v1268, %v1268
    %v1848 = vmul.f32 %v1269, %v1269
    %v1849 = vmul.f32 %v1270, %v1270
    %v1850 = vmul.f32 %v1271, %v1271
    %v1851 = vmul.f32 %v1272, %v1272
    %v1852 = vmul.f32 %v1273, %v1273
    %v1853 = vmul.f32 %v1274, %v1274
    %v1854 = vmul.f32 %v1275, %v1275
    %v1855 = vadd.f32 %v1773, %v1774
    %v1856 = vadd.f32 %v1855, %v1775
    %v1857 = vadd.f32 %v1856, %v1776
    %v1858 = vadd.f32 %v1857, %v1777
    %v1859 = vadd.f32 %v1858, %v1778
    %v1860 = vadd.f32 %v1859, %v1779
    %v1861 = vadd.f32 %v1860, %v1780
    %v1862 = vadd.f32 %v1861, %v1781
    %v1863 = vadd.f32 %v1862, %v1782
    %v1864 = vadd.f32 %v1863, %v1783
    %v1865 = vadd.f32 %v1864, %v1784
    %v1866 = vadd.f32 %v1865, %v1785
    %v1867 = vadd.f32 %v1866, %v1786
    %v1868 = vadd.f32 %v1867, %v1787
    %v1869 = vadd.f32 %v1868, %v1788
    %v1870 = vadd.f32 %v1869, %v1789
    %v1871 = vadd.f32 %v1870, %v1790
    %v1872 = vadd.f32 %v1871, %v1791
    %v1873 = vadd.f32 %v1872, %v1792
    %v1874 = vadd.f32 %v1873, %v1793
    %v1875 = vadd.f32 %v1874, %v1794
    %v1876 = vadd.f32 %v1875, %v1795
    %v1877 = vadd.f32 %v1876, %v1796
    %v1878 = vadd.f32 %v1877, %v1797
    %v1879 = vadd.f32 %v1878, %v1798
    %v1880 = vadd.f32 %v1879, %v1799
    %v1881 = vadd.f32 %v1880, %v1800
    %v1882 = vadd.f32 %v1881, %v1801
    %v1883 = vadd.f32 %v1882, %v1802
    %v1884 = vadd.f32 %v1883, %v1803
    %v1885 = vadd.f32 %v1884, %v1804
    %v1886 = vadd.f32 %v1885, %v1805
    %v1887 = vadd.f32 %v1886, %v1806
    %v1888 = vadd.f32 %v1887, %v1807
    %v1889 = vadd.f32 %v1888, %v1808
    %v1890 = vadd.f32 %v1889, %v1809
    %v1891 = vadd.f32 %v1890, %v1810
    %v1892 = vadd.f32 %v1891, %v1811
    %v1893 = vadd.f32 %v1892, %v1812
    %v1894 = vadd.f32 %v1893, %v1813
    %v1895 = vadd.f32 %v1894, %v1814
    %v1896 = vadd.f32 %v1895, %v1815
    %v1897 = vadd.f32 %v1896, %v1816
    %v1898 = vadd.f32 %v1897, %v1817
    %v1899 = vadd.f32 %v1898, %v1818
    %v1900 = vadd.f32 %v1899, %v1819
    %v1901 = vadd.f32 %v1900, %v1820
    %v1902 = vadd.f32 %v1901, %v1821
    %v1903 = vadd.f32 %v1902, %v1822
    %v1904 = vadd.f32 %v1903, %v1823
    %v1905 = vadd.f32 %v1904, %v1824
    %v1906 = vadd.f32 %v1905, %v1825
    %v1907 = vadd.f32 %v1906, %v1826
    %v1908 = vadd.f32 %v1907, %v1827
    %v1909 = vadd.f32 %v1908, %v1828
    %v1910 = vadd.f32 %v1909, %v1829
    %v1911 = vadd.f32 %v1910, %v1830
    %v1912 = vadd.f32 %v1911, %v1831
    %v1913 = vadd.f32 %v1912, %v1832
    %v1914 = vadd.f32 %v1913, %v1833
    %v1915 = vadd.f32 %v1914, %v1834
    %v1916 = vadd.f32 %v1915, %v1835
    %v1917 = vadd.f32 %v1916, %v1836
    %v1918 = vadd.f32 %v1917, %v1837
    %v1919 = vadd.f32 %v1918, %v1838
    %v1920 = vadd.f32 %v1919, %v1839
    %v1921 = vadd.f32 %v1920, %v1840
    %v1922 = vadd.f32 %v1921, %v1841
    %v1923 = vadd.f32 %v1922, %v1842
    %v1924 = vadd.f32 %v1923, %v1843
    %v1925 = vadd.f32 %v1924, %v1844
    %v1926 = vadd.f32 %v1925, %v1845
    %v1927 = vadd.f32 %v1926, %v1846
    %v1928 = vadd.f32 %v1927, %v1847
    %v1929 = vadd.f32 %v1928, %v1848
    %v1930 = vadd.f32 %v1929, %v1849
    %v1931 = vadd.f32 %v1930, %v1850
    %v1932 = vadd.f32 %v1931, %v1851
    %v1933 = vadd.f32 %v1932, %v1852
    %v1934 = vadd.f32 %v1933, %v1853
    %v1935 = vadd.f32 %v1934, %v1854
    %v1936 = vrot.slane %v1935, 4
    %v1937 = vadd.f32 %v1935, %v1936
    %v1938 = vrot.slane %v1937, 2
    %v1939 = vadd.f32 %v1937, %v1938
    %v1940 = vrot.slane %v1939, 1
    %v1941 = vadd.f32 %v1939, %v1940
    %vm1942 = vcmask 1040384
    %v1943 = vsel %vm1942, %v1772, %v1941
    %1944 = vst [vmem:[%s4] sm:$0x3] %v1943
  $region21: #{bottleneck_forward.4} parent=0 // pred_fallthru
    _
  // Predicated region
  $region22: #{bottleneck_forward.4} parent=0 // pred_check
    _
  $region23: #{bottleneck_forward.4} parent=0 // pred_check_branch
    %1946 = sbr.rel (0) target = $region25
  $region24: #{bottleneck_forward.4} parent=0 // pred_region
    _
  $region25: #{bottleneck_forward.4} parent=0 // pred_fallthru
    _
  // Predicated region
  $region26: #{bottleneck_forward.4} parent=0 // pred_check
    _
  $region27: #{bottleneck_forward.4} parent=0 // pred_check_branch
    %1948 = sbr.rel (0) target = $region29
  $region28: #{bottleneck_forward.4} parent=0 // pred_region
    _
  $region29: #{bottleneck_forward.4} parent=0 // pred_fallthru
    _
  // Predicated region
  $region30: #{bottleneck_forward.4} parent=0 // pred_check
    _
  $region31: #{bottleneck_forward.4} parent=0 // pred_check_branch
    %1950 = sbr.rel (0) target = $region33
  $region32: #{bottleneck_forward.4} parent=0 // pred_region
    _
  $region33: #{bottleneck_forward.4} parent=0 // pred_fallthru
    _
  // Predicated region
  $region34: #{bottleneck_forward.4} parent=0 // pred_check
    _
  $region35: #{bottleneck_forward.4} parent=0 // pred_check_branch
    %1952 = sbr.rel (0) target = $region37
  $region36: #{bottleneck_forward.4} parent=0 // pred_region
    _
  $region37: #{bottleneck_forward.4} parent=0 // pred_fallthru
    _

// kernel: bottleneck_forward.6
$region0: #{bottleneck_forward.6}
  #allocation0 [shape = 'u32[]', space=smem, size = 0x4, offset = 0x4, fixed_abs, tag = 'smem constant byte address 0x4 - core index']
  #allocation1 [shape = 'u32[144,128]{1,0:T(1,128)}', space=vmem, size = 0x12000, scoped, tag = 'internal scratch']
  #allocation2 [shape = 'f32[1152,128]{1,0:T(8,128)}', space=vmem, size = 0x90000, scoped, tag = 'scratch operand']
  %s0 = inlined_call_operand.vmem [shape: bf16[1152,128], index: 0, kind: input, shape index: {}]
  %s1 = inlined_call_operand.vmem [shape: f32[1,128], index: 1, kind: input, shape index: {}]
  %s2 = inlined_call_operand.vmem [shape: f32[1,128], index: 2, kind: input, shape index: {}]
  %s3 = inlined_call_operand.vmem [shape: bf16[128,128], index: 3, kind: input, shape index: {}]
  %s4 = inlined_call_operand.vmem [shape: f32[1,128], index: 4, kind: input, shape index: {}]
  %s5 = inlined_call_operand.vmem [shape: bf16[1152,128], index: 5, kind: output, shape index: {0}]
  %s6 = inlined_call_operand.vmem [shape: f32[1,2,128], index: 6, kind: output, shape index: {1}]
  %7 = xla_tuple %s5, %s6
  %s8 = sld [smem:[#allocation0]]
  $region46: #{bottleneck_forward.6} parent=0
    _
  %s10 = ssub.s32 1, %s8
  %s11 = scalar_select 0, %s10, %s8
  // Predicated region
  $region2: #{bottleneck_forward.6} parent=0 // pred_check
    _
  $region3: #{bottleneck_forward.6} parent=0 // pred_check_branch
    %13 = sbr.rel (0) target = $region5
  $region4: #{bottleneck_forward.6} parent=0 // pred_region
    _
  $region5: #{bottleneck_forward.6} parent=0 // pred_fallthru
    _
  // Predicated region
  $region6: #{bottleneck_forward.6} parent=0 // pred_check
    _
  $region7: #{bottleneck_forward.6} parent=0 // pred_check_branch
    %15 = sbr.rel (0) target = $region9
  $region8: #{bottleneck_forward.6} parent=0 // pred_region
    _
  $region9: #{bottleneck_forward.6} parent=0 // pred_fallthru
    _
  // Predicated region
  $region10: #{bottleneck_forward.6} parent=0 // pred_check
    _
  $region11: #{bottleneck_forward.6} parent=0 // pred_check_branch
    %17 = sbr.rel (0) target = $region13
  $region12: #{bottleneck_forward.6} parent=0 // pred_region
    _
  $region13: #{bottleneck_forward.6} parent=0 // pred_fallthru
    _
  // Predicated region
  $region14: #{bottleneck_forward.6} parent=0 // pred_check
    _
  $region15: #{bottleneck_forward.6} parent=0 // pred_check_branch
    %19 = sbr.rel (0) target = $region17
  $region16: #{bottleneck_forward.6} parent=0 // pred_region
    _
  $region17: #{bottleneck_forward.6} parent=0 // pred_fallthru
    _
  // Predicated region
  $region18: #{bottleneck_forward.6} parent=0 // pred_check
    _
  $region19: #{bottleneck_forward.6} parent=0 // pred_check_branch
    %21 = sbr.rel (0) target = $region21
  $region20: #{bottleneck_forward.6} parent=0 // pred_region
    _
  $region21: #{bottleneck_forward.6} parent=0 // pred_fallthru
    _
  %p23 = scmp.eq.s32.totalorder 0, 0
  // Predicated region
  $region22: #{bottleneck_forward.6} parent=0 // pred_check
    %p24 = pneg %p23
  $region23: #{bottleneck_forward.6} parent=0 // pred_check_branch
    %26 = sbr.rel (%p24) target = $region25
  $region24: #{bottleneck_forward.6} parent=0 // pred_region
    %27 = vst [vmem:[#allocation2] sm:$0xff] 0.0
    %28 = vst [vmem:[#allocation2 + $0x8] sm:$0xff] 0.0
    %29 = vst [vmem:[#allocation2 + $0x10] sm:$0xff] 0.0
    %30 = vst [vmem:[#allocation2 + $0x18] sm:$0xff] 0.0
    %31 = vst [vmem:[#allocation2 + $0x20] sm:$0xff] 0.0
    %32 = vst [vmem:[#allocation2 + $0x28] sm:$0xff] 0.0
    %33 = vst [vmem:[#allocation2 + $0x30] sm:$0xff] 0.0
    %34 = vst [vmem:[#allocation2 + $0x38] sm:$0xff] 0.0
    %35 = vst [vmem:[#allocation2 + $0x40] sm:$0xff] 0.0
    %36 = vst [vmem:[#allocation2 + $0x48] sm:$0xff] 0.0
    %37 = vst [vmem:[#allocation2 + $0x50] sm:$0xff] 0.0
    %38 = vst [vmem:[#allocation2 + $0x58] sm:$0xff] 0.0
    %39 = vst [vmem:[#allocation2 + $0x60] sm:$0xff] 0.0
    %40 = vst [vmem:[#allocation2 + $0x68] sm:$0xff] 0.0
    %41 = vst [vmem:[#allocation2 + $0x70] sm:$0xff] 0.0
    %42 = vst [vmem:[#allocation2 + $0x78] sm:$0xff] 0.0
    %43 = vst [vmem:[#allocation2 + $0x80] sm:$0xff] 0.0
    %44 = vst [vmem:[#allocation2 + $0x88] sm:$0xff] 0.0
    %45 = vst [vmem:[#allocation2 + $0x90] sm:$0xff] 0.0
    %46 = vst [vmem:[#allocation2 + $0x98] sm:$0xff] 0.0
    %47 = vst [vmem:[#allocation2 + $0xa0] sm:$0xff] 0.0
    %48 = vst [vmem:[#allocation2 + $0xa8] sm:$0xff] 0.0
    %49 = vst [vmem:[#allocation2 + $0xb0] sm:$0xff] 0.0
    %50 = vst [vmem:[#allocation2 + $0xb8] sm:$0xff] 0.0
    %51 = vst [vmem:[#allocation2 + $0xc0] sm:$0xff] 0.0
    %52 = vst [vmem:[#allocation2 + $0xc8] sm:$0xff] 0.0
    %53 = vst [vmem:[#allocation2 + $0xd0] sm:$0xff] 0.0
    %54 = vst [vmem:[#allocation2 + $0xd8] sm:$0xff] 0.0
    %55 = vst [vmem:[#allocation2 + $0xe0] sm:$0xff] 0.0
    %56 = vst [vmem:[#allocation2 + $0xe8] sm:$0xff] 0.0
    %57 = vst [vmem:[#allocation2 + $0xf0] sm:$0xff] 0.0
    %58 = vst [vmem:[#allocation2 + $0xf8] sm:$0xff] 0.0
    %59 = vst [vmem:[#allocation2 + $0x100] sm:$0xff] 0.0
    %60 = vst [vmem:[#allocation2 + $0x108] sm:$0xff] 0.0
    %61 = vst [vmem:[#allocation2 + $0x110] sm:$0xff] 0.0
    %62 = vst [vmem:[#allocation2 + $0x118] sm:$0xff] 0.0
    %63 = vst [vmem:[#allocation2 + $0x120] sm:$0xff] 0.0
    %64 = vst [vmem:[#allocation2 + $0x128] sm:$0xff] 0.0
    %65 = vst [vmem:[#allocation2 + $0x130] sm:$0xff] 0.0
    %66 = vst [vmem:[#allocation2 + $0x138] sm:$0xff] 0.0
    %67 = vst [vmem:[#allocation2 + $0x140] sm:$0xff] 0.0
    %68 = vst [vmem:[#allocation2 + $0x148] sm:$0xff] 0.0
    %69 = vst [vmem:[#allocation2 + $0x150] sm:$0xff] 0.0
    %70 = vst [vmem:[#allocation2 + $0x158] sm:$0xff] 0.0
    %71 = vst [vmem:[#allocation2 + $0x160] sm:$0xff] 0.0
    %72 = vst [vmem:[#allocation2 + $0x168] sm:$0xff] 0.0
    %73 = vst [vmem:[#allocation2 + $0x170] sm:$0xff] 0.0
    %74 = vst [vmem:[#allocation2 + $0x178] sm:$0xff] 0.0
    %75 = vst [vmem:[#allocation2 + $0x180] sm:$0xff] 0.0
    %76 = vst [vmem:[#allocation2 + $0x188] sm:$0xff] 0.0
    %77 = vst [vmem:[#allocation2 + $0x190] sm:$0xff] 0.0
    %78 = vst [vmem:[#allocation2 + $0x198] sm:$0xff] 0.0
    %79 = vst [vmem:[#allocation2 + $0x1a0] sm:$0xff] 0.0
    %80 = vst [vmem:[#allocation2 + $0x1a8] sm:$0xff] 0.0
    %81 = vst [vmem:[#allocation2 + $0x1b0] sm:$0xff] 0.0
    %82 = vst [vmem:[#allocation2 + $0x1b8] sm:$0xff] 0.0
    %83 = vst [vmem:[#allocation2 + $0x1c0] sm:$0xff] 0.0
    %84 = vst [vmem:[#allocation2 + $0x1c8] sm:$0xff] 0.0
    %85 = vst [vmem:[#allocation2 + $0x1d0] sm:$0xff] 0.0
    %86 = vst [vmem:[#allocation2 + $0x1d8] sm:$0xff] 0.0
    %87 = vst [vmem:[#allocation2 + $0x1e0] sm:$0xff] 0.0
    %88 = vst [vmem:[#allocation2 + $0x1e8] sm:$0xff] 0.0
    %89 = vst [vmem:[#allocation2 + $0x1f0] sm:$0xff] 0.0
    %90 = vst [vmem:[#allocation2 + $0x1f8] sm:$0xff] 0.0
    %91 = vst [vmem:[#allocation2 + $0x200] sm:$0xff] 0.0
    %92 = vst [vmem:[#allocation2 + $0x208] sm:$0xff] 0.0
    %93 = vst [vmem:[#allocation2 + $0x210] sm:$0xff] 0.0
    %94 = vst [vmem:[#allocation2 + $0x218] sm:$0xff] 0.0
    %95 = vst [vmem:[#allocation2 + $0x220] sm:$0xff] 0.0
    %96 = vst [vmem:[#allocation2 + $0x228] sm:$0xff] 0.0
    %97 = vst [vmem:[#allocation2 + $0x230] sm:$0xff] 0.0
    %98 = vst [vmem:[#allocation2 + $0x238] sm:$0xff] 0.0
    %99 = vst [vmem:[#allocation2 + $0x240] sm:$0xff] 0.0
    %100 = vst [vmem:[#allocation2 + $0x248] sm:$0xff] 0.0
    %101 = vst [vmem:[#allocation2 + $0x250] sm:$0xff] 0.0
    %102 = vst [vmem:[#allocation2 + $0x258] sm:$0xff] 0.0
    %103 = vst [vmem:[#allocation2 + $0x260] sm:$0xff] 0.0
    %104 = vst [vmem:[#allocation2 + $0x268] sm:$0xff] 0.0
    %105 = vst [vmem:[#allocation2 + $0x270] sm:$0xff] 0.0
    %106 = vst [vmem:[#allocation2 + $0x278] sm:$0xff] 0.0
    %107 = vst [vmem:[#allocation2 + $0x280] sm:$0xff] 0.0
    %108 = vst [vmem:[#allocation2 + $0x288] sm:$0xff] 0.0
    %109 = vst [vmem:[#allocation2 + $0x290] sm:$0xff] 0.0
    %110 = vst [vmem:[#allocation2 + $0x298] sm:$0xff] 0.0
    %111 = vst [vmem:[#allocation2 + $0x2a0] sm:$0xff] 0.0
    %112 = vst [vmem:[#allocation2 + $0x2a8] sm:$0xff] 0.0
    %113 = vst [vmem:[#allocation2 + $0x2b0] sm:$0xff] 0.0
    %114 = vst [vmem:[#allocation2 + $0x2b8] sm:$0xff] 0.0
    %115 = vst [vmem:[#allocation2 + $0x2c0] sm:$0xff] 0.0
    %116 = vst [vmem:[#allocation2 + $0x2c8] sm:$0xff] 0.0
    %117 = vst [vmem:[#allocation2 + $0x2d0] sm:$0xff] 0.0
    %118 = vst [vmem:[#allocation2 + $0x2d8] sm:$0xff] 0.0
    %119 = vst [vmem:[#allocation2 + $0x2e0] sm:$0xff] 0.0
    %120 = vst [vmem:[#allocation2 + $0x2e8] sm:$0xff] 0.0
    %121 = vst [vmem:[#allocation2 + $0x2f0] sm:$0xff] 0.0
    %122 = vst [vmem:[#allocation2 + $0x2f8] sm:$0xff] 0.0
    %123 = vst [vmem:[#allocation2 + $0x300] sm:$0xff] 0.0
    %124 = vst [vmem:[#allocation2 + $0x308] sm:$0xff] 0.0
    %125 = vst [vmem:[#allocation2 + $0x310] sm:$0xff] 0.0
    %126 = vst [vmem:[#allocation2 + $0x318] sm:$0xff] 0.0
    %127 = vst [vmem:[#allocation2 + $0x320] sm:$0xff] 0.0
    %128 = vst [vmem:[#allocation2 + $0x328] sm:$0xff] 0.0
    %129 = vst [vmem:[#allocation2 + $0x330] sm:$0xff] 0.0
    %130 = vst [vmem:[#allocation2 + $0x338] sm:$0xff] 0.0
    %131 = vst [vmem:[#allocation2 + $0x340] sm:$0xff] 0.0
    %132 = vst [vmem:[#allocation2 + $0x348] sm:$0xff] 0.0
    %133 = vst [vmem:[#allocation2 + $0x350] sm:$0xff] 0.0
    %134 = vst [vmem:[#allocation2 + $0x358] sm:$0xff] 0.0
    %135 = vst [vmem:[#allocation2 + $0x360] sm:$0xff] 0.0
    %136 = vst [vmem:[#allocation2 + $0x368] sm:$0xff] 0.0
    %137 = vst [vmem:[#allocation2 + $0x370] sm:$0xff] 0.0
    %138 = vst [vmem:[#allocation2 + $0x378] sm:$0xff] 0.0
    %139 = vst [vmem:[#allocation2 + $0x380] sm:$0xff] 0.0
    %140 = vst [vmem:[#allocation2 + $0x388] sm:$0xff] 0.0
    %141 = vst [vmem:[#allocation2 + $0x390] sm:$0xff] 0.0
    %142 = vst [vmem:[#allocation2 + $0x398] sm:$0xff] 0.0
    %143 = vst [vmem:[#allocation2 + $0x3a0] sm:$0xff] 0.0
    %144 = vst [vmem:[#allocation2 + $0x3a8] sm:$0xff] 0.0
    %145 = vst [vmem:[#allocation2 + $0x3b0] sm:$0xff] 0.0
    %146 = vst [vmem:[#allocation2 + $0x3b8] sm:$0xff] 0.0
    %147 = vst [vmem:[#allocation2 + $0x3c0] sm:$0xff] 0.0
    %148 = vst [vmem:[#allocation2 + $0x3c8] sm:$0xff] 0.0
    %149 = vst [vmem:[#allocation2 + $0x3d0] sm:$0xff] 0.0
    %150 = vst [vmem:[#allocation2 + $0x3d8] sm:$0xff] 0.0
    %151 = vst [vmem:[#allocation2 + $0x3e0] sm:$0xff] 0.0
    %152 = vst [vmem:[#allocation2 + $0x3e8] sm:$0xff] 0.0
    %153 = vst [vmem:[#allocation2 + $0x3f0] sm:$0xff] 0.0
    %154 = vst [vmem:[#allocation2 + $0x3f8] sm:$0xff] 0.0
    %155 = vst [vmem:[#allocation2 + $0x400] sm:$0xff] 0.0
    %156 = vst [vmem:[#allocation2 + $0x408] sm:$0xff] 0.0
    %157 = vst [vmem:[#allocation2 + $0x410] sm:$0xff] 0.0
    %158 = vst [vmem:[#allocation2 + $0x418] sm:$0xff] 0.0
    %159 = vst [vmem:[#allocation2 + $0x420] sm:$0xff] 0.0
    %160 = vst [vmem:[#allocation2 + $0x428] sm:$0xff] 0.0
    %161 = vst [vmem:[#allocation2 + $0x430] sm:$0xff] 0.0
    %162 = vst [vmem:[#allocation2 + $0x438] sm:$0xff] 0.0
    %163 = vst [vmem:[#allocation2 + $0x440] sm:$0xff] 0.0
    %164 = vst [vmem:[#allocation2 + $0x448] sm:$0xff] 0.0
    %165 = vst [vmem:[#allocation2 + $0x450] sm:$0xff] 0.0
    %166 = vst [vmem:[#allocation2 + $0x458] sm:$0xff] 0.0
    %167 = vst [vmem:[#allocation2 + $0x460] sm:$0xff] 0.0
    %168 = vst [vmem:[#allocation2 + $0x468] sm:$0xff] 0.0
    %169 = vst [vmem:[#allocation2 + $0x470] sm:$0xff] 0.0
    %170 = vst [vmem:[#allocation2 + $0x478] sm:$0xff] 0.0
  $region25: #{bottleneck_forward.6} parent=0 // pred_fallthru
    _
  %v171 = vld [vmem:[%s0] sm:$0xf]
  %v172 = vld [vmem:[%s0 + $0x4] sm:$0xf]
  %v173 = vld [vmem:[%s0 + $0x8] sm:$0xf]
  %v174 = vld [vmem:[%s0 + $0xc] sm:$0xf]
  %v175 = vld [vmem:[%s0 + $0x10] sm:$0xf]
  %v176 = vld [vmem:[%s0 + $0x14] sm:$0xf]
  %v177 = vld [vmem:[%s0 + $0x18] sm:$0xf]
  %v178 = vld [vmem:[%s0 + $0x1c] sm:$0xf]
  %v179 = vld [vmem:[%s0 + $0x20] sm:$0xf]
  %v180 = vld [vmem:[%s0 + $0x24] sm:$0xf]
  %v181 = vld [vmem:[%s0 + $0x28] sm:$0xf]
  %v182 = vld [vmem:[%s0 + $0x2c] sm:$0xf]
  %v183 = vld [vmem:[%s0 + $0x30] sm:$0xf]
  %v184 = vld [vmem:[%s0 + $0x34] sm:$0xf]
  %v185 = vld [vmem:[%s0 + $0x38] sm:$0xf]
  %v186 = vld [vmem:[%s0 + $0x3c] sm:$0xf]
  %v187 = vld [vmem:[%s0 + $0x40] sm:$0xf]
  %v188 = vld [vmem:[%s0 + $0x44] sm:$0xf]
  %v189 = vld [vmem:[%s0 + $0x48] sm:$0xf]
  %v190 = vld [vmem:[%s0 + $0x4c] sm:$0xf]
  %v191 = vld [vmem:[%s0 + $0x50] sm:$0xf]
  %v192 = vld [vmem:[%s0 + $0x54] sm:$0xf]
  %v193 = vld [vmem:[%s0 + $0x58] sm:$0xf]
  %v194 = vld [vmem:[%s0 + $0x5c] sm:$0xf]
  %v195 = vld [vmem:[%s0 + $0x60] sm:$0xf]
  %v196 = vld [vmem:[%s0 + $0x64] sm:$0xf]
  %v197 = vld [vmem:[%s0 + $0x68] sm:$0xf]
  %v198 = vld [vmem:[%s0 + $0x6c] sm:$0xf]
  %v199 = vld [vmem:[%s0 + $0x70] sm:$0xf]
  %v200 = vld [vmem:[%s0 + $0x74] sm:$0xf]
  %v201 = vld [vmem:[%s0 + $0x78] sm:$0xf]
  %v202 = vld [vmem:[%s0 + $0x7c] sm:$0xf]
  %v203 = vld [vmem:[%s0 + $0x80] sm:$0xf]
  %v204 = vld [vmem:[%s0 + $0x84] sm:$0xf]
  %v205 = vld [vmem:[%s0 + $0x88] sm:$0xf]
  %v206 = vld [vmem:[%s0 + $0x8c] sm:$0xf]
  %v207 = vld [vmem:[%s0 + $0x90] sm:$0xf]
  %v208 = vld [vmem:[%s0 + $0x94] sm:$0xf]
  %v209 = vld [vmem:[%s0 + $0x98] sm:$0xf]
  %v210 = vld [vmem:[%s0 + $0x9c] sm:$0xf]
  %v211 = vld [vmem:[%s0 + $0xa0] sm:$0xf]
  %v212 = vld [vmem:[%s0 + $0xa4] sm:$0xf]
  %v213 = vld [vmem:[%s0 + $0xa8] sm:$0xf]
  %v214 = vld [vmem:[%s0 + $0xac] sm:$0xf]
  %v215 = vld [vmem:[%s0 + $0xb0] sm:$0xf]
  %v216 = vld [vmem:[%s0 + $0xb4] sm:$0xf]
  %v217 = vld [vmem:[%s0 + $0xb8] sm:$0xf]
  %v218 = vld [vmem:[%s0 + $0xbc] sm:$0xf]
  %v219 = vld [vmem:[%s0 + $0xc0] sm:$0xf]
  %v220 = vld [vmem:[%s0 + $0xc4] sm:$0xf]
  %v221 = vld [vmem:[%s0 + $0xc8] sm:$0xf]
  %v222 = vld [vmem:[%s0 + $0xcc] sm:$0xf]
  %v223 = vld [vmem:[%s0 + $0xd0] sm:$0xf]
  %v224 = vld [vmem:[%s0 + $0xd4] sm:$0xf]
  %v225 = vld [vmem:[%s0 + $0xd8] sm:$0xf]
  %v226 = vld [vmem:[%s0 + $0xdc] sm:$0xf]
  %v227 = vld [vmem:[%s0 + $0xe0] sm:$0xf]
  %v228 = vld [vmem:[%s0 + $0xe4] sm:$0xf]
  %v229 = vld [vmem:[%s0 + $0xe8] sm:$0xf]
  %v230 = vld [vmem:[%s0 + $0xec] sm:$0xf]
  %v231 = vld [vmem:[%s0 + $0xf0] sm:$0xf]
  %v232 = vld [vmem:[%s0 + $0xf4] sm:$0xf]
  %v233 = vld [vmem:[%s0 + $0xf8] sm:$0xf]
  %v234 = vld [vmem:[%s0 + $0xfc] sm:$0xf]
  %v235 = vld [vmem:[%s0 + $0x100] sm:$0xf]
  %v236 = vld [vmem:[%s0 + $0x104] sm:$0xf]
  %v237 = vld [vmem:[%s0 + $0x108] sm:$0xf]
  %v238 = vld [vmem:[%s0 + $0x10c] sm:$0xf]
  %v239 = vld [vmem:[%s0 + $0x110] sm:$0xf]
  %v240 = vld [vmem:[%s0 + $0x114] sm:$0xf]
  %v241 = vld [vmem:[%s0 + $0x118] sm:$0xf]
  %v242 = vld [vmem:[%s0 + $0x11c] sm:$0xf]
  %v243 = vld [vmem:[%s0 + $0x120] sm:$0xf]
  %v244 = vld [vmem:[%s0 + $0x124] sm:$0xf]
  %v245 = vld [vmem:[%s0 + $0x128] sm:$0xf]
  %v246 = vld [vmem:[%s0 + $0x12c] sm:$0xf]
  %v247 = vld [vmem:[%s0 + $0x130] sm:$0xf]
  %v248 = vld [vmem:[%s0 + $0x134] sm:$0xf]
  %v249 = vld [vmem:[%s0 + $0x138] sm:$0xf]
  %v250 = vld [vmem:[%s0 + $0x13c] sm:$0xf]
  %v251 = vld [vmem:[%s0 + $0x140] sm:$0xf]
  %v252 = vld [vmem:[%s0 + $0x144] sm:$0xf]
  %v253 = vld [vmem:[%s0 + $0x148] sm:$0xf]
  %v254 = vld [vmem:[%s0 + $0x14c] sm:$0xf]
  %v255 = vld [vmem:[%s0 + $0x150] sm:$0xf]
  %v256 = vld [vmem:[%s0 + $0x154] sm:$0xf]
  %v257 = vld [vmem:[%s0 + $0x158] sm:$0xf]
  %v258 = vld [vmem:[%s0 + $0x15c] sm:$0xf]
  %v259 = vld [vmem:[%s0 + $0x160] sm:$0xf]
  %v260 = vld [vmem:[%s0 + $0x164] sm:$0xf]
  %v261 = vld [vmem:[%s0 + $0x168] sm:$0xf]
  %v262 = vld [vmem:[%s0 + $0x16c] sm:$0xf]
  %v263 = vld [vmem:[%s0 + $0x170] sm:$0xf]
  %v264 = vld [vmem:[%s0 + $0x174] sm:$0xf]
  %v265 = vld [vmem:[%s0 + $0x178] sm:$0xf]
  %v266 = vld [vmem:[%s0 + $0x17c] sm:$0xf]
  %v267 = vld [vmem:[%s0 + $0x180] sm:$0xf]
  %v268 = vld [vmem:[%s0 + $0x184] sm:$0xf]
  %v269 = vld [vmem:[%s0 + $0x188] sm:$0xf]
  %v270 = vld [vmem:[%s0 + $0x18c] sm:$0xf]
  %v271 = vld [vmem:[%s0 + $0x190] sm:$0xf]
  %v272 = vld [vmem:[%s0 + $0x194] sm:$0xf]
  %v273 = vld [vmem:[%s0 + $0x198] sm:$0xf]
  %v274 = vld [vmem:[%s0 + $0x19c] sm:$0xf]
  %v275 = vld [vmem:[%s0 + $0x1a0] sm:$0xf]
  %v276 = vld [vmem:[%s0 + $0x1a4] sm:$0xf]
  %v277 = vld [vmem:[%s0 + $0x1a8] sm:$0xf]
  %v278 = vld [vmem:[%s0 + $0x1ac] sm:$0xf]
  %v279 = vld [vmem:[%s0 + $0x1b0] sm:$0xf]
  %v280 = vld [vmem:[%s0 + $0x1b4] sm:$0xf]
  %v281 = vld [vmem:[%s0 + $0x1b8] sm:$0xf]
  %v282 = vld [vmem:[%s0 + $0x1bc] sm:$0xf]
  %v283 = vld [vmem:[%s0 + $0x1c0] sm:$0xf]
  %v284 = vld [vmem:[%s0 + $0x1c4] sm:$0xf]
  %v285 = vld [vmem:[%s0 + $0x1c8] sm:$0xf]
  %v286 = vld [vmem:[%s0 + $0x1cc] sm:$0xf]
  %v287 = vld [vmem:[%s0 + $0x1d0] sm:$0xf]
  %v288 = vld [vmem:[%s0 + $0x1d4] sm:$0xf]
  %v289 = vld [vmem:[%s0 + $0x1d8] sm:$0xf]
  %v290 = vld [vmem:[%s0 + $0x1dc] sm:$0xf]
  %v291 = vld [vmem:[%s0 + $0x1e0] sm:$0xf]
  %v292 = vld [vmem:[%s0 + $0x1e4] sm:$0xf]
  %v293 = vld [vmem:[%s0 + $0x1e8] sm:$0xf]
  %v294 = vld [vmem:[%s0 + $0x1ec] sm:$0xf]
  %v295 = vld [vmem:[%s0 + $0x1f0] sm:$0xf]
  %v296 = vld [vmem:[%s0 + $0x1f4] sm:$0xf]
  %v297 = vld [vmem:[%s0 + $0x1f8] sm:$0xf]
  %v298 = vld [vmem:[%s0 + $0x1fc] sm:$0xf]
  %v299 = vld [vmem:[%s0 + $0x200] sm:$0xf]
  %v300 = vld [vmem:[%s0 + $0x204] sm:$0xf]
  %v301 = vld [vmem:[%s0 + $0x208] sm:$0xf]
  %v302 = vld [vmem:[%s0 + $0x20c] sm:$0xf]
  %v303 = vld [vmem:[%s0 + $0x210] sm:$0xf]
  %v304 = vld [vmem:[%s0 + $0x214] sm:$0xf]
  %v305 = vld [vmem:[%s0 + $0x218] sm:$0xf]
  %v306 = vld [vmem:[%s0 + $0x21c] sm:$0xf]
  %v307 = vld [vmem:[%s0 + $0x220] sm:$0xf]
  %v308 = vld [vmem:[%s0 + $0x224] sm:$0xf]
  %v309 = vld [vmem:[%s0 + $0x228] sm:$0xf]
  %v310 = vld [vmem:[%s0 + $0x22c] sm:$0xf]
  %v311 = vld [vmem:[%s0 + $0x230] sm:$0xf]
  %v312 = vld [vmem:[%s0 + $0x234] sm:$0xf]
  %v313 = vld [vmem:[%s0 + $0x238] sm:$0xf]
  %v314 = vld [vmem:[%s0 + $0x23c] sm:$0xf]
  %v315 = vunpack.c.l.bf16 %v171
  %v316 = vunpack.c.l.bf16 %v172
  %v317 = vunpack.c.l.bf16 %v173
  %v318 = vunpack.c.l.bf16 %v174
  %v319 = vunpack.c.l.bf16 %v175
  %v320 = vunpack.c.l.bf16 %v176
  %v321 = vunpack.c.l.bf16 %v177
  %v322 = vunpack.c.l.bf16 %v178
  %v323 = vunpack.c.l.bf16 %v179
  %v324 = vunpack.c.l.bf16 %v180
  %v325 = vunpack.c.l.bf16 %v181
  %v326 = vunpack.c.l.bf16 %v182
  %v327 = vunpack.c.l.bf16 %v183
  %v328 = vunpack.c.l.bf16 %v184
  %v329 = vunpack.c.l.bf16 %v185
  %v330 = vunpack.c.l.bf16 %v186
  %v331 = vunpack.c.l.bf16 %v187
  %v332 = vunpack.c.l.bf16 %v188
  %v333 = vunpack.c.l.bf16 %v189
  %v334 = vunpack.c.l.bf16 %v190
  %v335 = vunpack.c.l.bf16 %v191
  %v336 = vunpack.c.l.bf16 %v192
  %v337 = vunpack.c.l.bf16 %v193
  %v338 = vunpack.c.l.bf16 %v194
  %v339 = vunpack.c.l.bf16 %v195
  %v340 = vunpack.c.l.bf16 %v196
  %v341 = vunpack.c.l.bf16 %v197
  %v342 = vunpack.c.l.bf16 %v198
  %v343 = vunpack.c.l.bf16 %v199
  %v344 = vunpack.c.l.bf16 %v200
  %v345 = vunpack.c.l.bf16 %v201
  %v346 = vunpack.c.l.bf16 %v202
  %v347 = vunpack.c.l.bf16 %v203
  %v348 = vunpack.c.l.bf16 %v204
  %v349 = vunpack.c.l.bf16 %v205
  %v350 = vunpack.c.l.bf16 %v206
  %v351 = vunpack.c.l.bf16 %v207
  %v352 = vunpack.c.l.bf16 %v208
  %v353 = vunpack.c.l.bf16 %v209
  %v354 = vunpack.c.l.bf16 %v210
  %v355 = vunpack.c.l.bf16 %v211
  %v356 = vunpack.c.l.bf16 %v212
  %v357 = vunpack.c.l.bf16 %v213
  %v358 = vunpack.c.l.bf16 %v214
  %v359 = vunpack.c.l.bf16 %v215
  %v360 = vunpack.c.l.bf16 %v216
  %v361 = vunpack.c.l.bf16 %v217
  %v362 = vunpack.c.l.bf16 %v218
  %v363 = vunpack.c.l.bf16 %v219
  %v364 = vunpack.c.l.bf16 %v220
  %v365 = vunpack.c.l.bf16 %v221
  %v366 = vunpack.c.l.bf16 %v222
  %v367 = vunpack.c.l.bf16 %v223
  %v368 = vunpack.c.l.bf16 %v224
  %v369 = vunpack.c.l.bf16 %v225
  %v370 = vunpack.c.l.bf16 %v226
  %v371 = vunpack.c.l.bf16 %v227
  %v372 = vunpack.c.l.bf16 %v228
  %v373 = vunpack.c.l.bf16 %v229
  %v374 = vunpack.c.l.bf16 %v230
  %v375 = vunpack.c.l.bf16 %v231
  %v376 = vunpack.c.l.bf16 %v232
  %v377 = vunpack.c.l.bf16 %v233
  %v378 = vunpack.c.l.bf16 %v234
  %v379 = vunpack.c.l.bf16 %v235
  %v380 = vunpack.c.l.bf16 %v236
  %v381 = vunpack.c.l.bf16 %v237
  %v382 = vunpack.c.l.bf16 %v238
  %v383 = vunpack.c.l.bf16 %v239
  %v384 = vunpack.c.l.bf16 %v240
  %v385 = vunpack.c.l.bf16 %v241
  %v386 = vunpack.c.l.bf16 %v242
  %v387 = vunpack.c.l.bf16 %v243
  %v388 = vunpack.c.l.bf16 %v244
  %v389 = vunpack.c.l.bf16 %v245
  %v390 = vunpack.c.l.bf16 %v246
  %v391 = vunpack.c.l.bf16 %v247
  %v392 = vunpack.c.l.bf16 %v248
  %v393 = vunpack.c.l.bf16 %v249
  %v394 = vunpack.c.l.bf16 %v250
  %v395 = vunpack.c.l.bf16 %v251
  %v396 = vunpack.c.l.bf16 %v252
  %v397 = vunpack.c.l.bf16 %v253
  %v398 = vunpack.c.l.bf16 %v254
  %v399 = vunpack.c.l.bf16 %v255
  %v400 = vunpack.c.l.bf16 %v256
  %v401 = vunpack.c.l.bf16 %v257
  %v402 = vunpack.c.l.bf16 %v258
  %v403 = vunpack.c.l.bf16 %v259
  %v404 = vunpack.c.l.bf16 %v260
  %v405 = vunpack.c.l.bf16 %v261
  %v406 = vunpack.c.l.bf16 %v262
  %v407 = vunpack.c.l.bf16 %v263
  %v408 = vunpack.c.l.bf16 %v264
  %v409 = vunpack.c.l.bf16 %v265
  %v410 = vunpack.c.l.bf16 %v266
  %v411 = vunpack.c.l.bf16 %v267
  %v412 = vunpack.c.l.bf16 %v268
  %v413 = vunpack.c.l.bf16 %v269
  %v414 = vunpack.c.l.bf16 %v270
  %v415 = vunpack.c.l.bf16 %v271
  %v416 = vunpack.c.l.bf16 %v272
  %v417 = vunpack.c.l.bf16 %v273
  %v418 = vunpack.c.l.bf16 %v274
  %v419 = vunpack.c.l.bf16 %v275
  %v420 = vunpack.c.l.bf16 %v276
  %v421 = vunpack.c.l.bf16 %v277
  %v422 = vunpack.c.l.bf16 %v278
  %v423 = vunpack.c.l.bf16 %v279
  %v424 = vunpack.c.l.bf16 %v280
  %v425 = vunpack.c.l.bf16 %v281
  %v426 = vunpack.c.l.bf16 %v282
  %v427 = vunpack.c.l.bf16 %v283
  %v428 = vunpack.c.l.bf16 %v284
  %v429 = vunpack.c.l.bf16 %v285
  %v430 = vunpack.c.l.bf16 %v286
  %v431 = vunpack.c.l.bf16 %v287
  %v432 = vunpack.c.l.bf16 %v288
  %v433 = vunpack.c.l.bf16 %v289
  %v434 = vunpack.c.l.bf16 %v290
  %v435 = vunpack.c.l.bf16 %v291
  %v436 = vunpack.c.l.bf16 %v292
  %v437 = vunpack.c.l.bf16 %v293
  %v438 = vunpack.c.l.bf16 %v294
  %v439 = vunpack.c.l.bf16 %v295
  %v440 = vunpack.c.l.bf16 %v296
  %v441 = vunpack.c.l.bf16 %v297
  %v442 = vunpack.c.l.bf16 %v298
  %v443 = vunpack.c.l.bf16 %v299
  %v444 = vunpack.c.l.bf16 %v300
  %v445 = vunpack.c.l.bf16 %v301
  %v446 = vunpack.c.l.bf16 %v302
  %v447 = vunpack.c.l.bf16 %v303
  %v448 = vunpack.c.l.bf16 %v304
  %v449 = vunpack.c.l.bf16 %v305
  %v450 = vunpack.c.l.bf16 %v306
  %v451 = vunpack.c.l.bf16 %v307
  %v452 = vunpack.c.l.bf16 %v308
  %v453 = vunpack.c.l.bf16 %v309
  %v454 = vunpack.c.l.bf16 %v310
  %v455 = vunpack.c.l.bf16 %v311
  %v456 = vunpack.c.l.bf16 %v312
  %v457 = vunpack.c.l.bf16 %v313
  %v458 = vunpack.c.l.bf16 %v314
  %v459 = vld [vmem:[%s1] sm:$0x1]
  %v461 = vlaneseq
  %v462 = vshrl.u32 %v461, 7
  %v463 = vsub.s32 0, %v462
  %v464 = vrot.slane %v459, %v463
  %v466 = vmul.f32 %v315, %v464
  %v467 = vmul.f32 %v316, %v464
  %v468 = vmul.f32 %v317, %v464
  %v469 = vmul.f32 %v318, %v464
  %v470 = vmul.f32 %v319, %v464
  %v471 = vmul.f32 %v320, %v464
  %v472 = vmul.f32 %v321, %v464
  %v473 = vmul.f32 %v322, %v464
  %v474 = vmul.f32 %v323, %v464
  %v475 = vmul.f32 %v324, %v464
  %v476 = vmul.f32 %v325, %v464
  %v477 = vmul.f32 %v326, %v464
  %v478 = vmul.f32 %v327, %v464
  %v479 = vmul.f32 %v328, %v464
  %v480 = vmul.f32 %v329, %v464
  %v481 = vmul.f32 %v330, %v464
  %v482 = vmul.f32 %v331, %v464
  %v483 = vmul.f32 %v332, %v464
  %v484 = vmul.f32 %v333, %v464
  %v485 = vmul.f32 %v334, %v464
  %v486 = vmul.f32 %v335, %v464
  %v487 = vmul.f32 %v336, %v464
  %v488 = vmul.f32 %v337, %v464
  %v489 = vmul.f32 %v338, %v464
  %v490 = vmul.f32 %v339, %v464
  %v491 = vmul.f32 %v340, %v464
  %v492 = vmul.f32 %v341, %v464
  %v493 = vmul.f32 %v342, %v464
  %v494 = vmul.f32 %v343, %v464
  %v495 = vmul.f32 %v344, %v464
  %v496 = vmul.f32 %v345, %v464
  %v497 = vmul.f32 %v346, %v464
  %v498 = vmul.f32 %v347, %v464
  %v499 = vmul.f32 %v348, %v464
  %v500 = vmul.f32 %v349, %v464
  %v501 = vmul.f32 %v350, %v464
  %v502 = vmul.f32 %v351, %v464
  %v503 = vmul.f32 %v352, %v464
  %v504 = vmul.f32 %v353, %v464
  %v505 = vmul.f32 %v354, %v464
  %v506 = vmul.f32 %v355, %v464
  %v507 = vmul.f32 %v356, %v464
  %v508 = vmul.f32 %v357, %v464
  %v509 = vmul.f32 %v358, %v464
  %v510 = vmul.f32 %v359, %v464
  %v511 = vmul.f32 %v360, %v464
  %v512 = vmul.f32 %v361, %v464
  %v513 = vmul.f32 %v362, %v464
  %v514 = vmul.f32 %v363, %v464
  %v515 = vmul.f32 %v364, %v464
  %v516 = vmul.f32 %v365, %v464
  %v517 = vmul.f32 %v366, %v464
  %v518 = vmul.f32 %v367, %v464
  %v519 = vmul.f32 %v368, %v464
  %v520 = vmul.f32 %v369, %v464
  %v521 = vmul.f32 %v370, %v464
  %v522 = vmul.f32 %v371, %v464
  %v523 = vmul.f32 %v372, %v464
  %v524 = vmul.f32 %v373, %v464
  %v525 = vmul.f32 %v374, %v464
  %v526 = vmul.f32 %v375, %v464
  %v527 = vmul.f32 %v376, %v464
  %v528 = vmul.f32 %v377, %v464
  %v529 = vmul.f32 %v378, %v464
  %v530 = vmul.f32 %v379, %v464
  %v531 = vmul.f32 %v380, %v464
  %v532 = vmul.f32 %v381, %v464
  %v533 = vmul.f32 %v382, %v464
  %v534 = vmul.f32 %v383, %v464
  %v535 = vmul.f32 %v384, %v464
  %v536 = vmul.f32 %v385, %v464
  %v537 = vmul.f32 %v386, %v464
  %v538 = vmul.f32 %v387, %v464
  %v539 = vmul.f32 %v388, %v464
  %v540 = vmul.f32 %v389, %v464
  %v541 = vmul.f32 %v390, %v464
  %v542 = vmul.f32 %v391, %v464
  %v543 = vmul.f32 %v392, %v464
  %v544 = vmul.f32 %v393, %v464
  %v545 = vmul.f32 %v394, %v464
  %v546 = vmul.f32 %v395, %v464
  %v547 = vmul.f32 %v396, %v464
  %v548 = vmul.f32 %v397, %v464
  %v549 = vmul.f32 %v398, %v464
  %v550 = vmul.f32 %v399, %v464
  %v551 = vmul.f32 %v400, %v464
  %v552 = vmul.f32 %v401, %v464
  %v553 = vmul.f32 %v402, %v464
  %v554 = vmul.f32 %v403, %v464
  %v555 = vmul.f32 %v404, %v464
  %v556 = vmul.f32 %v405, %v464
  %v557 = vmul.f32 %v406, %v464
  %v558 = vmul.f32 %v407, %v464
  %v559 = vmul.f32 %v408, %v464
  %v560 = vmul.f32 %v409, %v464
  %v561 = vmul.f32 %v410, %v464
  %v562 = vmul.f32 %v411, %v464
  %v563 = vmul.f32 %v412, %v464
  %v564 = vmul.f32 %v413, %v464
  %v565 = vmul.f32 %v414, %v464
  %v566 = vmul.f32 %v415, %v464
  %v567 = vmul.f32 %v416, %v464
  %v568 = vmul.f32 %v417, %v464
  %v569 = vmul.f32 %v418, %v464
  %v570 = vmul.f32 %v419, %v464
  %v571 = vmul.f32 %v420, %v464
  %v572 = vmul.f32 %v421, %v464
  %v573 = vmul.f32 %v422, %v464
  %v574 = vmul.f32 %v423, %v464
  %v575 = vmul.f32 %v424, %v464
  %v576 = vmul.f32 %v425, %v464
  %v577 = vmul.f32 %v426, %v464
  %v578 = vmul.f32 %v427, %v464
  %v579 = vmul.f32 %v428, %v464
  %v580 = vmul.f32 %v429, %v464
  %v581 = vmul.f32 %v430, %v464
  %v582 = vmul.f32 %v431, %v464
  %v583 = vmul.f32 %v432, %v464
  %v584 = vmul.f32 %v433, %v464
  %v585 = vmul.f32 %v434, %v464
  %v586 = vmul.f32 %v435, %v464
  %v587 = vmul.f32 %v436, %v464
  %v588 = vmul.f32 %v437, %v464
  %v589 = vmul.f32 %v438, %v464
  %v590 = vmul.f32 %v439, %v464
  %v591 = vmul.f32 %v440, %v464
  %v592 = vmul.f32 %v441, %v464
  %v593 = vmul.f32 %v442, %v464
  %v594 = vmul.f32 %v443, %v464
  %v595 = vmul.f32 %v444, %v464
  %v596 = vmul.f32 %v445, %v464
  %v597 = vmul.f32 %v446, %v464
  %v598 = vmul.f32 %v447, %v464
  %v599 = vmul.f32 %v448, %v464
  %v600 = vmul.f32 %v449, %v464
  %v601 = vmul.f32 %v450, %v464
  %v602 = vmul.f32 %v451, %v464
  %v603 = vmul.f32 %v452, %v464
  %v604 = vmul.f32 %v453, %v464
  %v605 = vmul.f32 %v454, %v464
  %v606 = vmul.f32 %v455, %v464
  %v607 = vmul.f32 %v456, %v464
  %v608 = vmul.f32 %v457, %v464
  %v609 = vmul.f32 %v458, %v464
  %v610 = vld [vmem:[%s2] sm:$0x1]
  %v612 = vlaneseq
  %v613 = vshrl.u32 %v612, 7
  %v614 = vsub.s32 0, %v613
  %v615 = vrot.slane %v610, %v614
  %v617 = vadd.f32 %v466, %v615
  %v618 = vadd.f32 %v467, %v615
  %v619 = vadd.f32 %v468, %v615
  %v620 = vadd.f32 %v469, %v615
  %v621 = vadd.f32 %v470, %v615
  %v622 = vadd.f32 %v471, %v615
  %v623 = vadd.f32 %v472, %v615
  %v624 = vadd.f32 %v473, %v615
  %v625 = vadd.f32 %v474, %v615
  %v626 = vadd.f32 %v475, %v615
  %v627 = vadd.f32 %v476, %v615
  %v628 = vadd.f32 %v477, %v615
  %v629 = vadd.f32 %v478, %v615
  %v630 = vadd.f32 %v479, %v615
  %v631 = vadd.f32 %v480, %v615
  %v632 = vadd.f32 %v481, %v615
  %v633 = vadd.f32 %v482, %v615
  %v634 = vadd.f32 %v483, %v615
  %v635 = vadd.f32 %v484, %v615
  %v636 = vadd.f32 %v485, %v615
  %v637 = vadd.f32 %v486, %v615
  %v638 = vadd.f32 %v487, %v615
  %v639 = vadd.f32 %v488, %v615
  %v640 = vadd.f32 %v489, %v615
  %v641 = vadd.f32 %v490, %v615
  %v642 = vadd.f32 %v491, %v615
  %v643 = vadd.f32 %v492, %v615
  %v644 = vadd.f32 %v493, %v615
  %v645 = vadd.f32 %v494, %v615
  %v646 = vadd.f32 %v495, %v615
  %v647 = vadd.f32 %v496, %v615
  %v648 = vadd.f32 %v497, %v615
  %v649 = vadd.f32 %v498, %v615
  %v650 = vadd.f32 %v499, %v615
  %v651 = vadd.f32 %v500, %v615
  %v652 = vadd.f32 %v501, %v615
  %v653 = vadd.f32 %v502, %v615
  %v654 = vadd.f32 %v503, %v615
  %v655 = vadd.f32 %v504, %v615
  %v656 = vadd.f32 %v505, %v615
  %v657 = vadd.f32 %v506, %v615
  %v658 = vadd.f32 %v507, %v615
  %v659 = vadd.f32 %v508, %v615
  %v660 = vadd.f32 %v509, %v615
  %v661 = vadd.f32 %v510, %v615
  %v662 = vadd.f32 %v511, %v615
  %v663 = vadd.f32 %v512, %v615
  %v664 = vadd.f32 %v513, %v615
  %v665 = vadd.f32 %v514, %v615
  %v666 = vadd.f32 %v515, %v615
  %v667 = vadd.f32 %v516, %v615
  %v668 = vadd.f32 %v517, %v615
  %v669 = vadd.f32 %v518, %v615
  %v670 = vadd.f32 %v519, %v615
  %v671 = vadd.f32 %v520, %v615
  %v672 = vadd.f32 %v521, %v615
  %v673 = vadd.f32 %v522, %v615
  %v674 = vadd.f32 %v523, %v615
  %v675 = vadd.f32 %v524, %v615
  %v676 = vadd.f32 %v525, %v615
  %v677 = vadd.f32 %v526, %v615
  %v678 = vadd.f32 %v527, %v615
  %v679 = vadd.f32 %v528, %v615
  %v680 = vadd.f32 %v529, %v615
  %v681 = vadd.f32 %v530, %v615
  %v682 = vadd.f32 %v531, %v615
  %v683 = vadd.f32 %v532, %v615
  %v684 = vadd.f32 %v533, %v615
  %v685 = vadd.f32 %v534, %v615
  %v686 = vadd.f32 %v535, %v615
  %v687 = vadd.f32 %v536, %v615
  %v688 = vadd.f32 %v537, %v615
  %v689 = vadd.f32 %v538, %v615
  %v690 = vadd.f32 %v539, %v615
  %v691 = vadd.f32 %v540, %v615
  %v692 = vadd.f32 %v541, %v615
  %v693 = vadd.f32 %v542, %v615
  %v694 = vadd.f32 %v543, %v615
  %v695 = vadd.f32 %v544, %v615
  %v696 = vadd.f32 %v545, %v615
  %v697 = vadd.f32 %v546, %v615
  %v698 = vadd.f32 %v547, %v615
  %v699 = vadd.f32 %v548, %v615
  %v700 = vadd.f32 %v549, %v615
  %v701 = vadd.f32 %v550, %v615
  %v702 = vadd.f32 %v551, %v615
  %v703 = vadd.f32 %v552, %v615
  %v704 = vadd.f32 %v553, %v615
  %v705 = vadd.f32 %v554, %v615
  %v706 = vadd.f32 %v555, %v615
  %v707 = vadd.f32 %v556, %v615
  %v708 = vadd.f32 %v557, %v615
  %v709 = vadd.f32 %v558, %v615
  %v710 = vadd.f32 %v559, %v615
  %v711 = vadd.f32 %v560, %v615
  %v712 = vadd.f32 %v561, %v615
  %v713 = vadd.f32 %v562, %v615
  %v714 = vadd.f32 %v563, %v615
  %v715 = vadd.f32 %v564, %v615
  %v716 = vadd.f32 %v565, %v615
  %v717 = vadd.f32 %v566, %v615
  %v718 = vadd.f32 %v567, %v615
  %v719 = vadd.f32 %v568, %v615
  %v720 = vadd.f32 %v569, %v615
  %v721 = vadd.f32 %v570, %v615
  %v722 = vadd.f32 %v571, %v615
  %v723 = vadd.f32 %v572, %v615
  %v724 = vadd.f32 %v573, %v615
  %v725 = vadd.f32 %v574, %v615
  %v726 = vadd.f32 %v575, %v615
  %v727 = vadd.f32 %v576, %v615
  %v728 = vadd.f32 %v577, %v615
  %v729 = vadd.f32 %v578, %v615
  %v730 = vadd.f32 %v579, %v615
  %v731 = vadd.f32 %v580, %v615
  %v732 = vadd.f32 %v581, %v615
  %v733 = vadd.f32 %v582, %v615
  %v734 = vadd.f32 %v583, %v615
  %v735 = vadd.f32 %v584, %v615
  %v736 = vadd.f32 %v585, %v615
  %v737 = vadd.f32 %v586, %v615
  %v738 = vadd.f32 %v587, %v615
  %v739 = vadd.f32 %v588, %v615
  %v740 = vadd.f32 %v589, %v615
  %v741 = vadd.f32 %v590, %v615
  %v742 = vadd.f32 %v591, %v615
  %v743 = vadd.f32 %v592, %v615
  %v744 = vadd.f32 %v593, %v615
  %v745 = vadd.f32 %v594, %v615
  %v746 = vadd.f32 %v595, %v615
  %v747 = vadd.f32 %v596, %v615
  %v748 = vadd.f32 %v597, %v615
  %v749 = vadd.f32 %v598, %v615
  %v750 = vadd.f32 %v599, %v615
  %v751 = vadd.f32 %v600, %v615
  %v752 = vadd.f32 %v601, %v615
  %v753 = vadd.f32 %v602, %v615
  %v754 = vadd.f32 %v603, %v615
  %v755 = vadd.f32 %v604, %v615
  %v756 = vadd.f32 %v605, %v615
  %v757 = vadd.f32 %v606, %v615
  %v758 = vadd.f32 %v607, %v615
  %v759 = vadd.f32 %v608, %v615
  %v760 = vadd.f32 %v609, %v615
  %v761 = vmax.f32 %v617, 0.0
  %v762 = vmax.f32 %v618, 0.0
  %v763 = vmax.f32 %v619, 0.0
  %v764 = vmax.f32 %v620, 0.0
  %v765 = vmax.f32 %v621, 0.0
  %v766 = vmax.f32 %v622, 0.0
  %v767 = vmax.f32 %v623, 0.0
  %v768 = vmax.f32 %v624, 0.0
  %v769 = vmax.f32 %v625, 0.0
  %v770 = vmax.f32 %v626, 0.0
  %v771 = vmax.f32 %v627, 0.0
  %v772 = vmax.f32 %v628, 0.0
  %v773 = vmax.f32 %v629, 0.0
  %v774 = vmax.f32 %v630, 0.0
  %v775 = vmax.f32 %v631, 0.0
  %v776 = vmax.f32 %v632, 0.0
  %v777 = vmax.f32 %v633, 0.0
  %v778 = vmax.f32 %v634, 0.0
  %v779 = vmax.f32 %v635, 0.0
  %v780 = vmax.f32 %v636, 0.0
  %v781 = vmax.f32 %v637, 0.0
  %v782 = vmax.f32 %v638, 0.0
  %v783 = vmax.f32 %v639, 0.0
  %v784 = vmax.f32 %v640, 0.0
  %v785 = vmax.f32 %v641, 0.0
  %v786 = vmax.f32 %v642, 0.0
  %v787 = vmax.f32 %v643, 0.0
  %v788 = vmax.f32 %v644, 0.0
  %v789 = vmax.f32 %v645, 0.0
  %v790 = vmax.f32 %v646, 0.0
  %v791 = vmax.f32 %v647, 0.0
  %v792 = vmax.f32 %v648, 0.0
  %v793 = vmax.f32 %v649, 0.0
  %v794 = vmax.f32 %v650, 0.0
  %v795 = vmax.f32 %v651, 0.0
  %v796 = vmax.f32 %v652, 0.0
  %v797 = vmax.f32 %v653, 0.0
  %v798 = vmax.f32 %v654, 0.0
  %v799 = vmax.f32 %v655, 0.0
  %v800 = vmax.f32 %v656, 0.0
  %v801 = vmax.f32 %v657, 0.0
  %v802 = vmax.f32 %v658, 0.0
  %v803 = vmax.f32 %v659, 0.0
  %v804 = vmax.f32 %v660, 0.0
  %v805 = vmax.f32 %v661, 0.0
  %v806 = vmax.f32 %v662, 0.0
  %v807 = vmax.f32 %v663, 0.0
  %v808 = vmax.f32 %v664, 0.0
  %v809 = vmax.f32 %v665, 0.0
  %v810 = vmax.f32 %v666, 0.0
  %v811 = vmax.f32 %v667, 0.0
  %v812 = vmax.f32 %v668, 0.0
  %v813 = vmax.f32 %v669, 0.0
  %v814 = vmax.f32 %v670, 0.0
  %v815 = vmax.f32 %v671, 0.0
  %v816 = vmax.f32 %v672, 0.0
  %v817 = vmax.f32 %v673, 0.0
  %v818 = vmax.f32 %v674, 0.0
  %v819 = vmax.f32 %v675, 0.0
  %v820 = vmax.f32 %v676, 0.0
  %v821 = vmax.f32 %v677, 0.0
  %v822 = vmax.f32 %v678, 0.0
  %v823 = vmax.f32 %v679, 0.0
  %v824 = vmax.f32 %v680, 0.0
  %v825 = vmax.f32 %v681, 0.0
  %v826 = vmax.f32 %v682, 0.0
  %v827 = vmax.f32 %v683, 0.0
  %v828 = vmax.f32 %v684, 0.0
  %v829 = vmax.f32 %v685, 0.0
  %v830 = vmax.f32 %v686, 0.0
  %v831 = vmax.f32 %v687, 0.0
  %v832 = vmax.f32 %v688, 0.0
  %v833 = vmax.f32 %v689, 0.0
  %v834 = vmax.f32 %v690, 0.0
  %v835 = vmax.f32 %v691, 0.0
  %v836 = vmax.f32 %v692, 0.0
  %v837 = vmax.f32 %v693, 0.0
  %v838 = vmax.f32 %v694, 0.0
  %v839 = vmax.f32 %v695, 0.0
  %v840 = vmax.f32 %v696, 0.0
  %v841 = vmax.f32 %v697, 0.0
  %v842 = vmax.f32 %v698, 0.0
  %v843 = vmax.f32 %v699, 0.0
  %v844 = vmax.f32 %v700, 0.0
  %v845 = vmax.f32 %v701, 0.0
  %v846 = vmax.f32 %v702, 0.0
  %v847 = vmax.f32 %v703, 0.0
  %v848 = vmax.f32 %v704, 0.0
  %v849 = vmax.f32 %v705, 0.0
  %v850 = vmax.f32 %v706, 0.0
  %v851 = vmax.f32 %v707, 0.0
  %v852 = vmax.f32 %v708, 0.0
  %v853 = vmax.f32 %v709, 0.0
  %v854 = vmax.f32 %v710, 0.0
  %v855 = vmax.f32 %v711, 0.0
  %v856 = vmax.f32 %v712, 0.0
  %v857 = vmax.f32 %v713, 0.0
  %v858 = vmax.f32 %v714, 0.0
  %v859 = vmax.f32 %v715, 0.0
  %v860 = vmax.f32 %v716, 0.0
  %v861 = vmax.f32 %v717, 0.0
  %v862 = vmax.f32 %v718, 0.0
  %v863 = vmax.f32 %v719, 0.0
  %v864 = vmax.f32 %v720, 0.0
  %v865 = vmax.f32 %v721, 0.0
  %v866 = vmax.f32 %v722, 0.0
  %v867 = vmax.f32 %v723, 0.0
  %v868 = vmax.f32 %v724, 0.0
  %v869 = vmax.f32 %v725, 0.0
  %v870 = vmax.f32 %v726, 0.0
  %v871 = vmax.f32 %v727, 0.0
  %v872 = vmax.f32 %v728, 0.0
  %v873 = vmax.f32 %v729, 0.0
  %v874 = vmax.f32 %v730, 0.0
  %v875 = vmax.f32 %v731, 0.0
  %v876 = vmax.f32 %v732, 0.0
  %v877 = vmax.f32 %v733, 0.0
  %v878 = vmax.f32 %v734, 0.0
  %v879 = vmax.f32 %v735, 0.0
  %v880 = vmax.f32 %v736, 0.0
  %v881 = vmax.f32 %v737, 0.0
  %v882 = vmax.f32 %v738, 0.0
  %v883 = vmax.f32 %v739, 0.0
  %v884 = vmax.f32 %v740, 0.0
  %v885 = vmax.f32 %v741, 0.0
  %v886 = vmax.f32 %v742, 0.0
  %v887 = vmax.f32 %v743, 0.0
  %v888 = vmax.f32 %v744, 0.0
  %v889 = vmax.f32 %v745, 0.0
  %v890 = vmax.f32 %v746, 0.0
  %v891 = vmax.f32 %v747, 0.0
  %v892 = vmax.f32 %v748, 0.0
  %v893 = vmax.f32 %v749, 0.0
  %v894 = vmax.f32 %v750, 0.0
  %v895 = vmax.f32 %v751, 0.0
  %v896 = vmax.f32 %v752, 0.0
  %v897 = vmax.f32 %v753, 0.0
  %v898 = vmax.f32 %v754, 0.0
  %v899 = vmax.f32 %v755, 0.0
  %v900 = vmax.f32 %v756, 0.0
  %v901 = vmax.f32 %v757, 0.0
  %v902 = vmax.f32 %v758, 0.0
  %v903 = vmax.f32 %v759, 0.0
  %v904 = vmax.f32 %v760, 0.0
  %v905 = vpack.c.bf16 %v762, %v761
  %v906 = vpack.c.bf16 %v764, %v763
  %v907 = vpack.c.bf16 %v766, %v765
  %v908 = vpack.c.bf16 %v768, %v767
  %v909 = vpack.c.bf16 %v770, %v769
  %v910 = vpack.c.bf16 %v772, %v771
  %v911 = vpack.c.bf16 %v774, %v773
  %v912 = vpack.c.bf16 %v776, %v775
  %v913 = vpack.c.bf16 %v778, %v777
  %v914 = vpack.c.bf16 %v780, %v779
  %v915 = vpack.c.bf16 %v782, %v781
  %v916 = vpack.c.bf16 %v784, %v783
  %v917 = vpack.c.bf16 %v786, %v785
  %v918 = vpack.c.bf16 %v788, %v787
  %v919 = vpack.c.bf16 %v790, %v789
  %v920 = vpack.c.bf16 %v792, %v791
  %v921 = vpack.c.bf16 %v794, %v793
  %v922 = vpack.c.bf16 %v796, %v795
  %v923 = vpack.c.bf16 %v798, %v797
  %v924 = vpack.c.bf16 %v800, %v799
  %v925 = vpack.c.bf16 %v802, %v801
  %v926 = vpack.c.bf16 %v804, %v803
  %v927 = vpack.c.bf16 %v806, %v805
  %v928 = vpack.c.bf16 %v808, %v807
  %v929 = vpack.c.bf16 %v810, %v809
  %v930 = vpack.c.bf16 %v812, %v811
  %v931 = vpack.c.bf16 %v814, %v813
  %v932 = vpack.c.bf16 %v816, %v815
  %v933 = vpack.c.bf16 %v818, %v817
  %v934 = vpack.c.bf16 %v820, %v819
  %v935 = vpack.c.bf16 %v822, %v821
  %v936 = vpack.c.bf16 %v824, %v823
  %v937 = vpack.c.bf16 %v826, %v825
  %v938 = vpack.c.bf16 %v828, %v827
  %v939 = vpack.c.bf16 %v830, %v829
  %v940 = vpack.c.bf16 %v832, %v831
  %v941 = vpack.c.bf16 %v834, %v833
  %v942 = vpack.c.bf16 %v836, %v835
  %v943 = vpack.c.bf16 %v838, %v837
  %v944 = vpack.c.bf16 %v840, %v839
  %v945 = vpack.c.bf16 %v842, %v841
  %v946 = vpack.c.bf16 %v844, %v843
  %v947 = vpack.c.bf16 %v846, %v845
  %v948 = vpack.c.bf16 %v848, %v847
  %v949 = vpack.c.bf16 %v850, %v849
  %v950 = vpack.c.bf16 %v852, %v851
  %v951 = vpack.c.bf16 %v854, %v853
  %v952 = vpack.c.bf16 %v856, %v855
  %v953 = vpack.c.bf16 %v858, %v857
  %v954 = vpack.c.bf16 %v860, %v859
  %v955 = vpack.c.bf16 %v862, %v861
  %v956 = vpack.c.bf16 %v864, %v863
  %v957 = vpack.c.bf16 %v866, %v865
  %v958 = vpack.c.bf16 %v868, %v867
  %v959 = vpack.c.bf16 %v870, %v869
  %v960 = vpack.c.bf16 %v872, %v871
  %v961 = vpack.c.bf16 %v874, %v873
  %v962 = vpack.c.bf16 %v876, %v875
  %v963 = vpack.c.bf16 %v878, %v877
  %v964 = vpack.c.bf16 %v880, %v879
  %v965 = vpack.c.bf16 %v882, %v881
  %v966 = vpack.c.bf16 %v884, %v883
  %v967 = vpack.c.bf16 %v886, %v885
  %v968 = vpack.c.bf16 %v888, %v887
  %v969 = vpack.c.bf16 %v890, %v889
  %v970 = vpack.c.bf16 %v892, %v891
  %v971 = vpack.c.bf16 %v894, %v893
  %v972 = vpack.c.bf16 %v896, %v895
  %v973 = vpack.c.bf16 %v898, %v897
  %v974 = vpack.c.bf16 %v900, %v899
  %v975 = vpack.c.bf16 %v902, %v901
  %v976 = vpack.c.bf16 %v904, %v903
  %v977 = vld [vmem:[#allocation2] sm:$0xff]
  %v978 = vld [vmem:[#allocation2 + $0x8] sm:$0xff]
  %v979 = vld [vmem:[#allocation2 + $0x10] sm:$0xff]
  %v980 = vld [vmem:[#allocation2 + $0x18] sm:$0xff]
  %v981 = vld [vmem:[#allocation2 + $0x20] sm:$0xff]
  %v982 = vld [vmem:[#allocation2 + $0x28] sm:$0xff]
  %v983 = vld [vmem:[#allocation2 + $0x30] sm:$0xff]
  %v984 = vld [vmem:[#allocation2 + $0x38] sm:$0xff]
  %v985 = vld [vmem:[#allocation2 + $0x40] sm:$0xff]
  %v986 = vld [vmem:[#allocation2 + $0x48] sm:$0xff]
  %v987 = vld [vmem:[#allocation2 + $0x50] sm:$0xff]
  %v988 = vld [vmem:[#allocation2 + $0x58] sm:$0xff]
  %v989 = vld [vmem:[#allocation2 + $0x60] sm:$0xff]
  %v990 = vld [vmem:[#allocation2 + $0x68] sm:$0xff]
  %v991 = vld [vmem:[#allocation2 + $0x70] sm:$0xff]
  %v992 = vld [vmem:[#allocation2 + $0x78] sm:$0xff]
  %v993 = vld [vmem:[#allocation2 + $0x80] sm:$0xff]
  %v994 = vld [vmem:[#allocation2 + $0x88] sm:$0xff]
  %v995 = vld [vmem:[#allocation2 + $0x90] sm:$0xff]
  %v996 = vld [vmem:[#allocation2 + $0x98] sm:$0xff]
  %v997 = vld [vmem:[#allocation2 + $0xa0] sm:$0xff]
  %v998 = vld [vmem:[#allocation2 + $0xa8] sm:$0xff]
  %v999 = vld [vmem:[#allocation2 + $0xb0] sm:$0xff]
  %v1000 = vld [vmem:[#allocation2 + $0xb8] sm:$0xff]
  %v1001 = vld [vmem:[#allocation2 + $0xc0] sm:$0xff]
  %v1002 = vld [vmem:[#allocation2 + $0xc8] sm:$0xff]
  %v1003 = vld [vmem:[#allocation2 + $0xd0] sm:$0xff]
  %v1004 = vld [vmem:[#allocation2 + $0xd8] sm:$0xff]
  %v1005 = vld [vmem:[#allocation2 + $0xe0] sm:$0xff]
  %v1006 = vld [vmem:[#allocation2 + $0xe8] sm:$0xff]
  %v1007 = vld [vmem:[#allocation2 + $0xf0] sm:$0xff]
  %v1008 = vld [vmem:[#allocation2 + $0xf8] sm:$0xff]
  %v1009 = vld [vmem:[#allocation2 + $0x100] sm:$0xff]
  %v1010 = vld [vmem:[#allocation2 + $0x108] sm:$0xff]
  %v1011 = vld [vmem:[#allocation2 + $0x110] sm:$0xff]
  %v1012 = vld [vmem:[#allocation2 + $0x118] sm:$0xff]
  %v1013 = vld [vmem:[#allocation2 + $0x120] sm:$0xff]
  %v1014 = vld [vmem:[#allocation2 + $0x128] sm:$0xff]
  %v1015 = vld [vmem:[#allocation2 + $0x130] sm:$0xff]
  %v1016 = vld [vmem:[#allocation2 + $0x138] sm:$0xff]
  %v1017 = vld [vmem:[#allocation2 + $0x140] sm:$0xff]
  %v1018 = vld [vmem:[#allocation2 + $0x148] sm:$0xff]
  %v1019 = vld [vmem:[#allocation2 + $0x150] sm:$0xff]
  %v1020 = vld [vmem:[#allocation2 + $0x158] sm:$0xff]
  %v1021 = vld [vmem:[#allocation2 + $0x160] sm:$0xff]
  %v1022 = vld [vmem:[#allocation2 + $0x168] sm:$0xff]
  %v1023 = vld [vmem:[#allocation2 + $0x170] sm:$0xff]
  %v1024 = vld [vmem:[#allocation2 + $0x178] sm:$0xff]
  %v1025 = vld [vmem:[#allocation2 + $0x180] sm:$0xff]
  %v1026 = vld [vmem:[#allocation2 + $0x188] sm:$0xff]
  %v1027 = vld [vmem:[#allocation2 + $0x190] sm:$0xff]
  %v1028 = vld [vmem:[#allocation2 + $0x198] sm:$0xff]
  %v1029 = vld [vmem:[#allocation2 + $0x1a0] sm:$0xff]
  %v1030 = vld [vmem:[#allocation2 + $0x1a8] sm:$0xff]
  %v1031 = vld [vmem:[#allocation2 + $0x1b0] sm:$0xff]
  %v1032 = vld [vmem:[#allocation2 + $0x1b8] sm:$0xff]
  %v1033 = vld [vmem:[#allocation2 + $0x1c0] sm:$0xff]
  %v1034 = vld [vmem:[#allocation2 + $0x1c8] sm:$0xff]
  %v1035 = vld [vmem:[#allocation2 + $0x1d0] sm:$0xff]
  %v1036 = vld [vmem:[#allocation2 + $0x1d8] sm:$0xff]
  %v1037 = vld [vmem:[#allocation2 + $0x1e0] sm:$0xff]
  %v1038 = vld [vmem:[#allocation2 + $0x1e8] sm:$0xff]
  %v1039 = vld [vmem:[#allocation2 + $0x1f0] sm:$0xff]
  %v1040 = vld [vmem:[#allocation2 + $0x1f8] sm:$0xff]
  %v1041 = vld [vmem:[#allocation2 + $0x200] sm:$0xff]
  %v1042 = vld [vmem:[#allocation2 + $0x208] sm:$0xff]
  %v1043 = vld [vmem:[#allocation2 + $0x210] sm:$0xff]
  %v1044 = vld [vmem:[#allocation2 + $0x218] sm:$0xff]
  %v1045 = vld [vmem:[#allocation2 + $0x220] sm:$0xff]
  %v1046 = vld [vmem:[#allocation2 + $0x228] sm:$0xff]
  %v1047 = vld [vmem:[#allocation2 + $0x230] sm:$0xff]
  %v1048 = vld [vmem:[#allocation2 + $0x238] sm:$0xff]
  %v1049 = vld [vmem:[#allocation2 + $0x240] sm:$0xff]
  %v1050 = vld [vmem:[#allocation2 + $0x248] sm:$0xff]
  %v1051 = vld [vmem:[#allocation2 + $0x250] sm:$0xff]
  %v1052 = vld [vmem:[#allocation2 + $0x258] sm:$0xff]
  %v1053 = vld [vmem:[#allocation2 + $0x260] sm:$0xff]
  %v1054 = vld [vmem:[#allocation2 + $0x268] sm:$0xff]
  %v1055 = vld [vmem:[#allocation2 + $0x270] sm:$0xff]
  %v1056 = vld [vmem:[#allocation2 + $0x278] sm:$0xff]
  %v1057 = vld [vmem:[#allocation2 + $0x280] sm:$0xff]
  %v1058 = vld [vmem:[#allocation2 + $0x288] sm:$0xff]
  %v1059 = vld [vmem:[#allocation2 + $0x290] sm:$0xff]
  %v1060 = vld [vmem:[#allocation2 + $0x298] sm:$0xff]
  %v1061 = vld [vmem:[#allocation2 + $0x2a0] sm:$0xff]
  %v1062 = vld [vmem:[#allocation2 + $0x2a8] sm:$0xff]
  %v1063 = vld [vmem:[#allocation2 + $0x2b0] sm:$0xff]
  %v1064 = vld [vmem:[#allocation2 + $0x2b8] sm:$0xff]
  %v1065 = vld [vmem:[#allocation2 + $0x2c0] sm:$0xff]
  %v1066 = vld [vmem:[#allocation2 + $0x2c8] sm:$0xff]
  %v1067 = vld [vmem:[#allocation2 + $0x2d0] sm:$0xff]
  %v1068 = vld [vmem:[#allocation2 + $0x2d8] sm:$0xff]
  %v1069 = vld [vmem:[#allocation2 + $0x2e0] sm:$0xff]
  %v1070 = vld [vmem:[#allocation2 + $0x2e8] sm:$0xff]
  %v1071 = vld [vmem:[#allocation2 + $0x2f0] sm:$0xff]
  %v1072 = vld [vmem:[#allocation2 + $0x2f8] sm:$0xff]
  %v1073 = vld [vmem:[#allocation2 + $0x300] sm:$0xff]
  %v1074 = vld [vmem:[#allocation2 + $0x308] sm:$0xff]
  %v1075 = vld [vmem:[#allocation2 + $0x310] sm:$0xff]
  %v1076 = vld [vmem:[#allocation2 + $0x318] sm:$0xff]
  %v1077 = vld [vmem:[#allocation2 + $0x320] sm:$0xff]
  %v1078 = vld [vmem:[#allocation2 + $0x328] sm:$0xff]
  %v1079 = vld [vmem:[#allocation2 + $0x330] sm:$0xff]
  %v1080 = vld [vmem:[#allocation2 + $0x338] sm:$0xff]
  %v1081 = vld [vmem:[#allocation2 + $0x340] sm:$0xff]
  %v1082 = vld [vmem:[#allocation2 + $0x348] sm:$0xff]
  %v1083 = vld [vmem:[#allocation2 + $0x350] sm:$0xff]
  %v1084 = vld [vmem:[#allocation2 + $0x358] sm:$0xff]
  %v1085 = vld [vmem:[#allocation2 + $0x360] sm:$0xff]
  %v1086 = vld [vmem:[#allocation2 + $0x368] sm:$0xff]
  %v1087 = vld [vmem:[#allocation2 + $0x370] sm:$0xff]
  %v1088 = vld [vmem:[#allocation2 + $0x378] sm:$0xff]
  %v1089 = vld [vmem:[#allocation2 + $0x380] sm:$0xff]
  %v1090 = vld [vmem:[#allocation2 + $0x388] sm:$0xff]
  %v1091 = vld [vmem:[#allocation2 + $0x390] sm:$0xff]
  %v1092 = vld [vmem:[#allocation2 + $0x398] sm:$0xff]
  %v1093 = vld [vmem:[#allocation2 + $0x3a0] sm:$0xff]
  %v1094 = vld [vmem:[#allocation2 + $0x3a8] sm:$0xff]
  %v1095 = vld [vmem:[#allocation2 + $0x3b0] sm:$0xff]
  %v1096 = vld [vmem:[#allocation2 + $0x3b8] sm:$0xff]
  %v1097 = vld [vmem:[#allocation2 + $0x3c0] sm:$0xff]
  %v1098 = vld [vmem:[#allocation2 + $0x3c8] sm:$0xff]
  %v1099 = vld [vmem:[#allocation2 + $0x3d0] sm:$0xff]
  %v1100 = vld [vmem:[#allocation2 + $0x3d8] sm:$0xff]
  %v1101 = vld [vmem:[#allocation2 + $0x3e0] sm:$0xff]
  %v1102 = vld [vmem:[#allocation2 + $0x3e8] sm:$0xff]
  %v1103 = vld [vmem:[#allocation2 + $0x3f0] sm:$0xff]
  %v1104 = vld [vmem:[#allocation2 + $0x3f8] sm:$0xff]
  %v1105 = vld [vmem:[#allocation2 + $0x400] sm:$0xff]
  %v1106 = vld [vmem:[#allocation2 + $0x408] sm:$0xff]
  %v1107 = vld [vmem:[#allocation2 + $0x410] sm:$0xff]
  %v1108 = vld [vmem:[#allocation2 + $0x418] sm:$0xff]
  %v1109 = vld [vmem:[#allocation2 + $0x420] sm:$0xff]
  %v1110 = vld [vmem:[#allocation2 + $0x428] sm:$0xff]
  %v1111 = vld [vmem:[#allocation2 + $0x430] sm:$0xff]
  %v1112 = vld [vmem:[#allocation2 + $0x438] sm:$0xff]
  %v1113 = vld [vmem:[#allocation2 + $0x440] sm:$0xff]
  %v1114 = vld [vmem:[#allocation2 + $0x448] sm:$0xff]
  %v1115 = vld [vmem:[#allocation2 + $0x450] sm:$0xff]
  %v1116 = vld [vmem:[#allocation2 + $0x458] sm:$0xff]
  %v1117 = vld [vmem:[#allocation2 + $0x460] sm:$0xff]
  %v1118 = vld [vmem:[#allocation2 + $0x468] sm:$0xff]
  %v1119 = vld [vmem:[#allocation2 + $0x470] sm:$0xff]
  %v1120 = vld [vmem:[#allocation2 + $0x478] sm:$0xff]
  %v1121 = vld [vmem:[%s3] sm:$0xf]
  %v1122 = vld [vmem:[%s3 + $0x4] sm:$0xf]
  %v1123 = vld [vmem:[%s3 + $0x8] sm:$0xf]
  %v1124 = vld [vmem:[%s3 + $0xc] sm:$0xf]
  %v1125 = vld [vmem:[%s3 + $0x10] sm:$0xf]
  %v1126 = vld [vmem:[%s3 + $0x14] sm:$0xf]
  %v1127 = vld [vmem:[%s3 + $0x18] sm:$0xf]
  %v1128 = vld [vmem:[%s3 + $0x1c] sm:$0xf]
  %v1129 = vld [vmem:[%s3 + $0x20] sm:$0xf]
  %v1130 = vld [vmem:[%s3 + $0x24] sm:$0xf]
  %v1131 = vld [vmem:[%s3 + $0x28] sm:$0xf]
  %v1132 = vld [vmem:[%s3 + $0x2c] sm:$0xf]
  %v1133 = vld [vmem:[%s3 + $0x30] sm:$0xf]
  %v1134 = vld [vmem:[%s3 + $0x34] sm:$0xf]
  %v1135 = vld [vmem:[%s3 + $0x38] sm:$0xf]
  %v1136 = vld [vmem:[%s3 + $0x3c] sm:$0xf]
  %v1153 = vunpack.c.l.b16 %v1121
  %v1154 = vunpack.c.l.b16 %v1122
  %v1155 = vunpack.c.l.b16 %v1123
  %v1156 = vunpack.c.l.b16 %v1124
  %v1157 = vunpack.c.l.b16 %v1125
  %v1158 = vunpack.c.l.b16 %v1126
  %v1159 = vunpack.c.l.b16 %v1127
  %v1160 = vunpack.c.l.b16 %v1128
  %v1161 = vunpack.c.l.b16 %v1129
  %v1162 = vunpack.c.l.b16 %v1130
  %v1163 = vunpack.c.l.b16 %v1131
  %v1164 = vunpack.c.l.b16 %v1132
  %v1165 = vunpack.c.l.b16 %v1133
  %v1166 = vunpack.c.l.b16 %v1134
  %v1167 = vunpack.c.l.b16 %v1135
  %v1168 = vunpack.c.l.b16 %v1136
  %v1169 = vpack.c.b16 %v1154, %v1153
  %v1170 = vpack.c.b16 %v1156, %v1155
  %v1171 = vpack.c.b16 %v1158, %v1157
  %v1172 = vpack.c.b16 %v1160, %v1159
  %v1173 = vpack.c.b16 %v1162, %v1161
  %v1174 = vpack.c.b16 %v1164, %v1163
  %v1175 = vpack.c.b16 %v1166, %v1165
  %v1176 = vpack.c.b16 %v1168, %v1167
  %1185 = vmatprep.subr.bf16.mxu0 0
  %1186 = vmatpush1.bf16.msra.mxu0 %v1169
  %1187 = vmatprep.subr.bf16.mxu0 0
  %1188 = vmatpush1.bf16.msra.mxu0 %v1170
  %1189 = vmatprep.subr.bf16.mxu0 0
  %1190 = vmatpush1.bf16.msra.mxu0 %v1171
  %1191 = vmatprep.subr.bf16.mxu0 0
  %1192 = vmatpush1.bf16.msra.mxu0 %v1172
  %1193 = vmatprep.subr.bf16.mxu0 0
  %1194 = vmatpush1.bf16.msra.mxu0 %v1173
  %1195 = vmatprep.subr.bf16.mxu0 0
  %1196 = vmatpush1.bf16.msra.mxu0 %v1174
  %1197 = vmatprep.subr.bf16.mxu0 0
  %1198 = vmatpush1.bf16.msra.mxu0 %v1175
  %1199 = vmatprep.subr.bf16.mxu0 0
  %1200 = vmatpush1.bf16.msra.mxu0 %v1176
  %1201 = vmatprep.subr.bf16.mxu0 0
  %1202 = vmatpush1.bf16.msra.mxu0 0
  %1203 = vmatprep.subr.bf16.mxu0 0
  %1204 = vmatpush1.bf16.msra.mxu0 0
  %1205 = vmatprep.subr.bf16.mxu0 0
  %1206 = vmatpush1.bf16.msra.mxu0 0
  %1207 = vmatprep.subr.bf16.mxu0 0
  %1208 = vmatpush1.bf16.msra.mxu0 0
  %1209 = vmatprep.subr.bf16.mxu0 0
  %1210 = vmatpush1.bf16.msra.mxu0 0
  %1211 = vmatprep.subr.bf16.mxu0 0
  %1212 = vmatpush1.bf16.msra.mxu0 0
  %1213 = vmatprep.subr.bf16.mxu0 0
  %1214 = vmatpush1.bf16.msra.mxu0 0
  %1215 = vmatprep.subr.bf16.mxu0 0
  %1216 = vmatpush1.bf16.msra.mxu0 0
  %1217 = vmatprep.mubr.bf16.mxu0 0
  %1218 = vmatmul.mubr.bf16.gmra.mrb[0].mxu0 %v905
  %v1219 = vpop.f32.mrb[0].mxu0
  %v1220 = vadd.f32 0.0, %v1219
  %v1221 = vpop.f32.mrb[0].mxu0
  %v1222 = vpop.f32.mrb[0].mxu0
  %v1223 = vadd.f32 0.0, %v1222
  %v1224 = vpop.f32.mrb[0].mxu0
  %1225 = vmatprep.mubr.bf16.mxu0 0
  %1226 = vmatmul.mubr.bf16.gmra.mrb[0].mxu0 %v906
  %v1227 = vpop.f32.mrb[0].mxu0
  %v1228 = vadd.f32 0.0, %v1227
  %v1229 = vpop.f32.mrb[0].mxu0
  %v1230 = vpop.f32.mrb[0].mxu0
  %v1231 = vadd.f32 0.0, %v1230
  %v1232 = vpop.f32.mrb[0].mxu0
  %1233 = vmatprep.mubr.bf16.mxu0 0
  %1234 = vmatmul.mubr.bf16.gmra.mrb[0].mxu0 %v907
  %v1235 = vpop.f32.mrb[0].mxu0
  %v1236 = vadd.f32 0.0, %v1235
  %v1237 = vpop.f32.mrb[0].mxu0
  %v1238 = vpop.f32.mrb[0].mxu0
  %v1239 = vadd.f32 0.0, %v1238
  %v1240 = vpop.f32.mrb[0].mxu0
  %1241 = vmatprep.mubr.bf16.mxu0 0
  %1242 = vmatmul.mubr.bf16.gmra.mrb[0].mxu0 %v908
  %v1243 = vpop.f32.mrb[0].mxu0
  %v1244 = vadd.f32 0.0, %v1243
  %v1245 = vpop.f32.mrb[0].mxu0
  %v1246 = vpop.f32.mrb[0].mxu0
  %v1247 = vadd.f32 0.0, %v1246
  %v1248 = vpop.f32.mrb[0].mxu0
  %1249 = vmatprep.mubr.bf16.mxu0 0
  %1250 = vmatmul.mubr.bf16.gmra.mrb[0].mxu0 %v909
  %v1251 = vpop.f32.mrb[0].mxu0
  %v1252 = vadd.f32 0.0, %v1251
  %v1253 = vpop.f32.mrb[0].mxu0
  %v1254 = vpop.f32.mrb[0].mxu0
  %v1255 = vadd.f32 0.0, %v1254
  %v1256 = vpop.f32.mrb[0].mxu0
  %1257 = vmatprep.mubr.bf16.mxu0 0
  %1258 = vmatmul.mubr.bf16.gmra.mrb[0].mxu0 %v910
  %v1259 = vpop.f32.mrb[0].mxu0
  %v1260 = vadd.f32 0.0, %v1259
  %v1261 = vpop.f32.mrb[0].mxu0
  %v1262 = vpop.f32.mrb[0].mxu0
  %v1263 = vadd.f32 0.0, %v1262
  %v1264 = vpop.f32.mrb[0].mxu0
  %1265 = vmatprep.mubr.bf16.mxu0 0
  %1266 = vmatmul.mubr.bf16.gmra.mrb[0].mxu0 %v911
  %v1267 = vpop.f32.mrb[0].mxu0
  %v1268 = vadd.f32 0.0, %v1267
  %v1269 = vpop.f32.mrb[0].mxu0
  %v1270 = vpop.f32.mrb[0].mxu0
  %v1271 = vadd.f32 0.0, %v1270
  %v1272 = vpop.f32.mrb[0].mxu0
  %1273 = vmatprep.mubr.bf16.mxu0 0
  %1274 = vmatmul.mubr.bf16.gmra.mrb[0].mxu0 %v912
  %v1275 = vpop.f32.mrb[0].mxu0
  %v1276 = vadd.f32 0.0, %v1275
  %v1277 = vpop.f32.mrb[0].mxu0
  %v1278 = vpop.f32.mrb[0].mxu0
  %v1279 = vadd.f32 0.0, %v1278
  %v1280 = vpop.f32.mrb[0].mxu0
  %1281 = vmatprep.mubr.bf16.mxu0 0
  %1282 = vmatmul.mubr.bf16.gmra.mrb[0].mxu0 %v913
  %v1283 = vpop.f32.mrb[0].mxu0
  %v1284 = vadd.f32 0.0, %v1283
  %v1285 = vpop.f32.mrb[0].mxu0
  %v1286 = vpop.f32.mrb[0].mxu0
  %v1287 = vadd.f32 0.0, %v1286
  %v1288 = vpop.f32.mrb[0].mxu0
  %1289 = vmatprep.mubr.bf16.mxu0 0
  %1290 = vmatmul.mubr.bf16.gmra.mrb[0].mxu0 %v914
  %v1291 = vpop.f32.mrb[0].mxu0
  %v1292 = vadd.f32 0.0, %v1291
  %v1293 = vpop.f32.mrb[0].mxu0
  %v1294 = vpop.f32.mrb[0].mxu0
  %v1295 = vadd.f32 0.0, %v1294
  %v1296 = vpop.f32.mrb[0].mxu0
  %1297 = vmatprep.mubr.bf16.mxu0 0
  %1298 = vmatmul.mubr.bf16.gmra.mrb[0].mxu0 %v915
  %v1299 = vpop.f32.mrb[0].mxu0
  %v1300 = vadd.f32 0.0, %v1299
  %v1301 = vpop.f32.mrb[0].mxu0
  %v1302 = vpop.f32.mrb[0].mxu0
  %v1303 = vadd.f32 0.0, %v1302
  %v1304 = vpop.f32.mrb[0].mxu0
  %1305 = vmatprep.mubr.bf16.mxu0 0
  %1306 = vmatmul.mubr.bf16.gmra.mrb[0].mxu0 %v916
  %v1307 = vpop.f32.mrb[0].mxu0
  %v1308 = vadd.f32 0.0, %v1307
  %v1309 = vpop.f32.mrb[0].mxu0
  %v1310 = vpop.f32.mrb[0].mxu0
  %v1311 = vadd.f32 0.0, %v1310
  %v1312 = vpop.f32.mrb[0].mxu0
  %1313 = vmatprep.mubr.bf16.mxu0 0
  %1314 = vmatmul.mubr.bf16.gmra.mrb[0].mxu0 %v917
  %v1315 = vpop.f32.mrb[0].mxu0
  %v1316 = vadd.f32 0.0, %v1315
  %v1317 = vpop.f32.mrb[0].mxu0
  %v1318 = vpop.f32.mrb[0].mxu0
  %v1319 = vadd.f32 0.0, %v1318
  %v1320 = vpop.f32.mrb[0].mxu0
  %1321 = vmatprep.mubr.bf16.mxu0 0
  %1322 = vmatmul.mubr.bf16.gmra.mrb[0].mxu0 %v918
  %v1323 = vpop.f32.mrb[0].mxu0
  %v1324 = vadd.f32 0.0, %v1323
  %v1325 = vpop.f32.mrb[0].mxu0
  %v1326 = vpop.f32.mrb[0].mxu0
  %v1327 = vadd.f32 0.0, %v1326
  %v1328 = vpop.f32.mrb[0].mxu0
  %1329 = vmatprep.mubr.bf16.mxu0 0
  %1330 = vmatmul.mubr.bf16.gmra.mrb[0].mxu0 %v919
  %v1331 = vpop.f32.mrb[0].mxu0
  %v1332 = vadd.f32 0.0, %v1331
  %v1333 = vpop.f32.mrb[0].mxu0
  %v1334 = vpop.f32.mrb[0].mxu0
  %v1335 = vadd.f32 0.0, %v1334
  %v1336 = vpop.f32.mrb[0].mxu0
  %1337 = vmatprep.mubr.bf16.mxu0 0
  %1338 = vmatmul.mubr.bf16.gmra.mrb[0].mxu0 %v920
  %v1339 = vpop.f32.mrb[0].mxu0
  %v1340 = vadd.f32 0.0, %v1339
  %v1341 = vpop.f32.mrb[0].mxu0
  %v1342 = vpop.f32.mrb[0].mxu0
  %v1343 = vadd.f32 0.0, %v1342
  %v1344 = vpop.f32.mrb[0].mxu0
  %1345 = vmatprep.mubr.bf16.mxu0 0
  %1346 = vmatmul.mubr.bf16.gmra.mrb[0].mxu0 %v921
  %v1347 = vpop.f32.mrb[0].mxu0
  %v1348 = vadd.f32 0.0, %v1347
  %v1349 = vpop.f32.mrb[0].mxu0
  %v1350 = vpop.f32.mrb[0].mxu0
  %v1351 = vadd.f32 0.0, %v1350
  %v1352 = vpop.f32.mrb[0].mxu0
  %1353 = vmatprep.mubr.bf16.mxu0 0
  %1354 = vmatmul.mubr.bf16.gmra.mrb[0].mxu0 %v922
  %v1355 = vpop.f32.mrb[0].mxu0
  %v1356 = vadd.f32 0.0, %v1355
  %v1357 = vpop.f32.mrb[0].mxu0
  %v1358 = vpop.f32.mrb[0].mxu0
  %v1359 = vadd.f32 0.0, %v1358
  %v1360 = vpop.f32.mrb[0].mxu0
  %1361 = vmatprep.mubr.bf16.mxu0 0
  %1362 = vmatmul.mubr.bf16.gmra.mrb[0].mxu0 %v923
  %v1363 = vpop.f32.mrb[0].mxu0
  %v1364 = vadd.f32 0.0, %v1363
  %v1365 = vpop.f32.mrb[0].mxu0
  %v1366 = vpop.f32.mrb[0].mxu0
  %v1367 = vadd.f32 0.0, %v1366
  %v1368 = vpop.f32.mrb[0].mxu0
  %1369 = vmatprep.mubr.bf16.mxu0 0
  %1370 = vmatmul.mubr.bf16.gmra.mrb[0].mxu0 %v924
  %v1371 = vpop.f32.mrb[0].mxu0
  %v1372 = vadd.f32 0.0, %v1371
  %v1373 = vpop.f32.mrb[0].mxu0
  %v1374 = vpop.f32.mrb[0].mxu0
  %v1375 = vadd.f32 0.0, %v1374
  %v1376 = vpop.f32.mrb[0].mxu0
  %1377 = vmatprep.mubr.bf16.mxu0 0
  %1378 = vmatmul.mubr.bf16.gmra.mrb[0].mxu0 %v925
  %v1379 = vpop.f32.mrb[0].mxu0
  %v1380 = vadd.f32 0.0, %v1379
  %v1381 = vpop.f32.mrb[0].mxu0
  %v1382 = vpop.f32.mrb[0].mxu0
  %v1383 = vadd.f32 0.0, %v1382
  %v1384 = vpop.f32.mrb[0].mxu0
  %1385 = vmatprep.mubr.bf16.mxu0 0
  %1386 = vmatmul.mubr.bf16.gmra.mrb[0].mxu0 %v926
  %v1387 = vpop.f32.mrb[0].mxu0
  %v1388 = vadd.f32 0.0, %v1387
  %v1389 = vpop.f32.mrb[0].mxu0
  %v1390 = vpop.f32.mrb[0].mxu0
  %v1391 = vadd.f32 0.0, %v1390
  %v1392 = vpop.f32.mrb[0].mxu0
  %1393 = vmatprep.mubr.bf16.mxu0 0
  %1394 = vmatmul.mubr.bf16.gmra.mrb[0].mxu0 %v927
  %v1395 = vpop.f32.mrb[0].mxu0
  %v1396 = vadd.f32 0.0, %v1395
  %v1397 = vpop.f32.mrb[0].mxu0
  %v1398 = vpop.f32.mrb[0].mxu0
  %v1399 = vadd.f32 0.0, %v1398
  %v1400 = vpop.f32.mrb[0].mxu0
  %1401 = vmatprep.mubr.bf16.mxu0 0
  %1402 = vmatmul.mubr.bf16.gmra.mrb[0].mxu0 %v928
  %v1403 = vpop.f32.mrb[0].mxu0
  %v1404 = vadd.f32 0.0, %v1403
  %v1405 = vpop.f32.mrb[0].mxu0
  %v1406 = vpop.f32.mrb[0].mxu0
  %v1407 = vadd.f32 0.0, %v1406
  %v1408 = vpop.f32.mrb[0].mxu0
  %1409 = vmatprep.mubr.bf16.mxu0 0
  %1410 = vmatmul.mubr.bf16.gmra.mrb[0].mxu0 %v929
  %v1411 = vpop.f32.mrb[0].mxu0
  %v1412 = vadd.f32 0.0, %v1411
  %v1413 = vpop.f32.mrb[0].mxu0
  %v1414 = vpop.f32.mrb[0].mxu0
  %v1415 = vadd.f32 0.0, %v1414
  %v1416 = vpop.f32.mrb[0].mxu0
  %1417 = vmatprep.mubr.bf16.mxu0 0
  %1418 = vmatmul.mubr.bf16.gmra.mrb[0].mxu0 %v930
  %v1419 = vpop.f32.mrb[0].mxu0
  %v1420 = vadd.f32 0.0, %v1419
  %v1421 = vpop.f32.mrb[0].mxu0
  %v1422 = vpop.f32.mrb[0].mxu0
  %v1423 = vadd.f32 0.0, %v1422
  %v1424 = vpop.f32.mrb[0].mxu0
  %1425 = vmatprep.mubr.bf16.mxu0 0
  %1426 = vmatmul.mubr.bf16.gmra.mrb[0].mxu0 %v931
  %v1427 = vpop.f32.mrb[0].mxu0
  %v1428 = vadd.f32 0.0, %v1427
  %v1429 = vpop.f32.mrb[0].mxu0
  %v1430 = vpop.f32.mrb[0].mxu0
  %v1431 = vadd.f32 0.0, %v1430
  %v1432 = vpop.f32.mrb[0].mxu0
  %1433 = vmatprep.mubr.bf16.mxu0 0
  %1434 = vmatmul.mubr.bf16.gmra.mrb[0].mxu0 %v932
  %v1435 = vpop.f32.mrb[0].mxu0
  %v1436 = vadd.f32 0.0, %v1435
  %v1437 = vpop.f32.mrb[0].mxu0
  %v1438 = vpop.f32.mrb[0].mxu0
  %v1439 = vadd.f32 0.0, %v1438
  %v1440 = vpop.f32.mrb[0].mxu0
  %1441 = vmatprep.mubr.bf16.mxu0 0
  %1442 = vmatmul.mubr.bf16.gmra.mrb[0].mxu0 %v933
  %v1443 = vpop.f32.mrb[0].mxu0
  %v1444 = vadd.f32 0.0, %v1443
  %v1445 = vpop.f32.mrb[0].mxu0
  %v1446 = vpop.f32.mrb[0].mxu0
  %v1447 = vadd.f32 0.0, %v1446
  %v1448 = vpop.f32.mrb[0].mxu0
  %1449 = vmatprep.mubr.bf16.mxu0 0
  %1450 = vmatmul.mubr.bf16.gmra.mrb[0].mxu0 %v934
  %v1451 = vpop.f32.mrb[0].mxu0
  %v1452 = vadd.f32 0.0, %v1451
  %v1453 = vpop.f32.mrb[0].mxu0
  %v1454 = vpop.f32.mrb[0].mxu0
  %v1455 = vadd.f32 0.0, %v1454
  %v1456 = vpop.f32.mrb[0].mxu0
  %1457 = vmatprep.mubr.bf16.mxu0 0
  %1458 = vmatmul.mubr.bf16.gmra.mrb[0].mxu0 %v935
  %v1459 = vpop.f32.mrb[0].mxu0
  %v1460 = vadd.f32 0.0, %v1459
  %v1461 = vpop.f32.mrb[0].mxu0
  %v1462 = vpop.f32.mrb[0].mxu0
  %v1463 = vadd.f32 0.0, %v1462
  %v1464 = vpop.f32.mrb[0].mxu0
  %1465 = vmatprep.mubr.bf16.mxu0 0
  %1466 = vmatmul.mubr.bf16.gmra.mrb[0].mxu0 %v936
  %v1467 = vpop.f32.mrb[0].mxu0
  %v1468 = vadd.f32 0.0, %v1467
  %v1469 = vpop.f32.mrb[0].mxu0
  %v1470 = vpop.f32.mrb[0].mxu0
  %v1471 = vadd.f32 0.0, %v1470
  %v1472 = vpop.f32.mrb[0].mxu0
  %1473 = vmatprep.mubr.bf16.mxu0 0
  %1474 = vmatmul.mubr.bf16.gmra.mrb[0].mxu0 %v937
  %v1475 = vpop.f32.mrb[0].mxu0
  %v1476 = vadd.f32 0.0, %v1475
  %v1477 = vpop.f32.mrb[0].mxu0
  %v1478 = vpop.f32.mrb[0].mxu0
  %v1479 = vadd.f32 0.0, %v1478
  %v1480 = vpop.f32.mrb[0].mxu0
  %1481 = vmatprep.mubr.bf16.mxu0 0
  %1482 = vmatmul.mubr.bf16.gmra.mrb[0].mxu0 %v938
  %v1483 = vpop.f32.mrb[0].mxu0
  %v1484 = vadd.f32 0.0, %v1483
  %v1485 = vpop.f32.mrb[0].mxu0
  %v1486 = vpop.f32.mrb[0].mxu0
  %v1487 = vadd.f32 0.0, %v1486
  %v1488 = vpop.f32.mrb[0].mxu0
  %1489 = vmatprep.mubr.bf16.mxu0 0
  %1490 = vmatmul.mubr.bf16.gmra.mrb[0].mxu0 %v939
  %v1491 = vpop.f32.mrb[0].mxu0
  %v1492 = vadd.f32 0.0, %v1491
  %v1493 = vpop.f32.mrb[0].mxu0
  %v1494 = vpop.f32.mrb[0].mxu0
  %v1495 = vadd.f32 0.0, %v1494
  %v1496 = vpop.f32.mrb[0].mxu0
  %1497 = vmatprep.mubr.bf16.mxu0 0
  %1498 = vmatmul.mubr.bf16.gmra.mrb[0].mxu0 %v940
  %v1499 = vpop.f32.mrb[0].mxu0
  %v1500 = vadd.f32 0.0, %v1499
  %v1501 = vpop.f32.mrb[0].mxu0
  %v1502 = vpop.f32.mrb[0].mxu0
  %v1503 = vadd.f32 0.0, %v1502
  %v1504 = vpop.f32.mrb[0].mxu0
  %1505 = vmatprep.mubr.bf16.mxu0 0
  %1506 = vmatmul.mubr.bf16.gmra.mrb[0].mxu0 %v941
  %v1507 = vpop.f32.mrb[0].mxu0
  %v1508 = vadd.f32 0.0, %v1507
  %v1509 = vpop.f32.mrb[0].mxu0
  %v1510 = vpop.f32.mrb[0].mxu0
  %v1511 = vadd.f32 0.0, %v1510
  %v1512 = vpop.f32.mrb[0].mxu0
  %1513 = vmatprep.mubr.bf16.mxu0 0
  %1514 = vmatmul.mubr.bf16.gmra.mrb[0].mxu0 %v942
  %v1515 = vpop.f32.mrb[0].mxu0
  %v1516 = vadd.f32 0.0, %v1515
  %v1517 = vpop.f32.mrb[0].mxu0
  %v1518 = vpop.f32.mrb[0].mxu0
  %v1519 = vadd.f32 0.0, %v1518
  %v1520 = vpop.f32.mrb[0].mxu0
  %1521 = vmatprep.mubr.bf16.mxu0 0
  %1522 = vmatmul.mubr.bf16.gmra.mrb[0].mxu0 %v943
  %v1523 = vpop.f32.mrb[0].mxu0
  %v1524 = vadd.f32 0.0, %v1523
  %v1525 = vpop.f32.mrb[0].mxu0
  %v1526 = vpop.f32.mrb[0].mxu0
  %v1527 = vadd.f32 0.0, %v1526
  %v1528 = vpop.f32.mrb[0].mxu0
  %1529 = vmatprep.mubr.bf16.mxu0 0
  %1530 = vmatmul.mubr.bf16.gmra.mrb[0].mxu0 %v944
  %v1531 = vpop.f32.mrb[0].mxu0
  %v1532 = vadd.f32 0.0, %v1531
  %v1533 = vpop.f32.mrb[0].mxu0
  %v1534 = vpop.f32.mrb[0].mxu0
  %v1535 = vadd.f32 0.0, %v1534
  %v1536 = vpop.f32.mrb[0].mxu0
  %1537 = vmatprep.mubr.bf16.mxu0 0
  %1538 = vmatmul.mubr.bf16.gmra.mrb[0].mxu0 %v945
  %v1539 = vpop.f32.mrb[0].mxu0
  %v1540 = vadd.f32 0.0, %v1539
  %v1541 = vpop.f32.mrb[0].mxu0
  %v1542 = vpop.f32.mrb[0].mxu0
  %v1543 = vadd.f32 0.0, %v1542
  %v1544 = vpop.f32.mrb[0].mxu0
  %1545 = vmatprep.mubr.bf16.mxu0 0
  %1546 = vmatmul.mubr.bf16.gmra.mrb[0].mxu0 %v946
  %v1547 = vpop.f32.mrb[0].mxu0
  %v1548 = vadd.f32 0.0, %v1547
  %v1549 = vpop.f32.mrb[0].mxu0
  %v1550 = vpop.f32.mrb[0].mxu0
  %v1551 = vadd.f32 0.0, %v1550
  %v1552 = vpop.f32.mrb[0].mxu0
  %1553 = vmatprep.mubr.bf16.mxu0 0
  %1554 = vmatmul.mubr.bf16.gmra.mrb[0].mxu0 %v947
  %v1555 = vpop.f32.mrb[0].mxu0
  %v1556 = vadd.f32 0.0, %v1555
  %v1557 = vpop.f32.mrb[0].mxu0
  %v1558 = vpop.f32.mrb[0].mxu0
  %v1559 = vadd.f32 0.0, %v1558
  %v1560 = vpop.f32.mrb[0].mxu0
  %1561 = vmatprep.mubr.bf16.mxu0 0
  %1562 = vmatmul.mubr.bf16.gmra.mrb[0].mxu0 %v948
  %v1563 = vpop.f32.mrb[0].mxu0
  %v1564 = vadd.f32 0.0, %v1563
  %v1565 = vpop.f32.mrb[0].mxu0
  %v1566 = vpop.f32.mrb[0].mxu0
  %v1567 = vadd.f32 0.0, %v1566
  %v1568 = vpop.f32.mrb[0].mxu0
  %1569 = vmatprep.mubr.bf16.mxu0 0
  %1570 = vmatmul.mubr.bf16.gmra.mrb[0].mxu0 %v949
  %v1571 = vpop.f32.mrb[0].mxu0
  %v1572 = vadd.f32 0.0, %v1571
  %v1573 = vpop.f32.mrb[0].mxu0
  %v1574 = vpop.f32.mrb[0].mxu0
  %v1575 = vadd.f32 0.0, %v1574
  %v1576 = vpop.f32.mrb[0].mxu0
  %1577 = vmatprep.mubr.bf16.mxu0 0
  %1578 = vmatmul.mubr.bf16.gmra.mrb[0].mxu0 %v950
  %v1579 = vpop.f32.mrb[0].mxu0
  %v1580 = vadd.f32 0.0, %v1579
  %v1581 = vpop.f32.mrb[0].mxu0
  %v1582 = vpop.f32.mrb[0].mxu0
  %v1583 = vadd.f32 0.0, %v1582
  %v1584 = vpop.f32.mrb[0].mxu0
  %1585 = vmatprep.mubr.bf16.mxu0 0
  %1586 = vmatmul.mubr.bf16.gmra.mrb[0].mxu0 %v951
  %v1587 = vpop.f32.mrb[0].mxu0
  %v1588 = vadd.f32 0.0, %v1587
  %v1589 = vpop.f32.mrb[0].mxu0
  %v1590 = vpop.f32.mrb[0].mxu0
  %v1591 = vadd.f32 0.0, %v1590
  %v1592 = vpop.f32.mrb[0].mxu0
  %1593 = vmatprep.mubr.bf16.mxu0 0
  %1594 = vmatmul.mubr.bf16.gmra.mrb[0].mxu0 %v952
  %v1595 = vpop.f32.mrb[0].mxu0
  %v1596 = vadd.f32 0.0, %v1595
  %v1597 = vpop.f32.mrb[0].mxu0
  %v1598 = vpop.f32.mrb[0].mxu0
  %v1599 = vadd.f32 0.0, %v1598
  %v1600 = vpop.f32.mrb[0].mxu0
  %1601 = vmatprep.mubr.bf16.mxu0 0
  %1602 = vmatmul.mubr.bf16.gmra.mrb[0].mxu0 %v953
  %v1603 = vpop.f32.mrb[0].mxu0
  %v1604 = vadd.f32 0.0, %v1603
  %v1605 = vpop.f32.mrb[0].mxu0
  %v1606 = vpop.f32.mrb[0].mxu0
  %v1607 = vadd.f32 0.0, %v1606
  %v1608 = vpop.f32.mrb[0].mxu0
  %1609 = vmatprep.mubr.bf16.mxu0 0
  %1610 = vmatmul.mubr.bf16.gmra.mrb[0].mxu0 %v954
  %v1611 = vpop.f32.mrb[0].mxu0
  %v1612 = vadd.f32 0.0, %v1611
  %v1613 = vpop.f32.mrb[0].mxu0
  %v1614 = vpop.f32.mrb[0].mxu0
  %v1615 = vadd.f32 0.0, %v1614
  %v1616 = vpop.f32.mrb[0].mxu0
  %1617 = vmatprep.mubr.bf16.mxu0 0
  %1618 = vmatmul.mubr.bf16.gmra.mrb[0].mxu0 %v955
  %v1619 = vpop.f32.mrb[0].mxu0
  %v1620 = vadd.f32 0.0, %v1619
  %v1621 = vpop.f32.mrb[0].mxu0
  %v1622 = vpop.f32.mrb[0].mxu0
  %v1623 = vadd.f32 0.0, %v1622
  %v1624 = vpop.f32.mrb[0].mxu0
  %1625 = vmatprep.mubr.bf16.mxu0 0
  %1626 = vmatmul.mubr.bf16.gmra.mrb[0].mxu0 %v956
  %v1627 = vpop.f32.mrb[0].mxu0
  %v1628 = vadd.f32 0.0, %v1627
  %v1629 = vpop.f32.mrb[0].mxu0
  %v1630 = vpop.f32.mrb[0].mxu0
  %v1631 = vadd.f32 0.0, %v1630
  %v1632 = vpop.f32.mrb[0].mxu0
  %1633 = vmatprep.mubr.bf16.mxu0 0
  %1634 = vmatmul.mubr.bf16.gmra.mrb[0].mxu0 %v957
  %v1635 = vpop.f32.mrb[0].mxu0
  %v1636 = vadd.f32 0.0, %v1635
  %v1637 = vpop.f32.mrb[0].mxu0
  %v1638 = vpop.f32.mrb[0].mxu0
  %v1639 = vadd.f32 0.0, %v1638
  %v1640 = vpop.f32.mrb[0].mxu0
  %1641 = vmatprep.mubr.bf16.mxu0 0
  %1642 = vmatmul.mubr.bf16.gmra.mrb[0].mxu0 %v958
  %v1643 = vpop.f32.mrb[0].mxu0
  %v1644 = vadd.f32 0.0, %v1643
  %v1645 = vpop.f32.mrb[0].mxu0
  %v1646 = vpop.f32.mrb[0].mxu0
  %v1647 = vadd.f32 0.0, %v1646
  %v1648 = vpop.f32.mrb[0].mxu0
  %1649 = vmatprep.mubr.bf16.mxu0 0
  %1650 = vmatmul.mubr.bf16.gmra.mrb[0].mxu0 %v959
  %v1651 = vpop.f32.mrb[0].mxu0
  %v1652 = vadd.f32 0.0, %v1651
  %v1653 = vpop.f32.mrb[0].mxu0
  %v1654 = vpop.f32.mrb[0].mxu0
  %v1655 = vadd.f32 0.0, %v1654
  %v1656 = vpop.f32.mrb[0].mxu0
  %1657 = vmatprep.mubr.bf16.mxu0 0
  %1658 = vmatmul.mubr.bf16.gmra.mrb[0].mxu0 %v960
  %v1659 = vpop.f32.mrb[0].mxu0
  %v1660 = vadd.f32 0.0, %v1659
  %v1661 = vpop.f32.mrb[0].mxu0
  %v1662 = vpop.f32.mrb[0].mxu0
  %v1663 = vadd.f32 0.0, %v1662
  %v1664 = vpop.f32.mrb[0].mxu0
  %1665 = vmatprep.mubr.bf16.mxu0 0
  %1666 = vmatmul.mubr.bf16.gmra.mrb[0].mxu0 %v961
  %v1667 = vpop.f32.mrb[0].mxu0
  %v1668 = vadd.f32 0.0, %v1667
  %v1669 = vpop.f32.mrb[0].mxu0
  %v1670 = vpop.f32.mrb[0].mxu0
  %v1671 = vadd.f32 0.0, %v1670
  %v1672 = vpop.f32.mrb[0].mxu0
  %1673 = vmatprep.mubr.bf16.mxu0 0
  %1674 = vmatmul.mubr.bf16.gmra.mrb[0].mxu0 %v962
  %v1675 = vpop.f32.mrb[0].mxu0
  %v1676 = vadd.f32 0.0, %v1675
  %v1677 = vpop.f32.mrb[0].mxu0
  %v1678 = vpop.f32.mrb[0].mxu0
  %v1679 = vadd.f32 0.0, %v1678
  %v1680 = vpop.f32.mrb[0].mxu0
  %1681 = vmatprep.mubr.bf16.mxu0 0
  %1682 = vmatmul.mubr.bf16.gmra.mrb[0].mxu0 %v963
  %v1683 = vpop.f32.mrb[0].mxu0
  %v1684 = vadd.f32 0.0, %v1683
  %v1685 = vpop.f32.mrb[0].mxu0
  %v1686 = vpop.f32.mrb[0].mxu0
  %v1687 = vadd.f32 0.0, %v1686
  %v1688 = vpop.f32.mrb[0].mxu0
  %1689 = vmatprep.mubr.bf16.mxu0 0
  %1690 = vmatmul.mubr.bf16.gmra.mrb[0].mxu0 %v964
  %v1691 = vpop.f32.mrb[0].mxu0
  %v1692 = vadd.f32 0.0, %v1691
  %v1693 = vpop.f32.mrb[0].mxu0
  %v1694 = vpop.f32.mrb[0].mxu0
  %v1695 = vadd.f32 0.0, %v1694
  %v1696 = vpop.f32.mrb[0].mxu0
  %1697 = vmatprep.mubr.bf16.mxu0 0
  %1698 = vmatmul.mubr.bf16.gmra.mrb[0].mxu0 %v965
  %v1699 = vpop.f32.mrb[0].mxu0
  %v1700 = vadd.f32 0.0, %v1699
  %v1701 = vpop.f32.mrb[0].mxu0
  %v1702 = vpop.f32.mrb[0].mxu0
  %v1703 = vadd.f32 0.0, %v1702
  %v1704 = vpop.f32.mrb[0].mxu0
  %1705 = vmatprep.mubr.bf16.mxu0 0
  %1706 = vmatmul.mubr.bf16.gmra.mrb[0].mxu0 %v966
  %v1707 = vpop.f32.mrb[0].mxu0
  %v1708 = vadd.f32 0.0, %v1707
  %v1709 = vpop.f32.mrb[0].mxu0
  %v1710 = vpop.f32.mrb[0].mxu0
  %v1711 = vadd.f32 0.0, %v1710
  %v1712 = vpop.f32.mrb[0].mxu0
  %1713 = vmatprep.mubr.bf16.mxu0 0
  %1714 = vmatmul.mubr.bf16.gmra.mrb[0].mxu0 %v967
  %v1715 = vpop.f32.mrb[0].mxu0
  %v1716 = vadd.f32 0.0, %v1715
  %v1717 = vpop.f32.mrb[0].mxu0
  %v1718 = vpop.f32.mrb[0].mxu0
  %v1719 = vadd.f32 0.0, %v1718
  %v1720 = vpop.f32.mrb[0].mxu0
  %1721 = vmatprep.mubr.bf16.mxu0 0
  %1722 = vmatmul.mubr.bf16.gmra.mrb[0].mxu0 %v968
  %v1723 = vpop.f32.mrb[0].mxu0
  %v1724 = vadd.f32 0.0, %v1723
  %v1725 = vpop.f32.mrb[0].mxu0
  %v1726 = vpop.f32.mrb[0].mxu0
  %v1727 = vadd.f32 0.0, %v1726
  %v1728 = vpop.f32.mrb[0].mxu0
  %1729 = vmatprep.mubr.bf16.mxu0 0
  %1730 = vmatmul.mubr.bf16.gmra.mrb[0].mxu0 %v969
  %v1731 = vpop.f32.mrb[0].mxu0
  %v1732 = vadd.f32 0.0, %v1731
  %v1733 = vpop.f32.mrb[0].mxu0
  %v1734 = vpop.f32.mrb[0].mxu0
  %v1735 = vadd.f32 0.0, %v1734
  %v1736 = vpop.f32.mrb[0].mxu0
  %1737 = vmatprep.mubr.bf16.mxu0 0
  %1738 = vmatmul.mubr.bf16.gmra.mrb[0].mxu0 %v970
  %v1739 = vpop.f32.mrb[0].mxu0
  %v1740 = vadd.f32 0.0, %v1739
  %v1741 = vpop.f32.mrb[0].mxu0
  %v1742 = vpop.f32.mrb[0].mxu0
  %v1743 = vadd.f32 0.0, %v1742
  %v1744 = vpop.f32.mrb[0].mxu0
  %1745 = vmatprep.mubr.bf16.mxu0 0
  %1746 = vmatmul.mubr.bf16.gmra.mrb[0].mxu0 %v971
  %v1747 = vpop.f32.mrb[0].mxu0
  %v1748 = vadd.f32 0.0, %v1747
  %v1749 = vpop.f32.mrb[0].mxu0
  %v1750 = vpop.f32.mrb[0].mxu0
  %v1751 = vadd.f32 0.0, %v1750
  %v1752 = vpop.f32.mrb[0].mxu0
  %1753 = vmatprep.mubr.bf16.mxu0 0
  %1754 = vmatmul.mubr.bf16.gmra.mrb[0].mxu0 %v972
  %v1755 = vpop.f32.mrb[0].mxu0
  %v1756 = vadd.f32 0.0, %v1755
  %v1757 = vpop.f32.mrb[0].mxu0
  %v1758 = vpop.f32.mrb[0].mxu0
  %v1759 = vadd.f32 0.0, %v1758
  %v1760 = vpop.f32.mrb[0].mxu0
  %1761 = vmatprep.mubr.bf16.mxu0 0
  %1762 = vmatmul.mubr.bf16.gmra.mrb[0].mxu0 %v973
  %v1763 = vpop.f32.mrb[0].mxu0
  %v1764 = vadd.f32 0.0, %v1763
  %v1765 = vpop.f32.mrb[0].mxu0
  %v1766 = vpop.f32.mrb[0].mxu0
  %v1767 = vadd.f32 0.0, %v1766
  %v1768 = vpop.f32.mrb[0].mxu0
  %1769 = vmatprep.mubr.bf16.mxu0 0
  %1770 = vmatmul.mubr.bf16.gmra.mrb[0].mxu0 %v974
  %v1771 = vpop.f32.mrb[0].mxu0
  %v1772 = vadd.f32 0.0, %v1771
  %v1773 = vpop.f32.mrb[0].mxu0
  %v1774 = vpop.f32.mrb[0].mxu0
  %v1775 = vadd.f32 0.0, %v1774
  %v1776 = vpop.f32.mrb[0].mxu0
  %1777 = vmatprep.mubr.bf16.mxu0 0
  %1778 = vmatmul.mubr.bf16.gmra.mrb[0].mxu0 %v975
  %v1779 = vpop.f32.mrb[0].mxu0
  %v1780 = vadd.f32 0.0, %v1779
  %v1781 = vpop.f32.mrb[0].mxu0
  %v1782 = vpop.f32.mrb[0].mxu0
  %v1783 = vadd.f32 0.0, %v1782
  %v1784 = vpop.f32.mrb[0].mxu0
  %1785 = vmatprep.mubr.bf16.mxu0 0
  %1786 = vmatmul.mubr.bf16.gmra.mrb[0].mxu0 %v976
  %v1787 = vpop.f32.mrb[0].mxu0
  %v1788 = vadd.f32 0.0, %v1787
  %v1789 = vpop.f32.mrb[0].mxu0
  %v1790 = vpop.f32.mrb[0].mxu0
  %v1791 = vadd.f32 0.0, %v1790
  %v1792 = vpop.f32.mrb[0].mxu0
  %1793 = vdwg.mxu0
  %v1794 = vadd.f32 %v977, %v1220
  %v1795 = vadd.f32 %v978, %v1223
  %v1796 = vadd.f32 %v979, %v1228
  %v1797 = vadd.f32 %v980, %v1231
  %v1798 = vadd.f32 %v981, %v1236
  %v1799 = vadd.f32 %v982, %v1239
  %v1800 = vadd.f32 %v983, %v1244
  %v1801 = vadd.f32 %v984, %v1247
  %v1802 = vadd.f32 %v985, %v1252
  %v1803 = vadd.f32 %v986, %v1255
  %v1804 = vadd.f32 %v987, %v1260
  %v1805 = vadd.f32 %v988, %v1263
  %v1806 = vadd.f32 %v989, %v1268
  %v1807 = vadd.f32 %v990, %v1271
  %v1808 = vadd.f32 %v991, %v1276
  %v1809 = vadd.f32 %v992, %v1279
  %v1810 = vadd.f32 %v993, %v1284
  %v1811 = vadd.f32 %v994, %v1287
  %v1812 = vadd.f32 %v995, %v1292
  %v1813 = vadd.f32 %v996, %v1295
  %v1814 = vadd.f32 %v997, %v1300
  %v1815 = vadd.f32 %v998, %v1303
  %v1816 = vadd.f32 %v999, %v1308
  %v1817 = vadd.f32 %v1000, %v1311
  %v1818 = vadd.f32 %v1001, %v1316
  %v1819 = vadd.f32 %v1002, %v1319
  %v1820 = vadd.f32 %v1003, %v1324
  %v1821 = vadd.f32 %v1004, %v1327
  %v1822 = vadd.f32 %v1005, %v1332
  %v1823 = vadd.f32 %v1006, %v1335
  %v1824 = vadd.f32 %v1007, %v1340
  %v1825 = vadd.f32 %v1008, %v1343
  %v1826 = vadd.f32 %v1009, %v1348
  %v1827 = vadd.f32 %v1010, %v1351
  %v1828 = vadd.f32 %v1011, %v1356
  %v1829 = vadd.f32 %v1012, %v1359
  %v1830 = vadd.f32 %v1013, %v1364
  %v1831 = vadd.f32 %v1014, %v1367
  %v1832 = vadd.f32 %v1015, %v1372
  %v1833 = vadd.f32 %v1016, %v1375
  %v1834 = vadd.f32 %v1017, %v1380
  %v1835 = vadd.f32 %v1018, %v1383
  %v1836 = vadd.f32 %v1019, %v1388
  %v1837 = vadd.f32 %v1020, %v1391
  %v1838 = vadd.f32 %v1021, %v1396
  %v1839 = vadd.f32 %v1022, %v1399
  %v1840 = vadd.f32 %v1023, %v1404
  %v1841 = vadd.f32 %v1024, %v1407
  %v1842 = vadd.f32 %v1025, %v1412
  %v1843 = vadd.f32 %v1026, %v1415
  %v1844 = vadd.f32 %v1027, %v1420
  %v1845 = vadd.f32 %v1028, %v1423
  %v1846 = vadd.f32 %v1029, %v1428
  %v1847 = vadd.f32 %v1030, %v1431
  %v1848 = vadd.f32 %v1031, %v1436
  %v1849 = vadd.f32 %v1032, %v1439
  %v1850 = vadd.f32 %v1033, %v1444
  %v1851 = vadd.f32 %v1034, %v1447
  %v1852 = vadd.f32 %v1035, %v1452
  %v1853 = vadd.f32 %v1036, %v1455
  %v1854 = vadd.f32 %v1037, %v1460
  %v1855 = vadd.f32 %v1038, %v1463
  %v1856 = vadd.f32 %v1039, %v1468
  %v1857 = vadd.f32 %v1040, %v1471
  %v1858 = vadd.f32 %v1041, %v1476
  %v1859 = vadd.f32 %v1042, %v1479
  %v1860 = vadd.f32 %v1043, %v1484
  %v1861 = vadd.f32 %v1044, %v1487
  %v1862 = vadd.f32 %v1045, %v1492
  %v1863 = vadd.f32 %v1046, %v1495
  %v1864 = vadd.f32 %v1047, %v1500
  %v1865 = vadd.f32 %v1048, %v1503
  %v1866 = vadd.f32 %v1049, %v1508
  %v1867 = vadd.f32 %v1050, %v1511
  %v1868 = vadd.f32 %v1051, %v1516
  %v1869 = vadd.f32 %v1052, %v1519
  %v1870 = vadd.f32 %v1053, %v1524
  %v1871 = vadd.f32 %v1054, %v1527
  %v1872 = vadd.f32 %v1055, %v1532
  %v1873 = vadd.f32 %v1056, %v1535
  %v1874 = vadd.f32 %v1057, %v1540
  %v1875 = vadd.f32 %v1058, %v1543
  %v1876 = vadd.f32 %v1059, %v1548
  %v1877 = vadd.f32 %v1060, %v1551
  %v1878 = vadd.f32 %v1061, %v1556
  %v1879 = vadd.f32 %v1062, %v1559
  %v1880 = vadd.f32 %v1063, %v1564
  %v1881 = vadd.f32 %v1064, %v1567
  %v1882 = vadd.f32 %v1065, %v1572
  %v1883 = vadd.f32 %v1066, %v1575
  %v1884 = vadd.f32 %v1067, %v1580
  %v1885 = vadd.f32 %v1068, %v1583
  %v1886 = vadd.f32 %v1069, %v1588
  %v1887 = vadd.f32 %v1070, %v1591
  %v1888 = vadd.f32 %v1071, %v1596
  %v1889 = vadd.f32 %v1072, %v1599
  %v1890 = vadd.f32 %v1073, %v1604
  %v1891 = vadd.f32 %v1074, %v1607
  %v1892 = vadd.f32 %v1075, %v1612
  %v1893 = vadd.f32 %v1076, %v1615
  %v1894 = vadd.f32 %v1077, %v1620
  %v1895 = vadd.f32 %v1078, %v1623
  %v1896 = vadd.f32 %v1079, %v1628
  %v1897 = vadd.f32 %v1080, %v1631
  %v1898 = vadd.f32 %v1081, %v1636
  %v1899 = vadd.f32 %v1082, %v1639
  %v1900 = vadd.f32 %v1083, %v1644
  %v1901 = vadd.f32 %v1084, %v1647
  %v1902 = vadd.f32 %v1085, %v1652
  %v1903 = vadd.f32 %v1086, %v1655
  %v1904 = vadd.f32 %v1087, %v1660
  %v1905 = vadd.f32 %v1088, %v1663
  %v1906 = vadd.f32 %v1089, %v1668
  %v1907 = vadd.f32 %v1090, %v1671
  %v1908 = vadd.f32 %v1091, %v1676
  %v1909 = vadd.f32 %v1092, %v1679
  %v1910 = vadd.f32 %v1093, %v1684
  %v1911 = vadd.f32 %v1094, %v1687
  %v1912 = vadd.f32 %v1095, %v1692
  %v1913 = vadd.f32 %v1096, %v1695
  %v1914 = vadd.f32 %v1097, %v1700
  %v1915 = vadd.f32 %v1098, %v1703
  %v1916 = vadd.f32 %v1099, %v1708
  %v1917 = vadd.f32 %v1100, %v1711
  %v1918 = vadd.f32 %v1101, %v1716
  %v1919 = vadd.f32 %v1102, %v1719
  %v1920 = vadd.f32 %v1103, %v1724
  %v1921 = vadd.f32 %v1104, %v1727
  %v1922 = vadd.f32 %v1105, %v1732
  %v1923 = vadd.f32 %v1106, %v1735
  %v1924 = vadd.f32 %v1107, %v1740
  %v1925 = vadd.f32 %v1108, %v1743
  %v1926 = vadd.f32 %v1109, %v1748
  %v1927 = vadd.f32 %v1110, %v1751
  %v1928 = vadd.f32 %v1111, %v1756
  %v1929 = vadd.f32 %v1112, %v1759
  %v1930 = vadd.f32 %v1113, %v1764
  %v1931 = vadd.f32 %v1114, %v1767
  %v1932 = vadd.f32 %v1115, %v1772
  %v1933 = vadd.f32 %v1116, %v1775
  %v1934 = vadd.f32 %v1117, %v1780
  %v1935 = vadd.f32 %v1118, %v1783
  %v1936 = vadd.f32 %v1119, %v1788
  %v1937 = vadd.f32 %v1120, %v1791
  %1938 = vst [vmem:[#allocation2] sm:$0xff] %v1794
  %1939 = vst [vmem:[#allocation2 + $0x8] sm:$0xff] %v1795
  %1940 = vst [vmem:[#allocation2 + $0x10] sm:$0xff] %v1796
  %1941 = vst [vmem:[#allocation2 + $0x18] sm:$0xff] %v1797
  %1942 = vst [vmem:[#allocation2 + $0x20] sm:$0xff] %v1798
  %1943 = vst [vmem:[#allocation2 + $0x28] sm:$0xff] %v1799
  %1944 = vst [vmem:[#allocation2 + $0x30] sm:$0xff] %v1800
  %1945 = vst [vmem:[#allocation2 + $0x38] sm:$0xff] %v1801
  %1946 = vst [vmem:[#allocation2 + $0x40] sm:$0xff] %v1802
  %1947 = vst [vmem:[#allocation2 + $0x48] sm:$0xff] %v1803
  %1948 = vst [vmem:[#allocation2 + $0x50] sm:$0xff] %v1804
  %1949 = vst [vmem:[#allocation2 + $0x58] sm:$0xff] %v1805
  %1950 = vst [vmem:[#allocation2 + $0x60] sm:$0xff] %v1806
  %1951 = vst [vmem:[#allocation2 + $0x68] sm:$0xff] %v1807
  %1952 = vst [vmem:[#allocation2 + $0x70] sm:$0xff] %v1808
  %1953 = vst [vmem:[#allocation2 + $0x78] sm:$0xff] %v1809
  %1954 = vst [vmem:[#allocation2 + $0x80] sm:$0xff] %v1810
  %1955 = vst [vmem:[#allocation2 + $0x88] sm:$0xff] %v1811
  %1956 = vst [vmem:[#allocation2 + $0x90] sm:$0xff] %v1812
  %1957 = vst [vmem:[#allocation2 + $0x98] sm:$0xff] %v1813
  %1958 = vst [vmem:[#allocation2 + $0xa0] sm:$0xff] %v1814
  %1959 = vst [vmem:[#allocation2 + $0xa8] sm:$0xff] %v1815
  %1960 = vst [vmem:[#allocation2 + $0xb0] sm:$0xff] %v1816
  %1961 = vst [vmem:[#allocation2 + $0xb8] sm:$0xff] %v1817
  %1962 = vst [vmem:[#allocation2 + $0xc0] sm:$0xff] %v1818
  %1963 = vst [vmem:[#allocation2 + $0xc8] sm:$0xff] %v1819
  %1964 = vst [vmem:[#allocation2 + $0xd0] sm:$0xff] %v1820
  %1965 = vst [vmem:[#allocation2 + $0xd8] sm:$0xff] %v1821
  %1966 = vst [vmem:[#allocation2 + $0xe0] sm:$0xff] %v1822
  %1967 = vst [vmem:[#allocation2 + $0xe8] sm:$0xff] %v1823
  %1968 = vst [vmem:[#allocation2 + $0xf0] sm:$0xff] %v1824
  %1969 = vst [vmem:[#allocation2 + $0xf8] sm:$0xff] %v1825
  %1970 = vst [vmem:[#allocation2 + $0x100] sm:$0xff] %v1826
  %1971 = vst [vmem:[#allocation2 + $0x108] sm:$0xff] %v1827
  %1972 = vst [vmem:[#allocation2 + $0x110] sm:$0xff] %v1828
  %1973 = vst [vmem:[#allocation2 + $0x118] sm:$0xff] %v1829
  %1974 = vst [vmem:[#allocation2 + $0x120] sm:$0xff] %v1830
  %1975 = vst [vmem:[#allocation2 + $0x128] sm:$0xff] %v1831
  %1976 = vst [vmem:[#allocation2 + $0x130] sm:$0xff] %v1832
  %1977 = vst [vmem:[#allocation2 + $0x138] sm:$0xff] %v1833
  %1978 = vst [vmem:[#allocation2 + $0x140] sm:$0xff] %v1834
  %1979 = vst [vmem:[#allocation2 + $0x148] sm:$0xff] %v1835
  %1980 = vst [vmem:[#allocation2 + $0x150] sm:$0xff] %v1836
  %1981 = vst [vmem:[#allocation2 + $0x158] sm:$0xff] %v1837
  %1982 = vst [vmem:[#allocation2 + $0x160] sm:$0xff] %v1838
  %1983 = vst [vmem:[#allocation2 + $0x168] sm:$0xff] %v1839
  %1984 = vst [vmem:[#allocation2 + $0x170] sm:$0xff] %v1840
  %1985 = vst [vmem:[#allocation2 + $0x178] sm:$0xff] %v1841
  %1986 = vst [vmem:[#allocation2 + $0x180] sm:$0xff] %v1842
  %1987 = vst [vmem:[#allocation2 + $0x188] sm:$0xff] %v1843
  %1988 = vst [vmem:[#allocation2 + $0x190] sm:$0xff] %v1844
  %1989 = vst [vmem:[#allocation2 + $0x198] sm:$0xff] %v1845
  %1990 = vst [vmem:[#allocation2 + $0x1a0] sm:$0xff] %v1846
  %1991 = vst [vmem:[#allocation2 + $0x1a8] sm:$0xff] %v1847
  %1992 = vst [vmem:[#allocation2 + $0x1b0] sm:$0xff] %v1848
  %1993 = vst [vmem:[#allocation2 + $0x1b8] sm:$0xff] %v1849
  %1994 = vst [vmem:[#allocation2 + $0x1c0] sm:$0xff] %v1850
  %1995 = vst [vmem:[#allocation2 + $0x1c8] sm:$0xff] %v1851
  %1996 = vst [vmem:[#allocation2 + $0x1d0] sm:$0xff] %v1852
  %1997 = vst [vmem:[#allocation2 + $0x1d8] sm:$0xff] %v1853
  %1998 = vst [vmem:[#allocation2 + $0x1e0] sm:$0xff] %v1854
  %1999 = vst [vmem:[#allocation2 + $0x1e8] sm:$0xff] %v1855
  %2000 = vst [vmem:[#allocation2 + $0x1f0] sm:$0xff] %v1856
  %2001 = vst [vmem:[#allocation2 + $0x1f8] sm:$0xff] %v1857
  %2002 = vst [vmem:[#allocation2 + $0x200] sm:$0xff] %v1858
  %2003 = vst [vmem:[#allocation2 + $0x208] sm:$0xff] %v1859
  %2004 = vst [vmem:[#allocation2 + $0x210] sm:$0xff] %v1860
  %2005 = vst [vmem:[#allocation2 + $0x218] sm:$0xff] %v1861
  %2006 = vst [vmem:[#allocation2 + $0x220] sm:$0xff] %v1862
  %2007 = vst [vmem:[#allocation2 + $0x228] sm:$0xff] %v1863
  %2008 = vst [vmem:[#allocation2 + $0x230] sm:$0xff] %v1864
  %2009 = vst [vmem:[#allocation2 + $0x238] sm:$0xff] %v1865
  %2010 = vst [vmem:[#allocation2 + $0x240] sm:$0xff] %v1866
  %2011 = vst [vmem:[#allocation2 + $0x248] sm:$0xff] %v1867
  %2012 = vst [vmem:[#allocation2 + $0x250] sm:$0xff] %v1868
  %2013 = vst [vmem:[#allocation2 + $0x258] sm:$0xff] %v1869
  %2014 = vst [vmem:[#allocation2 + $0x260] sm:$0xff] %v1870
  %2015 = vst [vmem:[#allocation2 + $0x268] sm:$0xff] %v1871
  %2016 = vst [vmem:[#allocation2 + $0x270] sm:$0xff] %v1872
  %2017 = vst [vmem:[#allocation2 + $0x278] sm:$0xff] %v1873
  %2018 = vst [vmem:[#allocation2 + $0x280] sm:$0xff] %v1874
  %2019 = vst [vmem:[#allocation2 + $0x288] sm:$0xff] %v1875
  %2020 = vst [vmem:[#allocation2 + $0x290] sm:$0xff] %v1876
  %2021 = vst [vmem:[#allocation2 + $0x298] sm:$0xff] %v1877
  %2022 = vst [vmem:[#allocation2 + $0x2a0] sm:$0xff] %v1878
  %2023 = vst [vmem:[#allocation2 + $0x2a8] sm:$0xff] %v1879
  %2024 = vst [vmem:[#allocation2 + $0x2b0] sm:$0xff] %v1880
  %2025 = vst [vmem:[#allocation2 + $0x2b8] sm:$0xff] %v1881
  %2026 = vst [vmem:[#allocation2 + $0x2c0] sm:$0xff] %v1882
  %2027 = vst [vmem:[#allocation2 + $0x2c8] sm:$0xff] %v1883
  %2028 = vst [vmem:[#allocation2 + $0x2d0] sm:$0xff] %v1884
  %2029 = vst [vmem:[#allocation2 + $0x2d8] sm:$0xff] %v1885
  %2030 = vst [vmem:[#allocation2 + $0x2e0] sm:$0xff] %v1886
  %2031 = vst [vmem:[#allocation2 + $0x2e8] sm:$0xff] %v1887
  %2032 = vst [vmem:[#allocation2 + $0x2f0] sm:$0xff] %v1888
  %2033 = vst [vmem:[#allocation2 + $0x2f8] sm:$0xff] %v1889
  %2034 = vst [vmem:[#allocation2 + $0x300] sm:$0xff] %v1890
  %2035 = vst [vmem:[#allocation2 + $0x308] sm:$0xff] %v1891
  %2036 = vst [vmem:[#allocation2 + $0x310] sm:$0xff] %v1892
  %2037 = vst [vmem:[#allocation2 + $0x318] sm:$0xff] %v1893
  %2038 = vst [vmem:[#allocation2 + $0x320] sm:$0xff] %v1894
  %2039 = vst [vmem:[#allocation2 + $0x328] sm:$0xff] %v1895
  %2040 = vst [vmem:[#allocation2 + $0x330] sm:$0xff] %v1896
  %2041 = vst [vmem:[#allocation2 + $0x338] sm:$0xff] %v1897
  %2042 = vst [vmem:[#allocation2 + $0x340] sm:$0xff] %v1898
  %2043 = vst [vmem:[#allocation2 + $0x348] sm:$0xff] %v1899
  %2044 = vst [vmem:[#allocation2 + $0x350] sm:$0xff] %v1900
  %2045 = vst [vmem:[#allocation2 + $0x358] sm:$0xff] %v1901
  %2046 = vst [vmem:[#allocation2 + $0x360] sm:$0xff] %v1902
  %2047 = vst [vmem:[#allocation2 + $0x368] sm:$0xff] %v1903
  %2048 = vst [vmem:[#allocation2 + $0x370] sm:$0xff] %v1904
  %2049 = vst [vmem:[#allocation2 + $0x378] sm:$0xff] %v1905
  %2050 = vst [vmem:[#allocation2 + $0x380] sm:$0xff] %v1906
  %2051 = vst [vmem:[#allocation2 + $0x388] sm:$0xff] %v1907
  %2052 = vst [vmem:[#allocation2 + $0x390] sm:$0xff] %v1908
  %2053 = vst [vmem:[#allocation2 + $0x398] sm:$0xff] %v1909
  %2054 = vst [vmem:[#allocation2 + $0x3a0] sm:$0xff] %v1910
  %2055 = vst [vmem:[#allocation2 + $0x3a8] sm:$0xff] %v1911
  %2056 = vst [vmem:[#allocation2 + $0x3b0] sm:$0xff] %v1912
  %2057 = vst [vmem:[#allocation2 + $0x3b8] sm:$0xff] %v1913
  %2058 = vst [vmem:[#allocation2 + $0x3c0] sm:$0xff] %v1914
  %2059 = vst [vmem:[#allocation2 + $0x3c8] sm:$0xff] %v1915
  %2060 = vst [vmem:[#allocation2 + $0x3d0] sm:$0xff] %v1916
  %2061 = vst [vmem:[#allocation2 + $0x3d8] sm:$0xff] %v1917
  %2062 = vst [vmem:[#allocation2 + $0x3e0] sm:$0xff] %v1918
  %2063 = vst [vmem:[#allocation2 + $0x3e8] sm:$0xff] %v1919
  %2064 = vst [vmem:[#allocation2 + $0x3f0] sm:$0xff] %v1920
  %2065 = vst [vmem:[#allocation2 + $0x3f8] sm:$0xff] %v1921
  %2066 = vst [vmem:[#allocation2 + $0x400] sm:$0xff] %v1922
  %2067 = vst [vmem:[#allocation2 + $0x408] sm:$0xff] %v1923
  %2068 = vst [vmem:[#allocation2 + $0x410] sm:$0xff] %v1924
  %2069 = vst [vmem:[#allocation2 + $0x418] sm:$0xff] %v1925
  %2070 = vst [vmem:[#allocation2 + $0x420] sm:$0xff] %v1926
  %2071 = vst [vmem:[#allocation2 + $0x428] sm:$0xff] %v1927
  %2072 = vst [vmem:[#allocation2 + $0x430] sm:$0xff] %v1928
  %2073 = vst [vmem:[#allocation2 + $0x438] sm:$0xff] %v1929
  %2074 = vst [vmem:[#allocation2 + $0x440] sm:$0xff] %v1930
  %2075 = vst [vmem:[#allocation2 + $0x448] sm:$0xff] %v1931
  %2076 = vst [vmem:[#allocation2 + $0x450] sm:$0xff] %v1932
  %2077 = vst [vmem:[#allocation2 + $0x458] sm:$0xff] %v1933
  %2078 = vst [vmem:[#allocation2 + $0x460] sm:$0xff] %v1934
  %2079 = vst [vmem:[#allocation2 + $0x468] sm:$0xff] %v1935
  %2080 = vst [vmem:[#allocation2 + $0x470] sm:$0xff] %v1936
  %2081 = vst [vmem:[#allocation2 + $0x478] sm:$0xff] %v1937
  // Predicated region
  $region26: #{bottleneck_forward.6} parent=0 // pred_check
    %p2082 = pneg %p23
  $region27: #{bottleneck_forward.6} parent=0 // pred_check_branch
    %2084 = sbr.rel (%p2082) target = $region29
  $region28: #{bottleneck_forward.6} parent=0 // pred_region
    %v2085 = vld [vmem:[#allocation2] sm:$0xff]
    %v2086 = vld [vmem:[#allocation2 + $0x8] sm:$0xff]
    %v2087 = vld [vmem:[#allocation2 + $0x10] sm:$0xff]
    %v2088 = vld [vmem:[#allocation2 + $0x18] sm:$0xff]
    %v2089 = vld [vmem:[#allocation2 + $0x20] sm:$0xff]
    %v2090 = vld [vmem:[#allocation2 + $0x28] sm:$0xff]
    %v2091 = vld [vmem:[#allocation2 + $0x30] sm:$0xff]
    %v2092 = vld [vmem:[#allocation2 + $0x38] sm:$0xff]
    %v2093 = vld [vmem:[#allocation2 + $0x40] sm:$0xff]
    %v2094 = vld [vmem:[#allocation2 + $0x48] sm:$0xff]
    %v2095 = vld [vmem:[#allocation2 + $0x50] sm:$0xff]
    %v2096 = vld [vmem:[#allocation2 + $0x58] sm:$0xff]
    %v2097 = vld [vmem:[#allocation2 + $0x60] sm:$0xff]
    %v2098 = vld [vmem:[#allocation2 + $0x68] sm:$0xff]
    %v2099 = vld [vmem:[#allocation2 + $0x70] sm:$0xff]
    %v2100 = vld [vmem:[#allocation2 + $0x78] sm:$0xff]
    %v2101 = vld [vmem:[#allocation2 + $0x80] sm:$0xff]
    %v2102 = vld [vmem:[#allocation2 + $0x88] sm:$0xff]
    %v2103 = vld [vmem:[#allocation2 + $0x90] sm:$0xff]
    %v2104 = vld [vmem:[#allocation2 + $0x98] sm:$0xff]
    %v2105 = vld [vmem:[#allocation2 + $0xa0] sm:$0xff]
    %v2106 = vld [vmem:[#allocation2 + $0xa8] sm:$0xff]
    %v2107 = vld [vmem:[#allocation2 + $0xb0] sm:$0xff]
    %v2108 = vld [vmem:[#allocation2 + $0xb8] sm:$0xff]
    %v2109 = vld [vmem:[#allocation2 + $0xc0] sm:$0xff]
    %v2110 = vld [vmem:[#allocation2 + $0xc8] sm:$0xff]
    %v2111 = vld [vmem:[#allocation2 + $0xd0] sm:$0xff]
    %v2112 = vld [vmem:[#allocation2 + $0xd8] sm:$0xff]
    %v2113 = vld [vmem:[#allocation2 + $0xe0] sm:$0xff]
    %v2114 = vld [vmem:[#allocation2 + $0xe8] sm:$0xff]
    %v2115 = vld [vmem:[#allocation2 + $0xf0] sm:$0xff]
    %v2116 = vld [vmem:[#allocation2 + $0xf8] sm:$0xff]
    %v2117 = vld [vmem:[#allocation2 + $0x100] sm:$0xff]
    %v2118 = vld [vmem:[#allocation2 + $0x108] sm:$0xff]
    %v2119 = vld [vmem:[#allocation2 + $0x110] sm:$0xff]
    %v2120 = vld [vmem:[#allocation2 + $0x118] sm:$0xff]
    %v2121 = vld [vmem:[#allocation2 + $0x120] sm:$0xff]
    %v2122 = vld [vmem:[#allocation2 + $0x128] sm:$0xff]
    %v2123 = vld [vmem:[#allocation2 + $0x130] sm:$0xff]
    %v2124 = vld [vmem:[#allocation2 + $0x138] sm:$0xff]
    %v2125 = vld [vmem:[#allocation2 + $0x140] sm:$0xff]
    %v2126 = vld [vmem:[#allocation2 + $0x148] sm:$0xff]
    %v2127 = vld [vmem:[#allocation2 + $0x150] sm:$0xff]
    %v2128 = vld [vmem:[#allocation2 + $0x158] sm:$0xff]
    %v2129 = vld [vmem:[#allocation2 + $0x160] sm:$0xff]
    %v2130 = vld [vmem:[#allocation2 + $0x168] sm:$0xff]
    %v2131 = vld [vmem:[#allocation2 + $0x170] sm:$0xff]
    %v2132 = vld [vmem:[#allocation2 + $0x178] sm:$0xff]
    %v2133 = vld [vmem:[#allocation2 + $0x180] sm:$0xff]
    %v2134 = vld [vmem:[#allocation2 + $0x188] sm:$0xff]
    %v2135 = vld [vmem:[#allocation2 + $0x190] sm:$0xff]
    %v2136 = vld [vmem:[#allocation2 + $0x198] sm:$0xff]
    %v2137 = vld [vmem:[#allocation2 + $0x1a0] sm:$0xff]
    %v2138 = vld [vmem:[#allocation2 + $0x1a8] sm:$0xff]
    %v2139 = vld [vmem:[#allocation2 + $0x1b0] sm:$0xff]
    %v2140 = vld [vmem:[#allocation2 + $0x1b8] sm:$0xff]
    %v2141 = vld [vmem:[#allocation2 + $0x1c0] sm:$0xff]
    %v2142 = vld [vmem:[#allocation2 + $0x1c8] sm:$0xff]
    %v2143 = vld [vmem:[#allocation2 + $0x1d0] sm:$0xff]
    %v2144 = vld [vmem:[#allocation2 + $0x1d8] sm:$0xff]
    %v2145 = vld [vmem:[#allocation2 + $0x1e0] sm:$0xff]
    %v2146 = vld [vmem:[#allocation2 + $0x1e8] sm:$0xff]
    %v2147 = vld [vmem:[#allocation2 + $0x1f0] sm:$0xff]
    %v2148 = vld [vmem:[#allocation2 + $0x1f8] sm:$0xff]
    %v2149 = vld [vmem:[#allocation2 + $0x200] sm:$0xff]
    %v2150 = vld [vmem:[#allocation2 + $0x208] sm:$0xff]
    %v2151 = vld [vmem:[#allocation2 + $0x210] sm:$0xff]
    %v2152 = vld [vmem:[#allocation2 + $0x218] sm:$0xff]
    %v2153 = vld [vmem:[#allocation2 + $0x220] sm:$0xff]
    %v2154 = vld [vmem:[#allocation2 + $0x228] sm:$0xff]
    %v2155 = vld [vmem:[#allocation2 + $0x230] sm:$0xff]
    %v2156 = vld [vmem:[#allocation2 + $0x238] sm:$0xff]
    %v2157 = vld [vmem:[#allocation2 + $0x240] sm:$0xff]
    %v2158 = vld [vmem:[#allocation2 + $0x248] sm:$0xff]
    %v2159 = vld [vmem:[#allocation2 + $0x250] sm:$0xff]
    %v2160 = vld [vmem:[#allocation2 + $0x258] sm:$0xff]
    %v2161 = vld [vmem:[#allocation2 + $0x260] sm:$0xff]
    %v2162 = vld [vmem:[#allocation2 + $0x268] sm:$0xff]
    %v2163 = vld [vmem:[#allocation2 + $0x270] sm:$0xff]
    %v2164 = vld [vmem:[#allocation2 + $0x278] sm:$0xff]
    %v2165 = vld [vmem:[#allocation2 + $0x280] sm:$0xff]
    %v2166 = vld [vmem:[#allocation2 + $0x288] sm:$0xff]
    %v2167 = vld [vmem:[#allocation2 + $0x290] sm:$0xff]
    %v2168 = vld [vmem:[#allocation2 + $0x298] sm:$0xff]
    %v2169 = vld [vmem:[#allocation2 + $0x2a0] sm:$0xff]
    %v2170 = vld [vmem:[#allocation2 + $0x2a8] sm:$0xff]
    %v2171 = vld [vmem:[#allocation2 + $0x2b0] sm:$0xff]
    %v2172 = vld [vmem:[#allocation2 + $0x2b8] sm:$0xff]
    %v2173 = vld [vmem:[#allocation2 + $0x2c0] sm:$0xff]
    %v2174 = vld [vmem:[#allocation2 + $0x2c8] sm:$0xff]
    %v2175 = vld [vmem:[#allocation2 + $0x2d0] sm:$0xff]
    %v2176 = vld [vmem:[#allocation2 + $0x2d8] sm:$0xff]
    %v2177 = vld [vmem:[#allocation2 + $0x2e0] sm:$0xff]
    %v2178 = vld [vmem:[#allocation2 + $0x2e8] sm:$0xff]
    %v2179 = vld [vmem:[#allocation2 + $0x2f0] sm:$0xff]
    %v2180 = vld [vmem:[#allocation2 + $0x2f8] sm:$0xff]
    %v2181 = vld [vmem:[#allocation2 + $0x300] sm:$0xff]
    %v2182 = vld [vmem:[#allocation2 + $0x308] sm:$0xff]
    %v2183 = vld [vmem:[#allocation2 + $0x310] sm:$0xff]
    %v2184 = vld [vmem:[#allocation2 + $0x318] sm:$0xff]
    %v2185 = vld [vmem:[#allocation2 + $0x320] sm:$0xff]
    %v2186 = vld [vmem:[#allocation2 + $0x328] sm:$0xff]
    %v2187 = vld [vmem:[#allocation2 + $0x330] sm:$0xff]
    %v2188 = vld [vmem:[#allocation2 + $0x338] sm:$0xff]
    %v2189 = vld [vmem:[#allocation2 + $0x340] sm:$0xff]
    %v2190 = vld [vmem:[#allocation2 + $0x348] sm:$0xff]
    %v2191 = vld [vmem:[#allocation2 + $0x350] sm:$0xff]
    %v2192 = vld [vmem:[#allocation2 + $0x358] sm:$0xff]
    %v2193 = vld [vmem:[#allocation2 + $0x360] sm:$0xff]
    %v2194 = vld [vmem:[#allocation2 + $0x368] sm:$0xff]
    %v2195 = vld [vmem:[#allocation2 + $0x370] sm:$0xff]
    %v2196 = vld [vmem:[#allocation2 + $0x378] sm:$0xff]
    %v2197 = vld [vmem:[#allocation2 + $0x380] sm:$0xff]
    %v2198 = vld [vmem:[#allocation2 + $0x388] sm:$0xff]
    %v2199 = vld [vmem:[#allocation2 + $0x390] sm:$0xff]
    %v2200 = vld [vmem:[#allocation2 + $0x398] sm:$0xff]
    %v2201 = vld [vmem:[#allocation2 + $0x3a0] sm:$0xff]
    %v2202 = vld [vmem:[#allocation2 + $0x3a8] sm:$0xff]
    %v2203 = vld [vmem:[#allocation2 + $0x3b0] sm:$0xff]
    %v2204 = vld [vmem:[#allocation2 + $0x3b8] sm:$0xff]
    %v2205 = vld [vmem:[#allocation2 + $0x3c0] sm:$0xff]
    %v2206 = vld [vmem:[#allocation2 + $0x3c8] sm:$0xff]
    %v2207 = vld [vmem:[#allocation2 + $0x3d0] sm:$0xff]
    %v2208 = vld [vmem:[#allocation2 + $0x3d8] sm:$0xff]
    %v2209 = vld [vmem:[#allocation2 + $0x3e0] sm:$0xff]
    %v2210 = vld [vmem:[#allocation2 + $0x3e8] sm:$0xff]
    %v2211 = vld [vmem:[#allocation2 + $0x3f0] sm:$0xff]
    %v2212 = vld [vmem:[#allocation2 + $0x3f8] sm:$0xff]
    %v2213 = vld [vmem:[#allocation2 + $0x400] sm:$0xff]
    %v2214 = vld [vmem:[#allocation2 + $0x408] sm:$0xff]
    %v2215 = vld [vmem:[#allocation2 + $0x410] sm:$0xff]
    %v2216 = vld [vmem:[#allocation2 + $0x418] sm:$0xff]
    %v2217 = vld [vmem:[#allocation2 + $0x420] sm:$0xff]
    %v2218 = vld [vmem:[#allocation2 + $0x428] sm:$0xff]
    %v2219 = vld [vmem:[#allocation2 + $0x430] sm:$0xff]
    %v2220 = vld [vmem:[#allocation2 + $0x438] sm:$0xff]
    %v2221 = vld [vmem:[#allocation2 + $0x440] sm:$0xff]
    %v2222 = vld [vmem:[#allocation2 + $0x448] sm:$0xff]
    %v2223 = vld [vmem:[#allocation2 + $0x450] sm:$0xff]
    %v2224 = vld [vmem:[#allocation2 + $0x458] sm:$0xff]
    %v2225 = vld [vmem:[#allocation2 + $0x460] sm:$0xff]
    %v2226 = vld [vmem:[#allocation2 + $0x468] sm:$0xff]
    %v2227 = vld [vmem:[#allocation2 + $0x470] sm:$0xff]
    %v2228 = vld [vmem:[#allocation2 + $0x478] sm:$0xff]
    %v2229 = vld [vmem:[%s4] sm:$0x1]
    %v2231 = vlaneseq
    %v2232 = vshrl.u32 %v2231, 7
    %v2233 = vsub.s32 0, %v2232
    %v2234 = vrot.slane %v2229, %v2233
    %v2236 = vadd.f32 %v2085, %v2234
    %v2237 = vadd.f32 %v2086, %v2234
    %v2238 = vadd.f32 %v2087, %v2234
    %v2239 = vadd.f32 %v2088, %v2234
    %v2240 = vadd.f32 %v2089, %v2234
    %v2241 = vadd.f32 %v2090, %v2234
    %v2242 = vadd.f32 %v2091, %v2234
    %v2243 = vadd.f32 %v2092, %v2234
    %v2244 = vadd.f32 %v2093, %v2234
    %v2245 = vadd.f32 %v2094, %v2234
    %v2246 = vadd.f32 %v2095, %v2234
    %v2247 = vadd.f32 %v2096, %v2234
    %v2248 = vadd.f32 %v2097, %v2234
    %v2249 = vadd.f32 %v2098, %v2234
    %v2250 = vadd.f32 %v2099, %v2234
    %v2251 = vadd.f32 %v2100, %v2234
    %v2252 = vadd.f32 %v2101, %v2234
    %v2253 = vadd.f32 %v2102, %v2234
    %v2254 = vadd.f32 %v2103, %v2234
    %v2255 = vadd.f32 %v2104, %v2234
    %v2256 = vadd.f32 %v2105, %v2234
    %v2257 = vadd.f32 %v2106, %v2234
    %v2258 = vadd.f32 %v2107, %v2234
    %v2259 = vadd.f32 %v2108, %v2234
    %v2260 = vadd.f32 %v2109, %v2234
    %v2261 = vadd.f32 %v2110, %v2234
    %v2262 = vadd.f32 %v2111, %v2234
    %v2263 = vadd.f32 %v2112, %v2234
    %v2264 = vadd.f32 %v2113, %v2234
    %v2265 = vadd.f32 %v2114, %v2234
    %v2266 = vadd.f32 %v2115, %v2234
    %v2267 = vadd.f32 %v2116, %v2234
    %v2268 = vadd.f32 %v2117, %v2234
    %v2269 = vadd.f32 %v2118, %v2234
    %v2270 = vadd.f32 %v2119, %v2234
    %v2271 = vadd.f32 %v2120, %v2234
    %v2272 = vadd.f32 %v2121, %v2234
    %v2273 = vadd.f32 %v2122, %v2234
    %v2274 = vadd.f32 %v2123, %v2234
    %v2275 = vadd.f32 %v2124, %v2234
    %v2276 = vadd.f32 %v2125, %v2234
    %v2277 = vadd.f32 %v2126, %v2234
    %v2278 = vadd.f32 %v2127, %v2234
    %v2279 = vadd.f32 %v2128, %v2234
    %v2280 = vadd.f32 %v2129, %v2234
    %v2281 = vadd.f32 %v2130, %v2234
    %v2282 = vadd.f32 %v2131, %v2234
    %v2283 = vadd.f32 %v2132, %v2234
    %v2284 = vadd.f32 %v2133, %v2234
    %v2285 = vadd.f32 %v2134, %v2234
    %v2286 = vadd.f32 %v2135, %v2234
    %v2287 = vadd.f32 %v2136, %v2234
    %v2288 = vadd.f32 %v2137, %v2234
    %v2289 = vadd.f32 %v2138, %v2234
    %v2290 = vadd.f32 %v2139, %v2234
    %v2291 = vadd.f32 %v2140, %v2234
    %v2292 = vadd.f32 %v2141, %v2234
    %v2293 = vadd.f32 %v2142, %v2234
    %v2294 = vadd.f32 %v2143, %v2234
    %v2295 = vadd.f32 %v2144, %v2234
    %v2296 = vadd.f32 %v2145, %v2234
    %v2297 = vadd.f32 %v2146, %v2234
    %v2298 = vadd.f32 %v2147, %v2234
    %v2299 = vadd.f32 %v2148, %v2234
    %v2300 = vadd.f32 %v2149, %v2234
    %v2301 = vadd.f32 %v2150, %v2234
    %v2302 = vadd.f32 %v2151, %v2234
    %v2303 = vadd.f32 %v2152, %v2234
    %v2304 = vadd.f32 %v2153, %v2234
    %v2305 = vadd.f32 %v2154, %v2234
    %v2306 = vadd.f32 %v2155, %v2234
    %v2307 = vadd.f32 %v2156, %v2234
    %v2308 = vadd.f32 %v2157, %v2234
    %v2309 = vadd.f32 %v2158, %v2234
    %v2310 = vadd.f32 %v2159, %v2234
    %v2311 = vadd.f32 %v2160, %v2234
    %v2312 = vadd.f32 %v2161, %v2234
    %v2313 = vadd.f32 %v2162, %v2234
    %v2314 = vadd.f32 %v2163, %v2234
    %v2315 = vadd.f32 %v2164, %v2234
    %v2316 = vadd.f32 %v2165, %v2234
    %v2317 = vadd.f32 %v2166, %v2234
    %v2318 = vadd.f32 %v2167, %v2234
    %v2319 = vadd.f32 %v2168, %v2234
    %v2320 = vadd.f32 %v2169, %v2234
    %v2321 = vadd.f32 %v2170, %v2234
    %v2322 = vadd.f32 %v2171, %v2234
    %v2323 = vadd.f32 %v2172, %v2234
    %v2324 = vadd.f32 %v2173, %v2234
    %v2325 = vadd.f32 %v2174, %v2234
    %v2326 = vadd.f32 %v2175, %v2234
    %v2327 = vadd.f32 %v2176, %v2234
    %v2328 = vadd.f32 %v2177, %v2234
    %v2329 = vadd.f32 %v2178, %v2234
    %v2330 = vadd.f32 %v2179, %v2234
    %v2331 = vadd.f32 %v2180, %v2234
    %v2332 = vadd.f32 %v2181, %v2234
    %v2333 = vadd.f32 %v2182, %v2234
    %v2334 = vadd.f32 %v2183, %v2234
    %v2335 = vadd.f32 %v2184, %v2234
    %v2336 = vadd.f32 %v2185, %v2234
    %v2337 = vadd.f32 %v2186, %v2234
    %v2338 = vadd.f32 %v2187, %v2234
    %v2339 = vadd.f32 %v2188, %v2234
    %v2340 = vadd.f32 %v2189, %v2234
    %v2341 = vadd.f32 %v2190, %v2234
    %v2342 = vadd.f32 %v2191, %v2234
    %v2343 = vadd.f32 %v2192, %v2234
    %v2344 = vadd.f32 %v2193, %v2234
    %v2345 = vadd.f32 %v2194, %v2234
    %v2346 = vadd.f32 %v2195, %v2234
    %v2347 = vadd.f32 %v2196, %v2234
    %v2348 = vadd.f32 %v2197, %v2234
    %v2349 = vadd.f32 %v2198, %v2234
    %v2350 = vadd.f32 %v2199, %v2234
    %v2351 = vadd.f32 %v2200, %v2234
    %v2352 = vadd.f32 %v2201, %v2234
    %v2353 = vadd.f32 %v2202, %v2234
    %v2354 = vadd.f32 %v2203, %v2234
    %v2355 = vadd.f32 %v2204, %v2234
    %v2356 = vadd.f32 %v2205, %v2234
    %v2357 = vadd.f32 %v2206, %v2234
    %v2358 = vadd.f32 %v2207, %v2234
    %v2359 = vadd.f32 %v2208, %v2234
    %v2360 = vadd.f32 %v2209, %v2234
    %v2361 = vadd.f32 %v2210, %v2234
    %v2362 = vadd.f32 %v2211, %v2234
    %v2363 = vadd.f32 %v2212, %v2234
    %v2364 = vadd.f32 %v2213, %v2234
    %v2365 = vadd.f32 %v2214, %v2234
    %v2366 = vadd.f32 %v2215, %v2234
    %v2367 = vadd.f32 %v2216, %v2234
    %v2368 = vadd.f32 %v2217, %v2234
    %v2369 = vadd.f32 %v2218, %v2234
    %v2370 = vadd.f32 %v2219, %v2234
    %v2371 = vadd.f32 %v2220, %v2234
    %v2372 = vadd.f32 %v2221, %v2234
    %v2373 = vadd.f32 %v2222, %v2234
    %v2374 = vadd.f32 %v2223, %v2234
    %v2375 = vadd.f32 %v2224, %v2234
    %v2376 = vadd.f32 %v2225, %v2234
    %v2377 = vadd.f32 %v2226, %v2234
    %v2378 = vadd.f32 %v2227, %v2234
    %v2379 = vadd.f32 %v2228, %v2234
    %v2380 = vpack.c.bf16 %v2237, %v2236
    %v2381 = vpack.c.bf16 %v2239, %v2238
    %v2382 = vpack.c.bf16 %v2241, %v2240
    %v2383 = vpack.c.bf16 %v2243, %v2242
    %v2384 = vpack.c.bf16 %v2245, %v2244
    %v2385 = vpack.c.bf16 %v2247, %v2246
    %v2386 = vpack.c.bf16 %v2249, %v2248
    %v2387 = vpack.c.bf16 %v2251, %v2250
    %v2388 = vpack.c.bf16 %v2253, %v2252
    %v2389 = vpack.c.bf16 %v2255, %v2254
    %v2390 = vpack.c.bf16 %v2257, %v2256
    %v2391 = vpack.c.bf16 %v2259, %v2258
    %v2392 = vpack.c.bf16 %v2261, %v2260
    %v2393 = vpack.c.bf16 %v2263, %v2262
    %v2394 = vpack.c.bf16 %v2265, %v2264
    %v2395 = vpack.c.bf16 %v2267, %v2266
    %v2396 = vpack.c.bf16 %v2269, %v2268
    %v2397 = vpack.c.bf16 %v2271, %v2270
    %v2398 = vpack.c.bf16 %v2273, %v2272
    %v2399 = vpack.c.bf16 %v2275, %v2274
    %v2400 = vpack.c.bf16 %v2277, %v2276
    %v2401 = vpack.c.bf16 %v2279, %v2278
    %v2402 = vpack.c.bf16 %v2281, %v2280
    %v2403 = vpack.c.bf16 %v2283, %v2282
    %v2404 = vpack.c.bf16 %v2285, %v2284
    %v2405 = vpack.c.bf16 %v2287, %v2286
    %v2406 = vpack.c.bf16 %v2289, %v2288
    %v2407 = vpack.c.bf16 %v2291, %v2290
    %v2408 = vpack.c.bf16 %v2293, %v2292
    %v2409 = vpack.c.bf16 %v2295, %v2294
    %v2410 = vpack.c.bf16 %v2297, %v2296
    %v2411 = vpack.c.bf16 %v2299, %v2298
    %v2412 = vpack.c.bf16 %v2301, %v2300
    %v2413 = vpack.c.bf16 %v2303, %v2302
    %v2414 = vpack.c.bf16 %v2305, %v2304
    %v2415 = vpack.c.bf16 %v2307, %v2306
    %v2416 = vpack.c.bf16 %v2309, %v2308
    %v2417 = vpack.c.bf16 %v2311, %v2310
    %v2418 = vpack.c.bf16 %v2313, %v2312
    %v2419 = vpack.c.bf16 %v2315, %v2314
    %v2420 = vpack.c.bf16 %v2317, %v2316
    %v2421 = vpack.c.bf16 %v2319, %v2318
    %v2422 = vpack.c.bf16 %v2321, %v2320
    %v2423 = vpack.c.bf16 %v2323, %v2322
    %v2424 = vpack.c.bf16 %v2325, %v2324
    %v2425 = vpack.c.bf16 %v2327, %v2326
    %v2426 = vpack.c.bf16 %v2329, %v2328
    %v2427 = vpack.c.bf16 %v2331, %v2330
    %v2428 = vpack.c.bf16 %v2333, %v2332
    %v2429 = vpack.c.bf16 %v2335, %v2334
    %v2430 = vpack.c.bf16 %v2337, %v2336
    %v2431 = vpack.c.bf16 %v2339, %v2338
    %v2432 = vpack.c.bf16 %v2341, %v2340
    %v2433 = vpack.c.bf16 %v2343, %v2342
    %v2434 = vpack.c.bf16 %v2345, %v2344
    %v2435 = vpack.c.bf16 %v2347, %v2346
    %v2436 = vpack.c.bf16 %v2349, %v2348
    %v2437 = vpack.c.bf16 %v2351, %v2350
    %v2438 = vpack.c.bf16 %v2353, %v2352
    %v2439 = vpack.c.bf16 %v2355, %v2354
    %v2440 = vpack.c.bf16 %v2357, %v2356
    %v2441 = vpack.c.bf16 %v2359, %v2358
    %v2442 = vpack.c.bf16 %v2361, %v2360
    %v2443 = vpack.c.bf16 %v2363, %v2362
    %v2444 = vpack.c.bf16 %v2365, %v2364
    %v2445 = vpack.c.bf16 %v2367, %v2366
    %v2446 = vpack.c.bf16 %v2369, %v2368
    %v2447 = vpack.c.bf16 %v2371, %v2370
    %v2448 = vpack.c.bf16 %v2373, %v2372
    %v2449 = vpack.c.bf16 %v2375, %v2374
    %v2450 = vpack.c.bf16 %v2377, %v2376
    %v2451 = vpack.c.bf16 %v2379, %v2378
    %v2524 = vunpack.c.l.b16 %v2380
    %v2525 = vunpack.c.h.b16 %v2380
    %v2526 = vunpack.c.l.b16 %v2381
    %v2527 = vunpack.c.h.b16 %v2381
    %v2528 = vunpack.c.l.b16 %v2382
    %v2529 = vunpack.c.h.b16 %v2382
    %v2530 = vunpack.c.l.b16 %v2383
    %v2531 = vunpack.c.h.b16 %v2383
    %v2532 = vunpack.c.l.b16 %v2384
    %v2533 = vunpack.c.h.b16 %v2384
    %v2534 = vunpack.c.l.b16 %v2385
    %v2535 = vunpack.c.h.b16 %v2385
    %v2536 = vunpack.c.l.b16 %v2386
    %v2537 = vunpack.c.h.b16 %v2386
    %v2538 = vunpack.c.l.b16 %v2387
    %v2539 = vunpack.c.h.b16 %v2387
    %v2540 = vunpack.c.l.b16 %v2388
    %v2541 = vunpack.c.h.b16 %v2388
    %v2542 = vunpack.c.l.b16 %v2389
    %v2543 = vunpack.c.h.b16 %v2389
    %v2544 = vunpack.c.l.b16 %v2390
    %v2545 = vunpack.c.h.b16 %v2390
    %v2546 = vunpack.c.l.b16 %v2391
    %v2547 = vunpack.c.h.b16 %v2391
    %v2548 = vunpack.c.l.b16 %v2392
    %v2549 = vunpack.c.h.b16 %v2392
    %v2550 = vunpack.c.l.b16 %v2393
    %v2551 = vunpack.c.h.b16 %v2393
    %v2552 = vunpack.c.l.b16 %v2394
    %v2553 = vunpack.c.h.b16 %v2394
    %v2554 = vunpack.c.l.b16 %v2395
    %v2555 = vunpack.c.h.b16 %v2395
    %v2556 = vunpack.c.l.b16 %v2396
    %v2557 = vunpack.c.h.b16 %v2396
    %v2558 = vunpack.c.l.b16 %v2397
    %v2559 = vunpack.c.h.b16 %v2397
    %v2560 = vunpack.c.l.b16 %v2398
    %v2561 = vunpack.c.h.b16 %v2398
    %v2562 = vunpack.c.l.b16 %v2399
    %v2563 = vunpack.c.h.b16 %v2399
    %v2564 = vunpack.c.l.b16 %v2400
    %v2565 = vunpack.c.h.b16 %v2400
    %v2566 = vunpack.c.l.b16 %v2401
    %v2567 = vunpack.c.h.b16 %v2401
    %v2568 = vunpack.c.l.b16 %v2402
    %v2569 = vunpack.c.h.b16 %v2402
    %v2570 = vunpack.c.l.b16 %v2403
    %v2571 = vunpack.c.h.b16 %v2403
    %v2572 = vunpack.c.l.b16 %v2404
    %v2573 = vunpack.c.h.b16 %v2404
    %v2574 = vunpack.c.l.b16 %v2405
    %v2575 = vunpack.c.h.b16 %v2405
    %v2576 = vunpack.c.l.b16 %v2406
    %v2577 = vunpack.c.h.b16 %v2406
    %v2578 = vunpack.c.l.b16 %v2407
    %v2579 = vunpack.c.h.b16 %v2407
    %v2580 = vunpack.c.l.b16 %v2408
    %v2581 = vunpack.c.h.b16 %v2408
    %v2582 = vunpack.c.l.b16 %v2409
    %v2583 = vunpack.c.h.b16 %v2409
    %v2584 = vunpack.c.l.b16 %v2410
    %v2585 = vunpack.c.h.b16 %v2410
    %v2586 = vunpack.c.l.b16 %v2411
    %v2587 = vunpack.c.h.b16 %v2411
    %v2588 = vunpack.c.l.b16 %v2412
    %v2589 = vunpack.c.h.b16 %v2412
    %v2590 = vunpack.c.l.b16 %v2413
    %v2591 = vunpack.c.h.b16 %v2413
    %v2592 = vunpack.c.l.b16 %v2414
    %v2593 = vunpack.c.h.b16 %v2414
    %v2594 = vunpack.c.l.b16 %v2415
    %v2595 = vunpack.c.h.b16 %v2415
    %v2596 = vunpack.c.l.b16 %v2416
    %v2597 = vunpack.c.h.b16 %v2416
    %v2598 = vunpack.c.l.b16 %v2417
    %v2599 = vunpack.c.h.b16 %v2417
    %v2600 = vunpack.c.l.b16 %v2418
    %v2601 = vunpack.c.h.b16 %v2418
    %v2602 = vunpack.c.l.b16 %v2419
    %v2603 = vunpack.c.h.b16 %v2419
    %v2604 = vunpack.c.l.b16 %v2420
    %v2605 = vunpack.c.h.b16 %v2420
    %v2606 = vunpack.c.l.b16 %v2421
    %v2607 = vunpack.c.h.b16 %v2421
    %v2608 = vunpack.c.l.b16 %v2422
    %v2609 = vunpack.c.h.b16 %v2422
    %v2610 = vunpack.c.l.b16 %v2423
    %v2611 = vunpack.c.h.b16 %v2423
    %v2612 = vunpack.c.l.b16 %v2424
    %v2613 = vunpack.c.h.b16 %v2424
    %v2614 = vunpack.c.l.b16 %v2425
    %v2615 = vunpack.c.h.b16 %v2425
    %v2616 = vunpack.c.l.b16 %v2426
    %v2617 = vunpack.c.h.b16 %v2426
    %v2618 = vunpack.c.l.b16 %v2427
    %v2619 = vunpack.c.h.b16 %v2427
    %v2620 = vunpack.c.l.b16 %v2428
    %v2621 = vunpack.c.h.b16 %v2428
    %v2622 = vunpack.c.l.b16 %v2429
    %v2623 = vunpack.c.h.b16 %v2429
    %v2624 = vunpack.c.l.b16 %v2430
    %v2625 = vunpack.c.h.b16 %v2430
    %v2626 = vunpack.c.l.b16 %v2431
    %v2627 = vunpack.c.h.b16 %v2431
    %v2628 = vunpack.c.l.b16 %v2432
    %v2629 = vunpack.c.h.b16 %v2432
    %v2630 = vunpack.c.l.b16 %v2433
    %v2631 = vunpack.c.h.b16 %v2433
    %v2632 = vunpack.c.l.b16 %v2434
    %v2633 = vunpack.c.h.b16 %v2434
    %v2634 = vunpack.c.l.b16 %v2435
    %v2635 = vunpack.c.h.b16 %v2435
    %v2636 = vunpack.c.l.b16 %v2436
    %v2637 = vunpack.c.h.b16 %v2436
    %v2638 = vunpack.c.l.b16 %v2437
    %v2639 = vunpack.c.h.b16 %v2437
    %v2640 = vunpack.c.l.b16 %v2438
    %v2641 = vunpack.c.h.b16 %v2438
    %v2642 = vunpack.c.l.b16 %v2439
    %v2643 = vunpack.c.h.b16 %v2439
    %v2644 = vunpack.c.l.b16 %v2440
    %v2645 = vunpack.c.h.b16 %v2440
    %v2646 = vunpack.c.l.b16 %v2441
    %v2647 = vunpack.c.h.b16 %v2441
    %v2648 = vunpack.c.l.b16 %v2442
    %v2649 = vunpack.c.h.b16 %v2442
    %v2650 = vunpack.c.l.b16 %v2443
    %v2651 = vunpack.c.h.b16 %v2443
    %v2652 = vunpack.c.l.b16 %v2444
    %v2653 = vunpack.c.h.b16 %v2444
    %v2654 = vunpack.c.l.b16 %v2445
    %v2655 = vunpack.c.h.b16 %v2445
    %v2656 = vunpack.c.l.b16 %v2446
    %v2657 = vunpack.c.h.b16 %v2446
    %v2658 = vunpack.c.l.b16 %v2447
    %v2659 = vunpack.c.h.b16 %v2447
    %v2660 = vunpack.c.l.b16 %v2448
    %v2661 = vunpack.c.h.b16 %v2448
    %v2662 = vunpack.c.l.b16 %v2449
    %v2663 = vunpack.c.h.b16 %v2449
    %v2664 = vunpack.c.l.b16 %v2450
    %v2665 = vunpack.c.h.b16 %v2450
    %v2666 = vunpack.c.l.b16 %v2451
    %v2667 = vunpack.c.h.b16 %v2451
    %v2668 = vpack.c.b16 %v2524, %v2524
    %v2669 = vpack.c.b16 %v2525, %v2525
    %v2670 = vpack.c.b16 %v2526, %v2526
    %v2671 = vpack.c.b16 %v2527, %v2527
    %v2672 = vpack.c.b16 %v2528, %v2528
    %v2673 = vpack.c.b16 %v2529, %v2529
    %v2674 = vpack.c.b16 %v2530, %v2530
    %v2675 = vpack.c.b16 %v2531, %v2531
    %v2676 = vpack.c.b16 %v2532, %v2532
    %v2677 = vpack.c.b16 %v2533, %v2533
    %v2678 = vpack.c.b16 %v2534, %v2534
    %v2679 = vpack.c.b16 %v2535, %v2535
    %v2680 = vpack.c.b16 %v2536, %v2536
    %v2681 = vpack.c.b16 %v2537, %v2537
    %v2682 = vpack.c.b16 %v2538, %v2538
    %v2683 = vpack.c.b16 %v2539, %v2539
    %v2684 = vpack.c.b16 %v2540, %v2540
    %v2685 = vpack.c.b16 %v2541, %v2541
    %v2686 = vpack.c.b16 %v2542, %v2542
    %v2687 = vpack.c.b16 %v2543, %v2543
    %v2688 = vpack.c.b16 %v2544, %v2544
    %v2689 = vpack.c.b16 %v2545, %v2545
    %v2690 = vpack.c.b16 %v2546, %v2546
    %v2691 = vpack.c.b16 %v2547, %v2547
    %v2692 = vpack.c.b16 %v2548, %v2548
    %v2693 = vpack.c.b16 %v2549, %v2549
    %v2694 = vpack.c.b16 %v2550, %v2550
    %v2695 = vpack.c.b16 %v2551, %v2551
    %v2696 = vpack.c.b16 %v2552, %v2552
    %v2697 = vpack.c.b16 %v2553, %v2553
    %v2698 = vpack.c.b16 %v2554, %v2554
    %v2699 = vpack.c.b16 %v2555, %v2555
    %v2700 = vpack.c.b16 %v2556, %v2556
    %v2701 = vpack.c.b16 %v2557, %v2557
    %v2702 = vpack.c.b16 %v2558, %v2558
    %v2703 = vpack.c.b16 %v2559, %v2559
    %v2704 = vpack.c.b16 %v2560, %v2560
    %v2705 = vpack.c.b16 %v2561, %v2561
    %v2706 = vpack.c.b16 %v2562, %v2562
    %v2707 = vpack.c.b16 %v2563, %v2563
    %v2708 = vpack.c.b16 %v2564, %v2564
    %v2709 = vpack.c.b16 %v2565, %v2565
    %v2710 = vpack.c.b16 %v2566, %v2566
    %v2711 = vpack.c.b16 %v2567, %v2567
    %v2712 = vpack.c.b16 %v2568, %v2568
    %v2713 = vpack.c.b16 %v2569, %v2569
    %v2714 = vpack.c.b16 %v2570, %v2570
    %v2715 = vpack.c.b16 %v2571, %v2571
    %v2716 = vpack.c.b16 %v2572, %v2572
    %v2717 = vpack.c.b16 %v2573, %v2573
    %v2718 = vpack.c.b16 %v2574, %v2574
    %v2719 = vpack.c.b16 %v2575, %v2575
    %v2720 = vpack.c.b16 %v2576, %v2576
    %v2721 = vpack.c.b16 %v2577, %v2577
    %v2722 = vpack.c.b16 %v2578, %v2578
    %v2723 = vpack.c.b16 %v2579, %v2579
    %v2724 = vpack.c.b16 %v2580, %v2580
    %v2725 = vpack.c.b16 %v2581, %v2581
    %v2726 = vpack.c.b16 %v2582, %v2582
    %v2727 = vpack.c.b16 %v2583, %v2583
    %v2728 = vpack.c.b16 %v2584, %v2584
    %v2729 = vpack.c.b16 %v2585, %v2585
    %v2730 = vpack.c.b16 %v2586, %v2586
    %v2731 = vpack.c.b16 %v2587, %v2587
    %v2732 = vpack.c.b16 %v2588, %v2588
    %v2733 = vpack.c.b16 %v2589, %v2589
    %v2734 = vpack.c.b16 %v2590, %v2590
    %v2735 = vpack.c.b16 %v2591, %v2591
    %v2736 = vpack.c.b16 %v2592, %v2592
    %v2737 = vpack.c.b16 %v2593, %v2593
    %v2738 = vpack.c.b16 %v2594, %v2594
    %v2739 = vpack.c.b16 %v2595, %v2595
    %v2740 = vpack.c.b16 %v2596, %v2596
    %v2741 = vpack.c.b16 %v2597, %v2597
    %v2742 = vpack.c.b16 %v2598, %v2598
    %v2743 = vpack.c.b16 %v2599, %v2599
    %v2744 = vpack.c.b16 %v2600, %v2600
    %v2745 = vpack.c.b16 %v2601, %v2601
    %v2746 = vpack.c.b16 %v2602, %v2602
    %v2747 = vpack.c.b16 %v2603, %v2603
    %v2748 = vpack.c.b16 %v2604, %v2604
    %v2749 = vpack.c.b16 %v2605, %v2605
    %v2750 = vpack.c.b16 %v2606, %v2606
    %v2751 = vpack.c.b16 %v2607, %v2607
    %v2752 = vpack.c.b16 %v2608, %v2608
    %v2753 = vpack.c.b16 %v2609, %v2609
    %v2754 = vpack.c.b16 %v2610, %v2610
    %v2755 = vpack.c.b16 %v2611, %v2611
    %v2756 = vpack.c.b16 %v2612, %v2612
    %v2757 = vpack.c.b16 %v2613, %v2613
    %v2758 = vpack.c.b16 %v2614, %v2614
    %v2759 = vpack.c.b16 %v2615, %v2615
    %v2760 = vpack.c.b16 %v2616, %v2616
    %v2761 = vpack.c.b16 %v2617, %v2617
    %v2762 = vpack.c.b16 %v2618, %v2618
    %v2763 = vpack.c.b16 %v2619, %v2619
    %v2764 = vpack.c.b16 %v2620, %v2620
    %v2765 = vpack.c.b16 %v2621, %v2621
    %v2766 = vpack.c.b16 %v2622, %v2622
    %v2767 = vpack.c.b16 %v2623, %v2623
    %v2768 = vpack.c.b16 %v2624, %v2624
    %v2769 = vpack.c.b16 %v2625, %v2625
    %v2770 = vpack.c.b16 %v2626, %v2626
    %v2771 = vpack.c.b16 %v2627, %v2627
    %v2772 = vpack.c.b16 %v2628, %v2628
    %v2773 = vpack.c.b16 %v2629, %v2629
    %v2774 = vpack.c.b16 %v2630, %v2630
    %v2775 = vpack.c.b16 %v2631, %v2631
    %v2776 = vpack.c.b16 %v2632, %v2632
    %v2777 = vpack.c.b16 %v2633, %v2633
    %v2778 = vpack.c.b16 %v2634, %v2634
    %v2779 = vpack.c.b16 %v2635, %v2635
    %v2780 = vpack.c.b16 %v2636, %v2636
    %v2781 = vpack.c.b16 %v2637, %v2637
    %v2782 = vpack.c.b16 %v2638, %v2638
    %v2783 = vpack.c.b16 %v2639, %v2639
    %v2784 = vpack.c.b16 %v2640, %v2640
    %v2785 = vpack.c.b16 %v2641, %v2641
    %v2786 = vpack.c.b16 %v2642, %v2642
    %v2787 = vpack.c.b16 %v2643, %v2643
    %v2788 = vpack.c.b16 %v2644, %v2644
    %v2789 = vpack.c.b16 %v2645, %v2645
    %v2790 = vpack.c.b16 %v2646, %v2646
    %v2791 = vpack.c.b16 %v2647, %v2647
    %v2792 = vpack.c.b16 %v2648, %v2648
    %v2793 = vpack.c.b16 %v2649, %v2649
    %v2794 = vpack.c.b16 %v2650, %v2650
    %v2795 = vpack.c.b16 %v2651, %v2651
    %v2796 = vpack.c.b16 %v2652, %v2652
    %v2797 = vpack.c.b16 %v2653, %v2653
    %v2798 = vpack.c.b16 %v2654, %v2654
    %v2799 = vpack.c.b16 %v2655, %v2655
    %v2800 = vpack.c.b16 %v2656, %v2656
    %v2801 = vpack.c.b16 %v2657, %v2657
    %v2802 = vpack.c.b16 %v2658, %v2658
    %v2803 = vpack.c.b16 %v2659, %v2659
    %v2804 = vpack.c.b16 %v2660, %v2660
    %v2805 = vpack.c.b16 %v2661, %v2661
    %v2806 = vpack.c.b16 %v2662, %v2662
    %v2807 = vpack.c.b16 %v2663, %v2663
    %v2808 = vpack.c.b16 %v2664, %v2664
    %v2809 = vpack.c.b16 %v2665, %v2665
    %v2810 = vpack.c.b16 %v2666, %v2666
    %v2811 = vpack.c.b16 %v2667, %v2667
    %2956 = vst [vmem:[%s5] sm:$0xf] %v2668
    %2957 = vst [vmem:[%s5 + $0x4] sm:$0xf] %v2669
    %2958 = vst [vmem:[%s5 + $0x8] sm:$0xf] %v2670
    %2959 = vst [vmem:[%s5 + $0xc] sm:$0xf] %v2671
    %2960 = vst [vmem:[%s5 + $0x10] sm:$0xf] %v2672
    %2961 = vst [vmem:[%s5 + $0x14] sm:$0xf] %v2673
    %2962 = vst [vmem:[%s5 + $0x18] sm:$0xf] %v2674
    %2963 = vst [vmem:[%s5 + $0x1c] sm:$0xf] %v2675
    %2964 = vst [vmem:[%s5 + $0x20] sm:$0xf] %v2676
    %2965 = vst [vmem:[%s5 + $0x24] sm:$0xf] %v2677
    %2966 = vst [vmem:[%s5 + $0x28] sm:$0xf] %v2678
    %2967 = vst [vmem:[%s5 + $0x2c] sm:$0xf] %v2679
    %2968 = vst [vmem:[%s5 + $0x30] sm:$0xf] %v2680
    %2969 = vst [vmem:[%s5 + $0x34] sm:$0xf] %v2681
    %2970 = vst [vmem:[%s5 + $0x38] sm:$0xf] %v2682
    %2971 = vst [vmem:[%s5 + $0x3c] sm:$0xf] %v2683
    %2972 = vst [vmem:[%s5 + $0x40] sm:$0xf] %v2684
    %2973 = vst [vmem:[%s5 + $0x44] sm:$0xf] %v2685
    %2974 = vst [vmem:[%s5 + $0x48] sm:$0xf] %v2686
    %2975 = vst [vmem:[%s5 + $0x4c] sm:$0xf] %v2687
    %2976 = vst [vmem:[%s5 + $0x50] sm:$0xf] %v2688
    %2977 = vst [vmem:[%s5 + $0x54] sm:$0xf] %v2689
    %2978 = vst [vmem:[%s5 + $0x58] sm:$0xf] %v2690
    %2979 = vst [vmem:[%s5 + $0x5c] sm:$0xf] %v2691
    %2980 = vst [vmem:[%s5 + $0x60] sm:$0xf] %v2692
    %2981 = vst [vmem:[%s5 + $0x64] sm:$0xf] %v2693
    %2982 = vst [vmem:[%s5 + $0x68] sm:$0xf] %v2694
    %2983 = vst [vmem:[%s5 + $0x6c] sm:$0xf] %v2695
    %2984 = vst [vmem:[%s5 + $0x70] sm:$0xf] %v2696
    %2985 = vst [vmem:[%s5 + $0x74] sm:$0xf] %v2697
    %2986 = vst [vmem:[%s5 + $0x78] sm:$0xf] %v2698
    %2987 = vst [vmem:[%s5 + $0x7c] sm:$0xf] %v2699
    %2988 = vst [vmem:[%s5 + $0x80] sm:$0xf] %v2700
    %2989 = vst [vmem:[%s5 + $0x84] sm:$0xf] %v2701
    %2990 = vst [vmem:[%s5 + $0x88] sm:$0xf] %v2702
    %2991 = vst [vmem:[%s5 + $0x8c] sm:$0xf] %v2703
    %2992 = vst [vmem:[%s5 + $0x90] sm:$0xf] %v2704
    %2993 = vst [vmem:[%s5 + $0x94] sm:$0xf] %v2705
    %2994 = vst [vmem:[%s5 + $0x98] sm:$0xf] %v2706
    %2995 = vst [vmem:[%s5 + $0x9c] sm:$0xf] %v2707
    %2996 = vst [vmem:[%s5 + $0xa0] sm:$0xf] %v2708
    %2997 = vst [vmem:[%s5 + $0xa4] sm:$0xf] %v2709
    %2998 = vst [vmem:[%s5 + $0xa8] sm:$0xf] %v2710
    %2999 = vst [vmem:[%s5 + $0xac] sm:$0xf] %v2711
    %3000 = vst [vmem:[%s5 + $0xb0] sm:$0xf] %v2712
    %3001 = vst [vmem:[%s5 + $0xb4] sm:$0xf] %v2713
    %3002 = vst [vmem:[%s5 + $0xb8] sm:$0xf] %v2714
    %3003 = vst [vmem:[%s5 + $0xbc] sm:$0xf] %v2715
    %3004 = vst [vmem:[%s5 + $0xc0] sm:$0xf] %v2716
    %3005 = vst [vmem:[%s5 + $0xc4] sm:$0xf] %v2717
    %3006 = vst [vmem:[%s5 + $0xc8] sm:$0xf] %v2718
    %3007 = vst [vmem:[%s5 + $0xcc] sm:$0xf] %v2719
    %3008 = vst [vmem:[%s5 + $0xd0] sm:$0xf] %v2720
    %3009 = vst [vmem:[%s5 + $0xd4] sm:$0xf] %v2721
    %3010 = vst [vmem:[%s5 + $0xd8] sm:$0xf] %v2722
    %3011 = vst [vmem:[%s5 + $0xdc] sm:$0xf] %v2723
    %3012 = vst [vmem:[%s5 + $0xe0] sm:$0xf] %v2724
    %3013 = vst [vmem:[%s5 + $0xe4] sm:$0xf] %v2725
    %3014 = vst [vmem:[%s5 + $0xe8] sm:$0xf] %v2726
    %3015 = vst [vmem:[%s5 + $0xec] sm:$0xf] %v2727
    %3016 = vst [vmem:[%s5 + $0xf0] sm:$0xf] %v2728
    %3017 = vst [vmem:[%s5 + $0xf4] sm:$0xf] %v2729
    %3018 = vst [vmem:[%s5 + $0xf8] sm:$0xf] %v2730
    %3019 = vst [vmem:[%s5 + $0xfc] sm:$0xf] %v2731
    %3020 = vst [vmem:[%s5 + $0x100] sm:$0xf] %v2732
    %3021 = vst [vmem:[%s5 + $0x104] sm:$0xf] %v2733
    %3022 = vst [vmem:[%s5 + $0x108] sm:$0xf] %v2734
    %3023 = vst [vmem:[%s5 + $0x10c] sm:$0xf] %v2735
    %3024 = vst [vmem:[%s5 + $0x110] sm:$0xf] %v2736
    %3025 = vst [vmem:[%s5 + $0x114] sm:$0xf] %v2737
    %3026 = vst [vmem:[%s5 + $0x118] sm:$0xf] %v2738
    %3027 = vst [vmem:[%s5 + $0x11c] sm:$0xf] %v2739
    %3028 = vst [vmem:[%s5 + $0x120] sm:$0xf] %v2740
    %3029 = vst [vmem:[%s5 + $0x124] sm:$0xf] %v2741
    %3030 = vst [vmem:[%s5 + $0x128] sm:$0xf] %v2742
    %3031 = vst [vmem:[%s5 + $0x12c] sm:$0xf] %v2743
    %3032 = vst [vmem:[%s5 + $0x130] sm:$0xf] %v2744
    %3033 = vst [vmem:[%s5 + $0x134] sm:$0xf] %v2745
    %3034 = vst [vmem:[%s5 + $0x138] sm:$0xf] %v2746
    %3035 = vst [vmem:[%s5 + $0x13c] sm:$0xf] %v2747
    %3036 = vst [vmem:[%s5 + $0x140] sm:$0xf] %v2748
    %3037 = vst [vmem:[%s5 + $0x144] sm:$0xf] %v2749
    %3038 = vst [vmem:[%s5 + $0x148] sm:$0xf] %v2750
    %3039 = vst [vmem:[%s5 + $0x14c] sm:$0xf] %v2751
    %3040 = vst [vmem:[%s5 + $0x150] sm:$0xf] %v2752
    %3041 = vst [vmem:[%s5 + $0x154] sm:$0xf] %v2753
    %3042 = vst [vmem:[%s5 + $0x158] sm:$0xf] %v2754
    %3043 = vst [vmem:[%s5 + $0x15c] sm:$0xf] %v2755
    %3044 = vst [vmem:[%s5 + $0x160] sm:$0xf] %v2756
    %3045 = vst [vmem:[%s5 + $0x164] sm:$0xf] %v2757
    %3046 = vst [vmem:[%s5 + $0x168] sm:$0xf] %v2758
    %3047 = vst [vmem:[%s5 + $0x16c] sm:$0xf] %v2759
    %3048 = vst [vmem:[%s5 + $0x170] sm:$0xf] %v2760
    %3049 = vst [vmem:[%s5 + $0x174] sm:$0xf] %v2761
    %3050 = vst [vmem:[%s5 + $0x178] sm:$0xf] %v2762
    %3051 = vst [vmem:[%s5 + $0x17c] sm:$0xf] %v2763
    %3052 = vst [vmem:[%s5 + $0x180] sm:$0xf] %v2764
    %3053 = vst [vmem:[%s5 + $0x184] sm:$0xf] %v2765
    %3054 = vst [vmem:[%s5 + $0x188] sm:$0xf] %v2766
    %3055 = vst [vmem:[%s5 + $0x18c] sm:$0xf] %v2767
    %3056 = vst [vmem:[%s5 + $0x190] sm:$0xf] %v2768
    %3057 = vst [vmem:[%s5 + $0x194] sm:$0xf] %v2769
    %3058 = vst [vmem:[%s5 + $0x198] sm:$0xf] %v2770
    %3059 = vst [vmem:[%s5 + $0x19c] sm:$0xf] %v2771
    %3060 = vst [vmem:[%s5 + $0x1a0] sm:$0xf] %v2772
    %3061 = vst [vmem:[%s5 + $0x1a4] sm:$0xf] %v2773
    %3062 = vst [vmem:[%s5 + $0x1a8] sm:$0xf] %v2774
    %3063 = vst [vmem:[%s5 + $0x1ac] sm:$0xf] %v2775
    %3064 = vst [vmem:[%s5 + $0x1b0] sm:$0xf] %v2776
    %3065 = vst [vmem:[%s5 + $0x1b4] sm:$0xf] %v2777
    %3066 = vst [vmem:[%s5 + $0x1b8] sm:$0xf] %v2778
    %3067 = vst [vmem:[%s5 + $0x1bc] sm:$0xf] %v2779
    %3068 = vst [vmem:[%s5 + $0x1c0] sm:$0xf] %v2780
    %3069 = vst [vmem:[%s5 + $0x1c4] sm:$0xf] %v2781
    %3070 = vst [vmem:[%s5 + $0x1c8] sm:$0xf] %v2782
    %3071 = vst [vmem:[%s5 + $0x1cc] sm:$0xf] %v2783
    %3072 = vst [vmem:[%s5 + $0x1d0] sm:$0xf] %v2784
    %3073 = vst [vmem:[%s5 + $0x1d4] sm:$0xf] %v2785
    %3074 = vst [vmem:[%s5 + $0x1d8] sm:$0xf] %v2786
    %3075 = vst [vmem:[%s5 + $0x1dc] sm:$0xf] %v2787
    %3076 = vst [vmem:[%s5 + $0x1e0] sm:$0xf] %v2788
    %3077 = vst [vmem:[%s5 + $0x1e4] sm:$0xf] %v2789
    %3078 = vst [vmem:[%s5 + $0x1e8] sm:$0xf] %v2790
    %3079 = vst [vmem:[%s5 + $0x1ec] sm:$0xf] %v2791
    %3080 = vst [vmem:[%s5 + $0x1f0] sm:$0xf] %v2792
    %3081 = vst [vmem:[%s5 + $0x1f4] sm:$0xf] %v2793
    %3082 = vst [vmem:[%s5 + $0x1f8] sm:$0xf] %v2794
    %3083 = vst [vmem:[%s5 + $0x1fc] sm:$0xf] %v2795
    %3084 = vst [vmem:[%s5 + $0x200] sm:$0xf] %v2796
    %3085 = vst [vmem:[%s5 + $0x204] sm:$0xf] %v2797
    %3086 = vst [vmem:[%s5 + $0x208] sm:$0xf] %v2798
    %3087 = vst [vmem:[%s5 + $0x20c] sm:$0xf] %v2799
    %3088 = vst [vmem:[%s5 + $0x210] sm:$0xf] %v2800
    %3089 = vst [vmem:[%s5 + $0x214] sm:$0xf] %v2801
    %3090 = vst [vmem:[%s5 + $0x218] sm:$0xf] %v2802
    %3091 = vst [vmem:[%s5 + $0x21c] sm:$0xf] %v2803
    %3092 = vst [vmem:[%s5 + $0x220] sm:$0xf] %v2804
    %3093 = vst [vmem:[%s5 + $0x224] sm:$0xf] %v2805
    %3094 = vst [vmem:[%s5 + $0x228] sm:$0xf] %v2806
    %3095 = vst [vmem:[%s5 + $0x22c] sm:$0xf] %v2807
    %3096 = vst [vmem:[%s5 + $0x230] sm:$0xf] %v2808
    %3097 = vst [vmem:[%s5 + $0x234] sm:$0xf] %v2809
    %3098 = vst [vmem:[%s5 + $0x238] sm:$0xf] %v2810
    %3099 = vst [vmem:[%s5 + $0x23c] sm:$0xf] %v2811
    %v3100 = vadd.f32 %v2236, %v2237
    %v3101 = vadd.f32 %v3100, %v2238
    %v3102 = vadd.f32 %v3101, %v2239
    %v3103 = vadd.f32 %v3102, %v2240
    %v3104 = vadd.f32 %v3103, %v2241
    %v3105 = vadd.f32 %v3104, %v2242
    %v3106 = vadd.f32 %v3105, %v2243
    %v3107 = vadd.f32 %v3106, %v2244
    %v3108 = vadd.f32 %v3107, %v2245
    %v3109 = vadd.f32 %v3108, %v2246
    %v3110 = vadd.f32 %v3109, %v2247
    %v3111 = vadd.f32 %v3110, %v2248
    %v3112 = vadd.f32 %v3111, %v2249
    %v3113 = vadd.f32 %v3112, %v2250
    %v3114 = vadd.f32 %v3113, %v2251
    %v3115 = vadd.f32 %v3114, %v2252
    %v3116 = vadd.f32 %v3115, %v2253
    %v3117 = vadd.f32 %v3116, %v2254
    %v3118 = vadd.f32 %v3117, %v2255
    %v3119 = vadd.f32 %v3118, %v2256
    %v3120 = vadd.f32 %v3119, %v2257
    %v3121 = vadd.f32 %v3120, %v2258
    %v3122 = vadd.f32 %v3121, %v2259
    %v3123 = vadd.f32 %v3122, %v2260
    %v3124 = vadd.f32 %v3123, %v2261
    %v3125 = vadd.f32 %v3124, %v2262
    %v3126 = vadd.f32 %v3125, %v2263
    %v3127 = vadd.f32 %v3126, %v2264
    %v3128 = vadd.f32 %v3127, %v2265
    %v3129 = vadd.f32 %v3128, %v2266
    %v3130 = vadd.f32 %v3129, %v2267
    %v3131 = vadd.f32 %v3130, %v2268
    %v3132 = vadd.f32 %v3131, %v2269
    %v3133 = vadd.f32 %v3132, %v2270
    %v3134 = vadd.f32 %v3133, %v2271
    %v3135 = vadd.f32 %v3134, %v2272
    %v3136 = vadd.f32 %v3135, %v2273
    %v3137 = vadd.f32 %v3136, %v2274
    %v3138 = vadd.f32 %v3137, %v2275
    %v3139 = vadd.f32 %v3138, %v2276
    %v3140 = vadd.f32 %v3139, %v2277
    %v3141 = vadd.f32 %v3140, %v2278
    %v3142 = vadd.f32 %v3141, %v2279
    %v3143 = vadd.f32 %v3142, %v2280
    %v3144 = vadd.f32 %v3143, %v2281
    %v3145 = vadd.f32 %v3144, %v2282
    %v3146 = vadd.f32 %v3145, %v2283
    %v3147 = vadd.f32 %v3146, %v2284
    %v3148 = vadd.f32 %v3147, %v2285
    %v3149 = vadd.f32 %v3148, %v2286
    %v3150 = vadd.f32 %v3149, %v2287
    %v3151 = vadd.f32 %v3150, %v2288
    %v3152 = vadd.f32 %v3151, %v2289
    %v3153 = vadd.f32 %v3152, %v2290
    %v3154 = vadd.f32 %v3153, %v2291
    %v3155 = vadd.f32 %v3154, %v2292
    %v3156 = vadd.f32 %v3155, %v2293
    %v3157 = vadd.f32 %v3156, %v2294
    %v3158 = vadd.f32 %v3157, %v2295
    %v3159 = vadd.f32 %v3158, %v2296
    %v3160 = vadd.f32 %v3159, %v2297
    %v3161 = vadd.f32 %v3160, %v2298
    %v3162 = vadd.f32 %v3161, %v2299
    %v3163 = vadd.f32 %v3162, %v2300
    %v3164 = vadd.f32 %v3163, %v2301
    %v3165 = vadd.f32 %v3164, %v2302
    %v3166 = vadd.f32 %v3165, %v2303
    %v3167 = vadd.f32 %v3166, %v2304
    %v3168 = vadd.f32 %v3167, %v2305
    %v3169 = vadd.f32 %v3168, %v2306
    %v3170 = vadd.f32 %v3169, %v2307
    %v3171 = vadd.f32 %v3170, %v2308
    %v3172 = vadd.f32 %v3171, %v2309
    %v3173 = vadd.f32 %v3172, %v2310
    %v3174 = vadd.f32 %v3173, %v2311
    %v3175 = vadd.f32 %v3174, %v2312
    %v3176 = vadd.f32 %v3175, %v2313
    %v3177 = vadd.f32 %v3176, %v2314
    %v3178 = vadd.f32 %v3177, %v2315
    %v3179 = vadd.f32 %v3178, %v2316
    %v3180 = vadd.f32 %v3179, %v2317
    %v3181 = vadd.f32 %v3180, %v2318
    %v3182 = vadd.f32 %v3181, %v2319
    %v3183 = vadd.f32 %v3182, %v2320
    %v3184 = vadd.f32 %v3183, %v2321
    %v3185 = vadd.f32 %v3184, %v2322
    %v3186 = vadd.f32 %v3185, %v2323
    %v3187 = vadd.f32 %v3186, %v2324
    %v3188 = vadd.f32 %v3187, %v2325
    %v3189 = vadd.f32 %v3188, %v2326
    %v3190 = vadd.f32 %v3189, %v2327
    %v3191 = vadd.f32 %v3190, %v2328
    %v3192 = vadd.f32 %v3191, %v2329
    %v3193 = vadd.f32 %v3192, %v2330
    %v3194 = vadd.f32 %v3193, %v2331
    %v3195 = vadd.f32 %v3194, %v2332
    %v3196 = vadd.f32 %v3195, %v2333
    %v3197 = vadd.f32 %v3196, %v2334
    %v3198 = vadd.f32 %v3197, %v2335
    %v3199 = vadd.f32 %v3198, %v2336
    %v3200 = vadd.f32 %v3199, %v2337
    %v3201 = vadd.f32 %v3200, %v2338
    %v3202 = vadd.f32 %v3201, %v2339
    %v3203 = vadd.f32 %v3202, %v2340
    %v3204 = vadd.f32 %v3203, %v2341
    %v3205 = vadd.f32 %v3204, %v2342
    %v3206 = vadd.f32 %v3205, %v2343
    %v3207 = vadd.f32 %v3206, %v2344
    %v3208 = vadd.f32 %v3207, %v2345
    %v3209 = vadd.f32 %v3208, %v2346
    %v3210 = vadd.f32 %v3209, %v2347
    %v3211 = vadd.f32 %v3210, %v2348
    %v3212 = vadd.f32 %v3211, %v2349
    %v3213 = vadd.f32 %v3212, %v2350
    %v3214 = vadd.f32 %v3213, %v2351
    %v3215 = vadd.f32 %v3214, %v2352
    %v3216 = vadd.f32 %v3215, %v2353
    %v3217 = vadd.f32 %v3216, %v2354
    %v3218 = vadd.f32 %v3217, %v2355
    %v3219 = vadd.f32 %v3218, %v2356
    %v3220 = vadd.f32 %v3219, %v2357
    %v3221 = vadd.f32 %v3220, %v2358
    %v3222 = vadd.f32 %v3221, %v2359
    %v3223 = vadd.f32 %v3222, %v2360
    %v3224 = vadd.f32 %v3223, %v2361
    %v3225 = vadd.f32 %v3224, %v2362
    %v3226 = vadd.f32 %v3225, %v2363
    %v3227 = vadd.f32 %v3226, %v2364
    %v3228 = vadd.f32 %v3227, %v2365
    %v3229 = vadd.f32 %v3228, %v2366
    %v3230 = vadd.f32 %v3229, %v2367
    %v3231 = vadd.f32 %v3230, %v2368
    %v3232 = vadd.f32 %v3231, %v2369
    %v3233 = vadd.f32 %v3232, %v2370
    %v3234 = vadd.f32 %v3233, %v2371
    %v3235 = vadd.f32 %v3234, %v2372
    %v3236 = vadd.f32 %v3235, %v2373
    %v3237 = vadd.f32 %v3236, %v2374
    %v3238 = vadd.f32 %v3237, %v2375
    %v3239 = vadd.f32 %v3238, %v2376
    %v3240 = vadd.f32 %v3239, %v2377
    %v3241 = vadd.f32 %v3240, %v2378
    %v3242 = vadd.f32 %v3241, %v2379
    %v3243 = vrot.slane %v3242, 4
    %v3244 = vadd.f32 %v3242, %v3243
    %v3245 = vrot.slane %v3244, 2
    %v3246 = vadd.f32 %v3244, %v3245
    %v3247 = vrot.slane %v3246, 1
    %v3248 = vadd.f32 %v3246, %v3247
    %v3249 = vmul.f32 %v2236, %v2236
    %v3250 = vmul.f32 %v2237, %v2237
    %v3251 = vmul.f32 %v2238, %v2238
    %v3252 = vmul.f32 %v2239, %v2239
    %v3253 = vmul.f32 %v2240, %v2240
    %v3254 = vmul.f32 %v2241, %v2241
    %v3255 = vmul.f32 %v2242, %v2242
    %v3256 = vmul.f32 %v2243, %v2243
    %v3257 = vmul.f32 %v2244, %v2244
    %v3258 = vmul.f32 %v2245, %v2245
    %v3259 = vmul.f32 %v2246, %v2246
    %v3260 = vmul.f32 %v2247, %v2247
    %v3261 = vmul.f32 %v2248, %v2248
    %v3262 = vmul.f32 %v2249, %v2249
    %v3263 = vmul.f32 %v2250, %v2250
    %v3264 = vmul.f32 %v2251, %v2251
    %v3265 = vmul.f32 %v2252, %v2252
    %v3266 = vmul.f32 %v2253, %v2253
    %v3267 = vmul.f32 %v2254, %v2254
    %v3268 = vmul.f32 %v2255, %v2255
    %v3269 = vmul.f32 %v2256, %v2256
    %v3270 = vmul.f32 %v2257, %v2257
    %v3271 = vmul.f32 %v2258, %v2258
    %v3272 = vmul.f32 %v2259, %v2259
    %v3273 = vmul.f32 %v2260, %v2260
    %v3274 = vmul.f32 %v2261, %v2261
    %v3275 = vmul.f32 %v2262, %v2262
    %v3276 = vmul.f32 %v2263, %v2263
    %v3277 = vmul.f32 %v2264, %v2264
    %v3278 = vmul.f32 %v2265, %v2265
    %v3279 = vmul.f32 %v2266, %v2266
    %v3280 = vmul.f32 %v2267, %v2267
    %v3281 = vmul.f32 %v2268, %v2268
    %v3282 = vmul.f32 %v2269, %v2269
    %v3283 = vmul.f32 %v2270, %v2270
    %v3284 = vmul.f32 %v2271, %v2271
    %v3285 = vmul.f32 %v2272, %v2272
    %v3286 = vmul.f32 %v2273, %v2273
    %v3287 = vmul.f32 %v2274, %v2274
    %v3288 = vmul.f32 %v2275, %v2275
    %v3289 = vmul.f32 %v2276, %v2276
    %v3290 = vmul.f32 %v2277, %v2277
    %v3291 = vmul.f32 %v2278, %v2278
    %v3292 = vmul.f32 %v2279, %v2279
    %v3293 = vmul.f32 %v2280, %v2280
    %v3294 = vmul.f32 %v2281, %v2281
    %v3295 = vmul.f32 %v2282, %v2282
    %v3296 = vmul.f32 %v2283, %v2283
    %v3297 = vmul.f32 %v2284, %v2284
    %v3298 = vmul.f32 %v2285, %v2285
    %v3299 = vmul.f32 %v2286, %v2286
    %v3300 = vmul.f32 %v2287, %v2287
    %v3301 = vmul.f32 %v2288, %v2288
    %v3302 = vmul.f32 %v2289, %v2289
    %v3303 = vmul.f32 %v2290, %v2290
    %v3304 = vmul.f32 %v2291, %v2291
    %v3305 = vmul.f32 %v2292, %v2292
    %v3306 = vmul.f32 %v2293, %v2293
    %v3307 = vmul.f32 %v2294, %v2294
    %v3308 = vmul.f32 %v2295, %v2295
    %v3309 = vmul.f32 %v2296, %v2296
    %v3310 = vmul.f32 %v2297, %v2297
    %v3311 = vmul.f32 %v2298, %v2298
    %v3312 = vmul.f32 %v2299, %v2299
    %v3313 = vmul.f32 %v2300, %v2300
    %v3314 = vmul.f32 %v2301, %v2301
    %v3315 = vmul.f32 %v2302, %v2302
    %v3316 = vmul.f32 %v2303, %v2303
    %v3317 = vmul.f32 %v2304, %v2304
    %v3318 = vmul.f32 %v2305, %v2305
    %v3319 = vmul.f32 %v2306, %v2306
    %v3320 = vmul.f32 %v2307, %v2307
    %v3321 = vmul.f32 %v2308, %v2308
    %v3322 = vmul.f32 %v2309, %v2309
    %v3323 = vmul.f32 %v2310, %v2310
    %v3324 = vmul.f32 %v2311, %v2311
    %v3325 = vmul.f32 %v2312, %v2312
    %v3326 = vmul.f32 %v2313, %v2313
    %v3327 = vmul.f32 %v2314, %v2314
    %v3328 = vmul.f32 %v2315, %v2315
    %v3329 = vmul.f32 %v2316, %v2316
    %v3330 = vmul.f32 %v2317, %v2317
    %v3331 = vmul.f32 %v2318, %v2318
    %v3332 = vmul.f32 %v2319, %v2319
    %v3333 = vmul.f32 %v2320, %v2320
    %v3334 = vmul.f32 %v2321, %v2321
    %v3335 = vmul.f32 %v2322, %v2322
    %v3336 = vmul.f32 %v2323, %v2323
    %v3337 = vmul.f32 %v2324, %v2324
    %v3338 = vmul.f32 %v2325, %v2325
    %v3339 = vmul.f32 %v2326, %v2326
    %v3340 = vmul.f32 %v2327, %v2327
    %v3341 = vmul.f32 %v2328, %v2328
    %v3342 = vmul.f32 %v2329, %v2329
    %v3343 = vmul.f32 %v2330, %v2330
    %v3344 = vmul.f32 %v2331, %v2331
    %v3345 = vmul.f32 %v2332, %v2332
    %v3346 = vmul.f32 %v2333, %v2333
    %v3347 = vmul.f32 %v2334, %v2334
    %v3348 = vmul.f32 %v2335, %v2335
    %v3349 = vmul.f32 %v2336, %v2336
    %v3350 = vmul.f32 %v2337, %v2337
    %v3351 = vmul.f32 %v2338, %v2338
    %v3352 = vmul.f32 %v2339, %v2339
    %v3353 = vmul.f32 %v2340, %v2340
    %v3354 = vmul.f32 %v2341, %v2341
    %v3355 = vmul.f32 %v2342, %v2342
    %v3356 = vmul.f32 %v2343, %v2343
    %v3357 = vmul.f32 %v2344, %v2344
    %v3358 = vmul.f32 %v2345, %v2345
    %v3359 = vmul.f32 %v2346, %v2346
    %v3360 = vmul.f32 %v2347, %v2347
    %v3361 = vmul.f32 %v2348, %v2348
    %v3362 = vmul.f32 %v2349, %v2349
    %v3363 = vmul.f32 %v2350, %v2350
    %v3364 = vmul.f32 %v2351, %v2351
    %v3365 = vmul.f32 %v2352, %v2352
    %v3366 = vmul.f32 %v2353, %v2353
    %v3367 = vmul.f32 %v2354, %v2354
    %v3368 = vmul.f32 %v2355, %v2355
    %v3369 = vmul.f32 %v2356, %v2356
    %v3370 = vmul.f32 %v2357, %v2357
    %v3371 = vmul.f32 %v2358, %v2358
    %v3372 = vmul.f32 %v2359, %v2359
    %v3373 = vmul.f32 %v2360, %v2360
    %v3374 = vmul.f32 %v2361, %v2361
    %v3375 = vmul.f32 %v2362, %v2362
    %v3376 = vmul.f32 %v2363, %v2363
    %v3377 = vmul.f32 %v2364, %v2364
    %v3378 = vmul.f32 %v2365, %v2365
    %v3379 = vmul.f32 %v2366, %v2366
    %v3380 = vmul.f32 %v2367, %v2367
    %v3381 = vmul.f32 %v2368, %v2368
    %v3382 = vmul.f32 %v2369, %v2369
    %v3383 = vmul.f32 %v2370, %v2370
    %v3384 = vmul.f32 %v2371, %v2371
    %v3385 = vmul.f32 %v2372, %v2372
    %v3386 = vmul.f32 %v2373, %v2373
    %v3387 = vmul.f32 %v2374, %v2374
    %v3388 = vmul.f32 %v2375, %v2375
    %v3389 = vmul.f32 %v2376, %v2376
    %v3390 = vmul.f32 %v2377, %v2377
    %v3391 = vmul.f32 %v2378, %v2378
    %v3392 = vmul.f32 %v2379, %v2379
    %v3393 = vadd.f32 %v3249, %v3250
    %v3394 = vadd.f32 %v3393, %v3251
    %v3395 = vadd.f32 %v3394, %v3252
    %v3396 = vadd.f32 %v3395, %v3253
    %v3397 = vadd.f32 %v3396, %v3254
    %v3398 = vadd.f32 %v3397, %v3255
    %v3399 = vadd.f32 %v3398, %v3256
    %v3400 = vadd.f32 %v3399, %v3257
    %v3401 = vadd.f32 %v3400, %v3258
    %v3402 = vadd.f32 %v3401, %v3259
    %v3403 = vadd.f32 %v3402, %v3260
    %v3404 = vadd.f32 %v3403, %v3261
    %v3405 = vadd.f32 %v3404, %v3262
    %v3406 = vadd.f32 %v3405, %v3263
    %v3407 = vadd.f32 %v3406, %v3264
    %v3408 = vadd.f32 %v3407, %v3265
    %v3409 = vadd.f32 %v3408, %v3266
    %v3410 = vadd.f32 %v3409, %v3267
    %v3411 = vadd.f32 %v3410, %v3268
    %v3412 = vadd.f32 %v3411, %v3269
    %v3413 = vadd.f32 %v3412, %v3270
    %v3414 = vadd.f32 %v3413, %v3271
    %v3415 = vadd.f32 %v3414, %v3272
    %v3416 = vadd.f32 %v3415, %v3273
    %v3417 = vadd.f32 %v3416, %v3274
    %v3418 = vadd.f32 %v3417, %v3275
    %v3419 = vadd.f32 %v3418, %v3276
    %v3420 = vadd.f32 %v3419, %v3277
    %v3421 = vadd.f32 %v3420, %v3278
    %v3422 = vadd.f32 %v3421, %v3279
    %v3423 = vadd.f32 %v3422, %v3280
    %v3424 = vadd.f32 %v3423, %v3281
    %v3425 = vadd.f32 %v3424, %v3282
    %v3426 = vadd.f32 %v3425, %v3283
    %v3427 = vadd.f32 %v3426, %v3284
    %v3428 = vadd.f32 %v3427, %v3285
    %v3429 = vadd.f32 %v3428, %v3286
    %v3430 = vadd.f32 %v3429, %v3287
    %v3431 = vadd.f32 %v3430, %v3288
    %v3432 = vadd.f32 %v3431, %v3289
    %v3433 = vadd.f32 %v3432, %v3290
    %v3434 = vadd.f32 %v3433, %v3291
    %v3435 = vadd.f32 %v3434, %v3292
    %v3436 = vadd.f32 %v3435, %v3293
    %v3437 = vadd.f32 %v3436, %v3294
    %v3438 = vadd.f32 %v3437, %v3295
    %v3439 = vadd.f32 %v3438, %v3296
    %v3440 = vadd.f32 %v3439, %v3297
    %v3441 = vadd.f32 %v3440, %v3298
    %v3442 = vadd.f32 %v3441, %v3299
    %v3443 = vadd.f32 %v3442, %v3300
    %v3444 = vadd.f32 %v3443, %v3301
    %v3445 = vadd.f32 %v3444, %v3302
    %v3446 = vadd.f32 %v3445, %v3303
    %v3447 = vadd.f32 %v3446, %v3304
    %v3448 = vadd.f32 %v3447, %v3305
    %v3449 = vadd.f32 %v3448, %v3306
    %v3450 = vadd.f32 %v3449, %v3307
    %v3451 = vadd.f32 %v3450, %v3308
    %v3452 = vadd.f32 %v3451, %v3309
    %v3453 = vadd.f32 %v3452, %v3310
    %v3454 = vadd.f32 %v3453, %v3311
    %v3455 = vadd.f32 %v3454, %v3312
    %v3456 = vadd.f32 %v3455, %v3313
    %v3457 = vadd.f32 %v3456, %v3314
    %v3458 = vadd.f32 %v3457, %v3315
    %v3459 = vadd.f32 %v3458, %v3316
    %v3460 = vadd.f32 %v3459, %v3317
    %v3461 = vadd.f32 %v3460, %v3318
    %v3462 = vadd.f32 %v3461, %v3319
    %v3463 = vadd.f32 %v3462, %v3320
    %v3464 = vadd.f32 %v3463, %v3321
    %v3465 = vadd.f32 %v3464, %v3322
    %v3466 = vadd.f32 %v3465, %v3323
    %v3467 = vadd.f32 %v3466, %v3324
    %v3468 = vadd.f32 %v3467, %v3325
    %v3469 = vadd.f32 %v3468, %v3326
    %v3470 = vadd.f32 %v3469, %v3327
    %v3471 = vadd.f32 %v3470, %v3328
    %v3472 = vadd.f32 %v3471, %v3329
    %v3473 = vadd.f32 %v3472, %v3330
    %v3474 = vadd.f32 %v3473, %v3331
    %v3475 = vadd.f32 %v3474, %v3332
    %v3476 = vadd.f32 %v3475, %v3333
    %v3477 = vadd.f32 %v3476, %v3334
    %v3478 = vadd.f32 %v3477, %v3335
    %v3479 = vadd.f32 %v3478, %v3336
    %v3480 = vadd.f32 %v3479, %v3337
    %v3481 = vadd.f32 %v3480, %v3338
    %v3482 = vadd.f32 %v3481, %v3339
    %v3483 = vadd.f32 %v3482, %v3340
    %v3484 = vadd.f32 %v3483, %v3341
    %v3485 = vadd.f32 %v3484, %v3342
    %v3486 = vadd.f32 %v3485, %v3343
    %v3487 = vadd.f32 %v3486, %v3344
    %v3488 = vadd.f32 %v3487, %v3345
    %v3489 = vadd.f32 %v3488, %v3346
    %v3490 = vadd.f32 %v3489, %v3347
    %v3491 = vadd.f32 %v3490, %v3348
    %v3492 = vadd.f32 %v3491, %v3349
    %v3493 = vadd.f32 %v3492, %v3350
    %v3494 = vadd.f32 %v3493, %v3351
    %v3495 = vadd.f32 %v3494, %v3352
    %v3496 = vadd.f32 %v3495, %v3353
    %v3497 = vadd.f32 %v3496, %v3354
    %v3498 = vadd.f32 %v3497, %v3355
    %v3499 = vadd.f32 %v3498, %v3356
    %v3500 = vadd.f32 %v3499, %v3357
    %v3501 = vadd.f32 %v3500, %v3358
    %v3502 = vadd.f32 %v3501, %v3359
    %v3503 = vadd.f32 %v3502, %v3360
    %v3504 = vadd.f32 %v3503, %v3361
    %v3505 = vadd.f32 %v3504, %v3362
    %v3506 = vadd.f32 %v3505, %v3363
    %v3507 = vadd.f32 %v3506, %v3364
    %v3508 = vadd.f32 %v3507, %v3365
    %v3509 = vadd.f32 %v3508, %v3366
    %v3510 = vadd.f32 %v3509, %v3367
    %v3511 = vadd.f32 %v3510, %v3368
    %v3512 = vadd.f32 %v3511, %v3369
    %v3513 = vadd.f32 %v3512, %v3370
    %v3514 = vadd.f32 %v3513, %v3371
    %v3515 = vadd.f32 %v3514, %v3372
    %v3516 = vadd.f32 %v3515, %v3373
    %v3517 = vadd.f32 %v3516, %v3374
    %v3518 = vadd.f32 %v3517, %v3375
    %v3519 = vadd.f32 %v3518, %v3376
    %v3520 = vadd.f32 %v3519, %v3377
    %v3521 = vadd.f32 %v3520, %v3378
    %v3522 = vadd.f32 %v3521, %v3379
    %v3523 = vadd.f32 %v3522, %v3380
    %v3524 = vadd.f32 %v3523, %v3381
    %v3525 = vadd.f32 %v3524, %v3382
    %v3526 = vadd.f32 %v3525, %v3383
    %v3527 = vadd.f32 %v3526, %v3384
    %v3528 = vadd.f32 %v3527, %v3385
    %v3529 = vadd.f32 %v3528, %v3386
    %v3530 = vadd.f32 %v3529, %v3387
    %v3531 = vadd.f32 %v3530, %v3388
    %v3532 = vadd.f32 %v3531, %v3389
    %v3533 = vadd.f32 %v3532, %v3390
    %v3534 = vadd.f32 %v3533, %v3391
    %v3535 = vadd.f32 %v3534, %v3392
    %v3536 = vrot.slane %v3535, 4
    %v3537 = vadd.f32 %v3535, %v3536
    %v3538 = vrot.slane %v3537, 2
    %v3539 = vadd.f32 %v3537, %v3538
    %v3540 = vrot.slane %v3539, 1
    %v3541 = vadd.f32 %v3539, %v3540
    %vm3542 = vcmask 1040384
    %v3543 = vsel %vm3542, %v3248, %v3541
    %3544 = vst [vmem:[%s6] sm:$0x3] %v3543
  $region29: #{bottleneck_forward.6} parent=0 // pred_fallthru
    _
  // Predicated region
  $region30: #{bottleneck_forward.6} parent=0 // pred_check
    _
  $region31: #{bottleneck_forward.6} parent=0 // pred_check_branch
    %3546 = sbr.rel (0) target = $region33
  $region32: #{bottleneck_forward.6} parent=0 // pred_region
    _
  $region33: #{bottleneck_forward.6} parent=0 // pred_fallthru
    _
  // Predicated region
  $region34: #{bottleneck_forward.6} parent=0 // pred_check
    _
  $region35: #{bottleneck_forward.6} parent=0 // pred_check_branch
    %3548 = sbr.rel (0) target = $region37
  $region36: #{bottleneck_forward.6} parent=0 // pred_region
    _
  $region37: #{bottleneck_forward.6} parent=0 // pred_fallthru
    _
  // Predicated region
  $region38: #{bottleneck_forward.6} parent=0 // pred_check
    _
  $region39: #{bottleneck_forward.6} parent=0 // pred_check_branch
    %3550 = sbr.rel (0) target = $region41
  $region40: #{bottleneck_forward.6} parent=0 // pred_region
    _
  $region41: #{bottleneck_forward.6} parent=0 // pred_fallthru
    _
  // Predicated region
  $region42: #{bottleneck_forward.6} parent=0 // pred_check
    _
  $region43: #{bottleneck_forward.6} parent=0 // pred_check_branch
    %3552 = sbr.rel (0) target = $region45
  $region44: #{bottleneck_forward.6} parent=0 // pred_region
    _
  $region45: #{bottleneck_forward.6} parent=0 // pred_fallthru
    _

// kernel: bottleneck_forward.5
$region0: #{bottleneck_forward.5}
  #allocation0 [shape = 'u32[]', space=smem, size = 0x4, offset = 0x4, fixed_abs, tag = 'smem constant byte address 0x4 - core index']
  #allocation1 [shape = 'u32[144,128]{1,0:T(1,128)}', space=vmem, size = 0x12000, scoped, tag = 'internal scratch']
  #allocation2 [shape = 'f32[576,128]{1,0:T(8,128)}', space=vmem, size = 0x48000, scoped, tag = 'scratch operand']
  %s0 = inlined_call_operand.vmem [shape: bf16[2,18,34,128], index: 0, kind: input, shape index: {}]
  %s1 = inlined_call_operand.vmem [shape: f32[1,128], index: 1, kind: input, shape index: {}]
  %s2 = inlined_call_operand.vmem [shape: f32[1,128], index: 2, kind: input, shape index: {}]
  %s3 = inlined_call_operand.vmem [shape: bf16[3,384,128], index: 3, kind: input, shape index: {}]
  %s4 = inlined_call_operand.vmem [shape: f32[1,128], index: 4, kind: input, shape index: {}]
  %s5 = inlined_call_operand.vmem [shape: bf16[2,18,32,128], index: 5, kind: output, shape index: {0}]
  %s6 = inlined_call_operand.vmem [shape: f32[2,2,128], index: 6, kind: output, shape index: {1}]
  %7 = xla_tuple %s5, %s6
  %s8 = sld [smem:[#allocation0]]
  $region61: #{bottleneck_forward.5} parent=0
    _
  %s10 = ssub.s32 1, %s8
  %s11 = scalar_select 0, %s10, %s8
  loop: start=0, step=1, limit=4
  $region2: #{bottleneck_forward.5} parent=0 // loop_pre_header
    _
  $region3: #{bottleneck_forward.5} parent=0 // loop_header
    %s13 = sphi 0, %s17
    %p14 = scmp.ge.s32.totalorder %s13, 4
    %s20 = sphi 0, %s32
    %s21 = sphi 0, %s28
    %s22 = sphi 0, %s20
    %s23 = sphi 0, %s21
    %s24 = sphi 0, %s22
    %s25 = sphi 0, %s23
    %s35 = sphi 0, %s37
    %s38 = sphi 0, %s35
    %s39 = sphi 0, %s38
    %s55 = sphi 0, %s39
    %s59 = sphi 0, %s59
    %s61 = sphi 0, %s59
    %s62 = sphi 0, %s61
    %s76 = sphi 0, %s62
    %s80 = sphi 0, %s80
    %s82 = sphi 0, %s80
    %s83 = sphi 0, %s82
    %s97 = sphi 0, %s83
    %s103 = sphi 0, %s105
    %s106 = sphi 0, %s103
    %s107 = sphi 0, %s106
    %s123 = sphi 0, %s107
    %s129 = sphi 0, %s131
    %s132 = sphi 0, %s129
    %s133 = sphi 0, %s132
    %s149 = sphi 0, %s133
    %s157 = sphi 0, %s159
    %s160 = sphi 0, %s157
    %s161 = sphi 0, %s160
    %s177 = sphi 0, %s161
    %s185 = sphi 0, %s187
    %s188 = sphi 0, %s185
    %s189 = sphi 0, %s188
    %s205 = sphi 0, %s189
  $region4: #{bottleneck_forward.5} parent=0 // loop_header_branch
    %16 = sbr.rel (%p14) target = $region8
  $region5: #{bottleneck_forward.5} parent=0 // loop_body
    %s18 = ssub.s32 %s13, 1
    %s19 = ssub.s32 %s13, 2
    %s26 = sadd.s32 1, %s21
    %p27 = scmp.ge.s32.totalorder %s26, 1
    %s28 = scalar_select %p27, 0, %s26
    %s29 = sadd.s32 1, %s20
    %s30 = scalar_select %p27, %s29, %s20
    %p31 = scmp.ge.s32.totalorder %s30, 2
    %s32 = scalar_select %p31, 0, %s30
    %s33 = ssub.s32 %s20, %s32
    %p34 = scmp.eq.s32.totalorder %s33, 0
    %s36 = sadd.s32 %s35, 1
    %s37 = scalar_select %p34, %s35, %s36
    %p40 = pneg %p34
    %p41 = scmp.eq.s32.totalorder %s13, 1
    %p42 = por %p40, %p41
    %p43 = scmp.ne.s32.totalorder %s35, %s38
    %p44 = scmp.eq.s32.totalorder %s13, 0
    %p45 = por %p43, %p44
    %p46 = scmp.ne.s32.totalorder %s35, %s38
    %p47 = scmp.eq.s32.totalorder %s18, 1
    %p48 = por %p46, %p47
    %p49 = scmp.ne.s32.totalorder %s38, %s39
    %p50 = scmp.eq.s32.totalorder %s18, 0
    %p51 = por %p49, %p50
    %p52 = scmp.ne.s32.totalorder %s38, %s39
    %p53 = scmp.eq.s32.totalorder %s19, 1
    %p54 = por %p52, %p53
    %p56 = scmp.ne.s32.totalorder %s39, %s55
    %p57 = scmp.eq.s32.totalorder %s19, 0
    %p58 = por %p56, %p57
    %s60 = sadd.s32 %s59, 1
    %p63 = scmp.eq.s32.totalorder %s13, 1
    %p64 = scmp.ne.s32.totalorder %s59, %s61
    %p65 = scmp.eq.s32.totalorder %s13, 0
    %p66 = por %p64, %p65
    %p67 = scmp.ne.s32.totalorder %s59, %s61
    %p68 = scmp.eq.s32.totalorder %s18, 1
    %p69 = por %p67, %p68
    %p70 = scmp.ne.s32.totalorder %s61, %s62
    %p71 = scmp.eq.s32.totalorder %s18, 0
    %p72 = por %p70, %p71
    %p73 = scmp.ne.s32.totalorder %s61, %s62
    %p74 = scmp.eq.s32.totalorder %s19, 1
    %p75 = por %p73, %p74
    %p77 = scmp.ne.s32.totalorder %s62, %s76
    %p78 = scmp.eq.s32.totalorder %s19, 0
    %p79 = por %p77, %p78
    %s81 = sadd.s32 %s80, 1
    %p84 = scmp.eq.s32.totalorder %s13, 1
    %p85 = scmp.ne.s32.totalorder %s80, %s82
    %p86 = scmp.eq.s32.totalorder %s13, 0
    %p87 = por %p85, %p86
    %p88 = scmp.ne.s32.totalorder %s80, %s82
    %p89 = scmp.eq.s32.totalorder %s18, 1
    %p90 = por %p88, %p89
    %p91 = scmp.ne.s32.totalorder %s82, %s83
    %p92 = scmp.eq.s32.totalorder %s18, 0
    %p93 = por %p91, %p92
    %p94 = scmp.ne.s32.totalorder %s82, %s83
    %p95 = scmp.eq.s32.totalorder %s19, 1
    %p96 = por %p94, %p95
    %p98 = scmp.ne.s32.totalorder %s83, %s97
    %p99 = scmp.eq.s32.totalorder %s19, 0
    %p100 = por %p98, %p99
    %s101 = ssub.s32 %s21, %s28
    %p102 = scmp.eq.s32.totalorder %s101, 0
    %s104 = sadd.s32 %s103, 1
    %s105 = scalar_select %p102, %s103, %s104
    %p108 = pneg %p102
    %p109 = scmp.eq.s32.totalorder %s13, 1
    %p110 = por %p108, %p109
    %p111 = scmp.ne.s32.totalorder %s103, %s106
    %p112 = scmp.eq.s32.totalorder %s13, 0
    %p113 = por %p111, %p112
    %p114 = scmp.ne.s32.totalorder %s103, %s106
    %p115 = scmp.eq.s32.totalorder %s18, 1
    %p116 = por %p114, %p115
    %p117 = scmp.ne.s32.totalorder %s106, %s107
    %p118 = scmp.eq.s32.totalorder %s18, 0
    %p119 = por %p117, %p118
    %p120 = scmp.ne.s32.totalorder %s106, %s107
    %p121 = scmp.eq.s32.totalorder %s19, 1
    %p122 = por %p120, %p121
    %p124 = scmp.ne.s32.totalorder %s107, %s123
    %p125 = scmp.eq.s32.totalorder %s19, 0
    %p126 = por %p124, %p125
    %s127 = ssub.s32 %s21, %s28
    %p128 = scmp.eq.s32.totalorder %s127, 0
    %s130 = sadd.s32 %s129, 1
    %s131 = scalar_select %p128, %s129, %s130
    %p134 = pneg %p128
    %p135 = scmp.eq.s32.totalorder %s13, 1
    %p136 = por %p134, %p135
    %p137 = scmp.ne.s32.totalorder %s129, %s132
    %p138 = scmp.eq.s32.totalorder %s13, 0
    %p139 = por %p137, %p138
    %p140 = scmp.ne.s32.totalorder %s129, %s132
    %p141 = scmp.eq.s32.totalorder %s18, 1
    %p142 = por %p140, %p141
    %p143 = scmp.ne.s32.totalorder %s132, %s133
    %p144 = scmp.eq.s32.totalorder %s18, 0
    %p145 = por %p143, %p144
    %p146 = scmp.ne.s32.totalorder %s132, %s133
    %p147 = scmp.eq.s32.totalorder %s19, 1
    %p148 = por %p146, %p147
    %p150 = scmp.ne.s32.totalorder %s133, %s149
    %p151 = scmp.eq.s32.totalorder %s19, 0
    %p152 = por %p150, %p151
    %s153 = ssub.s32 %s20, %s32
    %s154 = ssub.s32 %s21, %s28
    %s155 = sor.u32 %s153, %s154
    %p156 = scmp.eq.s32.totalorder %s155, 0
    %s158 = sadd.s32 %s157, 1
    %s159 = scalar_select %p156, %s157, %s158
    %p162 = pneg %p156
    %p163 = scmp.eq.s32.totalorder %s13, 1
    %p164 = por %p162, %p163
    %p165 = scmp.ne.s32.totalorder %s157, %s160
    %p166 = scmp.eq.s32.totalorder %s13, 0
    %p167 = por %p165, %p166
    %p168 = scmp.ne.s32.totalorder %s157, %s160
    %p169 = scmp.eq.s32.totalorder %s18, 1
    %p170 = por %p168, %p169
    %p171 = scmp.ne.s32.totalorder %s160, %s161
    %p172 = scmp.eq.s32.totalorder %s18, 0
    %p173 = por %p171, %p172
    %p174 = scmp.ne.s32.totalorder %s160, %s161
    %p175 = scmp.eq.s32.totalorder %s19, 1
    %p176 = por %p174, %p175
    %p178 = scmp.ne.s32.totalorder %s161, %s177
    %p179 = scmp.eq.s32.totalorder %s19, 0
    %p180 = por %p178, %p179
    %s181 = ssub.s32 %s20, %s32
    %s182 = ssub.s32 %s21, %s28
    %s183 = sor.u32 %s181, %s182
    %p184 = scmp.eq.s32.totalorder %s183, 0
    %s186 = sadd.s32 %s185, 1
    %s187 = scalar_select %p184, %s185, %s186
    %p190 = pneg %p184
    %p191 = scmp.eq.s32.totalorder %s13, 1
    %p192 = por %p190, %p191
    %p193 = scmp.ne.s32.totalorder %s185, %s188
    %p194 = scmp.eq.s32.totalorder %s13, 0
    %p195 = por %p193, %p194
    %p196 = scmp.ne.s32.totalorder %s185, %s188
    %p197 = scmp.eq.s32.totalorder %s18, 1
    %p198 = por %p196, %p197
    %p199 = scmp.ne.s32.totalorder %s188, %s189
    %p200 = scmp.eq.s32.totalorder %s18, 0
    %p201 = por %p199, %p200
    %p202 = scmp.ne.s32.totalorder %s188, %s189
    %p203 = scmp.eq.s32.totalorder %s19, 1
    %p204 = por %p202, %p203
    %p206 = scmp.ne.s32.totalorder %s189, %s205
    %p207 = scmp.eq.s32.totalorder %s19, 0
    %p208 = por %p206, %p207
    %p209 = scmp.le.s32.totalorder 1, %s13
    %p210 = scmp.lt.s32.totalorder %s13, 3
    %p211 = pnand %p209, %p210
    %p212 = pneg %p211
    // Predicated region
    $region9: #{bottleneck_forward.5} parent=5 // pred_check
      _
    $region10: #{bottleneck_forward.5} parent=5 // pred_check_branch
      %214 = sbr.rel (%p211) target = $region12
    $region11: #{bottleneck_forward.5} parent=5 // pred_region
      %s215 = ssub.s32 %s13, 1
      // Predicated region
      $region13: #{bottleneck_forward.5} parent=11 // pred_check
        %p216 = pneg %p72
      $region14: #{bottleneck_forward.5} parent=11 // pred_check_branch
        %218 = sbr.rel (%p216) target = $region16
      $region15: #{bottleneck_forward.5} parent=11 // pred_region
        _
      $region16: #{bottleneck_forward.5} parent=11 // pred_fallthru
        _
      // Predicated region
      $region17: #{bottleneck_forward.5} parent=11 // pred_check
        %p219 = pneg %p93
      $region18: #{bottleneck_forward.5} parent=11 // pred_check_branch
        %221 = sbr.rel (%p219) target = $region20
      $region19: #{bottleneck_forward.5} parent=11 // pred_region
        _
      $region20: #{bottleneck_forward.5} parent=11 // pred_fallthru
        _
      // Predicated region
      $region21: #{bottleneck_forward.5} parent=11 // pred_check
        %p222 = pneg %p119
      $region22: #{bottleneck_forward.5} parent=11 // pred_check_branch
        %224 = sbr.rel (%p222) target = $region24
      $region23: #{bottleneck_forward.5} parent=11 // pred_region
        %p225 = scmp.lt.s32.totalorder %s23, 0
        %s226 = scalar_select %p225, %s23, 0
        %s227 = smul.addr %s226, 4
        %s228 = scalar_lea.vmem %s3, %s227
      $region24: #{bottleneck_forward.5} parent=11 // pred_fallthru
        _
      // Predicated region
      $region25: #{bottleneck_forward.5} parent=11 // pred_check
        %p229 = pneg %p145
      $region26: #{bottleneck_forward.5} parent=11 // pred_check_branch
        %231 = sbr.rel (%p229) target = $region28
      $region27: #{bottleneck_forward.5} parent=11 // pred_region
        %p232 = scmp.lt.s32.totalorder %s23, 0
        %s233 = scalar_select %p232, %s23, 0
        %s234 = scalar_lea.vmem %s4, %s233
      $region28: #{bottleneck_forward.5} parent=11 // pred_fallthru
        _
    $region12: #{bottleneck_forward.5} parent=5 // pred_fallthru
      _
    %p235 = scmp.lt.s32.totalorder %s13, 2
    // Predicated region
    $region29: #{bottleneck_forward.5} parent=5 // pred_check
      %p236 = pneg %p235
    $region30: #{bottleneck_forward.5} parent=5 // pred_check_branch
      %238 = sbr.rel (%p236) target = $region32
    $region31: #{bottleneck_forward.5} parent=5 // pred_region
      // Predicated region
      $region33: #{bottleneck_forward.5} parent=31 // pred_check
        %p239 = pneg %p45
      $region34: #{bottleneck_forward.5} parent=31 // pred_check_branch
        %241 = sbr.rel (%p239) target = $region36
      $region35: #{bottleneck_forward.5} parent=31 // pred_region
        %p242 = scmp.lt.s32.totalorder %s20, 1
        %s243 = scalar_select %p242, %s20, 1
        %s244 = smul.addr %s243, 90
        %s245 = smul.addr %s244, 4
        %s246 = scalar_lea.vmem %s0, %s245
      $region36: #{bottleneck_forward.5} parent=31 // pred_fallthru
        _
    $region32: #{bottleneck_forward.5} parent=5 // pred_fallthru
      _
    %p247 = scmp.le.s32.totalorder 1, %s13
    %p248 = scmp.lt.s32.totalorder %s13, 3
    %p249 = pnand %p247, %p248
    %p250 = pneg %p249
    // Predicated region
    $region37: #{bottleneck_forward.5} parent=5 // pred_check
      _
    $region38: #{bottleneck_forward.5} parent=5 // pred_check_branch
      %252 = sbr.rel (%p249) target = $region40
    $region39: #{bottleneck_forward.5} parent=5 // pred_region
      %s253 = ssub.s32 %s13, 1
      %p254 = scmp.lt.s32.totalorder %s22, 1
      %s255 = scalar_select %p254, %s22, 1
      %s256 = smul.addr %s255, 90
      %s257 = smul.addr %s256, 4
      %s258 = scalar_lea.vmem %s0, %s257
      %p259 = pneg %p51
      %p260 = pneg %p48
      %p261 = pneg %p72
      %p262 = pneg %p69
      %p263 = pneg %p93
      %p264 = pneg %p90
      %p265 = scmp.lt.s32.totalorder %s23, 0
      %s266 = scalar_select %p265, %s23, 0
      %s267 = smul.addr %s266, 4
      %s268 = scalar_lea.vmem %s3, %s267
      %p269 = pneg %p119
      %p270 = pneg %p116
      %p271 = scmp.lt.s32.totalorder %s23, 0
      %s272 = scalar_select %p271, %s23, 0
      %s273 = scalar_lea.vmem %s4, %s272
      %p274 = pneg %p145
      %p275 = pneg %p142
      %p276 = pneg %p173
      %p277 = pneg %p170
      %p278 = scmp.lt.s32.totalorder %s22, 1
      %s279 = scalar_select %p278, %s22, 1
      %p280 = scmp.lt.s32.totalorder %s23, 0
      %s281 = scalar_select %p280, %s23, 0
      %s282 = smul.addr %s279, 72
      %s283 = sadd.s32 %s281, %s282
      %s284 = smul.addr %s283, 4
      %s285 = scalar_lea.vmem %s5, %s284
      %p286 = pneg %p201
      %p287 = pneg %p198
      %p288 = scmp.lt.s32.totalorder %s22, 1
      %s289 = scalar_select %p288, %s22, 1
      %p290 = scmp.lt.s32.totalorder %s23, 0
      %s291 = scalar_select %p290, %s23, 0
      %s292 = sadd.s32 %s291, %s289
      %s293 = smul.addr %s292, 2
      %s294 = scalar_lea.vmem %s6, %s293
      %p295 = scmp.lt.s32.totalorder %s22, 1
      %s296 = scalar_select %p295, %s22, 1
      %s297 = smul.addr %s296, 90
      %s298 = smul.addr %s297, 4
      %s299 = scalar_lea.vmem %s0, %s298
      %p300 = scmp.lt.s32.totalorder %s23, 0
      %s301 = scalar_select %p300, %s23, 0
      %s302 = smul.addr %s301, 4
      %s303 = scalar_lea.vmem %s3, %s302
      %p304 = scmp.lt.s32.totalorder %s23, 0
      %s305 = scalar_select %p304, %s23, 0
      %s306 = scalar_lea.vmem %s4, %s305
      %p307 = scmp.lt.s32.totalorder %s22, 1
      %s308 = scalar_select %p307, %s22, 1
      %p309 = scmp.lt.s32.totalorder %s23, 0
      %s310 = scalar_select %p309, %s23, 0
      %s311 = smul.addr %s308, 72
      %s312 = sadd.s32 %s310, %s311
      %s313 = smul.addr %s312, 4
      %s314 = scalar_lea.vmem %s5, %s313
      %p315 = scmp.lt.s32.totalorder %s22, 1
      %s316 = scalar_select %p315, %s22, 1
      %p317 = scmp.lt.s32.totalorder %s23, 0
      %s318 = scalar_select %p317, %s23, 0
      %s319 = sadd.s32 %s318, %s316
      %s320 = smul.addr %s319, 2
      %s321 = scalar_lea.vmem %s6, %s320
      %v323 = vld [vmem:[%s299] sm:$0xf]
      %v324 = vld [vmem:[%s299 + $0x4] sm:$0xf]
      %v325 = vld [vmem:[%s299 + $0x8] sm:$0xf]
      %v326 = vld [vmem:[%s299 + $0xc] sm:$0xf]
      %v327 = vld [vmem:[%s299 + $0x10] sm:$0x1]
      %v328 = vld [vmem:[%s299 + $0x14] sm:$0xf]
      %v329 = vld [vmem:[%s299 + $0x18] sm:$0xf]
      %v330 = vld [vmem:[%s299 + $0x1c] sm:$0xf]
      %v331 = vld [vmem:[%s299 + $0x20] sm:$0xf]
      %v332 = vld [vmem:[%s299 + $0x24] sm:$0x1]
      %v333 = vld [vmem:[%s299 + $0x28] sm:$0xf]
      %v334 = vld [vmem:[%s299 + $0x2c] sm:$0xf]
      %v335 = vld [vmem:[%s299 + $0x30] sm:$0xf]
      %v336 = vld [vmem:[%s299 + $0x34] sm:$0xf]
      %v337 = vld [vmem:[%s299 + $0x38] sm:$0x1]
      %v338 = vld [vmem:[%s299 + $0x3c] sm:$0xf]
      %v339 = vld [vmem:[%s299 + $0x40] sm:$0xf]
      %v340 = vld [vmem:[%s299 + $0x44] sm:$0xf]
      %v341 = vld [vmem:[%s299 + $0x48] sm:$0xf]
      %v342 = vld [vmem:[%s299 + $0x4c] sm:$0x1]
      %v343 = vld [vmem:[%s299 + $0x50] sm:$0xf]
      %v344 = vld [vmem:[%s299 + $0x54] sm:$0xf]
      %v345 = vld [vmem:[%s299 + $0x58] sm:$0xf]
      %v346 = vld [vmem:[%s299 + $0x5c] sm:$0xf]
      %v347 = vld [vmem:[%s299 + $0x60] sm:$0x1]
      %v348 = vld [vmem:[%s299 + $0x64] sm:$0xf]
      %v349 = vld [vmem:[%s299 + $0x68] sm:$0xf]
      %v350 = vld [vmem:[%s299 + $0x6c] sm:$0xf]
      %v351 = vld [vmem:[%s299 + $0x70] sm:$0xf]
      %v352 = vld [vmem:[%s299 + $0x74] sm:$0x1]
      %v353 = vld [vmem:[%s299 + $0x78] sm:$0xf]
      %v354 = vld [vmem:[%s299 + $0x7c] sm:$0xf]
      %v355 = vld [vmem:[%s299 + $0x80] sm:$0xf]
      %v356 = vld [vmem:[%s299 + $0x84] sm:$0xf]
      %v357 = vld [vmem:[%s299 + $0x88] sm:$0x1]
      %v358 = vld [vmem:[%s299 + $0x8c] sm:$0xf]
      %v359 = vld [vmem:[%s299 + $0x90] sm:$0xf]
      %v360 = vld [vmem:[%s299 + $0x94] sm:$0xf]
      %v361 = vld [vmem:[%s299 + $0x98] sm:$0xf]
      %v362 = vld [vmem:[%s299 + $0x9c] sm:$0x1]
      %v363 = vld [vmem:[%s299 + $0xa0] sm:$0xf]
      %v364 = vld [vmem:[%s299 + $0xa4] sm:$0xf]
      %v365 = vld [vmem:[%s299 + $0xa8] sm:$0xf]
      %v366 = vld [vmem:[%s299 + $0xac] sm:$0xf]
      %v367 = vld [vmem:[%s299 + $0xb0] sm:$0x1]
      %v368 = vld [vmem:[%s299 + $0xb4] sm:$0xf]
      %v369 = vld [vmem:[%s299 + $0xb8] sm:$0xf]
      %v370 = vld [vmem:[%s299 + $0xbc] sm:$0xf]
      %v371 = vld [vmem:[%s299 + $0xc0] sm:$0xf]
      %v372 = vld [vmem:[%s299 + $0xc4] sm:$0x1]
      %v373 = vld [vmem:[%s299 + $0xc8] sm:$0xf]
      %v374 = vld [vmem:[%s299 + $0xcc] sm:$0xf]
      %v375 = vld [vmem:[%s299 + $0xd0] sm:$0xf]
      %v376 = vld [vmem:[%s299 + $0xd4] sm:$0xf]
      %v377 = vld [vmem:[%s299 + $0xd8] sm:$0x1]
      %v378 = vld [vmem:[%s299 + $0xdc] sm:$0xf]
      %v379 = vld [vmem:[%s299 + $0xe0] sm:$0xf]
      %v380 = vld [vmem:[%s299 + $0xe4] sm:$0xf]
      %v381 = vld [vmem:[%s299 + $0xe8] sm:$0xf]
      %v382 = vld [vmem:[%s299 + $0xec] sm:$0x1]
      %v383 = vld [vmem:[%s299 + $0xf0] sm:$0xf]
      %v384 = vld [vmem:[%s299 + $0xf4] sm:$0xf]
      %v385 = vld [vmem:[%s299 + $0xf8] sm:$0xf]
      %v386 = vld [vmem:[%s299 + $0xfc] sm:$0xf]
      %v387 = vld [vmem:[%s299 + $0x100] sm:$0x1]
      %v388 = vld [vmem:[%s299 + $0x104] sm:$0xf]
      %v389 = vld [vmem:[%s299 + $0x108] sm:$0xf]
      %v390 = vld [vmem:[%s299 + $0x10c] sm:$0xf]
      %v391 = vld [vmem:[%s299 + $0x110] sm:$0xf]
      %v392 = vld [vmem:[%s299 + $0x114] sm:$0x1]
      %v393 = vld [vmem:[%s299 + $0x118] sm:$0xf]
      %v394 = vld [vmem:[%s299 + $0x11c] sm:$0xf]
      %v395 = vld [vmem:[%s299 + $0x120] sm:$0xf]
      %v396 = vld [vmem:[%s299 + $0x124] sm:$0xf]
      %v397 = vld [vmem:[%s299 + $0x128] sm:$0x1]
      %v398 = vld [vmem:[%s299 + $0x12c] sm:$0xf]
      %v399 = vld [vmem:[%s299 + $0x130] sm:$0xf]
      %v400 = vld [vmem:[%s299 + $0x134] sm:$0xf]
      %v401 = vld [vmem:[%s299 + $0x138] sm:$0xf]
      %v402 = vld [vmem:[%s299 + $0x13c] sm:$0x1]
      %v403 = vld [vmem:[%s299 + $0x140] sm:$0xf]
      %v404 = vld [vmem:[%s299 + $0x144] sm:$0xf]
      %v405 = vld [vmem:[%s299 + $0x148] sm:$0xf]
      %v406 = vld [vmem:[%s299 + $0x14c] sm:$0xf]
      %v407 = vld [vmem:[%s299 + $0x150] sm:$0x1]
      %v408 = vld [vmem:[%s299 + $0x154] sm:$0xf]
      %v409 = vld [vmem:[%s299 + $0x158] sm:$0xf]
      %v410 = vld [vmem:[%s299 + $0x15c] sm:$0xf]
      %v411 = vld [vmem:[%s299 + $0x160] sm:$0xf]
      %v412 = vld [vmem:[%s299 + $0x164] sm:$0x1]
      %v413 = vunpack.c.l.bf16 %v323
      %v414 = vunpack.c.l.bf16 %v324
      %v415 = vunpack.c.l.bf16 %v325
      %v416 = vunpack.c.l.bf16 %v326
      %v417 = vunpack.c.l.bf16 %v327
      %v418 = vunpack.c.l.bf16 %v328
      %v419 = vunpack.c.l.bf16 %v329
      %v420 = vunpack.c.l.bf16 %v330
      %v421 = vunpack.c.l.bf16 %v331
      %v422 = vunpack.c.l.bf16 %v332
      %v423 = vunpack.c.l.bf16 %v333
      %v424 = vunpack.c.l.bf16 %v334
      %v425 = vunpack.c.l.bf16 %v335
      %v426 = vunpack.c.l.bf16 %v336
      %v427 = vunpack.c.l.bf16 %v337
      %v428 = vunpack.c.l.bf16 %v338
      %v429 = vunpack.c.l.bf16 %v339
      %v430 = vunpack.c.l.bf16 %v340
      %v431 = vunpack.c.l.bf16 %v341
      %v432 = vunpack.c.l.bf16 %v342
      %v433 = vunpack.c.l.bf16 %v343
      %v434 = vunpack.c.l.bf16 %v344
      %v435 = vunpack.c.l.bf16 %v345
      %v436 = vunpack.c.l.bf16 %v346
      %v437 = vunpack.c.l.bf16 %v347
      %v438 = vunpack.c.l.bf16 %v348
      %v439 = vunpack.c.l.bf16 %v349
      %v440 = vunpack.c.l.bf16 %v350
      %v441 = vunpack.c.l.bf16 %v351
      %v442 = vunpack.c.l.bf16 %v352
      %v443 = vunpack.c.l.bf16 %v353
      %v444 = vunpack.c.l.bf16 %v354
      %v445 = vunpack.c.l.bf16 %v355
      %v446 = vunpack.c.l.bf16 %v356
      %v447 = vunpack.c.l.bf16 %v357
      %v448 = vunpack.c.l.bf16 %v358
      %v449 = vunpack.c.l.bf16 %v359
      %v450 = vunpack.c.l.bf16 %v360
      %v451 = vunpack.c.l.bf16 %v361
      %v452 = vunpack.c.l.bf16 %v362
      %v453 = vunpack.c.l.bf16 %v363
      %v454 = vunpack.c.l.bf16 %v364
      %v455 = vunpack.c.l.bf16 %v365
      %v456 = vunpack.c.l.bf16 %v366
      %v457 = vunpack.c.l.bf16 %v367
      %v458 = vunpack.c.l.bf16 %v368
      %v459 = vunpack.c.l.bf16 %v369
      %v460 = vunpack.c.l.bf16 %v370
      %v461 = vunpack.c.l.bf16 %v371
      %v462 = vunpack.c.l.bf16 %v372
      %v463 = vunpack.c.l.bf16 %v373
      %v464 = vunpack.c.l.bf16 %v374
      %v465 = vunpack.c.l.bf16 %v375
      %v466 = vunpack.c.l.bf16 %v376
      %v467 = vunpack.c.l.bf16 %v377
      %v468 = vunpack.c.l.bf16 %v378
      %v469 = vunpack.c.l.bf16 %v379
      %v470 = vunpack.c.l.bf16 %v380
      %v471 = vunpack.c.l.bf16 %v381
      %v472 = vunpack.c.l.bf16 %v382
      %v473 = vunpack.c.l.bf16 %v383
      %v474 = vunpack.c.l.bf16 %v384
      %v475 = vunpack.c.l.bf16 %v385
      %v476 = vunpack.c.l.bf16 %v386
      %v477 = vunpack.c.l.bf16 %v387
      %v478 = vunpack.c.l.bf16 %v388
      %v479 = vunpack.c.l.bf16 %v389
      %v480 = vunpack.c.l.bf16 %v390
      %v481 = vunpack.c.l.bf16 %v391
      %v482 = vunpack.c.l.bf16 %v392
      %v483 = vunpack.c.l.bf16 %v393
      %v484 = vunpack.c.l.bf16 %v394
      %v485 = vunpack.c.l.bf16 %v395
      %v486 = vunpack.c.l.bf16 %v396
      %v487 = vunpack.c.l.bf16 %v397
      %v488 = vunpack.c.l.bf16 %v398
      %v489 = vunpack.c.l.bf16 %v399
      %v490 = vunpack.c.l.bf16 %v400
      %v491 = vunpack.c.l.bf16 %v401
      %v492 = vunpack.c.l.bf16 %v402
      %v493 = vunpack.c.l.bf16 %v403
      %v494 = vunpack.c.l.bf16 %v404
      %v495 = vunpack.c.l.bf16 %v405
      %v496 = vunpack.c.l.bf16 %v406
      %v497 = vunpack.c.l.bf16 %v407
      %v498 = vunpack.c.l.bf16 %v408
      %v499 = vunpack.c.l.bf16 %v409
      %v500 = vunpack.c.l.bf16 %v410
      %v501 = vunpack.c.l.bf16 %v411
      %v502 = vunpack.c.l.bf16 %v412
      %v503 = vld [vmem:[%s1] sm:$0x1]
      %v505 = vlaneseq
      %v506 = vshrl.u32 %v505, 7
      %v507 = vsub.s32 0, %v506
      %v508 = vrot.slane %v503, %v507
      %v510 = vmul.f32 %v413, %v508
      %v511 = vmul.f32 %v414, %v508
      %v512 = vmul.f32 %v415, %v508
      %v513 = vmul.f32 %v416, %v508
      %v514 = vmul.f32 %v417, %v508
      %v515 = vmul.f32 %v418, %v508
      %v516 = vmul.f32 %v419, %v508
      %v517 = vmul.f32 %v420, %v508
      %v518 = vmul.f32 %v421, %v508
      %v519 = vmul.f32 %v422, %v508
      %v520 = vmul.f32 %v423, %v508
      %v521 = vmul.f32 %v424, %v508
      %v522 = vmul.f32 %v425, %v508
      %v523 = vmul.f32 %v426, %v508
      %v524 = vmul.f32 %v427, %v508
      %v525 = vmul.f32 %v428, %v508
      %v526 = vmul.f32 %v429, %v508
      %v527 = vmul.f32 %v430, %v508
      %v528 = vmul.f32 %v431, %v508
      %v529 = vmul.f32 %v432, %v508
      %v530 = vmul.f32 %v433, %v508
      %v531 = vmul.f32 %v434, %v508
      %v532 = vmul.f32 %v435, %v508
      %v533 = vmul.f32 %v436, %v508
      %v534 = vmul.f32 %v437, %v508
      %v535 = vmul.f32 %v438, %v508
      %v536 = vmul.f32 %v439, %v508
      %v537 = vmul.f32 %v440, %v508
      %v538 = vmul.f32 %v441, %v508
      %v539 = vmul.f32 %v442, %v508
      %v540 = vmul.f32 %v443, %v508
      %v541 = vmul.f32 %v444, %v508
      %v542 = vmul.f32 %v445, %v508
      %v543 = vmul.f32 %v446, %v508
      %v544 = vmul.f32 %v447, %v508
      %v545 = vmul.f32 %v448, %v508
      %v546 = vmul.f32 %v449, %v508
      %v547 = vmul.f32 %v450, %v508
      %v548 = vmul.f32 %v451, %v508
      %v549 = vmul.f32 %v452, %v508
      %v550 = vmul.f32 %v453, %v508
      %v551 = vmul.f32 %v454, %v508
      %v552 = vmul.f32 %v455, %v508
      %v553 = vmul.f32 %v456, %v508
      %v554 = vmul.f32 %v457, %v508
      %v555 = vmul.f32 %v458, %v508
      %v556 = vmul.f32 %v459, %v508
      %v557 = vmul.f32 %v460, %v508
      %v558 = vmul.f32 %v461, %v508
      %v559 = vmul.f32 %v462, %v508
      %v560 = vmul.f32 %v463, %v508
      %v561 = vmul.f32 %v464, %v508
      %v562 = vmul.f32 %v465, %v508
      %v563 = vmul.f32 %v466, %v508
      %v564 = vmul.f32 %v467, %v508
      %v565 = vmul.f32 %v468, %v508
      %v566 = vmul.f32 %v469, %v508
      %v567 = vmul.f32 %v470, %v508
      %v568 = vmul.f32 %v471, %v508
      %v569 = vmul.f32 %v472, %v508
      %v570 = vmul.f32 %v473, %v508
      %v571 = vmul.f32 %v474, %v508
      %v572 = vmul.f32 %v475, %v508
      %v573 = vmul.f32 %v476, %v508
      %v574 = vmul.f32 %v477, %v508
      %v575 = vmul.f32 %v478, %v508
      %v576 = vmul.f32 %v479, %v508
      %v577 = vmul.f32 %v480, %v508
      %v578 = vmul.f32 %v481, %v508
      %v579 = vmul.f32 %v482, %v508
      %v580 = vmul.f32 %v483, %v508
      %v581 = vmul.f32 %v484, %v508
      %v582 = vmul.f32 %v485, %v508
      %v583 = vmul.f32 %v486, %v508
      %v584 = vmul.f32 %v487, %v508
      %v585 = vmul.f32 %v488, %v508
      %v586 = vmul.f32 %v489, %v508
      %v587 = vmul.f32 %v490, %v508
      %v588 = vmul.f32 %v491, %v508
      %v589 = vmul.f32 %v492, %v508
      %v590 = vmul.f32 %v493, %v508
      %v591 = vmul.f32 %v494, %v508
      %v592 = vmul.f32 %v495, %v508
      %v593 = vmul.f32 %v496, %v508
      %v594 = vmul.f32 %v497, %v508
      %v595 = vmul.f32 %v498, %v508
      %v596 = vmul.f32 %v499, %v508
      %v597 = vmul.f32 %v500, %v508
      %v598 = vmul.f32 %v501, %v508
      %v599 = vmul.f32 %v502, %v508
      %v600 = vld [vmem:[%s2] sm:$0x1]
      %v602 = vlaneseq
      %v603 = vshrl.u32 %v602, 7
      %v604 = vsub.s32 0, %v603
      %v605 = vrot.slane %v600, %v604
      %v607 = vadd.f32 %v510, %v605
      %v608 = vadd.f32 %v511, %v605
      %v609 = vadd.f32 %v512, %v605
      %v610 = vadd.f32 %v513, %v605
      %v611 = vadd.f32 %v514, %v605
      %v612 = vadd.f32 %v515, %v605
      %v613 = vadd.f32 %v516, %v605
      %v614 = vadd.f32 %v517, %v605
      %v615 = vadd.f32 %v518, %v605
      %v616 = vadd.f32 %v519, %v605
      %v617 = vadd.f32 %v520, %v605
      %v618 = vadd.f32 %v521, %v605
      %v619 = vadd.f32 %v522, %v605
      %v620 = vadd.f32 %v523, %v605
      %v621 = vadd.f32 %v524, %v605
      %v622 = vadd.f32 %v525, %v605
      %v623 = vadd.f32 %v526, %v605
      %v624 = vadd.f32 %v527, %v605
      %v625 = vadd.f32 %v528, %v605
      %v626 = vadd.f32 %v529, %v605
      %v627 = vadd.f32 %v530, %v605
      %v628 = vadd.f32 %v531, %v605
      %v629 = vadd.f32 %v532, %v605
      %v630 = vadd.f32 %v533, %v605
      %v631 = vadd.f32 %v534, %v605
      %v632 = vadd.f32 %v535, %v605
      %v633 = vadd.f32 %v536, %v605
      %v634 = vadd.f32 %v537, %v605
      %v635 = vadd.f32 %v538, %v605
      %v636 = vadd.f32 %v539, %v605
      %v637 = vadd.f32 %v540, %v605
      %v638 = vadd.f32 %v541, %v605
      %v639 = vadd.f32 %v542, %v605
      %v640 = vadd.f32 %v543, %v605
      %v641 = vadd.f32 %v544, %v605
      %v642 = vadd.f32 %v545, %v605
      %v643 = vadd.f32 %v546, %v605
      %v644 = vadd.f32 %v547, %v605
      %v645 = vadd.f32 %v548, %v605
      %v646 = vadd.f32 %v549, %v605
      %v647 = vadd.f32 %v550, %v605
      %v648 = vadd.f32 %v551, %v605
      %v649 = vadd.f32 %v552, %v605
      %v650 = vadd.f32 %v553, %v605
      %v651 = vadd.f32 %v554, %v605
      %v652 = vadd.f32 %v555, %v605
      %v653 = vadd.f32 %v556, %v605
      %v654 = vadd.f32 %v557, %v605
      %v655 = vadd.f32 %v558, %v605
      %v656 = vadd.f32 %v559, %v605
      %v657 = vadd.f32 %v560, %v605
      %v658 = vadd.f32 %v561, %v605
      %v659 = vadd.f32 %v562, %v605
      %v660 = vadd.f32 %v563, %v605
      %v661 = vadd.f32 %v564, %v605
      %v662 = vadd.f32 %v565, %v605
      %v663 = vadd.f32 %v566, %v605
      %v664 = vadd.f32 %v567, %v605
      %v665 = vadd.f32 %v568, %v605
      %v666 = vadd.f32 %v569, %v605
      %v667 = vadd.f32 %v570, %v605
      %v668 = vadd.f32 %v571, %v605
      %v669 = vadd.f32 %v572, %v605
      %v670 = vadd.f32 %v573, %v605
      %v671 = vadd.f32 %v574, %v605
      %v672 = vadd.f32 %v575, %v605
      %v673 = vadd.f32 %v576, %v605
      %v674 = vadd.f32 %v577, %v605
      %v675 = vadd.f32 %v578, %v605
      %v676 = vadd.f32 %v579, %v605
      %v677 = vadd.f32 %v580, %v605
      %v678 = vadd.f32 %v581, %v605
      %v679 = vadd.f32 %v582, %v605
      %v680 = vadd.f32 %v583, %v605
      %v681 = vadd.f32 %v584, %v605
      %v682 = vadd.f32 %v585, %v605
      %v683 = vadd.f32 %v586, %v605
      %v684 = vadd.f32 %v587, %v605
      %v685 = vadd.f32 %v588, %v605
      %v686 = vadd.f32 %v589, %v605
      %v687 = vadd.f32 %v590, %v605
      %v688 = vadd.f32 %v591, %v605
      %v689 = vadd.f32 %v592, %v605
      %v690 = vadd.f32 %v593, %v605
      %v691 = vadd.f32 %v594, %v605
      %v692 = vadd.f32 %v595, %v605
      %v693 = vadd.f32 %v596, %v605
      %v694 = vadd.f32 %v597, %v605
      %v695 = vadd.f32 %v598, %v605
      %v696 = vadd.f32 %v599, %v605
      %v697 = vmax.f32 %v607, 0.0
      %v698 = vmax.f32 %v608, 0.0
      %v699 = vmax.f32 %v609, 0.0
      %v700 = vmax.f32 %v610, 0.0
      %v701 = vmax.f32 %v611, 0.0
      %v702 = vmax.f32 %v612, 0.0
      %v703 = vmax.f32 %v613, 0.0
      %v704 = vmax.f32 %v614, 0.0
      %v705 = vmax.f32 %v615, 0.0
      %v706 = vmax.f32 %v616, 0.0
      %v707 = vmax.f32 %v617, 0.0
      %v708 = vmax.f32 %v618, 0.0
      %v709 = vmax.f32 %v619, 0.0
      %v710 = vmax.f32 %v620, 0.0
      %v711 = vmax.f32 %v621, 0.0
      %v712 = vmax.f32 %v622, 0.0
      %v713 = vmax.f32 %v623, 0.0
      %v714 = vmax.f32 %v624, 0.0
      %v715 = vmax.f32 %v625, 0.0
      %v716 = vmax.f32 %v626, 0.0
      %v717 = vmax.f32 %v627, 0.0
      %v718 = vmax.f32 %v628, 0.0
      %v719 = vmax.f32 %v629, 0.0
      %v720 = vmax.f32 %v630, 0.0
      %v721 = vmax.f32 %v631, 0.0
      %v722 = vmax.f32 %v632, 0.0
      %v723 = vmax.f32 %v633, 0.0
      %v724 = vmax.f32 %v634, 0.0
      %v725 = vmax.f32 %v635, 0.0
      %v726 = vmax.f32 %v636, 0.0
      %v727 = vmax.f32 %v637, 0.0
      %v728 = vmax.f32 %v638, 0.0
      %v729 = vmax.f32 %v639, 0.0
      %v730 = vmax.f32 %v640, 0.0
      %v731 = vmax.f32 %v641, 0.0
      %v732 = vmax.f32 %v642, 0.0
      %v733 = vmax.f32 %v643, 0.0
      %v734 = vmax.f32 %v644, 0.0
      %v735 = vmax.f32 %v645, 0.0
      %v736 = vmax.f32 %v646, 0.0
      %v737 = vmax.f32 %v647, 0.0
      %v738 = vmax.f32 %v648, 0.0
      %v739 = vmax.f32 %v649, 0.0
      %v740 = vmax.f32 %v650, 0.0
      %v741 = vmax.f32 %v651, 0.0
      %v742 = vmax.f32 %v652, 0.0
      %v743 = vmax.f32 %v653, 0.0
      %v744 = vmax.f32 %v654, 0.0
      %v745 = vmax.f32 %v655, 0.0
      %v746 = vmax.f32 %v656, 0.0
      %v747 = vmax.f32 %v657, 0.0
      %v748 = vmax.f32 %v658, 0.0
      %v749 = vmax.f32 %v659, 0.0
      %v750 = vmax.f32 %v660, 0.0
      %v751 = vmax.f32 %v661, 0.0
      %v752 = vmax.f32 %v662, 0.0
      %v753 = vmax.f32 %v663, 0.0
      %v754 = vmax.f32 %v664, 0.0
      %v755 = vmax.f32 %v665, 0.0
      %v756 = vmax.f32 %v666, 0.0
      %v757 = vmax.f32 %v667, 0.0
      %v758 = vmax.f32 %v668, 0.0
      %v759 = vmax.f32 %v669, 0.0
      %v760 = vmax.f32 %v670, 0.0
      %v761 = vmax.f32 %v671, 0.0
      %v762 = vmax.f32 %v672, 0.0
      %v763 = vmax.f32 %v673, 0.0
      %v764 = vmax.f32 %v674, 0.0
      %v765 = vmax.f32 %v675, 0.0
      %v766 = vmax.f32 %v676, 0.0
      %v767 = vmax.f32 %v677, 0.0
      %v768 = vmax.f32 %v678, 0.0
      %v769 = vmax.f32 %v679, 0.0
      %v770 = vmax.f32 %v680, 0.0
      %v771 = vmax.f32 %v681, 0.0
      %v772 = vmax.f32 %v682, 0.0
      %v773 = vmax.f32 %v683, 0.0
      %v774 = vmax.f32 %v684, 0.0
      %v775 = vmax.f32 %v685, 0.0
      %v776 = vmax.f32 %v686, 0.0
      %v777 = vmax.f32 %v687, 0.0
      %v778 = vmax.f32 %v688, 0.0
      %v779 = vmax.f32 %v689, 0.0
      %v780 = vmax.f32 %v690, 0.0
      %v781 = vmax.f32 %v691, 0.0
      %v782 = vmax.f32 %v692, 0.0
      %v783 = vmax.f32 %v693, 0.0
      %v784 = vmax.f32 %v694, 0.0
      %v785 = vmax.f32 %v695, 0.0
      %v786 = vmax.f32 %v696, 0.0
      %v787 = vlaneseq
      %v788 = vshrl.u32 %v787, 7
      %v789 = vadd.s32 %v788, 8
      %v790 = vadd.s32 %v788, 16
      %v791 = vadd.s32 %v788, 24
      %v792 = vadd.s32 %v788, 32
      %vm793 = vcmp.ge.s32.totalorder %v788, 1
      %vm794 = vcmp.ge.s32.totalorder %v789, 1
      %vm795 = vcmp.ge.s32.totalorder %v790, 1
      %vm796 = vcmp.ge.s32.totalorder %v791, 1
      %vm797 = vcmp.ge.s32.totalorder %v792, 1
      %vm798 = vcmp.le.s32.totalorder %v788, 18
      %vm799 = vcmp.le.s32.totalorder %v789, 18
      %vm800 = vcmp.le.s32.totalorder %v790, 18
      %vm801 = vcmp.le.s32.totalorder %v791, 18
      %vm802 = vcmp.le.s32.totalorder %v792, 18
      %vm803 = vmand %vm793, %vm798
      %vm804 = vmand %vm794, %vm799
      %vm805 = vmand %vm795, %vm800
      %vm806 = vmand %vm796, %vm801
      %vm807 = vmand %vm797, %vm802
      %v808 = vsel %vm803, 1, 0
      %v809 = vsel %vm804, 1, 0
      %v810 = vsel %vm805, 1, 0
      %v811 = vsel %vm806, 1, 0
      %v812 = vsel %vm807, 1, 0
      %vm813 = vcmp.eq.s32.totalorder %v808, 1
      %vm814 = vcmp.eq.s32.totalorder %v809, 1
      %vm815 = vcmp.eq.s32.totalorder %v810, 1
      %vm816 = vcmp.eq.s32.totalorder %v811, 1
      %vm817 = vcmp.eq.s32.totalorder %v812, 1
      %v818 = vsel %vm813, %v697, 0.0
      %v819 = vsel %vm814, %v698, 0.0
      %v820 = vsel %vm815, %v699, 0.0
      %v821 = vsel %vm816, %v700, 0.0
      %v822 = vsel %vm817, %v701, 0.0
      %v823 = vsel %vm813, %v702, 0.0
      %v824 = vsel %vm814, %v703, 0.0
      %v825 = vsel %vm815, %v704, 0.0
      %v826 = vsel %vm816, %v705, 0.0
      %v827 = vsel %vm817, %v706, 0.0
      %v828 = vsel %vm813, %v707, 0.0
      %v829 = vsel %vm814, %v708, 0.0
      %v830 = vsel %vm815, %v709, 0.0
      %v831 = vsel %vm816, %v710, 0.0
      %v832 = vsel %vm817, %v711, 0.0
      %v833 = vsel %vm813, %v712, 0.0
      %v834 = vsel %vm814, %v713, 0.0
      %v835 = vsel %vm815, %v714, 0.0
      %v836 = vsel %vm816, %v715, 0.0
      %v837 = vsel %vm817, %v716, 0.0
      %v838 = vsel %vm813, %v717, 0.0
      %v839 = vsel %vm814, %v718, 0.0
      %v840 = vsel %vm815, %v719, 0.0
      %v841 = vsel %vm816, %v720, 0.0
      %v842 = vsel %vm817, %v721, 0.0
      %v843 = vsel %vm813, %v722, 0.0
      %v844 = vsel %vm814, %v723, 0.0
      %v845 = vsel %vm815, %v724, 0.0
      %v846 = vsel %vm816, %v725, 0.0
      %v847 = vsel %vm817, %v726, 0.0
      %v848 = vsel %vm813, %v727, 0.0
      %v849 = vsel %vm814, %v728, 0.0
      %v850 = vsel %vm815, %v729, 0.0
      %v851 = vsel %vm816, %v730, 0.0
      %v852 = vsel %vm817, %v731, 0.0
      %v853 = vsel %vm813, %v732, 0.0
      %v854 = vsel %vm814, %v733, 0.0
      %v855 = vsel %vm815, %v734, 0.0
      %v856 = vsel %vm816, %v735, 0.0
      %v857 = vsel %vm817, %v736, 0.0
      %v858 = vsel %vm813, %v737, 0.0
      %v859 = vsel %vm814, %v738, 0.0
      %v860 = vsel %vm815, %v739, 0.0
      %v861 = vsel %vm816, %v740, 0.0
      %v862 = vsel %vm817, %v741, 0.0
      %v863 = vsel %vm813, %v742, 0.0
      %v864 = vsel %vm814, %v743, 0.0
      %v865 = vsel %vm815, %v744, 0.0
      %v866 = vsel %vm816, %v745, 0.0
      %v867 = vsel %vm817, %v746, 0.0
      %v868 = vsel %vm813, %v747, 0.0
      %v869 = vsel %vm814, %v748, 0.0
      %v870 = vsel %vm815, %v749, 0.0
      %v871 = vsel %vm816, %v750, 0.0
      %v872 = vsel %vm817, %v751, 0.0
      %v873 = vsel %vm813, %v752, 0.0
      %v874 = vsel %vm814, %v753, 0.0
      %v875 = vsel %vm815, %v754, 0.0
      %v876 = vsel %vm816, %v755, 0.0
      %v877 = vsel %vm817, %v756, 0.0
      %v878 = vsel %vm813, %v757, 0.0
      %v879 = vsel %vm814, %v758, 0.0
      %v880 = vsel %vm815, %v759, 0.0
      %v881 = vsel %vm816, %v760, 0.0
      %v882 = vsel %vm817, %v761, 0.0
      %v883 = vsel %vm813, %v762, 0.0
      %v884 = vsel %vm814, %v763, 0.0
      %v885 = vsel %vm815, %v764, 0.0
      %v886 = vsel %vm816, %v765, 0.0
      %v887 = vsel %vm817, %v766, 0.0
      %v888 = vsel %vm813, %v767, 0.0
      %v889 = vsel %vm814, %v768, 0.0
      %v890 = vsel %vm815, %v769, 0.0
      %v891 = vsel %vm816, %v770, 0.0
      %v892 = vsel %vm817, %v771, 0.0
      %v893 = vsel %vm813, %v772, 0.0
      %v894 = vsel %vm814, %v773, 0.0
      %v895 = vsel %vm815, %v774, 0.0
      %v896 = vsel %vm816, %v775, 0.0
      %v897 = vsel %vm817, %v776, 0.0
      %v898 = vsel %vm813, %v777, 0.0
      %v899 = vsel %vm814, %v778, 0.0
      %v900 = vsel %vm815, %v779, 0.0
      %v901 = vsel %vm816, %v780, 0.0
      %v902 = vsel %vm817, %v781, 0.0
      %v903 = vsel %vm813, %v782, 0.0
      %v904 = vsel %vm814, %v783, 0.0
      %v905 = vsel %vm815, %v784, 0.0
      %v906 = vsel %vm816, %v785, 0.0
      %v907 = vsel %vm817, %v786, 0.0
      %vm998 = vcmask 1046528
      %v999 = vrot.slane %v818, 1
      %v1000 = vrot.slane %v819, 1
      %v1001 = vsel %vm998, %v999, %v1000
      %v1002 = vrot.slane %v820, 1
      %v1003 = vsel %vm998, %v1000, %v1002
      %v1004 = vrot.slane %v821, 1
      %v1005 = vsel %vm998, %v1002, %v1004
      %v1006 = vrot.slane %v822, 1
      %v1007 = vsel %vm998, %v1004, %v1006
      %v1008 = vrot.slane %v823, 1
      %v1009 = vrot.slane %v824, 1
      %v1010 = vsel %vm998, %v1008, %v1009
      %v1011 = vrot.slane %v825, 1
      %v1012 = vsel %vm998, %v1009, %v1011
      %v1013 = vrot.slane %v826, 1
      %v1014 = vsel %vm998, %v1011, %v1013
      %v1015 = vrot.slane %v827, 1
      %v1016 = vsel %vm998, %v1013, %v1015
      %v1017 = vrot.slane %v828, 1
      %v1018 = vrot.slane %v829, 1
      %v1019 = vsel %vm998, %v1017, %v1018
      %v1020 = vrot.slane %v830, 1
      %v1021 = vsel %vm998, %v1018, %v1020
      %v1022 = vrot.slane %v831, 1
      %v1023 = vsel %vm998, %v1020, %v1022
      %v1024 = vrot.slane %v832, 1
      %v1025 = vsel %vm998, %v1022, %v1024
      %v1026 = vrot.slane %v833, 1
      %v1027 = vrot.slane %v834, 1
      %v1028 = vsel %vm998, %v1026, %v1027
      %v1029 = vrot.slane %v835, 1
      %v1030 = vsel %vm998, %v1027, %v1029
      %v1031 = vrot.slane %v836, 1
      %v1032 = vsel %vm998, %v1029, %v1031
      %v1033 = vrot.slane %v837, 1
      %v1034 = vsel %vm998, %v1031, %v1033
      %v1035 = vrot.slane %v838, 1
      %v1036 = vrot.slane %v839, 1
      %v1037 = vsel %vm998, %v1035, %v1036
      %v1038 = vrot.slane %v840, 1
      %v1039 = vsel %vm998, %v1036, %v1038
      %v1040 = vrot.slane %v841, 1
      %v1041 = vsel %vm998, %v1038, %v1040
      %v1042 = vrot.slane %v842, 1
      %v1043 = vsel %vm998, %v1040, %v1042
      %v1044 = vrot.slane %v843, 1
      %v1045 = vrot.slane %v844, 1
      %v1046 = vsel %vm998, %v1044, %v1045
      %v1047 = vrot.slane %v845, 1
      %v1048 = vsel %vm998, %v1045, %v1047
      %v1049 = vrot.slane %v846, 1
      %v1050 = vsel %vm998, %v1047, %v1049
      %v1051 = vrot.slane %v847, 1
      %v1052 = vsel %vm998, %v1049, %v1051
      %v1053 = vrot.slane %v848, 1
      %v1054 = vrot.slane %v849, 1
      %v1055 = vsel %vm998, %v1053, %v1054
      %v1056 = vrot.slane %v850, 1
      %v1057 = vsel %vm998, %v1054, %v1056
      %v1058 = vrot.slane %v851, 1
      %v1059 = vsel %vm998, %v1056, %v1058
      %v1060 = vrot.slane %v852, 1
      %v1061 = vsel %vm998, %v1058, %v1060
      %v1062 = vrot.slane %v853, 1
      %v1063 = vrot.slane %v854, 1
      %v1064 = vsel %vm998, %v1062, %v1063
      %v1065 = vrot.slane %v855, 1
      %v1066 = vsel %vm998, %v1063, %v1065
      %v1067 = vrot.slane %v856, 1
      %v1068 = vsel %vm998, %v1065, %v1067
      %v1069 = vrot.slane %v857, 1
      %v1070 = vsel %vm998, %v1067, %v1069
      %v1071 = vrot.slane %v858, 1
      %v1072 = vrot.slane %v859, 1
      %v1073 = vsel %vm998, %v1071, %v1072
      %v1074 = vrot.slane %v860, 1
      %v1075 = vsel %vm998, %v1072, %v1074
      %v1076 = vrot.slane %v861, 1
      %v1077 = vsel %vm998, %v1074, %v1076
      %v1078 = vrot.slane %v862, 1
      %v1079 = vsel %vm998, %v1076, %v1078
      %v1080 = vrot.slane %v863, 1
      %v1081 = vrot.slane %v864, 1
      %v1082 = vsel %vm998, %v1080, %v1081
      %v1083 = vrot.slane %v865, 1
      %v1084 = vsel %vm998, %v1081, %v1083
      %v1085 = vrot.slane %v866, 1
      %v1086 = vsel %vm998, %v1083, %v1085
      %v1087 = vrot.slane %v867, 1
      %v1088 = vsel %vm998, %v1085, %v1087
      %v1089 = vrot.slane %v868, 1
      %v1090 = vrot.slane %v869, 1
      %v1091 = vsel %vm998, %v1089, %v1090
      %v1092 = vrot.slane %v870, 1
      %v1093 = vsel %vm998, %v1090, %v1092
      %v1094 = vrot.slane %v871, 1
      %v1095 = vsel %vm998, %v1092, %v1094
      %v1096 = vrot.slane %v872, 1
      %v1097 = vsel %vm998, %v1094, %v1096
      %v1098 = vrot.slane %v873, 1
      %v1099 = vrot.slane %v874, 1
      %v1100 = vsel %vm998, %v1098, %v1099
      %v1101 = vrot.slane %v875, 1
      %v1102 = vsel %vm998, %v1099, %v1101
      %v1103 = vrot.slane %v876, 1
      %v1104 = vsel %vm998, %v1101, %v1103
      %v1105 = vrot.slane %v877, 1
      %v1106 = vsel %vm998, %v1103, %v1105
      %v1107 = vrot.slane %v878, 1
      %v1108 = vrot.slane %v879, 1
      %v1109 = vsel %vm998, %v1107, %v1108
      %v1110 = vrot.slane %v880, 1
      %v1111 = vsel %vm998, %v1108, %v1110
      %v1112 = vrot.slane %v881, 1
      %v1113 = vsel %vm998, %v1110, %v1112
      %v1114 = vrot.slane %v882, 1
      %v1115 = vsel %vm998, %v1112, %v1114
      %v1116 = vrot.slane %v883, 1
      %v1117 = vrot.slane %v884, 1
      %v1118 = vsel %vm998, %v1116, %v1117
      %v1119 = vrot.slane %v885, 1
      %v1120 = vsel %vm998, %v1117, %v1119
      %v1121 = vrot.slane %v886, 1
      %v1122 = vsel %vm998, %v1119, %v1121
      %v1123 = vrot.slane %v887, 1
      %v1124 = vsel %vm998, %v1121, %v1123
      %v1125 = vrot.slane %v888, 1
      %v1126 = vrot.slane %v889, 1
      %v1127 = vsel %vm998, %v1125, %v1126
      %v1128 = vrot.slane %v890, 1
      %v1129 = vsel %vm998, %v1126, %v1128
      %v1130 = vrot.slane %v891, 1
      %v1131 = vsel %vm998, %v1128, %v1130
      %v1132 = vrot.slane %v892, 1
      %v1133 = vsel %vm998, %v1130, %v1132
      %v1134 = vrot.slane %v893, 1
      %v1135 = vrot.slane %v894, 1
      %v1136 = vsel %vm998, %v1134, %v1135
      %v1137 = vrot.slane %v895, 1
      %v1138 = vsel %vm998, %v1135, %v1137
      %v1139 = vrot.slane %v896, 1
      %v1140 = vsel %vm998, %v1137, %v1139
      %v1141 = vrot.slane %v897, 1
      %v1142 = vsel %vm998, %v1139, %v1141
      %v1143 = vrot.slane %v898, 1
      %v1144 = vrot.slane %v899, 1
      %v1145 = vsel %vm998, %v1143, %v1144
      %v1146 = vrot.slane %v900, 1
      %v1147 = vsel %vm998, %v1144, %v1146
      %v1148 = vrot.slane %v901, 1
      %v1149 = vsel %vm998, %v1146, %v1148
      %v1150 = vrot.slane %v902, 1
      %v1151 = vsel %vm998, %v1148, %v1150
      %v1152 = vrot.slane %v903, 1
      %v1153 = vrot.slane %v904, 1
      %v1154 = vsel %vm998, %v1152, %v1153
      %v1155 = vrot.slane %v905, 1
      %v1156 = vsel %vm998, %v1153, %v1155
      %v1157 = vrot.slane %v906, 1
      %v1158 = vsel %vm998, %v1155, %v1157
      %v1159 = vrot.slane %v907, 1
      %v1160 = vsel %vm998, %v1157, %v1159
      %vm1233 = vcmask 1045504
      %v1234 = vrot.slane %v818, 2
      %v1235 = vrot.slane %v819, 2
      %v1236 = vsel %vm1233, %v1234, %v1235
      %v1237 = vrot.slane %v820, 2
      %v1238 = vsel %vm1233, %v1235, %v1237
      %v1239 = vrot.slane %v821, 2
      %v1240 = vsel %vm1233, %v1237, %v1239
      %v1241 = vrot.slane %v822, 2
      %v1242 = vsel %vm1233, %v1239, %v1241
      %v1243 = vrot.slane %v823, 2
      %v1244 = vrot.slane %v824, 2
      %v1245 = vsel %vm1233, %v1243, %v1244
      %v1246 = vrot.slane %v825, 2
      %v1247 = vsel %vm1233, %v1244, %v1246
      %v1248 = vrot.slane %v826, 2
      %v1249 = vsel %vm1233, %v1246, %v1248
      %v1250 = vrot.slane %v827, 2
      %v1251 = vsel %vm1233, %v1248, %v1250
      %v1252 = vrot.slane %v828, 2
      %v1253 = vrot.slane %v829, 2
      %v1254 = vsel %vm1233, %v1252, %v1253
      %v1255 = vrot.slane %v830, 2
      %v1256 = vsel %vm1233, %v1253, %v1255
      %v1257 = vrot.slane %v831, 2
      %v1258 = vsel %vm1233, %v1255, %v1257
      %v1259 = vrot.slane %v832, 2
      %v1260 = vsel %vm1233, %v1257, %v1259
      %v1261 = vrot.slane %v833, 2
      %v1262 = vrot.slane %v834, 2
      %v1263 = vsel %vm1233, %v1261, %v1262
      %v1264 = vrot.slane %v835, 2
      %v1265 = vsel %vm1233, %v1262, %v1264
      %v1266 = vrot.slane %v836, 2
      %v1267 = vsel %vm1233, %v1264, %v1266
      %v1268 = vrot.slane %v837, 2
      %v1269 = vsel %vm1233, %v1266, %v1268
      %v1270 = vrot.slane %v838, 2
      %v1271 = vrot.slane %v839, 2
      %v1272 = vsel %vm1233, %v1270, %v1271
      %v1273 = vrot.slane %v840, 2
      %v1274 = vsel %vm1233, %v1271, %v1273
      %v1275 = vrot.slane %v841, 2
      %v1276 = vsel %vm1233, %v1273, %v1275
      %v1277 = vrot.slane %v842, 2
      %v1278 = vsel %vm1233, %v1275, %v1277
      %v1279 = vrot.slane %v843, 2
      %v1280 = vrot.slane %v844, 2
      %v1281 = vsel %vm1233, %v1279, %v1280
      %v1282 = vrot.slane %v845, 2
      %v1283 = vsel %vm1233, %v1280, %v1282
      %v1284 = vrot.slane %v846, 2
      %v1285 = vsel %vm1233, %v1282, %v1284
      %v1286 = vrot.slane %v847, 2
      %v1287 = vsel %vm1233, %v1284, %v1286
      %v1288 = vrot.slane %v848, 2
      %v1289 = vrot.slane %v849, 2
      %v1290 = vsel %vm1233, %v1288, %v1289
      %v1291 = vrot.slane %v850, 2
      %v1292 = vsel %vm1233, %v1289, %v1291
      %v1293 = vrot.slane %v851, 2
      %v1294 = vsel %vm1233, %v1291, %v1293
      %v1295 = vrot.slane %v852, 2
      %v1296 = vsel %vm1233, %v1293, %v1295
      %v1297 = vrot.slane %v853, 2
      %v1298 = vrot.slane %v854, 2
      %v1299 = vsel %vm1233, %v1297, %v1298
      %v1300 = vrot.slane %v855, 2
      %v1301 = vsel %vm1233, %v1298, %v1300
      %v1302 = vrot.slane %v856, 2
      %v1303 = vsel %vm1233, %v1300, %v1302
      %v1304 = vrot.slane %v857, 2
      %v1305 = vsel %vm1233, %v1302, %v1304
      %v1306 = vrot.slane %v858, 2
      %v1307 = vrot.slane %v859, 2
      %v1308 = vsel %vm1233, %v1306, %v1307
      %v1309 = vrot.slane %v860, 2
      %v1310 = vsel %vm1233, %v1307, %v1309
      %v1311 = vrot.slane %v861, 2
      %v1312 = vsel %vm1233, %v1309, %v1311
      %v1313 = vrot.slane %v862, 2
      %v1314 = vsel %vm1233, %v1311, %v1313
      %v1315 = vrot.slane %v863, 2
      %v1316 = vrot.slane %v864, 2
      %v1317 = vsel %vm1233, %v1315, %v1316
      %v1318 = vrot.slane %v865, 2
      %v1319 = vsel %vm1233, %v1316, %v1318
      %v1320 = vrot.slane %v866, 2
      %v1321 = vsel %vm1233, %v1318, %v1320
      %v1322 = vrot.slane %v867, 2
      %v1323 = vsel %vm1233, %v1320, %v1322
      %v1324 = vrot.slane %v868, 2
      %v1325 = vrot.slane %v869, 2
      %v1326 = vsel %vm1233, %v1324, %v1325
      %v1327 = vrot.slane %v870, 2
      %v1328 = vsel %vm1233, %v1325, %v1327
      %v1329 = vrot.slane %v871, 2
      %v1330 = vsel %vm1233, %v1327, %v1329
      %v1331 = vrot.slane %v872, 2
      %v1332 = vsel %vm1233, %v1329, %v1331
      %v1333 = vrot.slane %v873, 2
      %v1334 = vrot.slane %v874, 2
      %v1335 = vsel %vm1233, %v1333, %v1334
      %v1336 = vrot.slane %v875, 2
      %v1337 = vsel %vm1233, %v1334, %v1336
      %v1338 = vrot.slane %v876, 2
      %v1339 = vsel %vm1233, %v1336, %v1338
      %v1340 = vrot.slane %v877, 2
      %v1341 = vsel %vm1233, %v1338, %v1340
      %v1342 = vrot.slane %v878, 2
      %v1343 = vrot.slane %v879, 2
      %v1344 = vsel %vm1233, %v1342, %v1343
      %v1345 = vrot.slane %v880, 2
      %v1346 = vsel %vm1233, %v1343, %v1345
      %v1347 = vrot.slane %v881, 2
      %v1348 = vsel %vm1233, %v1345, %v1347
      %v1349 = vrot.slane %v882, 2
      %v1350 = vsel %vm1233, %v1347, %v1349
      %v1351 = vrot.slane %v883, 2
      %v1352 = vrot.slane %v884, 2
      %v1353 = vsel %vm1233, %v1351, %v1352
      %v1354 = vrot.slane %v885, 2
      %v1355 = vsel %vm1233, %v1352, %v1354
      %v1356 = vrot.slane %v886, 2
      %v1357 = vsel %vm1233, %v1354, %v1356
      %v1358 = vrot.slane %v887, 2
      %v1359 = vsel %vm1233, %v1356, %v1358
      %v1360 = vrot.slane %v888, 2
      %v1361 = vrot.slane %v889, 2
      %v1362 = vsel %vm1233, %v1360, %v1361
      %v1363 = vrot.slane %v890, 2
      %v1364 = vsel %vm1233, %v1361, %v1363
      %v1365 = vrot.slane %v891, 2
      %v1366 = vsel %vm1233, %v1363, %v1365
      %v1367 = vrot.slane %v892, 2
      %v1368 = vsel %vm1233, %v1365, %v1367
      %v1369 = vrot.slane %v893, 2
      %v1370 = vrot.slane %v894, 2
      %v1371 = vsel %vm1233, %v1369, %v1370
      %v1372 = vrot.slane %v895, 2
      %v1373 = vsel %vm1233, %v1370, %v1372
      %v1374 = vrot.slane %v896, 2
      %v1375 = vsel %vm1233, %v1372, %v1374
      %v1376 = vrot.slane %v897, 2
      %v1377 = vsel %vm1233, %v1374, %v1376
      %v1378 = vrot.slane %v898, 2
      %v1379 = vrot.slane %v899, 2
      %v1380 = vsel %vm1233, %v1378, %v1379
      %v1381 = vrot.slane %v900, 2
      %v1382 = vsel %vm1233, %v1379, %v1381
      %v1383 = vrot.slane %v901, 2
      %v1384 = vsel %vm1233, %v1381, %v1383
      %v1385 = vrot.slane %v902, 2
      %v1386 = vsel %vm1233, %v1383, %v1385
      %v1387 = vrot.slane %v903, 2
      %v1388 = vrot.slane %v904, 2
      %v1389 = vsel %vm1233, %v1387, %v1388
      %v1390 = vrot.slane %v905, 2
      %v1391 = vsel %vm1233, %v1388, %v1390
      %v1392 = vrot.slane %v906, 2
      %v1393 = vsel %vm1233, %v1390, %v1392
      %v1394 = vrot.slane %v907, 2
      %v1395 = vsel %vm1233, %v1392, %v1394
      %v1468 = vpack.c.bf16 %v819, %v818
      %v1469 = vpack.c.bf16 %v1003, %v1001
      %v1470 = vpack.c.bf16 %v1238, %v1236
      %v1471 = vpack.c.bf16 %v821, %v820
      %v1472 = vpack.c.bf16 %v1007, %v1005
      %v1473 = vpack.c.bf16 %v1242, %v1240
      %v1474 = vpack.c.bf16 %v824, %v823
      %v1475 = vpack.c.bf16 %v1012, %v1010
      %v1476 = vpack.c.bf16 %v1247, %v1245
      %v1477 = vpack.c.bf16 %v826, %v825
      %v1478 = vpack.c.bf16 %v1016, %v1014
      %v1479 = vpack.c.bf16 %v1251, %v1249
      %v1480 = vpack.c.bf16 %v829, %v828
      %v1481 = vpack.c.bf16 %v1021, %v1019
      %v1482 = vpack.c.bf16 %v1256, %v1254
      %v1483 = vpack.c.bf16 %v831, %v830
      %v1484 = vpack.c.bf16 %v1025, %v1023
      %v1485 = vpack.c.bf16 %v1260, %v1258
      %v1486 = vpack.c.bf16 %v834, %v833
      %v1487 = vpack.c.bf16 %v1030, %v1028
      %v1488 = vpack.c.bf16 %v1265, %v1263
      %v1489 = vpack.c.bf16 %v836, %v835
      %v1490 = vpack.c.bf16 %v1034, %v1032
      %v1491 = vpack.c.bf16 %v1269, %v1267
      %v1492 = vpack.c.bf16 %v839, %v838
      %v1493 = vpack.c.bf16 %v1039, %v1037
      %v1494 = vpack.c.bf16 %v1274, %v1272
      %v1495 = vpack.c.bf16 %v841, %v840
      %v1496 = vpack.c.bf16 %v1043, %v1041
      %v1497 = vpack.c.bf16 %v1278, %v1276
      %v1498 = vpack.c.bf16 %v844, %v843
      %v1499 = vpack.c.bf16 %v1048, %v1046
      %v1500 = vpack.c.bf16 %v1283, %v1281
      %v1501 = vpack.c.bf16 %v846, %v845
      %v1502 = vpack.c.bf16 %v1052, %v1050
      %v1503 = vpack.c.bf16 %v1287, %v1285
      %v1504 = vpack.c.bf16 %v849, %v848
      %v1505 = vpack.c.bf16 %v1057, %v1055
      %v1506 = vpack.c.bf16 %v1292, %v1290
      %v1507 = vpack.c.bf16 %v851, %v850
      %v1508 = vpack.c.bf16 %v1061, %v1059
      %v1509 = vpack.c.bf16 %v1296, %v1294
      %v1510 = vpack.c.bf16 %v854, %v853
      %v1511 = vpack.c.bf16 %v1066, %v1064
      %v1512 = vpack.c.bf16 %v1301, %v1299
      %v1513 = vpack.c.bf16 %v856, %v855
      %v1514 = vpack.c.bf16 %v1070, %v1068
      %v1515 = vpack.c.bf16 %v1305, %v1303
      %v1516 = vpack.c.bf16 %v859, %v858
      %v1517 = vpack.c.bf16 %v1075, %v1073
      %v1518 = vpack.c.bf16 %v1310, %v1308
      %v1519 = vpack.c.bf16 %v861, %v860
      %v1520 = vpack.c.bf16 %v1079, %v1077
      %v1521 = vpack.c.bf16 %v1314, %v1312
      %v1522 = vpack.c.bf16 %v864, %v863
      %v1523 = vpack.c.bf16 %v1084, %v1082
      %v1524 = vpack.c.bf16 %v1319, %v1317
      %v1525 = vpack.c.bf16 %v866, %v865
      %v1526 = vpack.c.bf16 %v1088, %v1086
      %v1527 = vpack.c.bf16 %v1323, %v1321
      %v1528 = vpack.c.bf16 %v869, %v868
      %v1529 = vpack.c.bf16 %v1093, %v1091
      %v1530 = vpack.c.bf16 %v1328, %v1326
      %v1531 = vpack.c.bf16 %v871, %v870
      %v1532 = vpack.c.bf16 %v1097, %v1095
      %v1533 = vpack.c.bf16 %v1332, %v1330
      %v1534 = vpack.c.bf16 %v874, %v873
      %v1535 = vpack.c.bf16 %v1102, %v1100
      %v1536 = vpack.c.bf16 %v1337, %v1335
      %v1537 = vpack.c.bf16 %v876, %v875
      %v1538 = vpack.c.bf16 %v1106, %v1104
      %v1539 = vpack.c.bf16 %v1341, %v1339
      %v1540 = vpack.c.bf16 %v879, %v878
      %v1541 = vpack.c.bf16 %v1111, %v1109
      %v1542 = vpack.c.bf16 %v1346, %v1344
      %v1543 = vpack.c.bf16 %v881, %v880
      %v1544 = vpack.c.bf16 %v1115, %v1113
      %v1545 = vpack.c.bf16 %v1350, %v1348
      %v1546 = vpack.c.bf16 %v884, %v883
      %v1547 = vpack.c.bf16 %v1120, %v1118
      %v1548 = vpack.c.bf16 %v1355, %v1353
      %v1549 = vpack.c.bf16 %v886, %v885
      %v1550 = vpack.c.bf16 %v1124, %v1122
      %v1551 = vpack.c.bf16 %v1359, %v1357
      %v1552 = vpack.c.bf16 %v889, %v888
      %v1553 = vpack.c.bf16 %v1129, %v1127
      %v1554 = vpack.c.bf16 %v1364, %v1362
      %v1555 = vpack.c.bf16 %v891, %v890
      %v1556 = vpack.c.bf16 %v1133, %v1131
      %v1557 = vpack.c.bf16 %v1368, %v1366
      %v1558 = vpack.c.bf16 %v894, %v893
      %v1559 = vpack.c.bf16 %v1138, %v1136
      %v1560 = vpack.c.bf16 %v1373, %v1371
      %v1561 = vpack.c.bf16 %v896, %v895
      %v1562 = vpack.c.bf16 %v1142, %v1140
      %v1563 = vpack.c.bf16 %v1377, %v1375
      %v1564 = vpack.c.bf16 %v899, %v898
      %v1565 = vpack.c.bf16 %v1147, %v1145
      %v1566 = vpack.c.bf16 %v1382, %v1380
      %v1567 = vpack.c.bf16 %v901, %v900
      %v1568 = vpack.c.bf16 %v1151, %v1149
      %v1569 = vpack.c.bf16 %v1386, %v1384
      %v1570 = vpack.c.bf16 %v904, %v903
      %v1571 = vpack.c.bf16 %v1156, %v1154
      %v1572 = vpack.c.bf16 %v1391, %v1389
      %v1573 = vpack.c.bf16 %v906, %v905
      %v1574 = vpack.c.bf16 %v1160, %v1158
      %v1575 = vpack.c.bf16 %v1395, %v1393
      %s1576 = scalar_lea.vmem %s303, 192
      %v1577 = vld [vmem:[%s1576] sm:$0xf]
      %v1578 = vld [vmem:[%s1576 + $0x4] sm:$0xf]
      %v1579 = vld [vmem:[%s1576 + $0x8] sm:$0xf]
      %v1580 = vld [vmem:[%s1576 + $0xc] sm:$0xf]
      %v1581 = vld [vmem:[%s1576 + $0x10] sm:$0xf]
      %v1582 = vld [vmem:[%s1576 + $0x14] sm:$0xf]
      %v1583 = vld [vmem:[%s1576 + $0x18] sm:$0xf]
      %v1584 = vld [vmem:[%s1576 + $0x1c] sm:$0xf]
      %v1585 = vld [vmem:[%s1576 + $0x20] sm:$0xf]
      %v1586 = vld [vmem:[%s1576 + $0x24] sm:$0xf]
      %v1587 = vld [vmem:[%s1576 + $0x28] sm:$0xf]
      %v1588 = vld [vmem:[%s1576 + $0x2c] sm:$0xf]
      %v1589 = vld [vmem:[%s1576 + $0x30] sm:$0xf]
      %v1590 = vld [vmem:[%s1576 + $0x34] sm:$0xf]
      %v1591 = vld [vmem:[%s1576 + $0x38] sm:$0xf]
      %v1592 = vld [vmem:[%s1576 + $0x3c] sm:$0xf]
      %v1593 = vld [vmem:[%s1576 + $0x40] sm:$0xf]
      %v1594 = vld [vmem:[%s1576 + $0x44] sm:$0xf]
      %v1595 = vld [vmem:[%s1576 + $0x48] sm:$0xf]
      %v1596 = vld [vmem:[%s1576 + $0x4c] sm:$0xf]
      %v1597 = vld [vmem:[%s1576 + $0x50] sm:$0xf]
      %v1598 = vld [vmem:[%s1576 + $0x54] sm:$0xf]
      %v1599 = vld [vmem:[%s1576 + $0x58] sm:$0xf]
      %v1600 = vld [vmem:[%s1576 + $0x5c] sm:$0xf]
      %v1601 = vld [vmem:[%s1576 + $0x60] sm:$0xf]
      %v1602 = vld [vmem:[%s1576 + $0x64] sm:$0xf]
      %v1603 = vld [vmem:[%s1576 + $0x68] sm:$0xf]
      %v1604 = vld [vmem:[%s1576 + $0x6c] sm:$0xf]
      %v1605 = vld [vmem:[%s1576 + $0x70] sm:$0xf]
      %v1606 = vld [vmem:[%s1576 + $0x74] sm:$0xf]
      %v1607 = vld [vmem:[%s1576 + $0x78] sm:$0xf]
      %v1608 = vld [vmem:[%s1576 + $0x7c] sm:$0xf]
      %v1609 = vld [vmem:[%s1576 + $0x80] sm:$0xf]
      %v1610 = vld [vmem:[%s1576 + $0x84] sm:$0xf]
      %v1611 = vld [vmem:[%s1576 + $0x88] sm:$0xf]
      %v1612 = vld [vmem:[%s1576 + $0x8c] sm:$0xf]
      %v1613 = vld [vmem:[%s1576 + $0x90] sm:$0xf]
      %v1614 = vld [vmem:[%s1576 + $0x94] sm:$0xf]
      %v1615 = vld [vmem:[%s1576 + $0x98] sm:$0xf]
      %v1616 = vld [vmem:[%s1576 + $0x9c] sm:$0xf]
      %v1617 = vld [vmem:[%s1576 + $0xa0] sm:$0xf]
      %v1618 = vld [vmem:[%s1576 + $0xa4] sm:$0xf]
      %v1619 = vld [vmem:[%s1576 + $0xa8] sm:$0xf]
      %v1620 = vld [vmem:[%s1576 + $0xac] sm:$0xf]
      %v1621 = vld [vmem:[%s1576 + $0xb0] sm:$0xf]
      %v1622 = vld [vmem:[%s1576 + $0xb4] sm:$0xf]
      %v1623 = vld [vmem:[%s1576 + $0xb8] sm:$0xf]
      %v1624 = vld [vmem:[%s1576 + $0xbc] sm:$0xf]
      %v1673 = vunpack.c.l.b16 %v1577
      %v1674 = vunpack.c.l.b16 %v1578
      %v1675 = vunpack.c.l.b16 %v1579
      %v1676 = vunpack.c.l.b16 %v1580
      %v1677 = vunpack.c.l.b16 %v1581
      %v1678 = vunpack.c.l.b16 %v1582
      %v1679 = vunpack.c.l.b16 %v1583
      %v1680 = vunpack.c.l.b16 %v1584
      %v1681 = vunpack.c.l.b16 %v1585
      %v1682 = vunpack.c.l.b16 %v1586
      %v1683 = vunpack.c.l.b16 %v1587
      %v1684 = vunpack.c.l.b16 %v1588
      %v1685 = vunpack.c.l.b16 %v1589
      %v1686 = vunpack.c.l.b16 %v1590
      %v1687 = vunpack.c.l.b16 %v1591
      %v1688 = vunpack.c.l.b16 %v1592
      %v1689 = vunpack.c.l.b16 %v1593
      %v1690 = vunpack.c.l.b16 %v1594
      %v1691 = vunpack.c.l.b16 %v1595
      %v1692 = vunpack.c.l.b16 %v1596
      %v1693 = vunpack.c.l.b16 %v1597
      %v1694 = vunpack.c.l.b16 %v1598
      %v1695 = vunpack.c.l.b16 %v1599
      %v1696 = vunpack.c.l.b16 %v1600
      %v1697 = vunpack.c.l.b16 %v1601
      %v1698 = vunpack.c.l.b16 %v1602
      %v1699 = vunpack.c.l.b16 %v1603
      %v1700 = vunpack.c.l.b16 %v1604
      %v1701 = vunpack.c.l.b16 %v1605
      %v1702 = vunpack.c.l.b16 %v1606
      %v1703 = vunpack.c.l.b16 %v1607
      %v1704 = vunpack.c.l.b16 %v1608
      %v1705 = vunpack.c.l.b16 %v1609
      %v1706 = vunpack.c.l.b16 %v1610
      %v1707 = vunpack.c.l.b16 %v1611
      %v1708 = vunpack.c.l.b16 %v1612
      %v1709 = vunpack.c.l.b16 %v1613
      %v1710 = vunpack.c.l.b16 %v1614
      %v1711 = vunpack.c.l.b16 %v1615
      %v1712 = vunpack.c.l.b16 %v1616
      %v1713 = vunpack.c.l.b16 %v1617
      %v1714 = vunpack.c.l.b16 %v1618
      %v1715 = vunpack.c.l.b16 %v1619
      %v1716 = vunpack.c.l.b16 %v1620
      %v1717 = vunpack.c.l.b16 %v1621
      %v1718 = vunpack.c.l.b16 %v1622
      %v1719 = vunpack.c.l.b16 %v1623
      %v1720 = vunpack.c.l.b16 %v1624
      %v1721 = vpack.c.b16 %v1674, %v1673
      %v1722 = vpack.c.b16 %v1676, %v1675
      %v1723 = vpack.c.b16 %v1678, %v1677
      %v1724 = vpack.c.b16 %v1680, %v1679
      %v1725 = vpack.c.b16 %v1682, %v1681
      %v1726 = vpack.c.b16 %v1684, %v1683
      %v1727 = vpack.c.b16 %v1686, %v1685
      %v1728 = vpack.c.b16 %v1688, %v1687
      %v1729 = vpack.c.b16 %v1690, %v1689
      %v1730 = vpack.c.b16 %v1692, %v1691
      %v1731 = vpack.c.b16 %v1694, %v1693
      %v1732 = vpack.c.b16 %v1696, %v1695
      %v1733 = vpack.c.b16 %v1698, %v1697
      %v1734 = vpack.c.b16 %v1700, %v1699
      %v1735 = vpack.c.b16 %v1702, %v1701
      %v1736 = vpack.c.b16 %v1704, %v1703
      %v1737 = vpack.c.b16 %v1706, %v1705
      %v1738 = vpack.c.b16 %v1708, %v1707
      %v1739 = vpack.c.b16 %v1710, %v1709
      %v1740 = vpack.c.b16 %v1712, %v1711
      %v1741 = vpack.c.b16 %v1714, %v1713
      %v1742 = vpack.c.b16 %v1716, %v1715
      %v1743 = vpack.c.b16 %v1718, %v1717
      %v1744 = vpack.c.b16 %v1720, %v1719
      %1769 = vmatprep.subr.bf16.mxu0 0
      %1770 = vmatpush1.bf16.msra.mxu0 %v1721
      %1771 = vmatprep.subr.bf16.mxu0 0
      %1772 = vmatpush1.bf16.msra.mxu0 %v1722
      %1773 = vmatprep.subr.bf16.mxu0 0
      %1774 = vmatpush1.bf16.msra.mxu0 %v1723
      %1775 = vmatprep.subr.bf16.mxu0 0
      %1776 = vmatpush1.bf16.msra.mxu0 %v1724
      %1777 = vmatprep.subr.bf16.mxu0 0
      %1778 = vmatpush1.bf16.msra.mxu0 %v1725
      %1779 = vmatprep.subr.bf16.mxu0 0
      %1780 = vmatpush1.bf16.msra.mxu0 %v1726
      %1781 = vmatprep.subr.bf16.mxu0 0
      %1782 = vmatpush1.bf16.msra.mxu0 %v1727
      %1783 = vmatprep.subr.bf16.mxu0 0
      %1784 = vmatpush1.bf16.msra.mxu0 %v1728
      %1785 = vmatprep.subr.bf16.mxu0 0
      %1786 = vmatpush1.bf16.msra.mxu0 %v1729
      %1787 = vmatprep.subr.bf16.mxu0 0
      %1788 = vmatpush1.bf16.msra.mxu0 %v1730
      %1789 = vmatprep.subr.bf16.mxu0 0
      %1790 = vmatpush1.bf16.msra.mxu0 %v1731
      %1791 = vmatprep.subr.bf16.mxu0 0
      %1792 = vmatpush1.bf16.msra.mxu0 %v1732
      %1793 = vmatprep.subr.bf16.mxu0 0
      %1794 = vmatpush1.bf16.msra.mxu0 %v1733
      %1795 = vmatprep.subr.bf16.mxu0 0
      %1796 = vmatpush1.bf16.msra.mxu0 %v1734
      %1797 = vmatprep.subr.bf16.mxu0 0
      %1798 = vmatpush1.bf16.msra.mxu0 %v1735
      %1799 = vmatprep.subr.bf16.mxu0 0
      %1800 = vmatpush1.bf16.msra.mxu0 %v1736
      %1801 = vmatprep.mubr.bf16.mxu0 %v1469
      %1802 = vmatmul.mubr.bf16.gmra.mrb[0].mxu0 %v1468
      %v1803 = vpop.f32.mrb[0].mxu0
      %v1804 = vadd.f32 0.0, %v1803
      %v1805 = vpop.f32.mrb[0].mxu0
      %v1806 = vpop.f32.mrb[0].mxu0
      %v1807 = vadd.f32 0.0, %v1806
      %v1808 = vpop.f32.mrb[0].mxu0
      %1809 = vmatprep.mubr.bf16.mxu0 %v1472
      %1810 = vmatmul.mubr.bf16.gmra.mrb[0].mxu0 %v1471
      %v1811 = vpop.f32.mrb[0].mxu0
      %v1812 = vadd.f32 0.0, %v1811
      %v1813 = vpop.f32.mrb[0].mxu0
      %v1814 = vpop.f32.mrb[0].mxu0
      %v1815 = vadd.f32 0.0, %v1814
      %v1816 = vpop.f32.mrb[0].mxu0
      %1817 = vmatprep.mubr.bf16.mxu0 %v1475
      %1818 = vmatmul.mubr.bf16.gmra.mrb[0].mxu0 %v1474
      %v1819 = vpop.f32.mrb[0].mxu0
      %v1820 = vadd.f32 0.0, %v1819
      %v1821 = vpop.f32.mrb[0].mxu0
      %v1822 = vpop.f32.mrb[0].mxu0
      %v1823 = vadd.f32 0.0, %v1822
      %v1824 = vpop.f32.mrb[0].mxu0
      %1825 = vmatprep.mubr.bf16.mxu0 %v1478
      %1826 = vmatmul.mubr.bf16.gmra.mrb[0].mxu0 %v1477
      %v1827 = vpop.f32.mrb[0].mxu0
      %v1828 = vadd.f32 0.0, %v1827
      %v1829 = vpop.f32.mrb[0].mxu0
      %v1830 = vpop.f32.mrb[0].mxu0
      %v1831 = vadd.f32 0.0, %v1830
      %v1832 = vpop.f32.mrb[0].mxu0
      %1833 = vmatprep.mubr.bf16.mxu0 %v1481
      %1834 = vmatmul.mubr.bf16.gmra.mrb[0].mxu0 %v1480
      %v1835 = vpop.f32.mrb[0].mxu0
      %v1836 = vadd.f32 0.0, %v1835
      %v1837 = vpop.f32.mrb[0].mxu0
      %v1838 = vpop.f32.mrb[0].mxu0
      %v1839 = vadd.f32 0.0, %v1838
      %v1840 = vpop.f32.mrb[0].mxu0
      %1841 = vmatprep.mubr.bf16.mxu0 %v1484
      %1842 = vmatmul.mubr.bf16.gmra.mrb[0].mxu0 %v1483
      %v1843 = vpop.f32.mrb[0].mxu0
      %v1844 = vadd.f32 0.0, %v1843
      %v1845 = vpop.f32.mrb[0].mxu0
      %v1846 = vpop.f32.mrb[0].mxu0
      %v1847 = vadd.f32 0.0, %v1846
      %v1848 = vpop.f32.mrb[0].mxu0
      %1849 = vmatprep.mubr.bf16.mxu0 %v1487
      %1850 = vmatmul.mubr.bf16.gmra.mrb[0].mxu0 %v1486
      %v1851 = vpop.f32.mrb[0].mxu0
      %v1852 = vadd.f32 0.0, %v1851
      %v1853 = vpop.f32.mrb[0].mxu0
      %v1854 = vpop.f32.mrb[0].mxu0
      %v1855 = vadd.f32 0.0, %v1854
      %v1856 = vpop.f32.mrb[0].mxu0
      %1857 = vmatprep.mubr.bf16.mxu0 %v1490
      %1858 = vmatmul.mubr.bf16.gmra.mrb[0].mxu0 %v1489
      %v1859 = vpop.f32.mrb[0].mxu0
      %v1860 = vadd.f32 0.0, %v1859
      %v1861 = vpop.f32.mrb[0].mxu0
      %v1862 = vpop.f32.mrb[0].mxu0
      %v1863 = vadd.f32 0.0, %v1862
      %v1864 = vpop.f32.mrb[0].mxu0
      %1865 = vmatprep.mubr.bf16.mxu0 %v1493
      %1866 = vmatmul.mubr.bf16.gmra.mrb[0].mxu0 %v1492
      %v1867 = vpop.f32.mrb[0].mxu0
      %v1868 = vadd.f32 0.0, %v1867
      %v1869 = vpop.f32.mrb[0].mxu0
      %v1870 = vpop.f32.mrb[0].mxu0
      %v1871 = vadd.f32 0.0, %v1870
      %v1872 = vpop.f32.mrb[0].mxu0
      %1873 = vmatprep.mubr.bf16.mxu0 %v1496
      %1874 = vmatmul.mubr.bf16.gmra.mrb[0].mxu0 %v1495
      %v1875 = vpop.f32.mrb[0].mxu0
      %v1876 = vadd.f32 0.0, %v1875
      %v1877 = vpop.f32.mrb[0].mxu0
      %v1878 = vpop.f32.mrb[0].mxu0
      %v1879 = vadd.f32 0.0, %v1878
      %v1880 = vpop.f32.mrb[0].mxu0
      %1881 = vmatprep.mubr.bf16.mxu0 %v1499
      %1882 = vmatmul.mubr.bf16.gmra.mrb[0].mxu0 %v1498
      %v1883 = vpop.f32.mrb[0].mxu0
      %v1884 = vadd.f32 0.0, %v1883
      %v1885 = vpop.f32.mrb[0].mxu0
      %v1886 = vpop.f32.mrb[0].mxu0
      %v1887 = vadd.f32 0.0, %v1886
      %v1888 = vpop.f32.mrb[0].mxu0
      %1889 = vmatprep.mubr.bf16.mxu0 %v1502
      %1890 = vmatmul.mubr.bf16.gmra.mrb[0].mxu0 %v1501
      %v1891 = vpop.f32.mrb[0].mxu0
      %v1892 = vadd.f32 0.0, %v1891
      %v1893 = vpop.f32.mrb[0].mxu0
      %v1894 = vpop.f32.mrb[0].mxu0
      %v1895 = vadd.f32 0.0, %v1894
      %v1896 = vpop.f32.mrb[0].mxu0
      %1897 = vmatprep.mubr.bf16.mxu0 %v1505
      %1898 = vmatmul.mubr.bf16.gmra.mrb[0].mxu0 %v1504
      %v1899 = vpop.f32.mrb[0].mxu0
      %v1900 = vadd.f32 0.0, %v1899
      %v1901 = vpop.f32.mrb[0].mxu0
      %v1902 = vpop.f32.mrb[0].mxu0
      %v1903 = vadd.f32 0.0, %v1902
      %v1904 = vpop.f32.mrb[0].mxu0
      %1905 = vmatprep.mubr.bf16.mxu0 %v1508
      %1906 = vmatmul.mubr.bf16.gmra.mrb[0].mxu0 %v1507
      %v1907 = vpop.f32.mrb[0].mxu0
      %v1908 = vadd.f32 0.0, %v1907
      %v1909 = vpop.f32.mrb[0].mxu0
      %v1910 = vpop.f32.mrb[0].mxu0
      %v1911 = vadd.f32 0.0, %v1910
      %v1912 = vpop.f32.mrb[0].mxu0
      %1913 = vmatprep.mubr.bf16.mxu0 %v1511
      %1914 = vmatmul.mubr.bf16.gmra.mrb[0].mxu0 %v1510
      %v1915 = vpop.f32.mrb[0].mxu0
      %v1916 = vadd.f32 0.0, %v1915
      %v1917 = vpop.f32.mrb[0].mxu0
      %v1918 = vpop.f32.mrb[0].mxu0
      %v1919 = vadd.f32 0.0, %v1918
      %v1920 = vpop.f32.mrb[0].mxu0
      %1921 = vmatprep.mubr.bf16.mxu0 %v1514
      %1922 = vmatmul.mubr.bf16.gmra.mrb[0].mxu0 %v1513
      %v1923 = vpop.f32.mrb[0].mxu0
      %v1924 = vadd.f32 0.0, %v1923
      %v1925 = vpop.f32.mrb[0].mxu0
      %v1926 = vpop.f32.mrb[0].mxu0
      %v1927 = vadd.f32 0.0, %v1926
      %v1928 = vpop.f32.mrb[0].mxu0
      %1929 = vmatprep.mubr.bf16.mxu0 %v1517
      %1930 = vmatmul.mubr.bf16.gmra.mrb[0].mxu0 %v1516
      %v1931 = vpop.f32.mrb[0].mxu0
      %v1932 = vadd.f32 0.0, %v1931
      %v1933 = vpop.f32.mrb[0].mxu0
      %v1934 = vpop.f32.mrb[0].mxu0
      %v1935 = vadd.f32 0.0, %v1934
      %v1936 = vpop.f32.mrb[0].mxu0
      %1937 = vmatprep.mubr.bf16.mxu0 %v1520
      %1938 = vmatmul.mubr.bf16.gmra.mrb[0].mxu0 %v1519
      %v1939 = vpop.f32.mrb[0].mxu0
      %v1940 = vadd.f32 0.0, %v1939
      %v1941 = vpop.f32.mrb[0].mxu0
      %v1942 = vpop.f32.mrb[0].mxu0
      %v1943 = vadd.f32 0.0, %v1942
      %v1944 = vpop.f32.mrb[0].mxu0
      %1945 = vmatprep.mubr.bf16.mxu0 %v1523
      %1946 = vmatmul.mubr.bf16.gmra.mrb[0].mxu0 %v1522
      %v1947 = vpop.f32.mrb[0].mxu0
      %v1948 = vadd.f32 0.0, %v1947
      %v1949 = vpop.f32.mrb[0].mxu0
      %v1950 = vpop.f32.mrb[0].mxu0
      %v1951 = vadd.f32 0.0, %v1950
      %v1952 = vpop.f32.mrb[0].mxu0
      %1953 = vmatprep.mubr.bf16.mxu0 %v1526
      %1954 = vmatmul.mubr.bf16.gmra.mrb[0].mxu0 %v1525
      %v1955 = vpop.f32.mrb[0].mxu0
      %v1956 = vadd.f32 0.0, %v1955
      %v1957 = vpop.f32.mrb[0].mxu0
      %v1958 = vpop.f32.mrb[0].mxu0
      %v1959 = vadd.f32 0.0, %v1958
      %v1960 = vpop.f32.mrb[0].mxu0
      %1961 = vmatprep.mubr.bf16.mxu0 %v1529
      %1962 = vmatmul.mubr.bf16.gmra.mrb[0].mxu0 %v1528
      %v1963 = vpop.f32.mrb[0].mxu0
      %v1964 = vadd.f32 0.0, %v1963
      %v1965 = vpop.f32.mrb[0].mxu0
      %v1966 = vpop.f32.mrb[0].mxu0
      %v1967 = vadd.f32 0.0, %v1966
      %v1968 = vpop.f32.mrb[0].mxu0
      %1969 = vmatprep.mubr.bf16.mxu0 %v1532
      %1970 = vmatmul.mubr.bf16.gmra.mrb[0].mxu0 %v1531
      %v1971 = vpop.f32.mrb[0].mxu0
      %v1972 = vadd.f32 0.0, %v1971
      %v1973 = vpop.f32.mrb[0].mxu0
      %v1974 = vpop.f32.mrb[0].mxu0
      %v1975 = vadd.f32 0.0, %v1974
      %v1976 = vpop.f32.mrb[0].mxu0
      %1977 = vmatprep.mubr.bf16.mxu0 %v1535
      %1978 = vmatmul.mubr.bf16.gmra.mrb[0].mxu0 %v1534
      %v1979 = vpop.f32.mrb[0].mxu0
      %v1980 = vadd.f32 0.0, %v1979
      %v1981 = vpop.f32.mrb[0].mxu0
      %v1982 = vpop.f32.mrb[0].mxu0
      %v1983 = vadd.f32 0.0, %v1982
      %v1984 = vpop.f32.mrb[0].mxu0
      %1985 = vmatprep.mubr.bf16.mxu0 %v1538
      %1986 = vmatmul.mubr.bf16.gmra.mrb[0].mxu0 %v1537
      %v1987 = vpop.f32.mrb[0].mxu0
      %v1988 = vadd.f32 0.0, %v1987
      %v1989 = vpop.f32.mrb[0].mxu0
      %v1990 = vpop.f32.mrb[0].mxu0
      %v1991 = vadd.f32 0.0, %v1990
      %v1992 = vpop.f32.mrb[0].mxu0
      %1993 = vmatprep.mubr.bf16.mxu0 %v1541
      %1994 = vmatmul.mubr.bf16.gmra.mrb[0].mxu0 %v1540
      %v1995 = vpop.f32.mrb[0].mxu0
      %v1996 = vadd.f32 0.0, %v1995
      %v1997 = vpop.f32.mrb[0].mxu0
      %v1998 = vpop.f32.mrb[0].mxu0
      %v1999 = vadd.f32 0.0, %v1998
      %v2000 = vpop.f32.mrb[0].mxu0
      %2001 = vmatprep.mubr.bf16.mxu0 %v1544
      %2002 = vmatmul.mubr.bf16.gmra.mrb[0].mxu0 %v1543
      %v2003 = vpop.f32.mrb[0].mxu0
      %v2004 = vadd.f32 0.0, %v2003
      %v2005 = vpop.f32.mrb[0].mxu0
      %v2006 = vpop.f32.mrb[0].mxu0
      %v2007 = vadd.f32 0.0, %v2006
      %v2008 = vpop.f32.mrb[0].mxu0
      %2009 = vmatprep.mubr.bf16.mxu0 %v1547
      %2010 = vmatmul.mubr.bf16.gmra.mrb[0].mxu0 %v1546
      %v2011 = vpop.f32.mrb[0].mxu0
      %v2012 = vadd.f32 0.0, %v2011
      %v2013 = vpop.f32.mrb[0].mxu0
      %v2014 = vpop.f32.mrb[0].mxu0
      %v2015 = vadd.f32 0.0, %v2014
      %v2016 = vpop.f32.mrb[0].mxu0
      %2017 = vmatprep.mubr.bf16.mxu0 %v1550
      %2018 = vmatmul.mubr.bf16.gmra.mrb[0].mxu0 %v1549
      %v2019 = vpop.f32.mrb[0].mxu0
      %v2020 = vadd.f32 0.0, %v2019
      %v2021 = vpop.f32.mrb[0].mxu0
      %v2022 = vpop.f32.mrb[0].mxu0
      %v2023 = vadd.f32 0.0, %v2022
      %v2024 = vpop.f32.mrb[0].mxu0
      %2025 = vmatprep.mubr.bf16.mxu0 %v1553
      %2026 = vmatmul.mubr.bf16.gmra.mrb[0].mxu0 %v1552
      %v2027 = vpop.f32.mrb[0].mxu0
      %v2028 = vadd.f32 0.0, %v2027
      %v2029 = vpop.f32.mrb[0].mxu0
      %v2030 = vpop.f32.mrb[0].mxu0
      %v2031 = vadd.f32 0.0, %v2030
      %v2032 = vpop.f32.mrb[0].mxu0
      %2033 = vmatprep.mubr.bf16.mxu0 %v1556
      %2034 = vmatmul.mubr.bf16.gmra.mrb[0].mxu0 %v1555
      %v2035 = vpop.f32.mrb[0].mxu0
      %v2036 = vadd.f32 0.0, %v2035
      %v2037 = vpop.f32.mrb[0].mxu0
      %v2038 = vpop.f32.mrb[0].mxu0
      %v2039 = vadd.f32 0.0, %v2038
      %v2040 = vpop.f32.mrb[0].mxu0
      %2041 = vmatprep.mubr.bf16.mxu0 %v1559
      %2042 = vmatmul.mubr.bf16.gmra.mrb[0].mxu0 %v1558
      %v2043 = vpop.f32.mrb[0].mxu0
      %v2044 = vadd.f32 0.0, %v2043
      %v2045 = vpop.f32.mrb[0].mxu0
      %v2046 = vpop.f32.mrb[0].mxu0
      %v2047 = vadd.f32 0.0, %v2046
      %v2048 = vpop.f32.mrb[0].mxu0
      %2049 = vmatprep.mubr.bf16.mxu0 %v1562
      %2050 = vmatmul.mubr.bf16.gmra.mrb[0].mxu0 %v1561
      %v2051 = vpop.f32.mrb[0].mxu0
      %v2052 = vadd.f32 0.0, %v2051
      %v2053 = vpop.f32.mrb[0].mxu0
      %v2054 = vpop.f32.mrb[0].mxu0
      %v2055 = vadd.f32 0.0, %v2054
      %v2056 = vpop.f32.mrb[0].mxu0
      %2057 = vmatprep.mubr.bf16.mxu0 %v1565
      %2058 = vmatmul.mubr.bf16.gmra.mrb[0].mxu0 %v1564
      %v2059 = vpop.f32.mrb[0].mxu0
      %v2060 = vadd.f32 0.0, %v2059
      %v2061 = vpop.f32.mrb[0].mxu0
      %v2062 = vpop.f32.mrb[0].mxu0
      %v2063 = vadd.f32 0.0, %v2062
      %v2064 = vpop.f32.mrb[0].mxu0
      %2065 = vmatprep.mubr.bf16.mxu0 %v1568
      %2066 = vmatmul.mubr.bf16.gmra.mrb[0].mxu0 %v1567
      %v2067 = vpop.f32.mrb[0].mxu0
      %v2068 = vadd.f32 0.0, %v2067
      %v2069 = vpop.f32.mrb[0].mxu0
      %v2070 = vpop.f32.mrb[0].mxu0
      %v2071 = vadd.f32 0.0, %v2070
      %v2072 = vpop.f32.mrb[0].mxu0
      %2073 = vmatprep.mubr.bf16.mxu0 %v1571
      %2074 = vmatmul.mubr.bf16.gmra.mrb[0].mxu0 %v1570
      %v2075 = vpop.f32.mrb[0].mxu0
      %v2076 = vadd.f32 0.0, %v2075
      %v2077 = vpop.f32.mrb[0].mxu0
      %v2078 = vpop.f32.mrb[0].mxu0
      %v2079 = vadd.f32 0.0, %v2078
      %v2080 = vpop.f32.mrb[0].mxu0
      %2081 = vmatprep.mubr.bf16.mxu0 %v1574
      %2082 = vmatmul.mubr.bf16.gmra.mrb[0].mxu0 %v1573
      %v2083 = vpop.f32.mrb[0].mxu0
      %v2084 = vadd.f32 0.0, %v2083
      %v2085 = vpop.f32.mrb[0].mxu0
      %v2086 = vpop.f32.mrb[0].mxu0
      %v2087 = vadd.f32 0.0, %v2086
      %v2088 = vpop.f32.mrb[0].mxu0
      %2089 = vdwg.mxu0
      %2090 = vmatprep.subr.bf16.mxu0 0
      %2091 = vmatpush1.bf16.msra.mxu0 %v1737
      %2092 = vmatprep.subr.bf16.mxu0 0
      %2093 = vmatpush1.bf16.msra.mxu0 %v1738
      %2094 = vmatprep.subr.bf16.mxu0 0
      %2095 = vmatpush1.bf16.msra.mxu0 %v1739
      %2096 = vmatprep.subr.bf16.mxu0 0
      %2097 = vmatpush1.bf16.msra.mxu0 %v1740
      %2098 = vmatprep.subr.bf16.mxu0 0
      %2099 = vmatpush1.bf16.msra.mxu0 %v1741
      %2100 = vmatprep.subr.bf16.mxu0 0
      %2101 = vmatpush1.bf16.msra.mxu0 %v1742
      %2102 = vmatprep.subr.bf16.mxu0 0
      %2103 = vmatpush1.bf16.msra.mxu0 %v1743
      %2104 = vmatprep.subr.bf16.mxu0 0
      %2105 = vmatpush1.bf16.msra.mxu0 %v1744
      %2106 = vmatprep.subr.bf16.mxu0 0
      %2107 = vmatpush1.bf16.msra.mxu0 0
      %2108 = vmatprep.subr.bf16.mxu0 0
      %2109 = vmatpush1.bf16.msra.mxu0 0
      %2110 = vmatprep.subr.bf16.mxu0 0
      %2111 = vmatpush1.bf16.msra.mxu0 0
      %2112 = vmatprep.subr.bf16.mxu0 0
      %2113 = vmatpush1.bf16.msra.mxu0 0
      %2114 = vmatprep.subr.bf16.mxu0 0
      %2115 = vmatpush1.bf16.msra.mxu0 0
      %2116 = vmatprep.subr.bf16.mxu0 0
      %2117 = vmatpush1.bf16.msra.mxu0 0
      %2118 = vmatprep.subr.bf16.mxu0 0
      %2119 = vmatpush1.bf16.msra.mxu0 0
      %2120 = vmatprep.subr.bf16.mxu0 0
      %2121 = vmatpush1.bf16.msra.mxu0 0
      %2122 = vmatprep.mubr.bf16.mxu0 0
      %2123 = vmatmul.mubr.bf16.gmra.mrb[0].mxu0 %v1470
      %v2124 = vpop.f32.mrb[0].mxu0
      %v2125 = vadd.f32 %v1804, %v2124
      %v2126 = vpop.f32.mrb[0].mxu0
      %v2127 = vpop.f32.mrb[0].mxu0
      %v2128 = vadd.f32 %v1807, %v2127
      %v2129 = vpop.f32.mrb[0].mxu0
      %2130 = vmatprep.mubr.bf16.mxu0 0
      %2131 = vmatmul.mubr.bf16.gmra.mrb[0].mxu0 %v1473
      %v2132 = vpop.f32.mrb[0].mxu0
      %v2133 = vadd.f32 %v1812, %v2132
      %v2134 = vpop.f32.mrb[0].mxu0
      %v2135 = vpop.f32.mrb[0].mxu0
      %v2136 = vadd.f32 %v1815, %v2135
      %v2137 = vpop.f32.mrb[0].mxu0
      %2138 = vmatprep.mubr.bf16.mxu0 0
      %2139 = vmatmul.mubr.bf16.gmra.mrb[0].mxu0 %v1476
      %v2140 = vpop.f32.mrb[0].mxu0
      %v2141 = vadd.f32 %v1820, %v2140
      %v2142 = vpop.f32.mrb[0].mxu0
      %v2143 = vpop.f32.mrb[0].mxu0
      %v2144 = vadd.f32 %v1823, %v2143
      %v2145 = vpop.f32.mrb[0].mxu0
      %2146 = vmatprep.mubr.bf16.mxu0 0
      %2147 = vmatmul.mubr.bf16.gmra.mrb[0].mxu0 %v1479
      %v2148 = vpop.f32.mrb[0].mxu0
      %v2149 = vadd.f32 %v1828, %v2148
      %v2150 = vpop.f32.mrb[0].mxu0
      %v2151 = vpop.f32.mrb[0].mxu0
      %v2152 = vadd.f32 %v1831, %v2151
      %v2153 = vpop.f32.mrb[0].mxu0
      %2154 = vmatprep.mubr.bf16.mxu0 0
      %2155 = vmatmul.mubr.bf16.gmra.mrb[0].mxu0 %v1482
      %v2156 = vpop.f32.mrb[0].mxu0
      %v2157 = vadd.f32 %v1836, %v2156
      %v2158 = vpop.f32.mrb[0].mxu0
      %v2159 = vpop.f32.mrb[0].mxu0
      %v2160 = vadd.f32 %v1839, %v2159
      %v2161 = vpop.f32.mrb[0].mxu0
      %2162 = vmatprep.mubr.bf16.mxu0 0
      %2163 = vmatmul.mubr.bf16.gmra.mrb[0].mxu0 %v1485
      %v2164 = vpop.f32.mrb[0].mxu0
      %v2165 = vadd.f32 %v1844, %v2164
      %v2166 = vpop.f32.mrb[0].mxu0
      %v2167 = vpop.f32.mrb[0].mxu0
      %v2168 = vadd.f32 %v1847, %v2167
      %v2169 = vpop.f32.mrb[0].mxu0
      %2170 = vmatprep.mubr.bf16.mxu0 0
      %2171 = vmatmul.mubr.bf16.gmra.mrb[0].mxu0 %v1488
      %v2172 = vpop.f32.mrb[0].mxu0
      %v2173 = vadd.f32 %v1852, %v2172
      %v2174 = vpop.f32.mrb[0].mxu0
      %v2175 = vpop.f32.mrb[0].mxu0
      %v2176 = vadd.f32 %v1855, %v2175
      %v2177 = vpop.f32.mrb[0].mxu0
      %2178 = vmatprep.mubr.bf16.mxu0 0
      %2179 = vmatmul.mubr.bf16.gmra.mrb[0].mxu0 %v1491
      %v2180 = vpop.f32.mrb[0].mxu0
      %v2181 = vadd.f32 %v1860, %v2180
      %v2182 = vpop.f32.mrb[0].mxu0
      %v2183 = vpop.f32.mrb[0].mxu0
      %v2184 = vadd.f32 %v1863, %v2183
      %v2185 = vpop.f32.mrb[0].mxu0
      %2186 = vmatprep.mubr.bf16.mxu0 0
      %2187 = vmatmul.mubr.bf16.gmra.mrb[0].mxu0 %v1494
      %v2188 = vpop.f32.mrb[0].mxu0
      %v2189 = vadd.f32 %v1868, %v2188
      %v2190 = vpop.f32.mrb[0].mxu0
      %v2191 = vpop.f32.mrb[0].mxu0
      %v2192 = vadd.f32 %v1871, %v2191
      %v2193 = vpop.f32.mrb[0].mxu0
      %2194 = vmatprep.mubr.bf16.mxu0 0
      %2195 = vmatmul.mubr.bf16.gmra.mrb[0].mxu0 %v1497
      %v2196 = vpop.f32.mrb[0].mxu0
      %v2197 = vadd.f32 %v1876, %v2196
      %v2198 = vpop.f32.mrb[0].mxu0
      %v2199 = vpop.f32.mrb[0].mxu0
      %v2200 = vadd.f32 %v1879, %v2199
      %v2201 = vpop.f32.mrb[0].mxu0
      %2202 = vmatprep.mubr.bf16.mxu0 0
      %2203 = vmatmul.mubr.bf16.gmra.mrb[0].mxu0 %v1500
      %v2204 = vpop.f32.mrb[0].mxu0
      %v2205 = vadd.f32 %v1884, %v2204
      %v2206 = vpop.f32.mrb[0].mxu0
      %v2207 = vpop.f32.mrb[0].mxu0
      %v2208 = vadd.f32 %v1887, %v2207
      %v2209 = vpop.f32.mrb[0].mxu0
      %2210 = vmatprep.mubr.bf16.mxu0 0
      %2211 = vmatmul.mubr.bf16.gmra.mrb[0].mxu0 %v1503
      %v2212 = vpop.f32.mrb[0].mxu0
      %v2213 = vadd.f32 %v1892, %v2212
      %v2214 = vpop.f32.mrb[0].mxu0
      %v2215 = vpop.f32.mrb[0].mxu0
      %v2216 = vadd.f32 %v1895, %v2215
      %v2217 = vpop.f32.mrb[0].mxu0
      %2218 = vmatprep.mubr.bf16.mxu0 0
      %2219 = vmatmul.mubr.bf16.gmra.mrb[0].mxu0 %v1506
      %v2220 = vpop.f32.mrb[0].mxu0
      %v2221 = vadd.f32 %v1900, %v2220
      %v2222 = vpop.f32.mrb[0].mxu0
      %v2223 = vpop.f32.mrb[0].mxu0
      %v2224 = vadd.f32 %v1903, %v2223
      %v2225 = vpop.f32.mrb[0].mxu0
      %2226 = vmatprep.mubr.bf16.mxu0 0
      %2227 = vmatmul.mubr.bf16.gmra.mrb[0].mxu0 %v1509
      %v2228 = vpop.f32.mrb[0].mxu0
      %v2229 = vadd.f32 %v1908, %v2228
      %v2230 = vpop.f32.mrb[0].mxu0
      %v2231 = vpop.f32.mrb[0].mxu0
      %v2232 = vadd.f32 %v1911, %v2231
      %v2233 = vpop.f32.mrb[0].mxu0
      %2234 = vmatprep.mubr.bf16.mxu0 0
      %2235 = vmatmul.mubr.bf16.gmra.mrb[0].mxu0 %v1512
      %v2236 = vpop.f32.mrb[0].mxu0
      %v2237 = vadd.f32 %v1916, %v2236
      %v2238 = vpop.f32.mrb[0].mxu0
      %v2239 = vpop.f32.mrb[0].mxu0
      %v2240 = vadd.f32 %v1919, %v2239
      %v2241 = vpop.f32.mrb[0].mxu0
      %2242 = vmatprep.mubr.bf16.mxu0 0
      %2243 = vmatmul.mubr.bf16.gmra.mrb[0].mxu0 %v1515
      %v2244 = vpop.f32.mrb[0].mxu0
      %v2245 = vadd.f32 %v1924, %v2244
      %v2246 = vpop.f32.mrb[0].mxu0
      %v2247 = vpop.f32.mrb[0].mxu0
      %v2248 = vadd.f32 %v1927, %v2247
      %v2249 = vpop.f32.mrb[0].mxu0
      %2250 = vmatprep.mubr.bf16.mxu0 0
      %2251 = vmatmul.mubr.bf16.gmra.mrb[0].mxu0 %v1518
      %v2252 = vpop.f32.mrb[0].mxu0
      %v2253 = vadd.f32 %v1932, %v2252
      %v2254 = vpop.f32.mrb[0].mxu0
      %v2255 = vpop.f32.mrb[0].mxu0
      %v2256 = vadd.f32 %v1935, %v2255
      %v2257 = vpop.f32.mrb[0].mxu0
      %2258 = vmatprep.mubr.bf16.mxu0 0
      %2259 = vmatmul.mubr.bf16.gmra.mrb[0].mxu0 %v1521
      %v2260 = vpop.f32.mrb[0].mxu0
      %v2261 = vadd.f32 %v1940, %v2260
      %v2262 = vpop.f32.mrb[0].mxu0
      %v2263 = vpop.f32.mrb[0].mxu0
      %v2264 = vadd.f32 %v1943, %v2263
      %v2265 = vpop.f32.mrb[0].mxu0
      %2266 = vmatprep.mubr.bf16.mxu0 0
      %2267 = vmatmul.mubr.bf16.gmra.mrb[0].mxu0 %v1524
      %v2268 = vpop.f32.mrb[0].mxu0
      %v2269 = vadd.f32 %v1948, %v2268
      %v2270 = vpop.f32.mrb[0].mxu0
      %v2271 = vpop.f32.mrb[0].mxu0
      %v2272 = vadd.f32 %v1951, %v2271
      %v2273 = vpop.f32.mrb[0].mxu0
      %2274 = vmatprep.mubr.bf16.mxu0 0
      %2275 = vmatmul.mubr.bf16.gmra.mrb[0].mxu0 %v1527
      %v2276 = vpop.f32.mrb[0].mxu0
      %v2277 = vadd.f32 %v1956, %v2276
      %v2278 = vpop.f32.mrb[0].mxu0
      %v2279 = vpop.f32.mrb[0].mxu0
      %v2280 = vadd.f32 %v1959, %v2279
      %v2281 = vpop.f32.mrb[0].mxu0
      %2282 = vmatprep.mubr.bf16.mxu0 0
      %2283 = vmatmul.mubr.bf16.gmra.mrb[0].mxu0 %v1530
      %v2284 = vpop.f32.mrb[0].mxu0
      %v2285 = vadd.f32 %v1964, %v2284
      %v2286 = vpop.f32.mrb[0].mxu0
      %v2287 = vpop.f32.mrb[0].mxu0
      %v2288 = vadd.f32 %v1967, %v2287
      %v2289 = vpop.f32.mrb[0].mxu0
      %2290 = vmatprep.mubr.bf16.mxu0 0
      %2291 = vmatmul.mubr.bf16.gmra.mrb[0].mxu0 %v1533
      %v2292 = vpop.f32.mrb[0].mxu0
      %v2293 = vadd.f32 %v1972, %v2292
      %v2294 = vpop.f32.mrb[0].mxu0
      %v2295 = vpop.f32.mrb[0].mxu0
      %v2296 = vadd.f32 %v1975, %v2295
      %v2297 = vpop.f32.mrb[0].mxu0
      %2298 = vmatprep.mubr.bf16.mxu0 0
      %2299 = vmatmul.mubr.bf16.gmra.mrb[0].mxu0 %v1536
      %v2300 = vpop.f32.mrb[0].mxu0
      %v2301 = vadd.f32 %v1980, %v2300
      %v2302 = vpop.f32.mrb[0].mxu0
      %v2303 = vpop.f32.mrb[0].mxu0
      %v2304 = vadd.f32 %v1983, %v2303
      %v2305 = vpop.f32.mrb[0].mxu0
      %2306 = vmatprep.mubr.bf16.mxu0 0
      %2307 = vmatmul.mubr.bf16.gmra.mrb[0].mxu0 %v1539
      %v2308 = vpop.f32.mrb[0].mxu0
      %v2309 = vadd.f32 %v1988, %v2308
      %v2310 = vpop.f32.mrb[0].mxu0
      %v2311 = vpop.f32.mrb[0].mxu0
      %v2312 = vadd.f32 %v1991, %v2311
      %v2313 = vpop.f32.mrb[0].mxu0
      %2314 = vmatprep.mubr.bf16.mxu0 0
      %2315 = vmatmul.mubr.bf16.gmra.mrb[0].mxu0 %v1542
      %v2316 = vpop.f32.mrb[0].mxu0
      %v2317 = vadd.f32 %v1996, %v2316
      %v2318 = vpop.f32.mrb[0].mxu0
      %v2319 = vpop.f32.mrb[0].mxu0
      %v2320 = vadd.f32 %v1999, %v2319
      %v2321 = vpop.f32.mrb[0].mxu0
      %2322 = vmatprep.mubr.bf16.mxu0 0
      %2323 = vmatmul.mubr.bf16.gmra.mrb[0].mxu0 %v1545
      %v2324 = vpop.f32.mrb[0].mxu0
      %v2325 = vadd.f32 %v2004, %v2324
      %v2326 = vpop.f32.mrb[0].mxu0
      %v2327 = vpop.f32.mrb[0].mxu0
      %v2328 = vadd.f32 %v2007, %v2327
      %v2329 = vpop.f32.mrb[0].mxu0
      %2330 = vmatprep.mubr.bf16.mxu0 0
      %2331 = vmatmul.mubr.bf16.gmra.mrb[0].mxu0 %v1548
      %v2332 = vpop.f32.mrb[0].mxu0
      %v2333 = vadd.f32 %v2012, %v2332
      %v2334 = vpop.f32.mrb[0].mxu0
      %v2335 = vpop.f32.mrb[0].mxu0
      %v2336 = vadd.f32 %v2015, %v2335
      %v2337 = vpop.f32.mrb[0].mxu0
      %2338 = vmatprep.mubr.bf16.mxu0 0
      %2339 = vmatmul.mubr.bf16.gmra.mrb[0].mxu0 %v1551
      %v2340 = vpop.f32.mrb[0].mxu0
      %v2341 = vadd.f32 %v2020, %v2340
      %v2342 = vpop.f32.mrb[0].mxu0
      %v2343 = vpop.f32.mrb[0].mxu0
      %v2344 = vadd.f32 %v2023, %v2343
      %v2345 = vpop.f32.mrb[0].mxu0
      %2346 = vmatprep.mubr.bf16.mxu0 0
      %2347 = vmatmul.mubr.bf16.gmra.mrb[0].mxu0 %v1554
      %v2348 = vpop.f32.mrb[0].mxu0
      %v2349 = vadd.f32 %v2028, %v2348
      %v2350 = vpop.f32.mrb[0].mxu0
      %v2351 = vpop.f32.mrb[0].mxu0
      %v2352 = vadd.f32 %v2031, %v2351
      %v2353 = vpop.f32.mrb[0].mxu0
      %2354 = vmatprep.mubr.bf16.mxu0 0
      %2355 = vmatmul.mubr.bf16.gmra.mrb[0].mxu0 %v1557
      %v2356 = vpop.f32.mrb[0].mxu0
      %v2357 = vadd.f32 %v2036, %v2356
      %v2358 = vpop.f32.mrb[0].mxu0
      %v2359 = vpop.f32.mrb[0].mxu0
      %v2360 = vadd.f32 %v2039, %v2359
      %v2361 = vpop.f32.mrb[0].mxu0
      %2362 = vmatprep.mubr.bf16.mxu0 0
      %2363 = vmatmul.mubr.bf16.gmra.mrb[0].mxu0 %v1560
      %v2364 = vpop.f32.mrb[0].mxu0
      %v2365 = vadd.f32 %v2044, %v2364
      %v2366 = vpop.f32.mrb[0].mxu0
      %v2367 = vpop.f32.mrb[0].mxu0
      %v2368 = vadd.f32 %v2047, %v2367
      %v2369 = vpop.f32.mrb[0].mxu0
      %2370 = vmatprep.mubr.bf16.mxu0 0
      %2371 = vmatmul.mubr.bf16.gmra.mrb[0].mxu0 %v1563
      %v2372 = vpop.f32.mrb[0].mxu0
      %v2373 = vadd.f32 %v2052, %v2372
      %v2374 = vpop.f32.mrb[0].mxu0
      %v2375 = vpop.f32.mrb[0].mxu0
      %v2376 = vadd.f32 %v2055, %v2375
      %v2377 = vpop.f32.mrb[0].mxu0
      %2378 = vmatprep.mubr.bf16.mxu0 0
      %2379 = vmatmul.mubr.bf16.gmra.mrb[0].mxu0 %v1566
      %v2380 = vpop.f32.mrb[0].mxu0
      %v2381 = vadd.f32 %v2060, %v2380
      %v2382 = vpop.f32.mrb[0].mxu0
      %v2383 = vpop.f32.mrb[0].mxu0
      %v2384 = vadd.f32 %v2063, %v2383
      %v2385 = vpop.f32.mrb[0].mxu0
      %2386 = vmatprep.mubr.bf16.mxu0 0
      %2387 = vmatmul.mubr.bf16.gmra.mrb[0].mxu0 %v1569
      %v2388 = vpop.f32.mrb[0].mxu0
      %v2389 = vadd.f32 %v2068, %v2388
      %v2390 = vpop.f32.mrb[0].mxu0
      %v2391 = vpop.f32.mrb[0].mxu0
      %v2392 = vadd.f32 %v2071, %v2391
      %v2393 = vpop.f32.mrb[0].mxu0
      %2394 = vmatprep.mubr.bf16.mxu0 0
      %2395 = vmatmul.mubr.bf16.gmra.mrb[0].mxu0 %v1572
      %v2396 = vpop.f32.mrb[0].mxu0
      %v2397 = vadd.f32 %v2076, %v2396
      %v2398 = vpop.f32.mrb[0].mxu0
      %v2399 = vpop.f32.mrb[0].mxu0
      %v2400 = vadd.f32 %v2079, %v2399
      %v2401 = vpop.f32.mrb[0].mxu0
      %2402 = vmatprep.mubr.bf16.mxu0 0
      %2403 = vmatmul.mubr.bf16.gmra.mrb[0].mxu0 %v1575
      %v2404 = vpop.f32.mrb[0].mxu0
      %v2405 = vadd.f32 %v2084, %v2404
      %v2406 = vpop.f32.mrb[0].mxu0
      %v2407 = vpop.f32.mrb[0].mxu0
      %v2408 = vadd.f32 %v2087, %v2407
      %v2409 = vpop.f32.mrb[0].mxu0
      %2410 = vdwg.mxu0
      %2411 = vst [vmem:[#allocation2] sm:$0xff] %v2125
      %2412 = vst [vmem:[#allocation2 + $0x8] sm:$0xff] %v2128
      %2413 = vst [vmem:[#allocation2 + $0x10] sm:$0xff] %v2133
      %2414 = vst [vmem:[#allocation2 + $0x18] sm:$0xff] %v2136
      %2415 = vst [vmem:[#allocation2 + $0x20] sm:$0xff] %v2141
      %2416 = vst [vmem:[#allocation2 + $0x28] sm:$0xff] %v2144
      %2417 = vst [vmem:[#allocation2 + $0x30] sm:$0xff] %v2149
      %2418 = vst [vmem:[#allocation2 + $0x38] sm:$0xff] %v2152
      %2419 = vst [vmem:[#allocation2 + $0x40] sm:$0xff] %v2157
      %2420 = vst [vmem:[#allocation2 + $0x48] sm:$0xff] %v2160
      %2421 = vst [vmem:[#allocation2 + $0x50] sm:$0xff] %v2165
      %2422 = vst [vmem:[#allocation2 + $0x58] sm:$0xff] %v2168
      %2423 = vst [vmem:[#allocation2 + $0x60] sm:$0xff] %v2173
      %2424 = vst [vmem:[#allocation2 + $0x68] sm:$0xff] %v2176
      %2425 = vst [vmem:[#allocation2 + $0x70] sm:$0xff] %v2181
      %2426 = vst [vmem:[#allocation2 + $0x78] sm:$0xff] %v2184
      %2427 = vst [vmem:[#allocation2 + $0x80] sm:$0xff] %v2189
      %2428 = vst [vmem:[#allocation2 + $0x88] sm:$0xff] %v2192
      %2429 = vst [vmem:[#allocation2 + $0x90] sm:$0xff] %v2197
      %2430 = vst [vmem:[#allocation2 + $0x98] sm:$0xff] %v2200
      %2431 = vst [vmem:[#allocation2 + $0xa0] sm:$0xff] %v2205
      %2432 = vst [vmem:[#allocation2 + $0xa8] sm:$0xff] %v2208
      %2433 = vst [vmem:[#allocation2 + $0xb0] sm:$0xff] %v2213
      %2434 = vst [vmem:[#allocation2 + $0xb8] sm:$0xff] %v2216
      %2435 = vst [vmem:[#allocation2 + $0xc0] sm:$0xff] %v2221
      %2436 = vst [vmem:[#allocation2 + $0xc8] sm:$0xff] %v2224
      %2437 = vst [vmem:[#allocation2 + $0xd0] sm:$0xff] %v2229
      %2438 = vst [vmem:[#allocation2 + $0xd8] sm:$0xff] %v2232
      %2439 = vst [vmem:[#allocation2 + $0xe0] sm:$0xff] %v2237
      %2440 = vst [vmem:[#allocation2 + $0xe8] sm:$0xff] %v2240
      %2441 = vst [vmem:[#allocation2 + $0xf0] sm:$0xff] %v2245
      %2442 = vst [vmem:[#allocation2 + $0xf8] sm:$0xff] %v2248
      %2443 = vst [vmem:[#allocation2 + $0x100] sm:$0xff] %v2253
      %2444 = vst [vmem:[#allocation2 + $0x108] sm:$0xff] %v2256
      %2445 = vst [vmem:[#allocation2 + $0x110] sm:$0xff] %v2261
      %2446 = vst [vmem:[#allocation2 + $0x118] sm:$0xff] %v2264
      %2447 = vst [vmem:[#allocation2 + $0x120] sm:$0xff] %v2269
      %2448 = vst [vmem:[#allocation2 + $0x128] sm:$0xff] %v2272
      %2449 = vst [vmem:[#allocation2 + $0x130] sm:$0xff] %v2277
      %2450 = vst [vmem:[#allocation2 + $0x138] sm:$0xff] %v2280
      %2451 = vst [vmem:[#allocation2 + $0x140] sm:$0xff] %v2285
      %2452 = vst [vmem:[#allocation2 + $0x148] sm:$0xff] %v2288
      %2453 = vst [vmem:[#allocation2 + $0x150] sm:$0xff] %v2293
      %2454 = vst [vmem:[#allocation2 + $0x158] sm:$0xff] %v2296
      %2455 = vst [vmem:[#allocation2 + $0x160] sm:$0xff] %v2301
      %2456 = vst [vmem:[#allocation2 + $0x168] sm:$0xff] %v2304
      %2457 = vst [vmem:[#allocation2 + $0x170] sm:$0xff] %v2309
      %2458 = vst [vmem:[#allocation2 + $0x178] sm:$0xff] %v2312
      %2459 = vst [vmem:[#allocation2 + $0x180] sm:$0xff] %v2317
      %2460 = vst [vmem:[#allocation2 + $0x188] sm:$0xff] %v2320
      %2461 = vst [vmem:[#allocation2 + $0x190] sm:$0xff] %v2325
      %2462 = vst [vmem:[#allocation2 + $0x198] sm:$0xff] %v2328
      %2463 = vst [vmem:[#allocation2 + $0x1a0] sm:$0xff] %v2333
      %2464 = vst [vmem:[#allocation2 + $0x1a8] sm:$0xff] %v2336
      %2465 = vst [vmem:[#allocation2 + $0x1b0] sm:$0xff] %v2341
      %2466 = vst [vmem:[#allocation2 + $0x1b8] sm:$0xff] %v2344
      %2467 = vst [vmem:[#allocation2 + $0x1c0] sm:$0xff] %v2349
      %2468 = vst [vmem:[#allocation2 + $0x1c8] sm:$0xff] %v2352
      %2469 = vst [vmem:[#allocation2 + $0x1d0] sm:$0xff] %v2357
      %2470 = vst [vmem:[#allocation2 + $0x1d8] sm:$0xff] %v2360
      %2471 = vst [vmem:[#allocation2 + $0x1e0] sm:$0xff] %v2365
      %2472 = vst [vmem:[#allocation2 + $0x1e8] sm:$0xff] %v2368
      %2473 = vst [vmem:[#allocation2 + $0x1f0] sm:$0xff] %v2373
      %2474 = vst [vmem:[#allocation2 + $0x1f8] sm:$0xff] %v2376
      %2475 = vst [vmem:[#allocation2 + $0x200] sm:$0xff] %v2381
      %2476 = vst [vmem:[#allocation2 + $0x208] sm:$0xff] %v2384
      %2477 = vst [vmem:[#allocation2 + $0x210] sm:$0xff] %v2389
      %2478 = vst [vmem:[#allocation2 + $0x218] sm:$0xff] %v2392
      %2479 = vst [vmem:[#allocation2 + $0x220] sm:$0xff] %v2397
      %2480 = vst [vmem:[#allocation2 + $0x228] sm:$0xff] %v2400
      %2481 = vst [vmem:[#allocation2 + $0x230] sm:$0xff] %v2405
      %2482 = vst [vmem:[#allocation2 + $0x238] sm:$0xff] %v2408
      %v2483 = vld [vmem:[#allocation2 + $0x20] sm:$0xff]
      %v2484 = vld [vmem:[#allocation2 + $0x28] sm:$0xff]
      %v2485 = vld [vmem:[#allocation2 + $0x30] sm:$0xff]
      %v2486 = vld [vmem:[#allocation2 + $0x38] sm:$0xff]
      %v2487 = vld [vmem:[#allocation2 + $0x40] sm:$0xff]
      %v2488 = vld [vmem:[#allocation2 + $0x48] sm:$0xff]
      %v2489 = vld [vmem:[#allocation2 + $0x50] sm:$0xff]
      %v2490 = vld [vmem:[#allocation2 + $0x58] sm:$0xff]
      %v2491 = vld [vmem:[#allocation2 + $0x60] sm:$0xff]
      %v2492 = vld [vmem:[#allocation2 + $0x68] sm:$0xff]
      %v2493 = vld [vmem:[#allocation2 + $0x70] sm:$0xff]
      %v2494 = vld [vmem:[#allocation2 + $0x78] sm:$0xff]
      %v2495 = vld [vmem:[#allocation2 + $0x80] sm:$0xff]
      %v2496 = vld [vmem:[#allocation2 + $0x88] sm:$0xff]
      %v2497 = vld [vmem:[#allocation2 + $0x90] sm:$0xff]
      %v2498 = vld [vmem:[#allocation2 + $0x98] sm:$0xff]
      %v2499 = vld [vmem:[#allocation2 + $0xa0] sm:$0xff]
      %v2500 = vld [vmem:[#allocation2 + $0xa8] sm:$0xff]
      %v2501 = vld [vmem:[#allocation2 + $0xb0] sm:$0xff]
      %v2502 = vld [vmem:[#allocation2 + $0xb8] sm:$0xff]
      %v2503 = vld [vmem:[#allocation2 + $0xc0] sm:$0xff]
      %v2504 = vld [vmem:[#allocation2 + $0xc8] sm:$0xff]
      %v2505 = vld [vmem:[#allocation2 + $0xd0] sm:$0xff]
      %v2506 = vld [vmem:[#allocation2 + $0xd8] sm:$0xff]
      %v2507 = vld [vmem:[#allocation2 + $0xe0] sm:$0xff]
      %v2508 = vld [vmem:[#allocation2 + $0xe8] sm:$0xff]
      %v2509 = vld [vmem:[#allocation2 + $0xf0] sm:$0xff]
      %v2510 = vld [vmem:[#allocation2 + $0xf8] sm:$0xff]
      %v2511 = vld [vmem:[#allocation2 + $0x100] sm:$0xff]
      %v2512 = vld [vmem:[#allocation2 + $0x108] sm:$0xff]
      %v2513 = vld [vmem:[#allocation2 + $0x110] sm:$0xff]
      %v2514 = vld [vmem:[#allocation2 + $0x118] sm:$0xff]
      %v2515 = vld [vmem:[#allocation2 + $0x120] sm:$0xff]
      %v2516 = vld [vmem:[#allocation2 + $0x128] sm:$0xff]
      %v2517 = vld [vmem:[#allocation2 + $0x130] sm:$0xff]
      %v2518 = vld [vmem:[#allocation2 + $0x138] sm:$0xff]
      %v2519 = vld [vmem:[#allocation2 + $0x140] sm:$0xff]
      %v2520 = vld [vmem:[#allocation2 + $0x148] sm:$0xff]
      %v2521 = vld [vmem:[#allocation2 + $0x150] sm:$0xff]
      %v2522 = vld [vmem:[#allocation2 + $0x158] sm:$0xff]
      %v2523 = vld [vmem:[#allocation2 + $0x160] sm:$0xff]
      %v2524 = vld [vmem:[#allocation2 + $0x168] sm:$0xff]
      %v2525 = vld [vmem:[#allocation2 + $0x170] sm:$0xff]
      %v2526 = vld [vmem:[#allocation2 + $0x178] sm:$0xff]
      %v2527 = vld [vmem:[#allocation2 + $0x180] sm:$0xff]
      %v2528 = vld [vmem:[#allocation2 + $0x188] sm:$0xff]
      %v2529 = vld [vmem:[#allocation2 + $0x190] sm:$0xff]
      %v2530 = vld [vmem:[#allocation2 + $0x198] sm:$0xff]
      %v2531 = vld [vmem:[#allocation2 + $0x1a0] sm:$0xff]
      %v2532 = vld [vmem:[#allocation2 + $0x1a8] sm:$0xff]
      %v2533 = vld [vmem:[#allocation2 + $0x1b0] sm:$0xff]
      %v2534 = vld [vmem:[#allocation2 + $0x1b8] sm:$0xff]
      %v2535 = vld [vmem:[#allocation2 + $0x1c0] sm:$0xff]
      %v2536 = vld [vmem:[#allocation2 + $0x1c8] sm:$0xff]
      %v2537 = vld [vmem:[#allocation2 + $0x1d0] sm:$0xff]
      %v2538 = vld [vmem:[#allocation2 + $0x1d8] sm:$0xff]
      %v2539 = vld [vmem:[#allocation2 + $0x1e0] sm:$0xff]
      %v2540 = vld [vmem:[#allocation2 + $0x1e8] sm:$0xff]
      %v2541 = vld [vmem:[#allocation2 + $0x1f0] sm:$0xff]
      %v2542 = vld [vmem:[#allocation2 + $0x1f8] sm:$0xff]
      %v2543 = vld [vmem:[#allocation2 + $0x200] sm:$0xff]
      %v2544 = vld [vmem:[#allocation2 + $0x208] sm:$0xff]
      %v2545 = vld [vmem:[#allocation2 + $0x210] sm:$0xff]
      %v2546 = vld [vmem:[#allocation2 + $0x218] sm:$0xff]
      %v2547 = vld [vmem:[#allocation2 + $0x220] sm:$0xff]
      %v2548 = vld [vmem:[#allocation2 + $0x228] sm:$0xff]
      %v2549 = vld [vmem:[#allocation2 + $0x230] sm:$0xff]
      %v2550 = vld [vmem:[#allocation2 + $0x238] sm:$0xff]
      %v2551 = vld [vmem:[%s303] sm:$0xf]
      %v2552 = vld [vmem:[%s303 + $0x4] sm:$0xf]
      %v2553 = vld [vmem:[%s303 + $0x8] sm:$0xf]
      %v2554 = vld [vmem:[%s303 + $0xc] sm:$0xf]
      %v2555 = vld [vmem:[%s303 + $0x10] sm:$0xf]
      %v2556 = vld [vmem:[%s303 + $0x14] sm:$0xf]
      %v2557 = vld [vmem:[%s303 + $0x18] sm:$0xf]
      %v2558 = vld [vmem:[%s303 + $0x1c] sm:$0xf]
      %v2559 = vld [vmem:[%s303 + $0x20] sm:$0xf]
      %v2560 = vld [vmem:[%s303 + $0x24] sm:$0xf]
      %v2561 = vld [vmem:[%s303 + $0x28] sm:$0xf]
      %v2562 = vld [vmem:[%s303 + $0x2c] sm:$0xf]
      %v2563 = vld [vmem:[%s303 + $0x30] sm:$0xf]
      %v2564 = vld [vmem:[%s303 + $0x34] sm:$0xf]
      %v2565 = vld [vmem:[%s303 + $0x38] sm:$0xf]
      %v2566 = vld [vmem:[%s303 + $0x3c] sm:$0xf]
      %v2567 = vld [vmem:[%s303 + $0x40] sm:$0xf]
      %v2568 = vld [vmem:[%s303 + $0x44] sm:$0xf]
      %v2569 = vld [vmem:[%s303 + $0x48] sm:$0xf]
      %v2570 = vld [vmem:[%s303 + $0x4c] sm:$0xf]
      %v2571 = vld [vmem:[%s303 + $0x50] sm:$0xf]
      %v2572 = vld [vmem:[%s303 + $0x54] sm:$0xf]
      %v2573 = vld [vmem:[%s303 + $0x58] sm:$0xf]
      %v2574 = vld [vmem:[%s303 + $0x5c] sm:$0xf]
      %v2575 = vld [vmem:[%s303 + $0x60] sm:$0xf]
      %v2576 = vld [vmem:[%s303 + $0x64] sm:$0xf]
      %v2577 = vld [vmem:[%s303 + $0x68] sm:$0xf]
      %v2578 = vld [vmem:[%s303 + $0x6c] sm:$0xf]
      %v2579 = vld [vmem:[%s303 + $0x70] sm:$0xf]
      %v2580 = vld [vmem:[%s303 + $0x74] sm:$0xf]
      %v2581 = vld [vmem:[%s303 + $0x78] sm:$0xf]
      %v2582 = vld [vmem:[%s303 + $0x7c] sm:$0xf]
      %v2583 = vld [vmem:[%s303 + $0x80] sm:$0xf]
      %v2584 = vld [vmem:[%s303 + $0x84] sm:$0xf]
      %v2585 = vld [vmem:[%s303 + $0x88] sm:$0xf]
      %v2586 = vld [vmem:[%s303 + $0x8c] sm:$0xf]
      %v2587 = vld [vmem:[%s303 + $0x90] sm:$0xf]
      %v2588 = vld [vmem:[%s303 + $0x94] sm:$0xf]
      %v2589 = vld [vmem:[%s303 + $0x98] sm:$0xf]
      %v2590 = vld [vmem:[%s303 + $0x9c] sm:$0xf]
      %v2591 = vld [vmem:[%s303 + $0xa0] sm:$0xf]
      %v2592 = vld [vmem:[%s303 + $0xa4] sm:$0xf]
      %v2593 = vld [vmem:[%s303 + $0xa8] sm:$0xf]
      %v2594 = vld [vmem:[%s303 + $0xac] sm:$0xf]
      %v2595 = vld [vmem:[%s303 + $0xb0] sm:$0xf]
      %v2596 = vld [vmem:[%s303 + $0xb4] sm:$0xf]
      %v2597 = vld [vmem:[%s303 + $0xb8] sm:$0xf]
      %v2598 = vld [vmem:[%s303 + $0xbc] sm:$0xf]
      %v2647 = vunpack.c.l.b16 %v2551
      %v2648 = vunpack.c.l.b16 %v2552
      %v2649 = vunpack.c.l.b16 %v2553
      %v2650 = vunpack.c.l.b16 %v2554
      %v2651 = vunpack.c.l.b16 %v2555
      %v2652 = vunpack.c.l.b16 %v2556
      %v2653 = vunpack.c.l.b16 %v2557
      %v2654 = vunpack.c.l.b16 %v2558
      %v2655 = vunpack.c.l.b16 %v2559
      %v2656 = vunpack.c.l.b16 %v2560
      %v2657 = vunpack.c.l.b16 %v2561
      %v2658 = vunpack.c.l.b16 %v2562
      %v2659 = vunpack.c.l.b16 %v2563
      %v2660 = vunpack.c.l.b16 %v2564
      %v2661 = vunpack.c.l.b16 %v2565
      %v2662 = vunpack.c.l.b16 %v2566
      %v2663 = vunpack.c.l.b16 %v2567
      %v2664 = vunpack.c.l.b16 %v2568
      %v2665 = vunpack.c.l.b16 %v2569
      %v2666 = vunpack.c.l.b16 %v2570
      %v2667 = vunpack.c.l.b16 %v2571
      %v2668 = vunpack.c.l.b16 %v2572
      %v2669 = vunpack.c.l.b16 %v2573
      %v2670 = vunpack.c.l.b16 %v2574
      %v2671 = vunpack.c.l.b16 %v2575
      %v2672 = vunpack.c.l.b16 %v2576
      %v2673 = vunpack.c.l.b16 %v2577
      %v2674 = vunpack.c.l.b16 %v2578
      %v2675 = vunpack.c.l.b16 %v2579
      %v2676 = vunpack.c.l.b16 %v2580
      %v2677 = vunpack.c.l.b16 %v2581
      %v2678 = vunpack.c.l.b16 %v2582
      %v2679 = vunpack.c.l.b16 %v2583
      %v2680 = vunpack.c.l.b16 %v2584
      %v2681 = vunpack.c.l.b16 %v2585
      %v2682 = vunpack.c.l.b16 %v2586
      %v2683 = vunpack.c.l.b16 %v2587
      %v2684 = vunpack.c.l.b16 %v2588
      %v2685 = vunpack.c.l.b16 %v2589
      %v2686 = vunpack.c.l.b16 %v2590
      %v2687 = vunpack.c.l.b16 %v2591
      %v2688 = vunpack.c.l.b16 %v2592
      %v2689 = vunpack.c.l.b16 %v2593
      %v2690 = vunpack.c.l.b16 %v2594
      %v2691 = vunpack.c.l.b16 %v2595
      %v2692 = vunpack.c.l.b16 %v2596
      %v2693 = vunpack.c.l.b16 %v2597
      %v2694 = vunpack.c.l.b16 %v2598
      %v2695 = vpack.c.b16 %v2648, %v2647
      %v2696 = vpack.c.b16 %v2650, %v2649
      %v2697 = vpack.c.b16 %v2652, %v2651
      %v2698 = vpack.c.b16 %v2654, %v2653
      %v2699 = vpack.c.b16 %v2656, %v2655
      %v2700 = vpack.c.b16 %v2658, %v2657
      %v2701 = vpack.c.b16 %v2660, %v2659
      %v2702 = vpack.c.b16 %v2662, %v2661
      %v2703 = vpack.c.b16 %v2664, %v2663
      %v2704 = vpack.c.b16 %v2666, %v2665
      %v2705 = vpack.c.b16 %v2668, %v2667
      %v2706 = vpack.c.b16 %v2670, %v2669
      %v2707 = vpack.c.b16 %v2672, %v2671
      %v2708 = vpack.c.b16 %v2674, %v2673
      %v2709 = vpack.c.b16 %v2676, %v2675
      %v2710 = vpack.c.b16 %v2678, %v2677
      %v2711 = vpack.c.b16 %v2680, %v2679
      %v2712 = vpack.c.b16 %v2682, %v2681
      %v2713 = vpack.c.b16 %v2684, %v2683
      %v2714 = vpack.c.b16 %v2686, %v2685
      %v2715 = vpack.c.b16 %v2688, %v2687
      %v2716 = vpack.c.b16 %v2690, %v2689
      %v2717 = vpack.c.b16 %v2692, %v2691
      %v2718 = vpack.c.b16 %v2694, %v2693
      %2743 = vmatprep.subr.bf16.mxu0 0
      %2744 = vmatpush1.bf16.msra.mxu0 %v2695
      %2745 = vmatprep.subr.bf16.mxu0 0
      %2746 = vmatpush1.bf16.msra.mxu0 %v2696
      %2747 = vmatprep.subr.bf16.mxu0 0
      %2748 = vmatpush1.bf16.msra.mxu0 %v2697
      %2749 = vmatprep.subr.bf16.mxu0 0
      %2750 = vmatpush1.bf16.msra.mxu0 %v2698
      %2751 = vmatprep.subr.bf16.mxu0 0
      %2752 = vmatpush1.bf16.msra.mxu0 %v2699
      %2753 = vmatprep.subr.bf16.mxu0 0
      %2754 = vmatpush1.bf16.msra.mxu0 %v2700
      %2755 = vmatprep.subr.bf16.mxu0 0
      %2756 = vmatpush1.bf16.msra.mxu0 %v2701
      %2757 = vmatprep.subr.bf16.mxu0 0
      %2758 = vmatpush1.bf16.msra.mxu0 %v2702
      %2759 = vmatprep.subr.bf16.mxu0 0
      %2760 = vmatpush1.bf16.msra.mxu0 %v2703
      %2761 = vmatprep.subr.bf16.mxu0 0
      %2762 = vmatpush1.bf16.msra.mxu0 %v2704
      %2763 = vmatprep.subr.bf16.mxu0 0
      %2764 = vmatpush1.bf16.msra.mxu0 %v2705
      %2765 = vmatprep.subr.bf16.mxu0 0
      %2766 = vmatpush1.bf16.msra.mxu0 %v2706
      %2767 = vmatprep.subr.bf16.mxu0 0
      %2768 = vmatpush1.bf16.msra.mxu0 %v2707
      %2769 = vmatprep.subr.bf16.mxu0 0
      %2770 = vmatpush1.bf16.msra.mxu0 %v2708
      %2771 = vmatprep.subr.bf16.mxu0 0
      %2772 = vmatpush1.bf16.msra.mxu0 %v2709
      %2773 = vmatprep.subr.bf16.mxu0 0
      %2774 = vmatpush1.bf16.msra.mxu0 %v2710
      %2775 = vmatprep.mubr.bf16.mxu0 %v1469
      %2776 = vmatmul.mubr.bf16.gmra.mrb[0].mxu0 %v1468
      %v2777 = vpop.f32.mrb[0].mxu0
      %v2778 = vadd.f32 0.0, %v2777
      %v2779 = vpop.f32.mrb[0].mxu0
      %v2780 = vpop.f32.mrb[0].mxu0
      %v2781 = vadd.f32 0.0, %v2780
      %v2782 = vpop.f32.mrb[0].mxu0
      %2783 = vmatprep.mubr.bf16.mxu0 %v1472
      %2784 = vmatmul.mubr.bf16.gmra.mrb[0].mxu0 %v1471
      %v2785 = vpop.f32.mrb[0].mxu0
      %v2786 = vadd.f32 0.0, %v2785
      %v2787 = vpop.f32.mrb[0].mxu0
      %v2788 = vpop.f32.mrb[0].mxu0
      %v2789 = vadd.f32 0.0, %v2788
      %v2790 = vpop.f32.mrb[0].mxu0
      %2791 = vmatprep.mubr.bf16.mxu0 %v1475
      %2792 = vmatmul.mubr.bf16.gmra.mrb[0].mxu0 %v1474
      %v2793 = vpop.f32.mrb[0].mxu0
      %v2794 = vadd.f32 0.0, %v2793
      %v2795 = vpop.f32.mrb[0].mxu0
      %v2796 = vpop.f32.mrb[0].mxu0
      %v2797 = vadd.f32 0.0, %v2796
      %v2798 = vpop.f32.mrb[0].mxu0
      %2799 = vmatprep.mubr.bf16.mxu0 %v1478
      %2800 = vmatmul.mubr.bf16.gmra.mrb[0].mxu0 %v1477
      %v2801 = vpop.f32.mrb[0].mxu0
      %v2802 = vadd.f32 0.0, %v2801
      %v2803 = vpop.f32.mrb[0].mxu0
      %v2804 = vpop.f32.mrb[0].mxu0
      %v2805 = vadd.f32 0.0, %v2804
      %v2806 = vpop.f32.mrb[0].mxu0
      %2807 = vmatprep.mubr.bf16.mxu0 %v1481
      %2808 = vmatmul.mubr.bf16.gmra.mrb[0].mxu0 %v1480
      %v2809 = vpop.f32.mrb[0].mxu0
      %v2810 = vadd.f32 0.0, %v2809
      %v2811 = vpop.f32.mrb[0].mxu0
      %v2812 = vpop.f32.mrb[0].mxu0
      %v2813 = vadd.f32 0.0, %v2812
      %v2814 = vpop.f32.mrb[0].mxu0
      %2815 = vmatprep.mubr.bf16.mxu0 %v1484
      %2816 = vmatmul.mubr.bf16.gmra.mrb[0].mxu0 %v1483
      %v2817 = vpop.f32.mrb[0].mxu0
      %v2818 = vadd.f32 0.0, %v2817
      %v2819 = vpop.f32.mrb[0].mxu0
      %v2820 = vpop.f32.mrb[0].mxu0
      %v2821 = vadd.f32 0.0, %v2820
      %v2822 = vpop.f32.mrb[0].mxu0
      %2823 = vmatprep.mubr.bf16.mxu0 %v1487
      %2824 = vmatmul.mubr.bf16.gmra.mrb[0].mxu0 %v1486
      %v2825 = vpop.f32.mrb[0].mxu0
      %v2826 = vadd.f32 0.0, %v2825
      %v2827 = vpop.f32.mrb[0].mxu0
      %v2828 = vpop.f32.mrb[0].mxu0
      %v2829 = vadd.f32 0.0, %v2828
      %v2830 = vpop.f32.mrb[0].mxu0
      %2831 = vmatprep.mubr.bf16.mxu0 %v1490
      %2832 = vmatmul.mubr.bf16.gmra.mrb[0].mxu0 %v1489
      %v2833 = vpop.f32.mrb[0].mxu0
      %v2834 = vadd.f32 0.0, %v2833
      %v2835 = vpop.f32.mrb[0].mxu0
      %v2836 = vpop.f32.mrb[0].mxu0
      %v2837 = vadd.f32 0.0, %v2836
      %v2838 = vpop.f32.mrb[0].mxu0
      %2839 = vmatprep.mubr.bf16.mxu0 %v1493
      %2840 = vmatmul.mubr.bf16.gmra.mrb[0].mxu0 %v1492
      %v2841 = vpop.f32.mrb[0].mxu0
      %v2842 = vadd.f32 0.0, %v2841
      %v2843 = vpop.f32.mrb[0].mxu0
      %v2844 = vpop.f32.mrb[0].mxu0
      %v2845 = vadd.f32 0.0, %v2844
      %v2846 = vpop.f32.mrb[0].mxu0
      %2847 = vmatprep.mubr.bf16.mxu0 %v1496
      %2848 = vmatmul.mubr.bf16.gmra.mrb[0].mxu0 %v1495
      %v2849 = vpop.f32.mrb[0].mxu0
      %v2850 = vadd.f32 0.0, %v2849
      %v2851 = vpop.f32.mrb[0].mxu0
      %v2852 = vpop.f32.mrb[0].mxu0
      %v2853 = vadd.f32 0.0, %v2852
      %v2854 = vpop.f32.mrb[0].mxu0
      %2855 = vmatprep.mubr.bf16.mxu0 %v1499
      %2856 = vmatmul.mubr.bf16.gmra.mrb[0].mxu0 %v1498
      %v2857 = vpop.f32.mrb[0].mxu0
      %v2858 = vadd.f32 0.0, %v2857
      %v2859 = vpop.f32.mrb[0].mxu0
      %v2860 = vpop.f32.mrb[0].mxu0
      %v2861 = vadd.f32 0.0, %v2860
      %v2862 = vpop.f32.mrb[0].mxu0
      %2863 = vmatprep.mubr.bf16.mxu0 %v1502
      %2864 = vmatmul.mubr.bf16.gmra.mrb[0].mxu0 %v1501
      %v2865 = vpop.f32.mrb[0].mxu0
      %v2866 = vadd.f32 0.0, %v2865
      %v2867 = vpop.f32.mrb[0].mxu0
      %v2868 = vpop.f32.mrb[0].mxu0
      %v2869 = vadd.f32 0.0, %v2868
      %v2870 = vpop.f32.mrb[0].mxu0
      %2871 = vmatprep.mubr.bf16.mxu0 %v1505
      %2872 = vmatmul.mubr.bf16.gmra.mrb[0].mxu0 %v1504
      %v2873 = vpop.f32.mrb[0].mxu0
      %v2874 = vadd.f32 0.0, %v2873
      %v2875 = vpop.f32.mrb[0].mxu0
      %v2876 = vpop.f32.mrb[0].mxu0
      %v2877 = vadd.f32 0.0, %v2876
      %v2878 = vpop.f32.mrb[0].mxu0
      %2879 = vmatprep.mubr.bf16.mxu0 %v1508
      %2880 = vmatmul.mubr.bf16.gmra.mrb[0].mxu0 %v1507
      %v2881 = vpop.f32.mrb[0].mxu0
      %v2882 = vadd.f32 0.0, %v2881
      %v2883 = vpop.f32.mrb[0].mxu0
      %v2884 = vpop.f32.mrb[0].mxu0
      %v2885 = vadd.f32 0.0, %v2884
      %v2886 = vpop.f32.mrb[0].mxu0
      %2887 = vmatprep.mubr.bf16.mxu0 %v1511
      %2888 = vmatmul.mubr.bf16.gmra.mrb[0].mxu0 %v1510
      %v2889 = vpop.f32.mrb[0].mxu0
      %v2890 = vadd.f32 0.0, %v2889
      %v2891 = vpop.f32.mrb[0].mxu0
      %v2892 = vpop.f32.mrb[0].mxu0
      %v2893 = vadd.f32 0.0, %v2892
      %v2894 = vpop.f32.mrb[0].mxu0
      %2895 = vmatprep.mubr.bf16.mxu0 %v1514
      %2896 = vmatmul.mubr.bf16.gmra.mrb[0].mxu0 %v1513
      %v2897 = vpop.f32.mrb[0].mxu0
      %v2898 = vadd.f32 0.0, %v2897
      %v2899 = vpop.f32.mrb[0].mxu0
      %v2900 = vpop.f32.mrb[0].mxu0
      %v2901 = vadd.f32 0.0, %v2900
      %v2902 = vpop.f32.mrb[0].mxu0
      %2903 = vmatprep.mubr.bf16.mxu0 %v1517
      %2904 = vmatmul.mubr.bf16.gmra.mrb[0].mxu0 %v1516
      %v2905 = vpop.f32.mrb[0].mxu0
      %v2906 = vadd.f32 0.0, %v2905
      %v2907 = vpop.f32.mrb[0].mxu0
      %v2908 = vpop.f32.mrb[0].mxu0
      %v2909 = vadd.f32 0.0, %v2908
      %v2910 = vpop.f32.mrb[0].mxu0
      %2911 = vmatprep.mubr.bf16.mxu0 %v1520
      %2912 = vmatmul.mubr.bf16.gmra.mrb[0].mxu0 %v1519
      %v2913 = vpop.f32.mrb[0].mxu0
      %v2914 = vadd.f32 0.0, %v2913
      %v2915 = vpop.f32.mrb[0].mxu0
      %v2916 = vpop.f32.mrb[0].mxu0
      %v2917 = vadd.f32 0.0, %v2916
      %v2918 = vpop.f32.mrb[0].mxu0
      %2919 = vmatprep.mubr.bf16.mxu0 %v1523
      %2920 = vmatmul.mubr.bf16.gmra.mrb[0].mxu0 %v1522
      %v2921 = vpop.f32.mrb[0].mxu0
      %v2922 = vadd.f32 0.0, %v2921
      %v2923 = vpop.f32.mrb[0].mxu0
      %v2924 = vpop.f32.mrb[0].mxu0
      %v2925 = vadd.f32 0.0, %v2924
      %v2926 = vpop.f32.mrb[0].mxu0
      %2927 = vmatprep.mubr.bf16.mxu0 %v1526
      %2928 = vmatmul.mubr.bf16.gmra.mrb[0].mxu0 %v1525
      %v2929 = vpop.f32.mrb[0].mxu0
      %v2930 = vadd.f32 0.0, %v2929
      %v2931 = vpop.f32.mrb[0].mxu0
      %v2932 = vpop.f32.mrb[0].mxu0
      %v2933 = vadd.f32 0.0, %v2932
      %v2934 = vpop.f32.mrb[0].mxu0
      %2935 = vmatprep.mubr.bf16.mxu0 %v1529
      %2936 = vmatmul.mubr.bf16.gmra.mrb[0].mxu0 %v1528
      %v2937 = vpop.f32.mrb[0].mxu0
      %v2938 = vadd.f32 0.0, %v2937
      %v2939 = vpop.f32.mrb[0].mxu0
      %v2940 = vpop.f32.mrb[0].mxu0
      %v2941 = vadd.f32 0.0, %v2940
      %v2942 = vpop.f32.mrb[0].mxu0
      %2943 = vmatprep.mubr.bf16.mxu0 %v1532
      %2944 = vmatmul.mubr.bf16.gmra.mrb[0].mxu0 %v1531
      %v2945 = vpop.f32.mrb[0].mxu0
      %v2946 = vadd.f32 0.0, %v2945
      %v2947 = vpop.f32.mrb[0].mxu0
      %v2948 = vpop.f32.mrb[0].mxu0
      %v2949 = vadd.f32 0.0, %v2948
      %v2950 = vpop.f32.mrb[0].mxu0
      %2951 = vmatprep.mubr.bf16.mxu0 %v1535
      %2952 = vmatmul.mubr.bf16.gmra.mrb[0].mxu0 %v1534
      %v2953 = vpop.f32.mrb[0].mxu0
      %v2954 = vadd.f32 0.0, %v2953
      %v2955 = vpop.f32.mrb[0].mxu0
      %v2956 = vpop.f32.mrb[0].mxu0
      %v2957 = vadd.f32 0.0, %v2956
      %v2958 = vpop.f32.mrb[0].mxu0
      %2959 = vmatprep.mubr.bf16.mxu0 %v1538
      %2960 = vmatmul.mubr.bf16.gmra.mrb[0].mxu0 %v1537
      %v2961 = vpop.f32.mrb[0].mxu0
      %v2962 = vadd.f32 0.0, %v2961
      %v2963 = vpop.f32.mrb[0].mxu0
      %v2964 = vpop.f32.mrb[0].mxu0
      %v2965 = vadd.f32 0.0, %v2964
      %v2966 = vpop.f32.mrb[0].mxu0
      %2967 = vmatprep.mubr.bf16.mxu0 %v1541
      %2968 = vmatmul.mubr.bf16.gmra.mrb[0].mxu0 %v1540
      %v2969 = vpop.f32.mrb[0].mxu0
      %v2970 = vadd.f32 0.0, %v2969
      %v2971 = vpop.f32.mrb[0].mxu0
      %v2972 = vpop.f32.mrb[0].mxu0
      %v2973 = vadd.f32 0.0, %v2972
      %v2974 = vpop.f32.mrb[0].mxu0
      %2975 = vmatprep.mubr.bf16.mxu0 %v1544
      %2976 = vmatmul.mubr.bf16.gmra.mrb[0].mxu0 %v1543
      %v2977 = vpop.f32.mrb[0].mxu0
      %v2978 = vadd.f32 0.0, %v2977
      %v2979 = vpop.f32.mrb[0].mxu0
      %v2980 = vpop.f32.mrb[0].mxu0
      %v2981 = vadd.f32 0.0, %v2980
      %v2982 = vpop.f32.mrb[0].mxu0
      %2983 = vmatprep.mubr.bf16.mxu0 %v1547
      %2984 = vmatmul.mubr.bf16.gmra.mrb[0].mxu0 %v1546
      %v2985 = vpop.f32.mrb[0].mxu0
      %v2986 = vadd.f32 0.0, %v2985
      %v2987 = vpop.f32.mrb[0].mxu0
      %v2988 = vpop.f32.mrb[0].mxu0
      %v2989 = vadd.f32 0.0, %v2988
      %v2990 = vpop.f32.mrb[0].mxu0
      %2991 = vmatprep.mubr.bf16.mxu0 %v1550
      %2992 = vmatmul.mubr.bf16.gmra.mrb[0].mxu0 %v1549
      %v2993 = vpop.f32.mrb[0].mxu0
      %v2994 = vadd.f32 0.0, %v2993
      %v2995 = vpop.f32.mrb[0].mxu0
      %v2996 = vpop.f32.mrb[0].mxu0
      %v2997 = vadd.f32 0.0, %v2996
      %v2998 = vpop.f32.mrb[0].mxu0
      %2999 = vmatprep.mubr.bf16.mxu0 %v1553
      %3000 = vmatmul.mubr.bf16.gmra.mrb[0].mxu0 %v1552
      %v3001 = vpop.f32.mrb[0].mxu0
      %v3002 = vadd.f32 0.0, %v3001
      %v3003 = vpop.f32.mrb[0].mxu0
      %v3004 = vpop.f32.mrb[0].mxu0
      %v3005 = vadd.f32 0.0, %v3004
      %v3006 = vpop.f32.mrb[0].mxu0
      %3007 = vmatprep.mubr.bf16.mxu0 %v1556
      %3008 = vmatmul.mubr.bf16.gmra.mrb[0].mxu0 %v1555
      %v3009 = vpop.f32.mrb[0].mxu0
      %v3010 = vadd.f32 0.0, %v3009
      %v3011 = vpop.f32.mrb[0].mxu0
      %v3012 = vpop.f32.mrb[0].mxu0
      %v3013 = vadd.f32 0.0, %v3012
      %v3014 = vpop.f32.mrb[0].mxu0
      %3015 = vmatprep.mubr.bf16.mxu0 %v1559
      %3016 = vmatmul.mubr.bf16.gmra.mrb[0].mxu0 %v1558
      %v3017 = vpop.f32.mrb[0].mxu0
      %v3018 = vadd.f32 0.0, %v3017
      %v3019 = vpop.f32.mrb[0].mxu0
      %v3020 = vpop.f32.mrb[0].mxu0
      %v3021 = vadd.f32 0.0, %v3020
      %v3022 = vpop.f32.mrb[0].mxu0
      %3023 = vmatprep.mubr.bf16.mxu0 %v1562
      %3024 = vmatmul.mubr.bf16.gmra.mrb[0].mxu0 %v1561
      %v3025 = vpop.f32.mrb[0].mxu0
      %v3026 = vadd.f32 0.0, %v3025
      %v3027 = vpop.f32.mrb[0].mxu0
      %v3028 = vpop.f32.mrb[0].mxu0
      %v3029 = vadd.f32 0.0, %v3028
      %v3030 = vpop.f32.mrb[0].mxu0
      %3031 = vmatprep.mubr.bf16.mxu0 %v1565
      %3032 = vmatmul.mubr.bf16.gmra.mrb[0].mxu0 %v1564
      %v3033 = vpop.f32.mrb[0].mxu0
      %v3034 = vadd.f32 0.0, %v3033
      %v3035 = vpop.f32.mrb[0].mxu0
      %v3036 = vpop.f32.mrb[0].mxu0
      %v3037 = vadd.f32 0.0, %v3036
      %v3038 = vpop.f32.mrb[0].mxu0
      %3039 = vmatprep.mubr.bf16.mxu0 %v1568
      %3040 = vmatmul.mubr.bf16.gmra.mrb[0].mxu0 %v1567
      %v3041 = vpop.f32.mrb[0].mxu0
      %v3042 = vadd.f32 0.0, %v3041
      %v3043 = vpop.f32.mrb[0].mxu0
      %v3044 = vpop.f32.mrb[0].mxu0
      %v3045 = vadd.f32 0.0, %v3044
      %v3046 = vpop.f32.mrb[0].mxu0
      %3047 = vdwg.mxu0
      %3048 = vmatprep.subr.bf16.mxu0 0
      %3049 = vmatpush1.bf16.msra.mxu0 %v2711
      %3050 = vmatprep.subr.bf16.mxu0 0
      %3051 = vmatpush1.bf16.msra.mxu0 %v2712
      %3052 = vmatprep.subr.bf16.mxu0 0
      %3053 = vmatpush1.bf16.msra.mxu0 %v2713
      %3054 = vmatprep.subr.bf16.mxu0 0
      %3055 = vmatpush1.bf16.msra.mxu0 %v2714
      %3056 = vmatprep.subr.bf16.mxu0 0
      %3057 = vmatpush1.bf16.msra.mxu0 %v2715
      %3058 = vmatprep.subr.bf16.mxu0 0
      %3059 = vmatpush1.bf16.msra.mxu0 %v2716
      %3060 = vmatprep.subr.bf16.mxu0 0
      %3061 = vmatpush1.bf16.msra.mxu0 %v2717
      %3062 = vmatprep.subr.bf16.mxu0 0
      %3063 = vmatpush1.bf16.msra.mxu0 %v2718
      %3064 = vmatprep.subr.bf16.mxu0 0
      %3065 = vmatpush1.bf16.msra.mxu0 0
      %3066 = vmatprep.subr.bf16.mxu0 0
      %3067 = vmatpush1.bf16.msra.mxu0 0
      %3068 = vmatprep.subr.bf16.mxu0 0
      %3069 = vmatpush1.bf16.msra.mxu0 0
      %3070 = vmatprep.subr.bf16.mxu0 0
      %3071 = vmatpush1.bf16.msra.mxu0 0
      %3072 = vmatprep.subr.bf16.mxu0 0
      %3073 = vmatpush1.bf16.msra.mxu0 0
      %3074 = vmatprep.subr.bf16.mxu0 0
      %3075 = vmatpush1.bf16.msra.mxu0 0
      %3076 = vmatprep.subr.bf16.mxu0 0
      %3077 = vmatpush1.bf16.msra.mxu0 0
      %3078 = vmatprep.subr.bf16.mxu0 0
      %3079 = vmatpush1.bf16.msra.mxu0 0
      %3080 = vmatprep.mubr.bf16.mxu0 0
      %3081 = vmatmul.mubr.bf16.gmra.mrb[0].mxu0 %v1470
      %v3082 = vpop.f32.mrb[0].mxu0
      %v3083 = vadd.f32 %v2778, %v3082
      %v3084 = vpop.f32.mrb[0].mxu0
      %v3085 = vpop.f32.mrb[0].mxu0
      %v3086 = vadd.f32 %v2781, %v3085
      %v3087 = vpop.f32.mrb[0].mxu0
      %3088 = vmatprep.mubr.bf16.mxu0 0
      %3089 = vmatmul.mubr.bf16.gmra.mrb[0].mxu0 %v1473
      %v3090 = vpop.f32.mrb[0].mxu0
      %v3091 = vadd.f32 %v2786, %v3090
      %v3092 = vpop.f32.mrb[0].mxu0
      %v3093 = vpop.f32.mrb[0].mxu0
      %v3094 = vadd.f32 %v2789, %v3093
      %v3095 = vpop.f32.mrb[0].mxu0
      %3096 = vmatprep.mubr.bf16.mxu0 0
      %3097 = vmatmul.mubr.bf16.gmra.mrb[0].mxu0 %v1476
      %v3098 = vpop.f32.mrb[0].mxu0
      %v3099 = vadd.f32 %v2794, %v3098
      %v3100 = vpop.f32.mrb[0].mxu0
      %v3101 = vpop.f32.mrb[0].mxu0
      %v3102 = vadd.f32 %v2797, %v3101
      %v3103 = vpop.f32.mrb[0].mxu0
      %3104 = vmatprep.mubr.bf16.mxu0 0
      %3105 = vmatmul.mubr.bf16.gmra.mrb[0].mxu0 %v1479
      %v3106 = vpop.f32.mrb[0].mxu0
      %v3107 = vadd.f32 %v2802, %v3106
      %v3108 = vpop.f32.mrb[0].mxu0
      %v3109 = vpop.f32.mrb[0].mxu0
      %v3110 = vadd.f32 %v2805, %v3109
      %v3111 = vpop.f32.mrb[0].mxu0
      %3112 = vmatprep.mubr.bf16.mxu0 0
      %3113 = vmatmul.mubr.bf16.gmra.mrb[0].mxu0 %v1482
      %v3114 = vpop.f32.mrb[0].mxu0
      %v3115 = vadd.f32 %v2810, %v3114
      %v3116 = vpop.f32.mrb[0].mxu0
      %v3117 = vpop.f32.mrb[0].mxu0
      %v3118 = vadd.f32 %v2813, %v3117
      %v3119 = vpop.f32.mrb[0].mxu0
      %3120 = vmatprep.mubr.bf16.mxu0 0
      %3121 = vmatmul.mubr.bf16.gmra.mrb[0].mxu0 %v1485
      %v3122 = vpop.f32.mrb[0].mxu0
      %v3123 = vadd.f32 %v2818, %v3122
      %v3124 = vpop.f32.mrb[0].mxu0
      %v3125 = vpop.f32.mrb[0].mxu0
      %v3126 = vadd.f32 %v2821, %v3125
      %v3127 = vpop.f32.mrb[0].mxu0
      %3128 = vmatprep.mubr.bf16.mxu0 0
      %3129 = vmatmul.mubr.bf16.gmra.mrb[0].mxu0 %v1488
      %v3130 = vpop.f32.mrb[0].mxu0
      %v3131 = vadd.f32 %v2826, %v3130
      %v3132 = vpop.f32.mrb[0].mxu0
      %v3133 = vpop.f32.mrb[0].mxu0
      %v3134 = vadd.f32 %v2829, %v3133
      %v3135 = vpop.f32.mrb[0].mxu0
      %3136 = vmatprep.mubr.bf16.mxu0 0
      %3137 = vmatmul.mubr.bf16.gmra.mrb[0].mxu0 %v1491
      %v3138 = vpop.f32.mrb[0].mxu0
      %v3139 = vadd.f32 %v2834, %v3138
      %v3140 = vpop.f32.mrb[0].mxu0
      %v3141 = vpop.f32.mrb[0].mxu0
      %v3142 = vadd.f32 %v2837, %v3141
      %v3143 = vpop.f32.mrb[0].mxu0
      %3144 = vmatprep.mubr.bf16.mxu0 0
      %3145 = vmatmul.mubr.bf16.gmra.mrb[0].mxu0 %v1494
      %v3146 = vpop.f32.mrb[0].mxu0
      %v3147 = vadd.f32 %v2842, %v3146
      %v3148 = vpop.f32.mrb[0].mxu0
      %v3149 = vpop.f32.mrb[0].mxu0
      %v3150 = vadd.f32 %v2845, %v3149
      %v3151 = vpop.f32.mrb[0].mxu0
      %3152 = vmatprep.mubr.bf16.mxu0 0
      %3153 = vmatmul.mubr.bf16.gmra.mrb[0].mxu0 %v1497
      %v3154 = vpop.f32.mrb[0].mxu0
      %v3155 = vadd.f32 %v2850, %v3154
      %v3156 = vpop.f32.mrb[0].mxu0
      %v3157 = vpop.f32.mrb[0].mxu0
      %v3158 = vadd.f32 %v2853, %v3157
      %v3159 = vpop.f32.mrb[0].mxu0
      %3160 = vmatprep.mubr.bf16.mxu0 0
      %3161 = vmatmul.mubr.bf16.gmra.mrb[0].mxu0 %v1500
      %v3162 = vpop.f32.mrb[0].mxu0
      %v3163 = vadd.f32 %v2858, %v3162
      %v3164 = vpop.f32.mrb[0].mxu0
      %v3165 = vpop.f32.mrb[0].mxu0
      %v3166 = vadd.f32 %v2861, %v3165
      %v3167 = vpop.f32.mrb[0].mxu0
      %3168 = vmatprep.mubr.bf16.mxu0 0
      %3169 = vmatmul.mubr.bf16.gmra.mrb[0].mxu0 %v1503
      %v3170 = vpop.f32.mrb[0].mxu0
      %v3171 = vadd.f32 %v2866, %v3170
      %v3172 = vpop.f32.mrb[0].mxu0
      %v3173 = vpop.f32.mrb[0].mxu0
      %v3174 = vadd.f32 %v2869, %v3173
      %v3175 = vpop.f32.mrb[0].mxu0
      %3176 = vmatprep.mubr.bf16.mxu0 0
      %3177 = vmatmul.mubr.bf16.gmra.mrb[0].mxu0 %v1506
      %v3178 = vpop.f32.mrb[0].mxu0
      %v3179 = vadd.f32 %v2874, %v3178
      %v3180 = vpop.f32.mrb[0].mxu0
      %v3181 = vpop.f32.mrb[0].mxu0
      %v3182 = vadd.f32 %v2877, %v3181
      %v3183 = vpop.f32.mrb[0].mxu0
      %3184 = vmatprep.mubr.bf16.mxu0 0
      %3185 = vmatmul.mubr.bf16.gmra.mrb[0].mxu0 %v1509
      %v3186 = vpop.f32.mrb[0].mxu0
      %v3187 = vadd.f32 %v2882, %v3186
      %v3188 = vpop.f32.mrb[0].mxu0
      %v3189 = vpop.f32.mrb[0].mxu0
      %v3190 = vadd.f32 %v2885, %v3189
      %v3191 = vpop.f32.mrb[0].mxu0
      %3192 = vmatprep.mubr.bf16.mxu0 0
      %3193 = vmatmul.mubr.bf16.gmra.mrb[0].mxu0 %v1512
      %v3194 = vpop.f32.mrb[0].mxu0
      %v3195 = vadd.f32 %v2890, %v3194
      %v3196 = vpop.f32.mrb[0].mxu0
      %v3197 = vpop.f32.mrb[0].mxu0
      %v3198 = vadd.f32 %v2893, %v3197
      %v3199 = vpop.f32.mrb[0].mxu0
      %3200 = vmatprep.mubr.bf16.mxu0 0
      %3201 = vmatmul.mubr.bf16.gmra.mrb[0].mxu0 %v1515
      %v3202 = vpop.f32.mrb[0].mxu0
      %v3203 = vadd.f32 %v2898, %v3202
      %v3204 = vpop.f32.mrb[0].mxu0
      %v3205 = vpop.f32.mrb[0].mxu0
      %v3206 = vadd.f32 %v2901, %v3205
      %v3207 = vpop.f32.mrb[0].mxu0
      %3208 = vmatprep.mubr.bf16.mxu0 0
      %3209 = vmatmul.mubr.bf16.gmra.mrb[0].mxu0 %v1518
      %v3210 = vpop.f32.mrb[0].mxu0
      %v3211 = vadd.f32 %v2906, %v3210
      %v3212 = vpop.f32.mrb[0].mxu0
      %v3213 = vpop.f32.mrb[0].mxu0
      %v3214 = vadd.f32 %v2909, %v3213
      %v3215 = vpop.f32.mrb[0].mxu0
      %3216 = vmatprep.mubr.bf16.mxu0 0
      %3217 = vmatmul.mubr.bf16.gmra.mrb[0].mxu0 %v1521
      %v3218 = vpop.f32.mrb[0].mxu0
      %v3219 = vadd.f32 %v2914, %v3218
      %v3220 = vpop.f32.mrb[0].mxu0
      %v3221 = vpop.f32.mrb[0].mxu0
      %v3222 = vadd.f32 %v2917, %v3221
      %v3223 = vpop.f32.mrb[0].mxu0
      %3224 = vmatprep.mubr.bf16.mxu0 0
      %3225 = vmatmul.mubr.bf16.gmra.mrb[0].mxu0 %v1524
      %v3226 = vpop.f32.mrb[0].mxu0
      %v3227 = vadd.f32 %v2922, %v3226
      %v3228 = vpop.f32.mrb[0].mxu0
      %v3229 = vpop.f32.mrb[0].mxu0
      %v3230 = vadd.f32 %v2925, %v3229
      %v3231 = vpop.f32.mrb[0].mxu0
      %3232 = vmatprep.mubr.bf16.mxu0 0
      %3233 = vmatmul.mubr.bf16.gmra.mrb[0].mxu0 %v1527
      %v3234 = vpop.f32.mrb[0].mxu0
      %v3235 = vadd.f32 %v2930, %v3234
      %v3236 = vpop.f32.mrb[0].mxu0
      %v3237 = vpop.f32.mrb[0].mxu0
      %v3238 = vadd.f32 %v2933, %v3237
      %v3239 = vpop.f32.mrb[0].mxu0
      %3240 = vmatprep.mubr.bf16.mxu0 0
      %3241 = vmatmul.mubr.bf16.gmra.mrb[0].mxu0 %v1530
      %v3242 = vpop.f32.mrb[0].mxu0
      %v3243 = vadd.f32 %v2938, %v3242
      %v3244 = vpop.f32.mrb[0].mxu0
      %v3245 = vpop.f32.mrb[0].mxu0
      %v3246 = vadd.f32 %v2941, %v3245
      %v3247 = vpop.f32.mrb[0].mxu0
      %3248 = vmatprep.mubr.bf16.mxu0 0
      %3249 = vmatmul.mubr.bf16.gmra.mrb[0].mxu0 %v1533
      %v3250 = vpop.f32.mrb[0].mxu0
      %v3251 = vadd.f32 %v2946, %v3250
      %v3252 = vpop.f32.mrb[0].mxu0
      %v3253 = vpop.f32.mrb[0].mxu0
      %v3254 = vadd.f32 %v2949, %v3253
      %v3255 = vpop.f32.mrb[0].mxu0
      %3256 = vmatprep.mubr.bf16.mxu0 0
      %3257 = vmatmul.mubr.bf16.gmra.mrb[0].mxu0 %v1536
      %v3258 = vpop.f32.mrb[0].mxu0
      %v3259 = vadd.f32 %v2954, %v3258
      %v3260 = vpop.f32.mrb[0].mxu0
      %v3261 = vpop.f32.mrb[0].mxu0
      %v3262 = vadd.f32 %v2957, %v3261
      %v3263 = vpop.f32.mrb[0].mxu0
      %3264 = vmatprep.mubr.bf16.mxu0 0
      %3265 = vmatmul.mubr.bf16.gmra.mrb[0].mxu0 %v1539
      %v3266 = vpop.f32.mrb[0].mxu0
      %v3267 = vadd.f32 %v2962, %v3266
      %v3268 = vpop.f32.mrb[0].mxu0
      %v3269 = vpop.f32.mrb[0].mxu0
      %v3270 = vadd.f32 %v2965, %v3269
      %v3271 = vpop.f32.mrb[0].mxu0
      %3272 = vmatprep.mubr.bf16.mxu0 0
      %3273 = vmatmul.mubr.bf16.gmra.mrb[0].mxu0 %v1542
      %v3274 = vpop.f32.mrb[0].mxu0
      %v3275 = vadd.f32 %v2970, %v3274
      %v3276 = vpop.f32.mrb[0].mxu0
      %v3277 = vpop.f32.mrb[0].mxu0
      %v3278 = vadd.f32 %v2973, %v3277
      %v3279 = vpop.f32.mrb[0].mxu0
      %3280 = vmatprep.mubr.bf16.mxu0 0
      %3281 = vmatmul.mubr.bf16.gmra.mrb[0].mxu0 %v1545
      %v3282 = vpop.f32.mrb[0].mxu0
      %v3283 = vadd.f32 %v2978, %v3282
      %v3284 = vpop.f32.mrb[0].mxu0
      %v3285 = vpop.f32.mrb[0].mxu0
      %v3286 = vadd.f32 %v2981, %v3285
      %v3287 = vpop.f32.mrb[0].mxu0
      %3288 = vmatprep.mubr.bf16.mxu0 0
      %3289 = vmatmul.mubr.bf16.gmra.mrb[0].mxu0 %v1548
      %v3290 = vpop.f32.mrb[0].mxu0
      %v3291 = vadd.f32 %v2986, %v3290
      %v3292 = vpop.f32.mrb[0].mxu0
      %v3293 = vpop.f32.mrb[0].mxu0
      %v3294 = vadd.f32 %v2989, %v3293
      %v3295 = vpop.f32.mrb[0].mxu0
      %3296 = vmatprep.mubr.bf16.mxu0 0
      %3297 = vmatmul.mubr.bf16.gmra.mrb[0].mxu0 %v1551
      %v3298 = vpop.f32.mrb[0].mxu0
      %v3299 = vadd.f32 %v2994, %v3298
      %v3300 = vpop.f32.mrb[0].mxu0
      %v3301 = vpop.f32.mrb[0].mxu0
      %v3302 = vadd.f32 %v2997, %v3301
      %v3303 = vpop.f32.mrb[0].mxu0
      %3304 = vmatprep.mubr.bf16.mxu0 0
      %3305 = vmatmul.mubr.bf16.gmra.mrb[0].mxu0 %v1554
      %v3306 = vpop.f32.mrb[0].mxu0
      %v3307 = vadd.f32 %v3002, %v3306
      %v3308 = vpop.f32.mrb[0].mxu0
      %v3309 = vpop.f32.mrb[0].mxu0
      %v3310 = vadd.f32 %v3005, %v3309
      %v3311 = vpop.f32.mrb[0].mxu0
      %3312 = vmatprep.mubr.bf16.mxu0 0
      %3313 = vmatmul.mubr.bf16.gmra.mrb[0].mxu0 %v1557
      %v3314 = vpop.f32.mrb[0].mxu0
      %v3315 = vadd.f32 %v3010, %v3314
      %v3316 = vpop.f32.mrb[0].mxu0
      %v3317 = vpop.f32.mrb[0].mxu0
      %v3318 = vadd.f32 %v3013, %v3317
      %v3319 = vpop.f32.mrb[0].mxu0
      %3320 = vmatprep.mubr.bf16.mxu0 0
      %3321 = vmatmul.mubr.bf16.gmra.mrb[0].mxu0 %v1560
      %v3322 = vpop.f32.mrb[0].mxu0
      %v3323 = vadd.f32 %v3018, %v3322
      %v3324 = vpop.f32.mrb[0].mxu0
      %v3325 = vpop.f32.mrb[0].mxu0
      %v3326 = vadd.f32 %v3021, %v3325
      %v3327 = vpop.f32.mrb[0].mxu0
      %3328 = vmatprep.mubr.bf16.mxu0 0
      %3329 = vmatmul.mubr.bf16.gmra.mrb[0].mxu0 %v1563
      %v3330 = vpop.f32.mrb[0].mxu0
      %v3331 = vadd.f32 %v3026, %v3330
      %v3332 = vpop.f32.mrb[0].mxu0
      %v3333 = vpop.f32.mrb[0].mxu0
      %v3334 = vadd.f32 %v3029, %v3333
      %v3335 = vpop.f32.mrb[0].mxu0
      %3336 = vmatprep.mubr.bf16.mxu0 0
      %3337 = vmatmul.mubr.bf16.gmra.mrb[0].mxu0 %v1566
      %v3338 = vpop.f32.mrb[0].mxu0
      %v3339 = vadd.f32 %v3034, %v3338
      %v3340 = vpop.f32.mrb[0].mxu0
      %v3341 = vpop.f32.mrb[0].mxu0
      %v3342 = vadd.f32 %v3037, %v3341
      %v3343 = vpop.f32.mrb[0].mxu0
      %3344 = vmatprep.mubr.bf16.mxu0 0
      %3345 = vmatmul.mubr.bf16.gmra.mrb[0].mxu0 %v1569
      %v3346 = vpop.f32.mrb[0].mxu0
      %v3347 = vadd.f32 %v3042, %v3346
      %v3348 = vpop.f32.mrb[0].mxu0
      %v3349 = vpop.f32.mrb[0].mxu0
      %v3350 = vadd.f32 %v3045, %v3349
      %v3351 = vpop.f32.mrb[0].mxu0
      %3352 = vdwg.mxu0
      %v3353 = vadd.f32 %v2483, %v3083
      %v3354 = vadd.f32 %v2484, %v3086
      %v3355 = vadd.f32 %v2485, %v3091
      %v3356 = vadd.f32 %v2486, %v3094
      %v3357 = vadd.f32 %v2487, %v3099
      %v3358 = vadd.f32 %v2488, %v3102
      %v3359 = vadd.f32 %v2489, %v3107
      %v3360 = vadd.f32 %v2490, %v3110
      %v3361 = vadd.f32 %v2491, %v3115
      %v3362 = vadd.f32 %v2492, %v3118
      %v3363 = vadd.f32 %v2493, %v3123
      %v3364 = vadd.f32 %v2494, %v3126
      %v3365 = vadd.f32 %v2495, %v3131
      %v3366 = vadd.f32 %v2496, %v3134
      %v3367 = vadd.f32 %v2497, %v3139
      %v3368 = vadd.f32 %v2498, %v3142
      %v3369 = vadd.f32 %v2499, %v3147
      %v3370 = vadd.f32 %v2500, %v3150
      %v3371 = vadd.f32 %v2501, %v3155
      %v3372 = vadd.f32 %v2502, %v3158
      %v3373 = vadd.f32 %v2503, %v3163
      %v3374 = vadd.f32 %v2504, %v3166
      %v3375 = vadd.f32 %v2505, %v3171
      %v3376 = vadd.f32 %v2506, %v3174
      %v3377 = vadd.f32 %v2507, %v3179
      %v3378 = vadd.f32 %v2508, %v3182
      %v3379 = vadd.f32 %v2509, %v3187
      %v3380 = vadd.f32 %v2510, %v3190
      %v3381 = vadd.f32 %v2511, %v3195
      %v3382 = vadd.f32 %v2512, %v3198
      %v3383 = vadd.f32 %v2513, %v3203
      %v3384 = vadd.f32 %v2514, %v3206
      %v3385 = vadd.f32 %v2515, %v3211
      %v3386 = vadd.f32 %v2516, %v3214
      %v3387 = vadd.f32 %v2517, %v3219
      %v3388 = vadd.f32 %v2518, %v3222
      %v3389 = vadd.f32 %v2519, %v3227
      %v3390 = vadd.f32 %v2520, %v3230
      %v3391 = vadd.f32 %v2521, %v3235
      %v3392 = vadd.f32 %v2522, %v3238
      %v3393 = vadd.f32 %v2523, %v3243
      %v3394 = vadd.f32 %v2524, %v3246
      %v3395 = vadd.f32 %v2525, %v3251
      %v3396 = vadd.f32 %v2526, %v3254
      %v3397 = vadd.f32 %v2527, %v3259
      %v3398 = vadd.f32 %v2528, %v3262
      %v3399 = vadd.f32 %v2529, %v3267
      %v3400 = vadd.f32 %v2530, %v3270
      %v3401 = vadd.f32 %v2531, %v3275
      %v3402 = vadd.f32 %v2532, %v3278
      %v3403 = vadd.f32 %v2533, %v3283
      %v3404 = vadd.f32 %v2534, %v3286
      %v3405 = vadd.f32 %v2535, %v3291
      %v3406 = vadd.f32 %v2536, %v3294
      %v3407 = vadd.f32 %v2537, %v3299
      %v3408 = vadd.f32 %v2538, %v3302
      %v3409 = vadd.f32 %v2539, %v3307
      %v3410 = vadd.f32 %v2540, %v3310
      %v3411 = vadd.f32 %v2541, %v3315
      %v3412 = vadd.f32 %v2542, %v3318
      %v3413 = vadd.f32 %v2543, %v3323
      %v3414 = vadd.f32 %v2544, %v3326
      %v3415 = vadd.f32 %v2545, %v3331
      %v3416 = vadd.f32 %v2546, %v3334
      %v3417 = vadd.f32 %v2547, %v3339
      %v3418 = vadd.f32 %v2548, %v3342
      %v3419 = vadd.f32 %v2549, %v3347
      %v3420 = vadd.f32 %v2550, %v3350
      %3421 = vst [vmem:[#allocation2 + $0x20] sm:$0xff] %v3353
      %3422 = vst [vmem:[#allocation2 + $0x28] sm:$0xff] %v3354
      %3423 = vst [vmem:[#allocation2 + $0x30] sm:$0xff] %v3355
      %3424 = vst [vmem:[#allocation2 + $0x38] sm:$0xff] %v3356
      %3425 = vst [vmem:[#allocation2 + $0x40] sm:$0xff] %v3357
      %3426 = vst [vmem:[#allocation2 + $0x48] sm:$0xff] %v3358
      %3427 = vst [vmem:[#allocation2 + $0x50] sm:$0xff] %v3359
      %3428 = vst [vmem:[#allocation2 + $0x58] sm:$0xff] %v3360
      %3429 = vst [vmem:[#allocation2 + $0x60] sm:$0xff] %v3361
      %3430 = vst [vmem:[#allocation2 + $0x68] sm:$0xff] %v3362
      %3431 = vst [vmem:[#allocation2 + $0x70] sm:$0xff] %v3363
      %3432 = vst [vmem:[#allocation2 + $0x78] sm:$0xff] %v3364
      %3433 = vst [vmem:[#allocation2 + $0x80] sm:$0xff] %v3365
      %3434 = vst [vmem:[#allocation2 + $0x88] sm:$0xff] %v3366
      %3435 = vst [vmem:[#allocation2 + $0x90] sm:$0xff] %v3367
      %3436 = vst [vmem:[#allocation2 + $0x98] sm:$0xff] %v3368
      %3437 = vst [vmem:[#allocation2 + $0xa0] sm:$0xff] %v3369
      %3438 = vst [vmem:[#allocation2 + $0xa8] sm:$0xff] %v3370
      %3439 = vst [vmem:[#allocation2 + $0xb0] sm:$0xff] %v3371
      %3440 = vst [vmem:[#allocation2 + $0xb8] sm:$0xff] %v3372
      %3441 = vst [vmem:[#allocation2 + $0xc0] sm:$0xff] %v3373
      %3442 = vst [vmem:[#allocation2 + $0xc8] sm:$0xff] %v3374
      %3443 = vst [vmem:[#allocation2 + $0xd0] sm:$0xff] %v3375
      %3444 = vst [vmem:[#allocation2 + $0xd8] sm:$0xff] %v3376
      %3445 = vst [vmem:[#allocation2 + $0xe0] sm:$0xff] %v3377
      %3446 = vst [vmem:[#allocation2 + $0xe8] sm:$0xff] %v3378
      %3447 = vst [vmem:[#allocation2 + $0xf0] sm:$0xff] %v3379
      %3448 = vst [vmem:[#allocation2 + $0xf8] sm:$0xff] %v3380
      %3449 = vst [vmem:[#allocation2 + $0x100] sm:$0xff] %v3381
      %3450 = vst [vmem:[#allocation2 + $0x108] sm:$0xff] %v3382
      %3451 = vst [vmem:[#allocation2 + $0x110] sm:$0xff] %v3383
      %3452 = vst [vmem:[#allocation2 + $0x118] sm:$0xff] %v3384
      %3453 = vst [vmem:[#allocation2 + $0x120] sm:$0xff] %v3385
      %3454 = vst [vmem:[#allocation2 + $0x128] sm:$0xff] %v3386
      %3455 = vst [vmem:[#allocation2 + $0x130] sm:$0xff] %v3387
      %3456 = vst [vmem:[#allocation2 + $0x138] sm:$0xff] %v3388
      %3457 = vst [vmem:[#allocation2 + $0x140] sm:$0xff] %v3389
      %3458 = vst [vmem:[#allocation2 + $0x148] sm:$0xff] %v3390
      %3459 = vst [vmem:[#allocation2 + $0x150] sm:$0xff] %v3391
      %3460 = vst [vmem:[#allocation2 + $0x158] sm:$0xff] %v3392
      %3461 = vst [vmem:[#allocation2 + $0x160] sm:$0xff] %v3393
      %3462 = vst [vmem:[#allocation2 + $0x168] sm:$0xff] %v3394
      %3463 = vst [vmem:[#allocation2 + $0x170] sm:$0xff] %v3395
      %3464 = vst [vmem:[#allocation2 + $0x178] sm:$0xff] %v3396
      %3465 = vst [vmem:[#allocation2 + $0x180] sm:$0xff] %v3397
      %3466 = vst [vmem:[#allocation2 + $0x188] sm:$0xff] %v3398
      %3467 = vst [vmem:[#allocation2 + $0x190] sm:$0xff] %v3399
      %3468 = vst [vmem:[#allocation2 + $0x198] sm:$0xff] %v3400
      %3469 = vst [vmem:[#allocation2 + $0x1a0] sm:$0xff] %v3401
      %3470 = vst [vmem:[#allocation2 + $0x1a8] sm:$0xff] %v3402
      %3471 = vst [vmem:[#allocation2 + $0x1b0] sm:$0xff] %v3403
      %3472 = vst [vmem:[#allocation2 + $0x1b8] sm:$0xff] %v3404
      %3473 = vst [vmem:[#allocation2 + $0x1c0] sm:$0xff] %v3405
      %3474 = vst [vmem:[#allocation2 + $0x1c8] sm:$0xff] %v3406
      %3475 = vst [vmem:[#allocation2 + $0x1d0] sm:$0xff] %v3407
      %3476 = vst [vmem:[#allocation2 + $0x1d8] sm:$0xff] %v3408
      %3477 = vst [vmem:[#allocation2 + $0x1e0] sm:$0xff] %v3409
      %3478 = vst [vmem:[#allocation2 + $0x1e8] sm:$0xff] %v3410
      %3479 = vst [vmem:[#allocation2 + $0x1f0] sm:$0xff] %v3411
      %3480 = vst [vmem:[#allocation2 + $0x1f8] sm:$0xff] %v3412
      %3481 = vst [vmem:[#allocation2 + $0x200] sm:$0xff] %v3413
      %3482 = vst [vmem:[#allocation2 + $0x208] sm:$0xff] %v3414
      %3483 = vst [vmem:[#allocation2 + $0x210] sm:$0xff] %v3415
      %3484 = vst [vmem:[#allocation2 + $0x218] sm:$0xff] %v3416
      %3485 = vst [vmem:[#allocation2 + $0x220] sm:$0xff] %v3417
      %3486 = vst [vmem:[#allocation2 + $0x228] sm:$0xff] %v3418
      %3487 = vst [vmem:[#allocation2 + $0x230] sm:$0xff] %v3419
      %3488 = vst [vmem:[#allocation2 + $0x238] sm:$0xff] %v3420
      %v3489 = vld [vmem:[#allocation2] sm:$0xff]
      %v3490 = vld [vmem:[#allocation2 + $0x8] sm:$0xff]
      %v3491 = vld [vmem:[#allocation2 + $0x10] sm:$0xff]
      %v3492 = vld [vmem:[#allocation2 + $0x18] sm:$0xff]
      %v3493 = vld [vmem:[#allocation2 + $0x20] sm:$0xff]
      %v3494 = vld [vmem:[#allocation2 + $0x28] sm:$0xff]
      %v3495 = vld [vmem:[#allocation2 + $0x30] sm:$0xff]
      %v3496 = vld [vmem:[#allocation2 + $0x38] sm:$0xff]
      %v3497 = vld [vmem:[#allocation2 + $0x40] sm:$0xff]
      %v3498 = vld [vmem:[#allocation2 + $0x48] sm:$0xff]
      %v3499 = vld [vmem:[#allocation2 + $0x50] sm:$0xff]
      %v3500 = vld [vmem:[#allocation2 + $0x58] sm:$0xff]
      %v3501 = vld [vmem:[#allocation2 + $0x60] sm:$0xff]
      %v3502 = vld [vmem:[#allocation2 + $0x68] sm:$0xff]
      %v3503 = vld [vmem:[#allocation2 + $0x70] sm:$0xff]
      %v3504 = vld [vmem:[#allocation2 + $0x78] sm:$0xff]
      %v3505 = vld [vmem:[#allocation2 + $0x80] sm:$0xff]
      %v3506 = vld [vmem:[#allocation2 + $0x88] sm:$0xff]
      %v3507 = vld [vmem:[#allocation2 + $0x90] sm:$0xff]
      %v3508 = vld [vmem:[#allocation2 + $0x98] sm:$0xff]
      %v3509 = vld [vmem:[#allocation2 + $0xa0] sm:$0xff]
      %v3510 = vld [vmem:[#allocation2 + $0xa8] sm:$0xff]
      %v3511 = vld [vmem:[#allocation2 + $0xb0] sm:$0xff]
      %v3512 = vld [vmem:[#allocation2 + $0xb8] sm:$0xff]
      %v3513 = vld [vmem:[#allocation2 + $0xc0] sm:$0xff]
      %v3514 = vld [vmem:[#allocation2 + $0xc8] sm:$0xff]
      %v3515 = vld [vmem:[#allocation2 + $0xd0] sm:$0xff]
      %v3516 = vld [vmem:[#allocation2 + $0xd8] sm:$0xff]
      %v3517 = vld [vmem:[#allocation2 + $0xe0] sm:$0xff]
      %v3518 = vld [vmem:[#allocation2 + $0xe8] sm:$0xff]
      %v3519 = vld [vmem:[#allocation2 + $0xf0] sm:$0xff]
      %v3520 = vld [vmem:[#allocation2 + $0xf8] sm:$0xff]
      %v3521 = vld [vmem:[#allocation2 + $0x100] sm:$0xff]
      %v3522 = vld [vmem:[#allocation2 + $0x108] sm:$0xff]
      %v3523 = vld [vmem:[#allocation2 + $0x110] sm:$0xff]
      %v3524 = vld [vmem:[#allocation2 + $0x118] sm:$0xff]
      %v3525 = vld [vmem:[#allocation2 + $0x120] sm:$0xff]
      %v3526 = vld [vmem:[#allocation2 + $0x128] sm:$0xff]
      %v3527 = vld [vmem:[#allocation2 + $0x130] sm:$0xff]
      %v3528 = vld [vmem:[#allocation2 + $0x138] sm:$0xff]
      %v3529 = vld [vmem:[#allocation2 + $0x140] sm:$0xff]
      %v3530 = vld [vmem:[#allocation2 + $0x148] sm:$0xff]
      %v3531 = vld [vmem:[#allocation2 + $0x150] sm:$0xff]
      %v3532 = vld [vmem:[#allocation2 + $0x158] sm:$0xff]
      %v3533 = vld [vmem:[#allocation2 + $0x160] sm:$0xff]
      %v3534 = vld [vmem:[#allocation2 + $0x168] sm:$0xff]
      %v3535 = vld [vmem:[#allocation2 + $0x170] sm:$0xff]
      %v3536 = vld [vmem:[#allocation2 + $0x178] sm:$0xff]
      %v3537 = vld [vmem:[#allocation2 + $0x180] sm:$0xff]
      %v3538 = vld [vmem:[#allocation2 + $0x188] sm:$0xff]
      %v3539 = vld [vmem:[#allocation2 + $0x190] sm:$0xff]
      %v3540 = vld [vmem:[#allocation2 + $0x198] sm:$0xff]
      %v3541 = vld [vmem:[#allocation2 + $0x1a0] sm:$0xff]
      %v3542 = vld [vmem:[#allocation2 + $0x1a8] sm:$0xff]
      %v3543 = vld [vmem:[#allocation2 + $0x1b0] sm:$0xff]
      %v3544 = vld [vmem:[#allocation2 + $0x1b8] sm:$0xff]
      %v3545 = vld [vmem:[#allocation2 + $0x1c0] sm:$0xff]
      %v3546 = vld [vmem:[#allocation2 + $0x1c8] sm:$0xff]
      %v3547 = vld [vmem:[#allocation2 + $0x1d0] sm:$0xff]
      %v3548 = vld [vmem:[#allocation2 + $0x1d8] sm:$0xff]
      %v3549 = vld [vmem:[#allocation2 + $0x1e0] sm:$0xff]
      %v3550 = vld [vmem:[#allocation2 + $0x1e8] sm:$0xff]
      %v3551 = vld [vmem:[#allocation2 + $0x1f0] sm:$0xff]
      %v3552 = vld [vmem:[#allocation2 + $0x1f8] sm:$0xff]
      %v3553 = vld [vmem:[#allocation2 + $0x200] sm:$0xff]
      %v3554 = vld [vmem:[#allocation2 + $0x208] sm:$0xff]
      %v3555 = vld [vmem:[#allocation2 + $0x210] sm:$0xff]
      %v3556 = vld [vmem:[#allocation2 + $0x218] sm:$0xff]
      %s3557 = scalar_lea.vmem %s303, 384
      %v3558 = vld [vmem:[%s3557] sm:$0xf]
      %v3559 = vld [vmem:[%s3557 + $0x4] sm:$0xf]
      %v3560 = vld [vmem:[%s3557 + $0x8] sm:$0xf]
      %v3561 = vld [vmem:[%s3557 + $0xc] sm:$0xf]
      %v3562 = vld [vmem:[%s3557 + $0x10] sm:$0xf]
      %v3563 = vld [vmem:[%s3557 + $0x14] sm:$0xf]
      %v3564 = vld [vmem:[%s3557 + $0x18] sm:$0xf]
      %v3565 = vld [vmem:[%s3557 + $0x1c] sm:$0xf]
      %v3566 = vld [vmem:[%s3557 + $0x20] sm:$0xf]
      %v3567 = vld [vmem:[%s3557 + $0x24] sm:$0xf]
      %v3568 = vld [vmem:[%s3557 + $0x28] sm:$0xf]
      %v3569 = vld [vmem:[%s3557 + $0x2c] sm:$0xf]
      %v3570 = vld [vmem:[%s3557 + $0x30] sm:$0xf]
      %v3571 = vld [vmem:[%s3557 + $0x34] sm:$0xf]
      %v3572 = vld [vmem:[%s3557 + $0x38] sm:$0xf]
      %v3573 = vld [vmem:[%s3557 + $0x3c] sm:$0xf]
      %v3574 = vld [vmem:[%s3557 + $0x40] sm:$0xf]
      %v3575 = vld [vmem:[%s3557 + $0x44] sm:$0xf]
      %v3576 = vld [vmem:[%s3557 + $0x48] sm:$0xf]
      %v3577 = vld [vmem:[%s3557 + $0x4c] sm:$0xf]
      %v3578 = vld [vmem:[%s3557 + $0x50] sm:$0xf]
      %v3579 = vld [vmem:[%s3557 + $0x54] sm:$0xf]
      %v3580 = vld [vmem:[%s3557 + $0x58] sm:$0xf]
      %v3581 = vld [vmem:[%s3557 + $0x5c] sm:$0xf]
      %v3582 = vld [vmem:[%s3557 + $0x60] sm:$0xf]
      %v3583 = vld [vmem:[%s3557 + $0x64] sm:$0xf]
      %v3584 = vld [vmem:[%s3557 + $0x68] sm:$0xf]
      %v3585 = vld [vmem:[%s3557 + $0x6c] sm:$0xf]
      %v3586 = vld [vmem:[%s3557 + $0x70] sm:$0xf]
      %v3587 = vld [vmem:[%s3557 + $0x74] sm:$0xf]
      %v3588 = vld [vmem:[%s3557 + $0x78] sm:$0xf]
      %v3589 = vld [vmem:[%s3557 + $0x7c] sm:$0xf]
      %v3590 = vld [vmem:[%s3557 + $0x80] sm:$0xf]
      %v3591 = vld [vmem:[%s3557 + $0x84] sm:$0xf]
      %v3592 = vld [vmem:[%s3557 + $0x88] sm:$0xf]
      %v3593 = vld [vmem:[%s3557 + $0x8c] sm:$0xf]
      %v3594 = vld [vmem:[%s3557 + $0x90] sm:$0xf]
      %v3595 = vld [vmem:[%s3557 + $0x94] sm:$0xf]
      %v3596 = vld [vmem:[%s3557 + $0x98] sm:$0xf]
      %v3597 = vld [vmem:[%s3557 + $0x9c] sm:$0xf]
      %v3598 = vld [vmem:[%s3557 + $0xa0] sm:$0xf]
      %v3599 = vld [vmem:[%s3557 + $0xa4] sm:$0xf]
      %v3600 = vld [vmem:[%s3557 + $0xa8] sm:$0xf]
      %v3601 = vld [vmem:[%s3557 + $0xac] sm:$0xf]
      %v3602 = vld [vmem:[%s3557 + $0xb0] sm:$0xf]
      %v3603 = vld [vmem:[%s3557 + $0xb4] sm:$0xf]
      %v3604 = vld [vmem:[%s3557 + $0xb8] sm:$0xf]
      %v3605 = vld [vmem:[%s3557 + $0xbc] sm:$0xf]
      %v3654 = vunpack.c.l.b16 %v3558
      %v3655 = vunpack.c.l.b16 %v3559
      %v3656 = vunpack.c.l.b16 %v3560
      %v3657 = vunpack.c.l.b16 %v3561
      %v3658 = vunpack.c.l.b16 %v3562
      %v3659 = vunpack.c.l.b16 %v3563
      %v3660 = vunpack.c.l.b16 %v3564
      %v3661 = vunpack.c.l.b16 %v3565
      %v3662 = vunpack.c.l.b16 %v3566
      %v3663 = vunpack.c.l.b16 %v3567
      %v3664 = vunpack.c.l.b16 %v3568
      %v3665 = vunpack.c.l.b16 %v3569
      %v3666 = vunpack.c.l.b16 %v3570
      %v3667 = vunpack.c.l.b16 %v3571
      %v3668 = vunpack.c.l.b16 %v3572
      %v3669 = vunpack.c.l.b16 %v3573
      %v3670 = vunpack.c.l.b16 %v3574
      %v3671 = vunpack.c.l.b16 %v3575
      %v3672 = vunpack.c.l.b16 %v3576
      %v3673 = vunpack.c.l.b16 %v3577
      %v3674 = vunpack.c.l.b16 %v3578
      %v3675 = vunpack.c.l.b16 %v3579
      %v3676 = vunpack.c.l.b16 %v3580
      %v3677 = vunpack.c.l.b16 %v3581
      %v3678 = vunpack.c.l.b16 %v3582
      %v3679 = vunpack.c.l.b16 %v3583
      %v3680 = vunpack.c.l.b16 %v3584
      %v3681 = vunpack.c.l.b16 %v3585
      %v3682 = vunpack.c.l.b16 %v3586
      %v3683 = vunpack.c.l.b16 %v3587
      %v3684 = vunpack.c.l.b16 %v3588
      %v3685 = vunpack.c.l.b16 %v3589
      %v3686 = vunpack.c.l.b16 %v3590
      %v3687 = vunpack.c.l.b16 %v3591
      %v3688 = vunpack.c.l.b16 %v3592
      %v3689 = vunpack.c.l.b16 %v3593
      %v3690 = vunpack.c.l.b16 %v3594
      %v3691 = vunpack.c.l.b16 %v3595
      %v3692 = vunpack.c.l.b16 %v3596
      %v3693 = vunpack.c.l.b16 %v3597
      %v3694 = vunpack.c.l.b16 %v3598
      %v3695 = vunpack.c.l.b16 %v3599
      %v3696 = vunpack.c.l.b16 %v3600
      %v3697 = vunpack.c.l.b16 %v3601
      %v3698 = vunpack.c.l.b16 %v3602
      %v3699 = vunpack.c.l.b16 %v3603
      %v3700 = vunpack.c.l.b16 %v3604
      %v3701 = vunpack.c.l.b16 %v3605
      %v3702 = vpack.c.b16 %v3655, %v3654
      %v3703 = vpack.c.b16 %v3657, %v3656
      %v3704 = vpack.c.b16 %v3659, %v3658
      %v3705 = vpack.c.b16 %v3661, %v3660
      %v3706 = vpack.c.b16 %v3663, %v3662
      %v3707 = vpack.c.b16 %v3665, %v3664
      %v3708 = vpack.c.b16 %v3667, %v3666
      %v3709 = vpack.c.b16 %v3669, %v3668
      %v3710 = vpack.c.b16 %v3671, %v3670
      %v3711 = vpack.c.b16 %v3673, %v3672
      %v3712 = vpack.c.b16 %v3675, %v3674
      %v3713 = vpack.c.b16 %v3677, %v3676
      %v3714 = vpack.c.b16 %v3679, %v3678
      %v3715 = vpack.c.b16 %v3681, %v3680
      %v3716 = vpack.c.b16 %v3683, %v3682
      %v3717 = vpack.c.b16 %v3685, %v3684
      %v3718 = vpack.c.b16 %v3687, %v3686
      %v3719 = vpack.c.b16 %v3689, %v3688
      %v3720 = vpack.c.b16 %v3691, %v3690
      %v3721 = vpack.c.b16 %v3693, %v3692
      %v3722 = vpack.c.b16 %v3695, %v3694
      %v3723 = vpack.c.b16 %v3697, %v3696
      %v3724 = vpack.c.b16 %v3699, %v3698
      %v3725 = vpack.c.b16 %v3701, %v3700
      %3750 = vmatprep.subr.bf16.mxu0 0
      %3751 = vmatpush1.bf16.msra.mxu0 %v3702
      %3752 = vmatprep.subr.bf16.mxu0 0
      %3753 = vmatpush1.bf16.msra.mxu0 %v3703
      %3754 = vmatprep.subr.bf16.mxu0 0
      %3755 = vmatpush1.bf16.msra.mxu0 %v3704
      %3756 = vmatprep.subr.bf16.mxu0 0
      %3757 = vmatpush1.bf16.msra.mxu0 %v3705
      %3758 = vmatprep.subr.bf16.mxu0 0
      %3759 = vmatpush1.bf16.msra.mxu0 %v3706
      %3760 = vmatprep.subr.bf16.mxu0 0
      %3761 = vmatpush1.bf16.msra.mxu0 %v3707
      %3762 = vmatprep.subr.bf16.mxu0 0
      %3763 = vmatpush1.bf16.msra.mxu0 %v3708
      %3764 = vmatprep.subr.bf16.mxu0 0
      %3765 = vmatpush1.bf16.msra.mxu0 %v3709
      %3766 = vmatprep.subr.bf16.mxu0 0
      %3767 = vmatpush1.bf16.msra.mxu0 %v3710
      %3768 = vmatprep.subr.bf16.mxu0 0
      %3769 = vmatpush1.bf16.msra.mxu0 %v3711
      %3770 = vmatprep.subr.bf16.mxu0 0
      %3771 = vmatpush1.bf16.msra.mxu0 %v3712
      %3772 = vmatprep.subr.bf16.mxu0 0
      %3773 = vmatpush1.bf16.msra.mxu0 %v3713
      %3774 = vmatprep.subr.bf16.mxu0 0
      %3775 = vmatpush1.bf16.msra.mxu0 %v3714
      %3776 = vmatprep.subr.bf16.mxu0 0
      %3777 = vmatpush1.bf16.msra.mxu0 %v3715
      %3778 = vmatprep.subr.bf16.mxu0 0
      %3779 = vmatpush1.bf16.msra.mxu0 %v3716
      %3780 = vmatprep.subr.bf16.mxu0 0
      %3781 = vmatpush1.bf16.msra.mxu0 %v3717
      %3782 = vmatprep.mubr.bf16.mxu0 %v1475
      %3783 = vmatmul.mubr.bf16.gmra.mrb[0].mxu0 %v1474
      %v3784 = vpop.f32.mrb[0].mxu0
      %v3785 = vadd.f32 0.0, %v3784
      %v3786 = vpop.f32.mrb[0].mxu0
      %v3787 = vpop.f32.mrb[0].mxu0
      %v3788 = vadd.f32 0.0, %v3787
      %v3789 = vpop.f32.mrb[0].mxu0
      %3790 = vmatprep.mubr.bf16.mxu0 %v1478
      %3791 = vmatmul.mubr.bf16.gmra.mrb[0].mxu0 %v1477
      %v3792 = vpop.f32.mrb[0].mxu0
      %v3793 = vadd.f32 0.0, %v3792
      %v3794 = vpop.f32.mrb[0].mxu0
      %v3795 = vpop.f32.mrb[0].mxu0
      %v3796 = vadd.f32 0.0, %v3795
      %v3797 = vpop.f32.mrb[0].mxu0
      %3798 = vmatprep.mubr.bf16.mxu0 %v1481
      %3799 = vmatmul.mubr.bf16.gmra.mrb[0].mxu0 %v1480
      %v3800 = vpop.f32.mrb[0].mxu0
      %v3801 = vadd.f32 0.0, %v3800
      %v3802 = vpop.f32.mrb[0].mxu0
      %v3803 = vpop.f32.mrb[0].mxu0
      %v3804 = vadd.f32 0.0, %v3803
      %v3805 = vpop.f32.mrb[0].mxu0
      %3806 = vmatprep.mubr.bf16.mxu0 %v1484
      %3807 = vmatmul.mubr.bf16.gmra.mrb[0].mxu0 %v1483
      %v3808 = vpop.f32.mrb[0].mxu0
      %v3809 = vadd.f32 0.0, %v3808
      %v3810 = vpop.f32.mrb[0].mxu0
      %v3811 = vpop.f32.mrb[0].mxu0
      %v3812 = vadd.f32 0.0, %v3811
      %v3813 = vpop.f32.mrb[0].mxu0
      %3814 = vmatprep.mubr.bf16.mxu0 %v1487
      %3815 = vmatmul.mubr.bf16.gmra.mrb[0].mxu0 %v1486
      %v3816 = vpop.f32.mrb[0].mxu0
      %v3817 = vadd.f32 0.0, %v3816
      %v3818 = vpop.f32.mrb[0].mxu0
      %v3819 = vpop.f32.mrb[0].mxu0
      %v3820 = vadd.f32 0.0, %v3819
      %v3821 = vpop.f32.mrb[0].mxu0
      %3822 = vmatprep.mubr.bf16.mxu0 %v1490
      %3823 = vmatmul.mubr.bf16.gmra.mrb[0].mxu0 %v1489
      %v3824 = vpop.f32.mrb[0].mxu0
      %v3825 = vadd.f32 0.0, %v3824
      %v3826 = vpop.f32.mrb[0].mxu0
      %v3827 = vpop.f32.mrb[0].mxu0
      %v3828 = vadd.f32 0.0, %v3827
      %v3829 = vpop.f32.mrb[0].mxu0
      %3830 = vmatprep.mubr.bf16.mxu0 %v1493
      %3831 = vmatmul.mubr.bf16.gmra.mrb[0].mxu0 %v1492
      %v3832 = vpop.f32.mrb[0].mxu0
      %v3833 = vadd.f32 0.0, %v3832
      %v3834 = vpop.f32.mrb[0].mxu0
      %v3835 = vpop.f32.mrb[0].mxu0
      %v3836 = vadd.f32 0.0, %v3835
      %v3837 = vpop.f32.mrb[0].mxu0
      %3838 = vmatprep.mubr.bf16.mxu0 %v1496
      %3839 = vmatmul.mubr.bf16.gmra.mrb[0].mxu0 %v1495
      %v3840 = vpop.f32.mrb[0].mxu0
      %v3841 = vadd.f32 0.0, %v3840
      %v3842 = vpop.f32.mrb[0].mxu0
      %v3843 = vpop.f32.mrb[0].mxu0
      %v3844 = vadd.f32 0.0, %v3843
      %v3845 = vpop.f32.mrb[0].mxu0
      %3846 = vmatprep.mubr.bf16.mxu0 %v1499
      %3847 = vmatmul.mubr.bf16.gmra.mrb[0].mxu0 %v1498
      %v3848 = vpop.f32.mrb[0].mxu0
      %v3849 = vadd.f32 0.0, %v3848
      %v3850 = vpop.f32.mrb[0].mxu0
      %v3851 = vpop.f32.mrb[0].mxu0
      %v3852 = vadd.f32 0.0, %v3851
      %v3853 = vpop.f32.mrb[0].mxu0
      %3854 = vmatprep.mubr.bf16.mxu0 %v1502
      %3855 = vmatmul.mubr.bf16.gmra.mrb[0].mxu0 %v1501
      %v3856 = vpop.f32.mrb[0].mxu0
      %v3857 = vadd.f32 0.0, %v3856
      %v3858 = vpop.f32.mrb[0].mxu0
      %v3859 = vpop.f32.mrb[0].mxu0
      %v3860 = vadd.f32 0.0, %v3859
      %v3861 = vpop.f32.mrb[0].mxu0
      %3862 = vmatprep.mubr.bf16.mxu0 %v1505
      %3863 = vmatmul.mubr.bf16.gmra.mrb[0].mxu0 %v1504
      %v3864 = vpop.f32.mrb[0].mxu0
      %v3865 = vadd.f32 0.0, %v3864
      %v3866 = vpop.f32.mrb[0].mxu0
      %v3867 = vpop.f32.mrb[0].mxu0
      %v3868 = vadd.f32 0.0, %v3867
      %v3869 = vpop.f32.mrb[0].mxu0
      %3870 = vmatprep.mubr.bf16.mxu0 %v1508
      %3871 = vmatmul.mubr.bf16.gmra.mrb[0].mxu0 %v1507
      %v3872 = vpop.f32.mrb[0].mxu0
      %v3873 = vadd.f32 0.0, %v3872
      %v3874 = vpop.f32.mrb[0].mxu0
      %v3875 = vpop.f32.mrb[0].mxu0
      %v3876 = vadd.f32 0.0, %v3875
      %v3877 = vpop.f32.mrb[0].mxu0
      %3878 = vmatprep.mubr.bf16.mxu0 %v1511
      %3879 = vmatmul.mubr.bf16.gmra.mrb[0].mxu0 %v1510
      %v3880 = vpop.f32.mrb[0].mxu0
      %v3881 = vadd.f32 0.0, %v3880
      %v3882 = vpop.f32.mrb[0].mxu0
      %v3883 = vpop.f32.mrb[0].mxu0
      %v3884 = vadd.f32 0.0, %v3883
      %v3885 = vpop.f32.mrb[0].mxu0
      %3886 = vmatprep.mubr.bf16.mxu0 %v1514
      %3887 = vmatmul.mubr.bf16.gmra.mrb[0].mxu0 %v1513
      %v3888 = vpop.f32.mrb[0].mxu0
      %v3889 = vadd.f32 0.0, %v3888
      %v3890 = vpop.f32.mrb[0].mxu0
      %v3891 = vpop.f32.mrb[0].mxu0
      %v3892 = vadd.f32 0.0, %v3891
      %v3893 = vpop.f32.mrb[0].mxu0
      %3894 = vmatprep.mubr.bf16.mxu0 %v1517
      %3895 = vmatmul.mubr.bf16.gmra.mrb[0].mxu0 %v1516
      %v3896 = vpop.f32.mrb[0].mxu0
      %v3897 = vadd.f32 0.0, %v3896
      %v3898 = vpop.f32.mrb[0].mxu0
      %v3899 = vpop.f32.mrb[0].mxu0
      %v3900 = vadd.f32 0.0, %v3899
      %v3901 = vpop.f32.mrb[0].mxu0
      %3902 = vmatprep.mubr.bf16.mxu0 %v1520
      %3903 = vmatmul.mubr.bf16.gmra.mrb[0].mxu0 %v1519
      %v3904 = vpop.f32.mrb[0].mxu0
      %v3905 = vadd.f32 0.0, %v3904
      %v3906 = vpop.f32.mrb[0].mxu0
      %v3907 = vpop.f32.mrb[0].mxu0
      %v3908 = vadd.f32 0.0, %v3907
      %v3909 = vpop.f32.mrb[0].mxu0
      %3910 = vmatprep.mubr.bf16.mxu0 %v1523
      %3911 = vmatmul.mubr.bf16.gmra.mrb[0].mxu0 %v1522
      %v3912 = vpop.f32.mrb[0].mxu0
      %v3913 = vadd.f32 0.0, %v3912
      %v3914 = vpop.f32.mrb[0].mxu0
      %v3915 = vpop.f32.mrb[0].mxu0
      %v3916 = vadd.f32 0.0, %v3915
      %v3917 = vpop.f32.mrb[0].mxu0
      %3918 = vmatprep.mubr.bf16.mxu0 %v1526
      %3919 = vmatmul.mubr.bf16.gmra.mrb[0].mxu0 %v1525
      %v3920 = vpop.f32.mrb[0].mxu0
      %v3921 = vadd.f32 0.0, %v3920
      %v3922 = vpop.f32.mrb[0].mxu0
      %v3923 = vpop.f32.mrb[0].mxu0
      %v3924 = vadd.f32 0.0, %v3923
      %v3925 = vpop.f32.mrb[0].mxu0
      %3926 = vmatprep.mubr.bf16.mxu0 %v1529
      %3927 = vmatmul.mubr.bf16.gmra.mrb[0].mxu0 %v1528
      %v3928 = vpop.f32.mrb[0].mxu0
      %v3929 = vadd.f32 0.0, %v3928
      %v3930 = vpop.f32.mrb[0].mxu0
      %v3931 = vpop.f32.mrb[0].mxu0
      %v3932 = vadd.f32 0.0, %v3931
      %v3933 = vpop.f32.mrb[0].mxu0
      %3934 = vmatprep.mubr.bf16.mxu0 %v1532
      %3935 = vmatmul.mubr.bf16.gmra.mrb[0].mxu0 %v1531
      %v3936 = vpop.f32.mrb[0].mxu0
      %v3937 = vadd.f32 0.0, %v3936
      %v3938 = vpop.f32.mrb[0].mxu0
      %v3939 = vpop.f32.mrb[0].mxu0
      %v3940 = vadd.f32 0.0, %v3939
      %v3941 = vpop.f32.mrb[0].mxu0
      %3942 = vmatprep.mubr.bf16.mxu0 %v1535
      %3943 = vmatmul.mubr.bf16.gmra.mrb[0].mxu0 %v1534
      %v3944 = vpop.f32.mrb[0].mxu0
      %v3945 = vadd.f32 0.0, %v3944
      %v3946 = vpop.f32.mrb[0].mxu0
      %v3947 = vpop.f32.mrb[0].mxu0
      %v3948 = vadd.f32 0.0, %v3947
      %v3949 = vpop.f32.mrb[0].mxu0
      %3950 = vmatprep.mubr.bf16.mxu0 %v1538
      %3951 = vmatmul.mubr.bf16.gmra.mrb[0].mxu0 %v1537
      %v3952 = vpop.f32.mrb[0].mxu0
      %v3953 = vadd.f32 0.0, %v3952
      %v3954 = vpop.f32.mrb[0].mxu0
      %v3955 = vpop.f32.mrb[0].mxu0
      %v3956 = vadd.f32 0.0, %v3955
      %v3957 = vpop.f32.mrb[0].mxu0
      %3958 = vmatprep.mubr.bf16.mxu0 %v1541
      %3959 = vmatmul.mubr.bf16.gmra.mrb[0].mxu0 %v1540
      %v3960 = vpop.f32.mrb[0].mxu0
      %v3961 = vadd.f32 0.0, %v3960
      %v3962 = vpop.f32.mrb[0].mxu0
      %v3963 = vpop.f32.mrb[0].mxu0
      %v3964 = vadd.f32 0.0, %v3963
      %v3965 = vpop.f32.mrb[0].mxu0
      %3966 = vmatprep.mubr.bf16.mxu0 %v1544
      %3967 = vmatmul.mubr.bf16.gmra.mrb[0].mxu0 %v1543
      %v3968 = vpop.f32.mrb[0].mxu0
      %v3969 = vadd.f32 0.0, %v3968
      %v3970 = vpop.f32.mrb[0].mxu0
      %v3971 = vpop.f32.mrb[0].mxu0
      %v3972 = vadd.f32 0.0, %v3971
      %v3973 = vpop.f32.mrb[0].mxu0
      %3974 = vmatprep.mubr.bf16.mxu0 %v1547
      %3975 = vmatmul.mubr.bf16.gmra.mrb[0].mxu0 %v1546
      %v3976 = vpop.f32.mrb[0].mxu0
      %v3977 = vadd.f32 0.0, %v3976
      %v3978 = vpop.f32.mrb[0].mxu0
      %v3979 = vpop.f32.mrb[0].mxu0
      %v3980 = vadd.f32 0.0, %v3979
      %v3981 = vpop.f32.mrb[0].mxu0
      %3982 = vmatprep.mubr.bf16.mxu0 %v1550
      %3983 = vmatmul.mubr.bf16.gmra.mrb[0].mxu0 %v1549
      %v3984 = vpop.f32.mrb[0].mxu0
      %v3985 = vadd.f32 0.0, %v3984
      %v3986 = vpop.f32.mrb[0].mxu0
      %v3987 = vpop.f32.mrb[0].mxu0
      %v3988 = vadd.f32 0.0, %v3987
      %v3989 = vpop.f32.mrb[0].mxu0
      %3990 = vmatprep.mubr.bf16.mxu0 %v1553
      %3991 = vmatmul.mubr.bf16.gmra.mrb[0].mxu0 %v1552
      %v3992 = vpop.f32.mrb[0].mxu0
      %v3993 = vadd.f32 0.0, %v3992
      %v3994 = vpop.f32.mrb[0].mxu0
      %v3995 = vpop.f32.mrb[0].mxu0
      %v3996 = vadd.f32 0.0, %v3995
      %v3997 = vpop.f32.mrb[0].mxu0
      %3998 = vmatprep.mubr.bf16.mxu0 %v1556
      %3999 = vmatmul.mubr.bf16.gmra.mrb[0].mxu0 %v1555
      %v4000 = vpop.f32.mrb[0].mxu0
      %v4001 = vadd.f32 0.0, %v4000
      %v4002 = vpop.f32.mrb[0].mxu0
      %v4003 = vpop.f32.mrb[0].mxu0
      %v4004 = vadd.f32 0.0, %v4003
      %v4005 = vpop.f32.mrb[0].mxu0
      %4006 = vmatprep.mubr.bf16.mxu0 %v1559
      %4007 = vmatmul.mubr.bf16.gmra.mrb[0].mxu0 %v1558
      %v4008 = vpop.f32.mrb[0].mxu0
      %v4009 = vadd.f32 0.0, %v4008
      %v4010 = vpop.f32.mrb[0].mxu0
      %v4011 = vpop.f32.mrb[0].mxu0
      %v4012 = vadd.f32 0.0, %v4011
      %v4013 = vpop.f32.mrb[0].mxu0
      %4014 = vmatprep.mubr.bf16.mxu0 %v1562
      %4015 = vmatmul.mubr.bf16.gmra.mrb[0].mxu0 %v1561
      %v4016 = vpop.f32.mrb[0].mxu0
      %v4017 = vadd.f32 0.0, %v4016
      %v4018 = vpop.f32.mrb[0].mxu0
      %v4019 = vpop.f32.mrb[0].mxu0
      %v4020 = vadd.f32 0.0, %v4019
      %v4021 = vpop.f32.mrb[0].mxu0
      %4022 = vmatprep.mubr.bf16.mxu0 %v1565
      %4023 = vmatmul.mubr.bf16.gmra.mrb[0].mxu0 %v1564
      %v4024 = vpop.f32.mrb[0].mxu0
      %v4025 = vadd.f32 0.0, %v4024
      %v4026 = vpop.f32.mrb[0].mxu0
      %v4027 = vpop.f32.mrb[0].mxu0
      %v4028 = vadd.f32 0.0, %v4027
      %v4029 = vpop.f32.mrb[0].mxu0
      %4030 = vmatprep.mubr.bf16.mxu0 %v1568
      %4031 = vmatmul.mubr.bf16.gmra.mrb[0].mxu0 %v1567
      %v4032 = vpop.f32.mrb[0].mxu0
      %v4033 = vadd.f32 0.0, %v4032
      %v4034 = vpop.f32.mrb[0].mxu0
      %v4035 = vpop.f32.mrb[0].mxu0
      %v4036 = vadd.f32 0.0, %v4035
      %v4037 = vpop.f32.mrb[0].mxu0
      %4038 = vmatprep.mubr.bf16.mxu0 %v1571
      %4039 = vmatmul.mubr.bf16.gmra.mrb[0].mxu0 %v1570
      %v4040 = vpop.f32.mrb[0].mxu0
      %v4041 = vadd.f32 0.0, %v4040
      %v4042 = vpop.f32.mrb[0].mxu0
      %v4043 = vpop.f32.mrb[0].mxu0
      %v4044 = vadd.f32 0.0, %v4043
      %v4045 = vpop.f32.mrb[0].mxu0
      %4046 = vmatprep.mubr.bf16.mxu0 %v1574
      %4047 = vmatmul.mubr.bf16.gmra.mrb[0].mxu0 %v1573
      %v4048 = vpop.f32.mrb[0].mxu0
      %v4049 = vadd.f32 0.0, %v4048
      %v4050 = vpop.f32.mrb[0].mxu0
      %v4051 = vpop.f32.mrb[0].mxu0
      %v4052 = vadd.f32 0.0, %v4051
      %v4053 = vpop.f32.mrb[0].mxu0
      %4054 = vdwg.mxu0
      %4055 = vmatprep.subr.bf16.mxu0 0
      %4056 = vmatpush1.bf16.msra.mxu0 %v3718
      %4057 = vmatprep.subr.bf16.mxu0 0
      %4058 = vmatpush1.bf16.msra.mxu0 %v3719
      %4059 = vmatprep.subr.bf16.mxu0 0
      %4060 = vmatpush1.bf16.msra.mxu0 %v3720
      %4061 = vmatprep.subr.bf16.mxu0 0
      %4062 = vmatpush1.bf16.msra.mxu0 %v3721
      %4063 = vmatprep.subr.bf16.mxu0 0
      %4064 = vmatpush1.bf16.msra.mxu0 %v3722
      %4065 = vmatprep.subr.bf16.mxu0 0
      %4066 = vmatpush1.bf16.msra.mxu0 %v3723
      %4067 = vmatprep.subr.bf16.mxu0 0
      %4068 = vmatpush1.bf16.msra.mxu0 %v3724
      %4069 = vmatprep.subr.bf16.mxu0 0
      %4070 = vmatpush1.bf16.msra.mxu0 %v3725
      %4071 = vmatprep.subr.bf16.mxu0 0
      %4072 = vmatpush1.bf16.msra.mxu0 0
      %4073 = vmatprep.subr.bf16.mxu0 0
      %4074 = vmatpush1.bf16.msra.mxu0 0
      %4075 = vmatprep.subr.bf16.mxu0 0
      %4076 = vmatpush1.bf16.msra.mxu0 0
      %4077 = vmatprep.subr.bf16.mxu0 0
      %4078 = vmatpush1.bf16.msra.mxu0 0
      %4079 = vmatprep.subr.bf16.mxu0 0
      %4080 = vmatpush1.bf16.msra.mxu0 0
      %4081 = vmatprep.subr.bf16.mxu0 0
      %4082 = vmatpush1.bf16.msra.mxu0 0
      %4083 = vmatprep.subr.bf16.mxu0 0
      %4084 = vmatpush1.bf16.msra.mxu0 0
      %4085 = vmatprep.subr.bf16.mxu0 0
      %4086 = vmatpush1.bf16.msra.mxu0 0
      %4087 = vmatprep.mubr.bf16.mxu0 0
      %4088 = vmatmul.mubr.bf16.gmra.mrb[0].mxu0 %v1476
      %v4089 = vpop.f32.mrb[0].mxu0
      %v4090 = vadd.f32 %v3785, %v4089
      %v4091 = vpop.f32.mrb[0].mxu0
      %v4092 = vpop.f32.mrb[0].mxu0
      %v4093 = vadd.f32 %v3788, %v4092
      %v4094 = vpop.f32.mrb[0].mxu0
      %4095 = vmatprep.mubr.bf16.mxu0 0
      %4096 = vmatmul.mubr.bf16.gmra.mrb[0].mxu0 %v1479
      %v4097 = vpop.f32.mrb[0].mxu0
      %v4098 = vadd.f32 %v3793, %v4097
      %v4099 = vpop.f32.mrb[0].mxu0
      %v4100 = vpop.f32.mrb[0].mxu0
      %v4101 = vadd.f32 %v3796, %v4100
      %v4102 = vpop.f32.mrb[0].mxu0
      %4103 = vmatprep.mubr.bf16.mxu0 0
      %4104 = vmatmul.mubr.bf16.gmra.mrb[0].mxu0 %v1482
      %v4105 = vpop.f32.mrb[0].mxu0
      %v4106 = vadd.f32 %v3801, %v4105
      %v4107 = vpop.f32.mrb[0].mxu0
      %v4108 = vpop.f32.mrb[0].mxu0
      %v4109 = vadd.f32 %v3804, %v4108
      %v4110 = vpop.f32.mrb[0].mxu0
      %4111 = vmatprep.mubr.bf16.mxu0 0
      %4112 = vmatmul.mubr.bf16.gmra.mrb[0].mxu0 %v1485
      %v4113 = vpop.f32.mrb[0].mxu0
      %v4114 = vadd.f32 %v3809, %v4113
      %v4115 = vpop.f32.mrb[0].mxu0
      %v4116 = vpop.f32.mrb[0].mxu0
      %v4117 = vadd.f32 %v3812, %v4116
      %v4118 = vpop.f32.mrb[0].mxu0
      %4119 = vmatprep.mubr.bf16.mxu0 0
      %4120 = vmatmul.mubr.bf16.gmra.mrb[0].mxu0 %v1488
      %v4121 = vpop.f32.mrb[0].mxu0
      %v4122 = vadd.f32 %v3817, %v4121
      %v4123 = vpop.f32.mrb[0].mxu0
      %v4124 = vpop.f32.mrb[0].mxu0
      %v4125 = vadd.f32 %v3820, %v4124
      %v4126 = vpop.f32.mrb[0].mxu0
      %4127 = vmatprep.mubr.bf16.mxu0 0
      %4128 = vmatmul.mubr.bf16.gmra.mrb[0].mxu0 %v1491
      %v4129 = vpop.f32.mrb[0].mxu0
      %v4130 = vadd.f32 %v3825, %v4129
      %v4131 = vpop.f32.mrb[0].mxu0
      %v4132 = vpop.f32.mrb[0].mxu0
      %v4133 = vadd.f32 %v3828, %v4132
      %v4134 = vpop.f32.mrb[0].mxu0
      %4135 = vmatprep.mubr.bf16.mxu0 0
      %4136 = vmatmul.mubr.bf16.gmra.mrb[0].mxu0 %v1494
      %v4137 = vpop.f32.mrb[0].mxu0
      %v4138 = vadd.f32 %v3833, %v4137
      %v4139 = vpop.f32.mrb[0].mxu0
      %v4140 = vpop.f32.mrb[0].mxu0
      %v4141 = vadd.f32 %v3836, %v4140
      %v4142 = vpop.f32.mrb[0].mxu0
      %4143 = vmatprep.mubr.bf16.mxu0 0
      %4144 = vmatmul.mubr.bf16.gmra.mrb[0].mxu0 %v1497
      %v4145 = vpop.f32.mrb[0].mxu0
      %v4146 = vadd.f32 %v3841, %v4145
      %v4147 = vpop.f32.mrb[0].mxu0
      %v4148 = vpop.f32.mrb[0].mxu0
      %v4149 = vadd.f32 %v3844, %v4148
      %v4150 = vpop.f32.mrb[0].mxu0
      %4151 = vmatprep.mubr.bf16.mxu0 0
      %4152 = vmatmul.mubr.bf16.gmra.mrb[0].mxu0 %v1500
      %v4153 = vpop.f32.mrb[0].mxu0
      %v4154 = vadd.f32 %v3849, %v4153
      %v4155 = vpop.f32.mrb[0].mxu0
      %v4156 = vpop.f32.mrb[0].mxu0
      %v4157 = vadd.f32 %v3852, %v4156
      %v4158 = vpop.f32.mrb[0].mxu0
      %4159 = vmatprep.mubr.bf16.mxu0 0
      %4160 = vmatmul.mubr.bf16.gmra.mrb[0].mxu0 %v1503
      %v4161 = vpop.f32.mrb[0].mxu0
      %v4162 = vadd.f32 %v3857, %v4161
      %v4163 = vpop.f32.mrb[0].mxu0
      %v4164 = vpop.f32.mrb[0].mxu0
      %v4165 = vadd.f32 %v3860, %v4164
      %v4166 = vpop.f32.mrb[0].mxu0
      %4167 = vmatprep.mubr.bf16.mxu0 0
      %4168 = vmatmul.mubr.bf16.gmra.mrb[0].mxu0 %v1506
      %v4169 = vpop.f32.mrb[0].mxu0
      %v4170 = vadd.f32 %v3865, %v4169
      %v4171 = vpop.f32.mrb[0].mxu0
      %v4172 = vpop.f32.mrb[0].mxu0
      %v4173 = vadd.f32 %v3868, %v4172
      %v4174 = vpop.f32.mrb[0].mxu0
      %4175 = vmatprep.mubr.bf16.mxu0 0
      %4176 = vmatmul.mubr.bf16.gmra.mrb[0].mxu0 %v1509
      %v4177 = vpop.f32.mrb[0].mxu0
      %v4178 = vadd.f32 %v3873, %v4177
      %v4179 = vpop.f32.mrb[0].mxu0
      %v4180 = vpop.f32.mrb[0].mxu0
      %v4181 = vadd.f32 %v3876, %v4180
      %v4182 = vpop.f32.mrb[0].mxu0
      %4183 = vmatprep.mubr.bf16.mxu0 0
      %4184 = vmatmul.mubr.bf16.gmra.mrb[0].mxu0 %v1512
      %v4185 = vpop.f32.mrb[0].mxu0
      %v4186 = vadd.f32 %v3881, %v4185
      %v4187 = vpop.f32.mrb[0].mxu0
      %v4188 = vpop.f32.mrb[0].mxu0
      %v4189 = vadd.f32 %v3884, %v4188
      %v4190 = vpop.f32.mrb[0].mxu0
      %4191 = vmatprep.mubr.bf16.mxu0 0
      %4192 = vmatmul.mubr.bf16.gmra.mrb[0].mxu0 %v1515
      %v4193 = vpop.f32.mrb[0].mxu0
      %v4194 = vadd.f32 %v3889, %v4193
      %v4195 = vpop.f32.mrb[0].mxu0
      %v4196 = vpop.f32.mrb[0].mxu0
      %v4197 = vadd.f32 %v3892, %v4196
      %v4198 = vpop.f32.mrb[0].mxu0
      %4199 = vmatprep.mubr.bf16.mxu0 0
      %4200 = vmatmul.mubr.bf16.gmra.mrb[0].mxu0 %v1518
      %v4201 = vpop.f32.mrb[0].mxu0
      %v4202 = vadd.f32 %v3897, %v4201
      %v4203 = vpop.f32.mrb[0].mxu0
      %v4204 = vpop.f32.mrb[0].mxu0
      %v4205 = vadd.f32 %v3900, %v4204
      %v4206 = vpop.f32.mrb[0].mxu0
      %4207 = vmatprep.mubr.bf16.mxu0 0
      %4208 = vmatmul.mubr.bf16.gmra.mrb[0].mxu0 %v1521
      %v4209 = vpop.f32.mrb[0].mxu0
      %v4210 = vadd.f32 %v3905, %v4209
      %v4211 = vpop.f32.mrb[0].mxu0
      %v4212 = vpop.f32.mrb[0].mxu0
      %v4213 = vadd.f32 %v3908, %v4212
      %v4214 = vpop.f32.mrb[0].mxu0
      %4215 = vmatprep.mubr.bf16.mxu0 0
      %4216 = vmatmul.mubr.bf16.gmra.mrb[0].mxu0 %v1524
      %v4217 = vpop.f32.mrb[0].mxu0
      %v4218 = vadd.f32 %v3913, %v4217
      %v4219 = vpop.f32.mrb[0].mxu0
      %v4220 = vpop.f32.mrb[0].mxu0
      %v4221 = vadd.f32 %v3916, %v4220
      %v4222 = vpop.f32.mrb[0].mxu0
      %4223 = vmatprep.mubr.bf16.mxu0 0
      %4224 = vmatmul.mubr.bf16.gmra.mrb[0].mxu0 %v1527
      %v4225 = vpop.f32.mrb[0].mxu0
      %v4226 = vadd.f32 %v3921, %v4225
      %v4227 = vpop.f32.mrb[0].mxu0
      %v4228 = vpop.f32.mrb[0].mxu0
      %v4229 = vadd.f32 %v3924, %v4228
      %v4230 = vpop.f32.mrb[0].mxu0
      %4231 = vmatprep.mubr.bf16.mxu0 0
      %4232 = vmatmul.mubr.bf16.gmra.mrb[0].mxu0 %v1530
      %v4233 = vpop.f32.mrb[0].mxu0
      %v4234 = vadd.f32 %v3929, %v4233
      %v4235 = vpop.f32.mrb[0].mxu0
      %v4236 = vpop.f32.mrb[0].mxu0
      %v4237 = vadd.f32 %v3932, %v4236
      %v4238 = vpop.f32.mrb[0].mxu0
      %4239 = vmatprep.mubr.bf16.mxu0 0
      %4240 = vmatmul.mubr.bf16.gmra.mrb[0].mxu0 %v1533
      %v4241 = vpop.f32.mrb[0].mxu0
      %v4242 = vadd.f32 %v3937, %v4241
      %v4243 = vpop.f32.mrb[0].mxu0
      %v4244 = vpop.f32.mrb[0].mxu0
      %v4245 = vadd.f32 %v3940, %v4244
      %v4246 = vpop.f32.mrb[0].mxu0
      %4247 = vmatprep.mubr.bf16.mxu0 0
      %4248 = vmatmul.mubr.bf16.gmra.mrb[0].mxu0 %v1536
      %v4249 = vpop.f32.mrb[0].mxu0
      %v4250 = vadd.f32 %v3945, %v4249
      %v4251 = vpop.f32.mrb[0].mxu0
      %v4252 = vpop.f32.mrb[0].mxu0
      %v4253 = vadd.f32 %v3948, %v4252
      %v4254 = vpop.f32.mrb[0].mxu0
      %4255 = vmatprep.mubr.bf16.mxu0 0
      %4256 = vmatmul.mubr.bf16.gmra.mrb[0].mxu0 %v1539
      %v4257 = vpop.f32.mrb[0].mxu0
      %v4258 = vadd.f32 %v3953, %v4257
      %v4259 = vpop.f32.mrb[0].mxu0
      %v4260 = vpop.f32.mrb[0].mxu0
      %v4261 = vadd.f32 %v3956, %v4260
      %v4262 = vpop.f32.mrb[0].mxu0
      %4263 = vmatprep.mubr.bf16.mxu0 0
      %4264 = vmatmul.mubr.bf16.gmra.mrb[0].mxu0 %v1542
      %v4265 = vpop.f32.mrb[0].mxu0
      %v4266 = vadd.f32 %v3961, %v4265
      %v4267 = vpop.f32.mrb[0].mxu0
      %v4268 = vpop.f32.mrb[0].mxu0
      %v4269 = vadd.f32 %v3964, %v4268
      %v4270 = vpop.f32.mrb[0].mxu0
      %4271 = vmatprep.mubr.bf16.mxu0 0
      %4272 = vmatmul.mubr.bf16.gmra.mrb[0].mxu0 %v1545
      %v4273 = vpop.f32.mrb[0].mxu0
      %v4274 = vadd.f32 %v3969, %v4273
      %v4275 = vpop.f32.mrb[0].mxu0
      %v4276 = vpop.f32.mrb[0].mxu0
      %v4277 = vadd.f32 %v3972, %v4276
      %v4278 = vpop.f32.mrb[0].mxu0
      %4279 = vmatprep.mubr.bf16.mxu0 0
      %4280 = vmatmul.mubr.bf16.gmra.mrb[0].mxu0 %v1548
      %v4281 = vpop.f32.mrb[0].mxu0
      %v4282 = vadd.f32 %v3977, %v4281
      %v4283 = vpop.f32.mrb[0].mxu0
      %v4284 = vpop.f32.mrb[0].mxu0
      %v4285 = vadd.f32 %v3980, %v4284
      %v4286 = vpop.f32.mrb[0].mxu0
      %4287 = vmatprep.mubr.bf16.mxu0 0
      %4288 = vmatmul.mubr.bf16.gmra.mrb[0].mxu0 %v1551
      %v4289 = vpop.f32.mrb[0].mxu0
      %v4290 = vadd.f32 %v3985, %v4289
      %v4291 = vpop.f32.mrb[0].mxu0
      %v4292 = vpop.f32.mrb[0].mxu0
      %v4293 = vadd.f32 %v3988, %v4292
      %v4294 = vpop.f32.mrb[0].mxu0
      %4295 = vmatprep.mubr.bf16.mxu0 0
      %4296 = vmatmul.mubr.bf16.gmra.mrb[0].mxu0 %v1554
      %v4297 = vpop.f32.mrb[0].mxu0
      %v4298 = vadd.f32 %v3993, %v4297
      %v4299 = vpop.f32.mrb[0].mxu0
      %v4300 = vpop.f32.mrb[0].mxu0
      %v4301 = vadd.f32 %v3996, %v4300
      %v4302 = vpop.f32.mrb[0].mxu0
      %4303 = vmatprep.mubr.bf16.mxu0 0
      %4304 = vmatmul.mubr.bf16.gmra.mrb[0].mxu0 %v1557
      %v4305 = vpop.f32.mrb[0].mxu0
      %v4306 = vadd.f32 %v4001, %v4305
      %v4307 = vpop.f32.mrb[0].mxu0
      %v4308 = vpop.f32.mrb[0].mxu0
      %v4309 = vadd.f32 %v4004, %v4308
      %v4310 = vpop.f32.mrb[0].mxu0
      %4311 = vmatprep.mubr.bf16.mxu0 0
      %4312 = vmatmul.mubr.bf16.gmra.mrb[0].mxu0 %v1560
      %v4313 = vpop.f32.mrb[0].mxu0
      %v4314 = vadd.f32 %v4009, %v4313
      %v4315 = vpop.f32.mrb[0].mxu0
      %v4316 = vpop.f32.mrb[0].mxu0
      %v4317 = vadd.f32 %v4012, %v4316
      %v4318 = vpop.f32.mrb[0].mxu0
      %4319 = vmatprep.mubr.bf16.mxu0 0
      %4320 = vmatmul.mubr.bf16.gmra.mrb[0].mxu0 %v1563
      %v4321 = vpop.f32.mrb[0].mxu0
      %v4322 = vadd.f32 %v4017, %v4321
      %v4323 = vpop.f32.mrb[0].mxu0
      %v4324 = vpop.f32.mrb[0].mxu0
      %v4325 = vadd.f32 %v4020, %v4324
      %v4326 = vpop.f32.mrb[0].mxu0
      %4327 = vmatprep.mubr.bf16.mxu0 0
      %4328 = vmatmul.mubr.bf16.gmra.mrb[0].mxu0 %v1566
      %v4329 = vpop.f32.mrb[0].mxu0
      %v4330 = vadd.f32 %v4025, %v4329
      %v4331 = vpop.f32.mrb[0].mxu0
      %v4332 = vpop.f32.mrb[0].mxu0
      %v4333 = vadd.f32 %v4028, %v4332
      %v4334 = vpop.f32.mrb[0].mxu0
      %4335 = vmatprep.mubr.bf16.mxu0 0
      %4336 = vmatmul.mubr.bf16.gmra.mrb[0].mxu0 %v1569
      %v4337 = vpop.f32.mrb[0].mxu0
      %v4338 = vadd.f32 %v4033, %v4337
      %v4339 = vpop.f32.mrb[0].mxu0
      %v4340 = vpop.f32.mrb[0].mxu0
      %v4341 = vadd.f32 %v4036, %v4340
      %v4342 = vpop.f32.mrb[0].mxu0
      %4343 = vmatprep.mubr.bf16.mxu0 0
      %4344 = vmatmul.mubr.bf16.gmra.mrb[0].mxu0 %v1572
      %v4345 = vpop.f32.mrb[0].mxu0
      %v4346 = vadd.f32 %v4041, %v4345
      %v4347 = vpop.f32.mrb[0].mxu0
      %v4348 = vpop.f32.mrb[0].mxu0
      %v4349 = vadd.f32 %v4044, %v4348
      %v4350 = vpop.f32.mrb[0].mxu0
      %4351 = vmatprep.mubr.bf16.mxu0 0
      %4352 = vmatmul.mubr.bf16.gmra.mrb[0].mxu0 %v1575
      %v4353 = vpop.f32.mrb[0].mxu0
      %v4354 = vadd.f32 %v4049, %v4353
      %v4355 = vpop.f32.mrb[0].mxu0
      %v4356 = vpop.f32.mrb[0].mxu0
      %v4357 = vadd.f32 %v4052, %v4356
      %v4358 = vpop.f32.mrb[0].mxu0
      %4359 = vdwg.mxu0
      %v4360 = vadd.f32 %v3489, %v4090
      %v4361 = vadd.f32 %v3490, %v4093
      %v4362 = vadd.f32 %v3491, %v4098
      %v4363 = vadd.f32 %v3492, %v4101
      %v4364 = vadd.f32 %v3493, %v4106
      %v4365 = vadd.f32 %v3494, %v4109
      %v4366 = vadd.f32 %v3495, %v4114
      %v4367 = vadd.f32 %v3496, %v4117
      %v4368 = vadd.f32 %v3497, %v4122
      %v4369 = vadd.f32 %v3498, %v4125
      %v4370 = vadd.f32 %v3499, %v4130
      %v4371 = vadd.f32 %v3500, %v4133
      %v4372 = vadd.f32 %v3501, %v4138
      %v4373 = vadd.f32 %v3502, %v4141
      %v4374 = vadd.f32 %v3503, %v4146
      %v4375 = vadd.f32 %v3504, %v4149
      %v4376 = vadd.f32 %v3505, %v4154
      %v4377 = vadd.f32 %v3506, %v4157
      %v4378 = vadd.f32 %v3507, %v4162
      %v4379 = vadd.f32 %v3508, %v4165
      %v4380 = vadd.f32 %v3509, %v4170
      %v4381 = vadd.f32 %v3510, %v4173
      %v4382 = vadd.f32 %v3511, %v4178
      %v4383 = vadd.f32 %v3512, %v4181
      %v4384 = vadd.f32 %v3513, %v4186
      %v4385 = vadd.f32 %v3514, %v4189
      %v4386 = vadd.f32 %v3515, %v4194
      %v4387 = vadd.f32 %v3516, %v4197
      %v4388 = vadd.f32 %v3517, %v4202
      %v4389 = vadd.f32 %v3518, %v4205
      %v4390 = vadd.f32 %v3519, %v4210
      %v4391 = vadd.f32 %v3520, %v4213
      %v4392 = vadd.f32 %v3521, %v4218
      %v4393 = vadd.f32 %v3522, %v4221
      %v4394 = vadd.f32 %v3523, %v4226
      %v4395 = vadd.f32 %v3524, %v4229
      %v4396 = vadd.f32 %v3525, %v4234
      %v4397 = vadd.f32 %v3526, %v4237
      %v4398 = vadd.f32 %v3527, %v4242
      %v4399 = vadd.f32 %v3528, %v4245
      %v4400 = vadd.f32 %v3529, %v4250
      %v4401 = vadd.f32 %v3530, %v4253
      %v4402 = vadd.f32 %v3531, %v4258
      %v4403 = vadd.f32 %v3532, %v4261
      %v4404 = vadd.f32 %v3533, %v4266
      %v4405 = vadd.f32 %v3534, %v4269
      %v4406 = vadd.f32 %v3535, %v4274
      %v4407 = vadd.f32 %v3536, %v4277
      %v4408 = vadd.f32 %v3537, %v4282
      %v4409 = vadd.f32 %v3538, %v4285
      %v4410 = vadd.f32 %v3539, %v4290
      %v4411 = vadd.f32 %v3540, %v4293
      %v4412 = vadd.f32 %v3541, %v4298
      %v4413 = vadd.f32 %v3542, %v4301
      %v4414 = vadd.f32 %v3543, %v4306
      %v4415 = vadd.f32 %v3544, %v4309
      %v4416 = vadd.f32 %v3545, %v4314
      %v4417 = vadd.f32 %v3546, %v4317
      %v4418 = vadd.f32 %v3547, %v4322
      %v4419 = vadd.f32 %v3548, %v4325
      %v4420 = vadd.f32 %v3549, %v4330
      %v4421 = vadd.f32 %v3550, %v4333
      %v4422 = vadd.f32 %v3551, %v4338
      %v4423 = vadd.f32 %v3552, %v4341
      %v4424 = vadd.f32 %v3553, %v4346
      %v4425 = vadd.f32 %v3554, %v4349
      %v4426 = vadd.f32 %v3555, %v4354
      %v4427 = vadd.f32 %v3556, %v4357
      %4428 = vst [vmem:[#allocation2] sm:$0xff] %v4360
      %4429 = vst [vmem:[#allocation2 + $0x8] sm:$0xff] %v4361
      %4430 = vst [vmem:[#allocation2 + $0x10] sm:$0xff] %v4362
      %4431 = vst [vmem:[#allocation2 + $0x18] sm:$0xff] %v4363
      %4432 = vst [vmem:[#allocation2 + $0x20] sm:$0xff] %v4364
      %4433 = vst [vmem:[#allocation2 + $0x28] sm:$0xff] %v4365
      %4434 = vst [vmem:[#allocation2 + $0x30] sm:$0xff] %v4366
      %4435 = vst [vmem:[#allocation2 + $0x38] sm:$0xff] %v4367
      %4436 = vst [vmem:[#allocation2 + $0x40] sm:$0xff] %v4368
      %4437 = vst [vmem:[#allocation2 + $0x48] sm:$0xff] %v4369
      %4438 = vst [vmem:[#allocation2 + $0x50] sm:$0xff] %v4370
      %4439 = vst [vmem:[#allocation2 + $0x58] sm:$0xff] %v4371
      %4440 = vst [vmem:[#allocation2 + $0x60] sm:$0xff] %v4372
      %4441 = vst [vmem:[#allocation2 + $0x68] sm:$0xff] %v4373
      %4442 = vst [vmem:[#allocation2 + $0x70] sm:$0xff] %v4374
      %4443 = vst [vmem:[#allocation2 + $0x78] sm:$0xff] %v4375
      %4444 = vst [vmem:[#allocation2 + $0x80] sm:$0xff] %v4376
      %4445 = vst [vmem:[#allocation2 + $0x88] sm:$0xff] %v4377
      %4446 = vst [vmem:[#allocation2 + $0x90] sm:$0xff] %v4378
      %4447 = vst [vmem:[#allocation2 + $0x98] sm:$0xff] %v4379
      %4448 = vst [vmem:[#allocation2 + $0xa0] sm:$0xff] %v4380
      %4449 = vst [vmem:[#allocation2 + $0xa8] sm:$0xff] %v4381
      %4450 = vst [vmem:[#allocation2 + $0xb0] sm:$0xff] %v4382
      %4451 = vst [vmem:[#allocation2 + $0xb8] sm:$0xff] %v4383
      %4452 = vst [vmem:[#allocation2 + $0xc0] sm:$0xff] %v4384
      %4453 = vst [vmem:[#allocation2 + $0xc8] sm:$0xff] %v4385
      %4454 = vst [vmem:[#allocation2 + $0xd0] sm:$0xff] %v4386
      %4455 = vst [vmem:[#allocation2 + $0xd8] sm:$0xff] %v4387
      %4456 = vst [vmem:[#allocation2 + $0xe0] sm:$0xff] %v4388
      %4457 = vst [vmem:[#allocation2 + $0xe8] sm:$0xff] %v4389
      %4458 = vst [vmem:[#allocation2 + $0xf0] sm:$0xff] %v4390
      %4459 = vst [vmem:[#allocation2 + $0xf8] sm:$0xff] %v4391
      %4460 = vst [vmem:[#allocation2 + $0x100] sm:$0xff] %v4392
      %4461 = vst [vmem:[#allocation2 + $0x108] sm:$0xff] %v4393
      %4462 = vst [vmem:[#allocation2 + $0x110] sm:$0xff] %v4394
      %4463 = vst [vmem:[#allocation2 + $0x118] sm:$0xff] %v4395
      %4464 = vst [vmem:[#allocation2 + $0x120] sm:$0xff] %v4396
      %4465 = vst [vmem:[#allocation2 + $0x128] sm:$0xff] %v4397
      %4466 = vst [vmem:[#allocation2 + $0x130] sm:$0xff] %v4398
      %4467 = vst [vmem:[#allocation2 + $0x138] sm:$0xff] %v4399
      %4468 = vst [vmem:[#allocation2 + $0x140] sm:$0xff] %v4400
      %4469 = vst [vmem:[#allocation2 + $0x148] sm:$0xff] %v4401
      %4470 = vst [vmem:[#allocation2 + $0x150] sm:$0xff] %v4402
      %4471 = vst [vmem:[#allocation2 + $0x158] sm:$0xff] %v4403
      %4472 = vst [vmem:[#allocation2 + $0x160] sm:$0xff] %v4404
      %4473 = vst [vmem:[#allocation2 + $0x168] sm:$0xff] %v4405
      %4474 = vst [vmem:[#allocation2 + $0x170] sm:$0xff] %v4406
      %4475 = vst [vmem:[#allocation2 + $0x178] sm:$0xff] %v4407
      %4476 = vst [vmem:[#allocation2 + $0x180] sm:$0xff] %v4408
      %4477 = vst [vmem:[#allocation2 + $0x188] sm:$0xff] %v4409
      %4478 = vst [vmem:[#allocation2 + $0x190] sm:$0xff] %v4410
      %4479 = vst [vmem:[#allocation2 + $0x198] sm:$0xff] %v4411
      %4480 = vst [vmem:[#allocation2 + $0x1a0] sm:$0xff] %v4412
      %4481 = vst [vmem:[#allocation2 + $0x1a8] sm:$0xff] %v4413
      %4482 = vst [vmem:[#allocation2 + $0x1b0] sm:$0xff] %v4414
      %4483 = vst [vmem:[#allocation2 + $0x1b8] sm:$0xff] %v4415
      %4484 = vst [vmem:[#allocation2 + $0x1c0] sm:$0xff] %v4416
      %4485 = vst [vmem:[#allocation2 + $0x1c8] sm:$0xff] %v4417
      %4486 = vst [vmem:[#allocation2 + $0x1d0] sm:$0xff] %v4418
      %4487 = vst [vmem:[#allocation2 + $0x1d8] sm:$0xff] %v4419
      %4488 = vst [vmem:[#allocation2 + $0x1e0] sm:$0xff] %v4420
      %4489 = vst [vmem:[#allocation2 + $0x1e8] sm:$0xff] %v4421
      %4490 = vst [vmem:[#allocation2 + $0x1f0] sm:$0xff] %v4422
      %4491 = vst [vmem:[#allocation2 + $0x1f8] sm:$0xff] %v4423
      %4492 = vst [vmem:[#allocation2 + $0x200] sm:$0xff] %v4424
      %4493 = vst [vmem:[#allocation2 + $0x208] sm:$0xff] %v4425
      %4494 = vst [vmem:[#allocation2 + $0x210] sm:$0xff] %v4426
      %4495 = vst [vmem:[#allocation2 + $0x218] sm:$0xff] %v4427
      %v4496 = vld [vmem:[#allocation2] sm:$0xff]
      %v4497 = vld [vmem:[#allocation2 + $0x8] sm:$0xff]
      %v4498 = vld [vmem:[#allocation2 + $0x10] sm:$0xff]
      %v4499 = vld [vmem:[#allocation2 + $0x18] sm:$0xff]
      %v4500 = vld [vmem:[#allocation2 + $0x20] sm:$0xff]
      %v4501 = vld [vmem:[#allocation2 + $0x28] sm:$0xff]
      %v4502 = vld [vmem:[#allocation2 + $0x30] sm:$0xff]
      %v4503 = vld [vmem:[#allocation2 + $0x38] sm:$0xff]
      %v4504 = vld [vmem:[#allocation2 + $0x40] sm:$0xff]
      %v4505 = vld [vmem:[#allocation2 + $0x48] sm:$0xff]
      %v4506 = vld [vmem:[#allocation2 + $0x50] sm:$0xff]
      %v4507 = vld [vmem:[#allocation2 + $0x58] sm:$0xff]
      %v4508 = vld [vmem:[#allocation2 + $0x60] sm:$0xff]
      %v4509 = vld [vmem:[#allocation2 + $0x68] sm:$0xff]
      %v4510 = vld [vmem:[#allocation2 + $0x70] sm:$0xff]
      %v4511 = vld [vmem:[#allocation2 + $0x78] sm:$0xff]
      %v4512 = vld [vmem:[#allocation2 + $0x80] sm:$0xff]
      %v4513 = vld [vmem:[#allocation2 + $0x88] sm:$0xff]
      %v4514 = vld [vmem:[#allocation2 + $0x90] sm:$0xff]
      %v4515 = vld [vmem:[#allocation2 + $0x98] sm:$0xff]
      %v4516 = vld [vmem:[#allocation2 + $0xa0] sm:$0xff]
      %v4517 = vld [vmem:[#allocation2 + $0xa8] sm:$0xff]
      %v4518 = vld [vmem:[#allocation2 + $0xb0] sm:$0xff]
      %v4519 = vld [vmem:[#allocation2 + $0xb8] sm:$0xff]
      %v4520 = vld [vmem:[#allocation2 + $0xc0] sm:$0xff]
      %v4521 = vld [vmem:[#allocation2 + $0xc8] sm:$0xff]
      %v4522 = vld [vmem:[#allocation2 + $0xd0] sm:$0xff]
      %v4523 = vld [vmem:[#allocation2 + $0xd8] sm:$0xff]
      %v4524 = vld [vmem:[#allocation2 + $0xe0] sm:$0xff]
      %v4525 = vld [vmem:[#allocation2 + $0xe8] sm:$0xff]
      %v4526 = vld [vmem:[#allocation2 + $0xf0] sm:$0xff]
      %v4527 = vld [vmem:[#allocation2 + $0xf8] sm:$0xff]
      %v4528 = vld [vmem:[#allocation2 + $0x100] sm:$0xff]
      %v4529 = vld [vmem:[#allocation2 + $0x108] sm:$0xff]
      %v4530 = vld [vmem:[#allocation2 + $0x110] sm:$0xff]
      %v4531 = vld [vmem:[#allocation2 + $0x118] sm:$0xff]
      %v4532 = vld [vmem:[#allocation2 + $0x120] sm:$0xff]
      %v4533 = vld [vmem:[#allocation2 + $0x128] sm:$0xff]
      %v4534 = vld [vmem:[#allocation2 + $0x130] sm:$0xff]
      %v4535 = vld [vmem:[#allocation2 + $0x138] sm:$0xff]
      %v4536 = vld [vmem:[#allocation2 + $0x140] sm:$0xff]
      %v4537 = vld [vmem:[#allocation2 + $0x148] sm:$0xff]
      %v4538 = vld [vmem:[#allocation2 + $0x150] sm:$0xff]
      %v4539 = vld [vmem:[#allocation2 + $0x158] sm:$0xff]
      %v4540 = vld [vmem:[#allocation2 + $0x160] sm:$0xff]
      %v4541 = vld [vmem:[#allocation2 + $0x168] sm:$0xff]
      %v4542 = vld [vmem:[#allocation2 + $0x170] sm:$0xff]
      %v4543 = vld [vmem:[#allocation2 + $0x178] sm:$0xff]
      %v4544 = vld [vmem:[#allocation2 + $0x180] sm:$0xff]
      %v4545 = vld [vmem:[#allocation2 + $0x188] sm:$0xff]
      %v4546 = vld [vmem:[#allocation2 + $0x190] sm:$0xff]
      %v4547 = vld [vmem:[#allocation2 + $0x198] sm:$0xff]
      %v4548 = vld [vmem:[#allocation2 + $0x1a0] sm:$0xff]
      %v4549 = vld [vmem:[#allocation2 + $0x1a8] sm:$0xff]
      %v4550 = vld [vmem:[#allocation2 + $0x1b0] sm:$0xff]
      %v4551 = vld [vmem:[#allocation2 + $0x1b8] sm:$0xff]
      %v4552 = vld [vmem:[#allocation2 + $0x1c0] sm:$0xff]
      %v4553 = vld [vmem:[#allocation2 + $0x1c8] sm:$0xff]
      %v4554 = vld [vmem:[#allocation2 + $0x1d0] sm:$0xff]
      %v4555 = vld [vmem:[#allocation2 + $0x1d8] sm:$0xff]
      %v4556 = vld [vmem:[#allocation2 + $0x1e0] sm:$0xff]
      %v4557 = vld [vmem:[#allocation2 + $0x1e8] sm:$0xff]
      %v4558 = vld [vmem:[#allocation2 + $0x1f0] sm:$0xff]
      %v4559 = vld [vmem:[#allocation2 + $0x1f8] sm:$0xff]
      %v4560 = vld [vmem:[#allocation2 + $0x200] sm:$0xff]
      %v4561 = vld [vmem:[#allocation2 + $0x208] sm:$0xff]
      %v4562 = vld [vmem:[#allocation2 + $0x210] sm:$0xff]
      %v4563 = vld [vmem:[#allocation2 + $0x218] sm:$0xff]
      %v4564 = vld [vmem:[#allocation2 + $0x220] sm:$0xff]
      %v4565 = vld [vmem:[#allocation2 + $0x228] sm:$0xff]
      %v4566 = vld [vmem:[#allocation2 + $0x230] sm:$0xff]
      %v4567 = vld [vmem:[#allocation2 + $0x238] sm:$0xff]
      %v4568 = vld [vmem:[%s306] sm:$0x1]
      %v4570 = vlaneseq
      %v4571 = vshrl.u32 %v4570, 7
      %v4572 = vsub.s32 0, %v4571
      %v4573 = vrot.slane %v4568, %v4572
      %v4575 = vadd.f32 %v4496, %v4573
      %v4576 = vadd.f32 %v4497, %v4573
      %v4577 = vadd.f32 %v4498, %v4573
      %v4578 = vadd.f32 %v4499, %v4573
      %v4579 = vadd.f32 %v4500, %v4573
      %v4580 = vadd.f32 %v4501, %v4573
      %v4581 = vadd.f32 %v4502, %v4573
      %v4582 = vadd.f32 %v4503, %v4573
      %v4583 = vadd.f32 %v4504, %v4573
      %v4584 = vadd.f32 %v4505, %v4573
      %v4585 = vadd.f32 %v4506, %v4573
      %v4586 = vadd.f32 %v4507, %v4573
      %v4587 = vadd.f32 %v4508, %v4573
      %v4588 = vadd.f32 %v4509, %v4573
      %v4589 = vadd.f32 %v4510, %v4573
      %v4590 = vadd.f32 %v4511, %v4573
      %v4591 = vadd.f32 %v4512, %v4573
      %v4592 = vadd.f32 %v4513, %v4573
      %v4593 = vadd.f32 %v4514, %v4573
      %v4594 = vadd.f32 %v4515, %v4573
      %v4595 = vadd.f32 %v4516, %v4573
      %v4596 = vadd.f32 %v4517, %v4573
      %v4597 = vadd.f32 %v4518, %v4573
      %v4598 = vadd.f32 %v4519, %v4573
      %v4599 = vadd.f32 %v4520, %v4573
      %v4600 = vadd.f32 %v4521, %v4573
      %v4601 = vadd.f32 %v4522, %v4573
      %v4602 = vadd.f32 %v4523, %v4573
      %v4603 = vadd.f32 %v4524, %v4573
      %v4604 = vadd.f32 %v4525, %v4573
      %v4605 = vadd.f32 %v4526, %v4573
      %v4606 = vadd.f32 %v4527, %v4573
      %v4607 = vadd.f32 %v4528, %v4573
      %v4608 = vadd.f32 %v4529, %v4573
      %v4609 = vadd.f32 %v4530, %v4573
      %v4610 = vadd.f32 %v4531, %v4573
      %v4611 = vadd.f32 %v4532, %v4573
      %v4612 = vadd.f32 %v4533, %v4573
      %v4613 = vadd.f32 %v4534, %v4573
      %v4614 = vadd.f32 %v4535, %v4573
      %v4615 = vadd.f32 %v4536, %v4573
      %v4616 = vadd.f32 %v4537, %v4573
      %v4617 = vadd.f32 %v4538, %v4573
      %v4618 = vadd.f32 %v4539, %v4573
      %v4619 = vadd.f32 %v4540, %v4573
      %v4620 = vadd.f32 %v4541, %v4573
      %v4621 = vadd.f32 %v4542, %v4573
      %v4622 = vadd.f32 %v4543, %v4573
      %v4623 = vadd.f32 %v4544, %v4573
      %v4624 = vadd.f32 %v4545, %v4573
      %v4625 = vadd.f32 %v4546, %v4573
      %v4626 = vadd.f32 %v4547, %v4573
      %v4627 = vadd.f32 %v4548, %v4573
      %v4628 = vadd.f32 %v4549, %v4573
      %v4629 = vadd.f32 %v4550, %v4573
      %v4630 = vadd.f32 %v4551, %v4573
      %v4631 = vadd.f32 %v4552, %v4573
      %v4632 = vadd.f32 %v4553, %v4573
      %v4633 = vadd.f32 %v4554, %v4573
      %v4634 = vadd.f32 %v4555, %v4573
      %v4635 = vadd.f32 %v4556, %v4573
      %v4636 = vadd.f32 %v4557, %v4573
      %v4637 = vadd.f32 %v4558, %v4573
      %v4638 = vadd.f32 %v4559, %v4573
      %v4639 = vadd.f32 %v4560, %v4573
      %v4640 = vadd.f32 %v4561, %v4573
      %v4641 = vadd.f32 %v4562, %v4573
      %v4642 = vadd.f32 %v4563, %v4573
      %v4643 = vadd.f32 %v4564, %v4573
      %v4644 = vadd.f32 %v4565, %v4573
      %v4645 = vadd.f32 %v4566, %v4573
      %v4646 = vadd.f32 %v4567, %v4573
      %vm4647 = vcmp.lt.s32.totalorder %v788, 18
      %vm4648 = vcmp.lt.s32.totalorder %v789, 18
      %vm4649 = vcmp.lt.s32.totalorder %v790, 18
      %vm4650 = vcmp.lt.s32.totalorder %v791, 18
      %v4651 = vsel %vm4647, 1, 0
      %v4652 = vsel %vm4648, 1, 0
      %v4653 = vsel %vm4649, 1, 0
      %v4654 = vsel %vm4650, 1, 0
      %vm4655 = vcmp.eq.s32.totalorder %v4651, 1
      %vm4656 = vcmp.eq.s32.totalorder %v4652, 1
      %vm4657 = vcmp.eq.s32.totalorder %v4653, 1
      %vm4658 = vcmp.eq.s32.totalorder %v4654, 1
      %v4659 = vsel %vm4655, %v4575, 0.0
      %v4660 = vsel %vm4656, %v4576, 0.0
      %v4661 = vsel %vm4657, %v4577, 0.0
      %v4662 = vsel %vm4658, %v4578, 0.0
      %v4663 = vsel %vm4655, %v4579, 0.0
      %v4664 = vsel %vm4656, %v4580, 0.0
      %v4665 = vsel %vm4657, %v4581, 0.0
      %v4666 = vsel %vm4658, %v4582, 0.0
      %v4667 = vsel %vm4655, %v4583, 0.0
      %v4668 = vsel %vm4656, %v4584, 0.0
      %v4669 = vsel %vm4657, %v4585, 0.0
      %v4670 = vsel %vm4658, %v4586, 0.0
      %v4671 = vsel %vm4655, %v4587, 0.0
      %v4672 = vsel %vm4656, %v4588, 0.0
      %v4673 = vsel %vm4657, %v4589, 0.0
      %v4674 = vsel %vm4658, %v4590, 0.0
      %v4675 = vsel %vm4655, %v4591, 0.0
      %v4676 = vsel %vm4656, %v4592, 0.0
      %v4677 = vsel %vm4657, %v4593, 0.0
      %v4678 = vsel %vm4658, %v4594, 0.0
      %v4679 = vsel %vm4655, %v4595, 0.0
      %v4680 = vsel %vm4656, %v4596, 0.0
      %v4681 = vsel %vm4657, %v4597, 0.0
      %v4682 = vsel %vm4658, %v4598, 0.0
      %v4683 = vsel %vm4655, %v4599, 0.0
      %v4684 = vsel %vm4656, %v4600, 0.0
      %v4685 = vsel %vm4657, %v4601, 0.0
      %v4686 = vsel %vm4658, %v4602, 0.0
      %v4687 = vsel %vm4655, %v4603, 0.0
      %v4688 = vsel %vm4656, %v4604, 0.0
      %v4689 = vsel %vm4657, %v4605, 0.0
      %v4690 = vsel %vm4658, %v4606, 0.0
      %v4691 = vsel %vm4655, %v4607, 0.0
      %v4692 = vsel %vm4656, %v4608, 0.0
      %v4693 = vsel %vm4657, %v4609, 0.0
      %v4694 = vsel %vm4658, %v4610, 0.0
      %v4695 = vsel %vm4655, %v4611, 0.0
      %v4696 = vsel %vm4656, %v4612, 0.0
      %v4697 = vsel %vm4657, %v4613, 0.0
      %v4698 = vsel %vm4658, %v4614, 0.0
      %v4699 = vsel %vm4655, %v4615, 0.0
      %v4700 = vsel %vm4656, %v4616, 0.0
      %v4701 = vsel %vm4657, %v4617, 0.0
      %v4702 = vsel %vm4658, %v4618, 0.0
      %v4703 = vsel %vm4655, %v4619, 0.0
      %v4704 = vsel %vm4656, %v4620, 0.0
      %v4705 = vsel %vm4657, %v4621, 0.0
      %v4706 = vsel %vm4658, %v4622, 0.0
      %v4707 = vsel %vm4655, %v4623, 0.0
      %v4708 = vsel %vm4656, %v4624, 0.0
      %v4709 = vsel %vm4657, %v4625, 0.0
      %v4710 = vsel %vm4658, %v4626, 0.0
      %v4711 = vsel %vm4655, %v4627, 0.0
      %v4712 = vsel %vm4656, %v4628, 0.0
      %v4713 = vsel %vm4657, %v4629, 0.0
      %v4714 = vsel %vm4658, %v4630, 0.0
      %v4715 = vsel %vm4655, %v4631, 0.0
      %v4716 = vsel %vm4656, %v4632, 0.0
      %v4717 = vsel %vm4657, %v4633, 0.0
      %v4718 = vsel %vm4658, %v4634, 0.0
      %v4719 = vsel %vm4655, %v4635, 0.0
      %v4720 = vsel %vm4656, %v4636, 0.0
      %v4721 = vsel %vm4657, %v4637, 0.0
      %v4722 = vsel %vm4658, %v4638, 0.0
      %v4723 = vsel %vm4655, %v4639, 0.0
      %v4724 = vsel %vm4656, %v4640, 0.0
      %v4725 = vsel %vm4657, %v4641, 0.0
      %v4726 = vsel %vm4658, %v4642, 0.0
      %v4727 = vsel %vm4655, %v4643, 0.0
      %v4728 = vsel %vm4656, %v4644, 0.0
      %v4729 = vsel %vm4657, %v4645, 0.0
      %v4730 = vsel %vm4658, %v4646, 0.0
      %v4731 = vpack.c.bf16 %v4660, %v4659
      %v4732 = vpack.c.bf16 %v4662, %v4661
      %v4733 = vpack.c.bf16 %v4664, %v4663
      %v4734 = vpack.c.bf16 %v4666, %v4665
      %v4735 = vpack.c.bf16 %v4668, %v4667
      %v4736 = vpack.c.bf16 %v4670, %v4669
      %v4737 = vpack.c.bf16 %v4672, %v4671
      %v4738 = vpack.c.bf16 %v4674, %v4673
      %v4739 = vpack.c.bf16 %v4676, %v4675
      %v4740 = vpack.c.bf16 %v4678, %v4677
      %v4741 = vpack.c.bf16 %v4680, %v4679
      %v4742 = vpack.c.bf16 %v4682, %v4681
      %v4743 = vpack.c.bf16 %v4684, %v4683
      %v4744 = vpack.c.bf16 %v4686, %v4685
      %v4745 = vpack.c.bf16 %v4688, %v4687
      %v4746 = vpack.c.bf16 %v4690, %v4689
      %v4747 = vpack.c.bf16 %v4692, %v4691
      %v4748 = vpack.c.bf16 %v4694, %v4693
      %v4749 = vpack.c.bf16 %v4696, %v4695
      %v4750 = vpack.c.bf16 %v4698, %v4697
      %v4751 = vpack.c.bf16 %v4700, %v4699
      %v4752 = vpack.c.bf16 %v4702, %v4701
      %v4753 = vpack.c.bf16 %v4704, %v4703
      %v4754 = vpack.c.bf16 %v4706, %v4705
      %v4755 = vpack.c.bf16 %v4708, %v4707
      %v4756 = vpack.c.bf16 %v4710, %v4709
      %v4757 = vpack.c.bf16 %v4712, %v4711
      %v4758 = vpack.c.bf16 %v4714, %v4713
      %v4759 = vpack.c.bf16 %v4716, %v4715
      %v4760 = vpack.c.bf16 %v4718, %v4717
      %v4761 = vpack.c.bf16 %v4720, %v4719
      %v4762 = vpack.c.bf16 %v4722, %v4721
      %v4763 = vpack.c.bf16 %v4724, %v4723
      %v4764 = vpack.c.bf16 %v4726, %v4725
      %v4765 = vpack.c.bf16 %v4728, %v4727
      %v4766 = vpack.c.bf16 %v4730, %v4729
      %v4803 = vunpack.c.l.b16 %v4731
      %v4804 = vunpack.c.h.b16 %v4731
      %v4805 = vunpack.c.l.b16 %v4732
      %v4806 = vunpack.c.h.b16 %v4732
      %v4807 = vunpack.c.l.b16 %v4733
      %v4808 = vunpack.c.h.b16 %v4733
      %v4809 = vunpack.c.l.b16 %v4734
      %v4810 = vunpack.c.h.b16 %v4734
      %v4811 = vunpack.c.l.b16 %v4735
      %v4812 = vunpack.c.h.b16 %v4735
      %v4813 = vunpack.c.l.b16 %v4736
      %v4814 = vunpack.c.h.b16 %v4736
      %v4815 = vunpack.c.l.b16 %v4737
      %v4816 = vunpack.c.h.b16 %v4737
      %v4817 = vunpack.c.l.b16 %v4738
      %v4818 = vunpack.c.h.b16 %v4738
      %v4819 = vunpack.c.l.b16 %v4739
      %v4820 = vunpack.c.h.b16 %v4739
      %v4821 = vunpack.c.l.b16 %v4740
      %v4822 = vunpack.c.h.b16 %v4740
      %v4823 = vunpack.c.l.b16 %v4741
      %v4824 = vunpack.c.h.b16 %v4741
      %v4825 = vunpack.c.l.b16 %v4742
      %v4826 = vunpack.c.h.b16 %v4742
      %v4827 = vunpack.c.l.b16 %v4743
      %v4828 = vunpack.c.h.b16 %v4743
      %v4829 = vunpack.c.l.b16 %v4744
      %v4830 = vunpack.c.h.b16 %v4744
      %v4831 = vunpack.c.l.b16 %v4745
      %v4832 = vunpack.c.h.b16 %v4745
      %v4833 = vunpack.c.l.b16 %v4746
      %v4834 = vunpack.c.h.b16 %v4746
      %v4835 = vunpack.c.l.b16 %v4747
      %v4836 = vunpack.c.h.b16 %v4747
      %v4837 = vunpack.c.l.b16 %v4748
      %v4838 = vunpack.c.h.b16 %v4748
      %v4839 = vunpack.c.l.b16 %v4749
      %v4840 = vunpack.c.h.b16 %v4749
      %v4841 = vunpack.c.l.b16 %v4750
      %v4842 = vunpack.c.h.b16 %v4750
      %v4843 = vunpack.c.l.b16 %v4751
      %v4844 = vunpack.c.h.b16 %v4751
      %v4845 = vunpack.c.l.b16 %v4752
      %v4846 = vunpack.c.h.b16 %v4752
      %v4847 = vunpack.c.l.b16 %v4753
      %v4848 = vunpack.c.h.b16 %v4753
      %v4849 = vunpack.c.l.b16 %v4754
      %v4850 = vunpack.c.h.b16 %v4754
      %v4851 = vunpack.c.l.b16 %v4755
      %v4852 = vunpack.c.h.b16 %v4755
      %v4853 = vunpack.c.l.b16 %v4756
      %v4854 = vunpack.c.h.b16 %v4756
      %v4855 = vunpack.c.l.b16 %v4757
      %v4856 = vunpack.c.h.b16 %v4757
      %v4857 = vunpack.c.l.b16 %v4758
      %v4858 = vunpack.c.h.b16 %v4758
      %v4859 = vunpack.c.l.b16 %v4759
      %v4860 = vunpack.c.h.b16 %v4759
      %v4861 = vunpack.c.l.b16 %v4760
      %v4862 = vunpack.c.h.b16 %v4760
      %v4863 = vunpack.c.l.b16 %v4761
      %v4864 = vunpack.c.h.b16 %v4761
      %v4865 = vunpack.c.l.b16 %v4762
      %v4866 = vunpack.c.h.b16 %v4762
      %v4867 = vunpack.c.l.b16 %v4763
      %v4868 = vunpack.c.h.b16 %v4763
      %v4869 = vunpack.c.l.b16 %v4764
      %v4870 = vunpack.c.h.b16 %v4764
      %v4871 = vunpack.c.l.b16 %v4765
      %v4872 = vunpack.c.h.b16 %v4765
      %v4873 = vunpack.c.l.b16 %v4766
      %v4874 = vunpack.c.h.b16 %v4766
      %v4875 = vpack.c.b16 %v4803, %v4803
      %v4876 = vpack.c.b16 %v4804, %v4804
      %v4877 = vpack.c.b16 %v4805, %v4805
      %v4878 = vpack.c.b16 %v4806, %v4806
      %v4879 = vpack.c.b16 %v4807, %v4807
      %v4880 = vpack.c.b16 %v4808, %v4808
      %v4881 = vpack.c.b16 %v4809, %v4809
      %v4882 = vpack.c.b16 %v4810, %v4810
      %v4883 = vpack.c.b16 %v4811, %v4811
      %v4884 = vpack.c.b16 %v4812, %v4812
      %v4885 = vpack.c.b16 %v4813, %v4813
      %v4886 = vpack.c.b16 %v4814, %v4814
      %v4887 = vpack.c.b16 %v4815, %v4815
      %v4888 = vpack.c.b16 %v4816, %v4816
      %v4889 = vpack.c.b16 %v4817, %v4817
      %v4890 = vpack.c.b16 %v4818, %v4818
      %v4891 = vpack.c.b16 %v4819, %v4819
      %v4892 = vpack.c.b16 %v4820, %v4820
      %v4893 = vpack.c.b16 %v4821, %v4821
      %v4894 = vpack.c.b16 %v4822, %v4822
      %v4895 = vpack.c.b16 %v4823, %v4823
      %v4896 = vpack.c.b16 %v4824, %v4824
      %v4897 = vpack.c.b16 %v4825, %v4825
      %v4898 = vpack.c.b16 %v4826, %v4826
      %v4899 = vpack.c.b16 %v4827, %v4827
      %v4900 = vpack.c.b16 %v4828, %v4828
      %v4901 = vpack.c.b16 %v4829, %v4829
      %v4902 = vpack.c.b16 %v4830, %v4830
      %v4903 = vpack.c.b16 %v4831, %v4831
      %v4904 = vpack.c.b16 %v4832, %v4832
      %v4905 = vpack.c.b16 %v4833, %v4833
      %v4906 = vpack.c.b16 %v4834, %v4834
      %v4907 = vpack.c.b16 %v4835, %v4835
      %v4908 = vpack.c.b16 %v4836, %v4836
      %v4909 = vpack.c.b16 %v4837, %v4837
      %v4910 = vpack.c.b16 %v4838, %v4838
      %v4911 = vpack.c.b16 %v4839, %v4839
      %v4912 = vpack.c.b16 %v4840, %v4840
      %v4913 = vpack.c.b16 %v4841, %v4841
      %v4914 = vpack.c.b16 %v4842, %v4842
      %v4915 = vpack.c.b16 %v4843, %v4843
      %v4916 = vpack.c.b16 %v4844, %v4844
      %v4917 = vpack.c.b16 %v4845, %v4845
      %v4918 = vpack.c.b16 %v4846, %v4846
      %v4919 = vpack.c.b16 %v4847, %v4847
      %v4920 = vpack.c.b16 %v4848, %v4848
      %v4921 = vpack.c.b16 %v4849, %v4849
      %v4922 = vpack.c.b16 %v4850, %v4850
      %v4923 = vpack.c.b16 %v4851, %v4851
      %v4924 = vpack.c.b16 %v4852, %v4852
      %v4925 = vpack.c.b16 %v4853, %v4853
      %v4926 = vpack.c.b16 %v4854, %v4854
      %v4927 = vpack.c.b16 %v4855, %v4855
      %v4928 = vpack.c.b16 %v4856, %v4856
      %v4929 = vpack.c.b16 %v4857, %v4857
      %v4930 = vpack.c.b16 %v4858, %v4858
      %v4931 = vpack.c.b16 %v4859, %v4859
      %v4932 = vpack.c.b16 %v4860, %v4860
      %v4933 = vpack.c.b16 %v4861, %v4861
      %v4934 = vpack.c.b16 %v4862, %v4862
      %v4935 = vpack.c.b16 %v4863, %v4863
      %v4936 = vpack.c.b16 %v4864, %v4864
      %v4937 = vpack.c.b16 %v4865, %v4865
      %v4938 = vpack.c.b16 %v4866, %v4866
      %v4939 = vpack.c.b16 %v4867, %v4867
      %v4940 = vpack.c.b16 %v4868, %v4868
      %v4941 = vpack.c.b16 %v4869, %v4869
      %v4942 = vpack.c.b16 %v4870, %v4870
      %v4943 = vpack.c.b16 %v4871, %v4871
      %v4944 = vpack.c.b16 %v4872, %v4872
      %v4945 = vpack.c.b16 %v4873, %v4873
      %v4946 = vpack.c.b16 %v4874, %v4874
      %5019 = vst [vmem:[%s314] sm:$0xf] %v4875
      %5020 = vst [vmem:[%s314 + $0x4] sm:$0xf] %v4876
      %5021 = vst [vmem:[%s314 + $0x8] sm:$0xf] %v4877
      %5022 = vst [vmem:[%s314 + $0xc] sm:$0xf] %v4878
      %5023 = vst [vmem:[%s314 + $0x10] sm:$0xf] %v4879
      %5024 = vst [vmem:[%s314 + $0x14] sm:$0xf] %v4880
      %5025 = vst [vmem:[%s314 + $0x18] sm:$0xf] %v4881
      %5026 = vst [vmem:[%s314 + $0x1c] sm:$0xf] %v4882
      %5027 = vst [vmem:[%s314 + $0x20] sm:$0xf] %v4883
      %5028 = vst [vmem:[%s314 + $0x24] sm:$0xf] %v4884
      %5029 = vst [vmem:[%s314 + $0x28] sm:$0xf] %v4885
      %5030 = vst [vmem:[%s314 + $0x2c] sm:$0xf] %v4886
      %5031 = vst [vmem:[%s314 + $0x30] sm:$0xf] %v4887
      %5032 = vst [vmem:[%s314 + $0x34] sm:$0xf] %v4888
      %5033 = vst [vmem:[%s314 + $0x38] sm:$0xf] %v4889
      %5034 = vst [vmem:[%s314 + $0x3c] sm:$0xf] %v4890
      %5035 = vst [vmem:[%s314 + $0x40] sm:$0xf] %v4891
      %5036 = vst [vmem:[%s314 + $0x44] sm:$0xf] %v4892
      %5037 = vst [vmem:[%s314 + $0x48] sm:$0xf] %v4893
      %5038 = vst [vmem:[%s314 + $0x4c] sm:$0xf] %v4894
      %5039 = vst [vmem:[%s314 + $0x50] sm:$0xf] %v4895
      %5040 = vst [vmem:[%s314 + $0x54] sm:$0xf] %v4896
      %5041 = vst [vmem:[%s314 + $0x58] sm:$0xf] %v4897
      %5042 = vst [vmem:[%s314 + $0x5c] sm:$0xf] %v4898
      %5043 = vst [vmem:[%s314 + $0x60] sm:$0xf] %v4899
      %5044 = vst [vmem:[%s314 + $0x64] sm:$0xf] %v4900
      %5045 = vst [vmem:[%s314 + $0x68] sm:$0xf] %v4901
      %5046 = vst [vmem:[%s314 + $0x6c] sm:$0xf] %v4902
      %5047 = vst [vmem:[%s314 + $0x70] sm:$0xf] %v4903
      %5048 = vst [vmem:[%s314 + $0x74] sm:$0xf] %v4904
      %5049 = vst [vmem:[%s314 + $0x78] sm:$0xf] %v4905
      %5050 = vst [vmem:[%s314 + $0x7c] sm:$0xf] %v4906
      %5051 = vst [vmem:[%s314 + $0x80] sm:$0xf] %v4907
      %5052 = vst [vmem:[%s314 + $0x84] sm:$0xf] %v4908
      %5053 = vst [vmem:[%s314 + $0x88] sm:$0xf] %v4909
      %5054 = vst [vmem:[%s314 + $0x8c] sm:$0xf] %v4910
      %5055 = vst [vmem:[%s314 + $0x90] sm:$0xf] %v4911
      %5056 = vst [vmem:[%s314 + $0x94] sm:$0xf] %v4912
      %5057 = vst [vmem:[%s314 + $0x98] sm:$0xf] %v4913
      %5058 = vst [vmem:[%s314 + $0x9c] sm:$0xf] %v4914
      %5059 = vst [vmem:[%s314 + $0xa0] sm:$0xf] %v4915
      %5060 = vst [vmem:[%s314 + $0xa4] sm:$0xf] %v4916
      %5061 = vst [vmem:[%s314 + $0xa8] sm:$0xf] %v4917
      %5062 = vst [vmem:[%s314 + $0xac] sm:$0xf] %v4918
      %5063 = vst [vmem:[%s314 + $0xb0] sm:$0xf] %v4919
      %5064 = vst [vmem:[%s314 + $0xb4] sm:$0xf] %v4920
      %5065 = vst [vmem:[%s314 + $0xb8] sm:$0xf] %v4921
      %5066 = vst [vmem:[%s314 + $0xbc] sm:$0xf] %v4922
      %5067 = vst [vmem:[%s314 + $0xc0] sm:$0xf] %v4923
      %5068 = vst [vmem:[%s314 + $0xc4] sm:$0xf] %v4924
      %5069 = vst [vmem:[%s314 + $0xc8] sm:$0xf] %v4925
      %5070 = vst [vmem:[%s314 + $0xcc] sm:$0xf] %v4926
      %5071 = vst [vmem:[%s314 + $0xd0] sm:$0xf] %v4927
      %5072 = vst [vmem:[%s314 + $0xd4] sm:$0xf] %v4928
      %5073 = vst [vmem:[%s314 + $0xd8] sm:$0xf] %v4929
      %5074 = vst [vmem:[%s314 + $0xdc] sm:$0xf] %v4930
      %5075 = vst [vmem:[%s314 + $0xe0] sm:$0xf] %v4931
      %5076 = vst [vmem:[%s314 + $0xe4] sm:$0xf] %v4932
      %5077 = vst [vmem:[%s314 + $0xe8] sm:$0xf] %v4933
      %5078 = vst [vmem:[%s314 + $0xec] sm:$0xf] %v4934
      %5079 = vst [vmem:[%s314 + $0xf0] sm:$0xf] %v4935
      %5080 = vst [vmem:[%s314 + $0xf4] sm:$0xf] %v4936
      %5081 = vst [vmem:[%s314 + $0xf8] sm:$0xf] %v4937
      %5082 = vst [vmem:[%s314 + $0xfc] sm:$0xf] %v4938
      %5083 = vst [vmem:[%s314 + $0x100] sm:$0xf] %v4939
      %5084 = vst [vmem:[%s314 + $0x104] sm:$0xf] %v4940
      %5085 = vst [vmem:[%s314 + $0x108] sm:$0xf] %v4941
      %5086 = vst [vmem:[%s314 + $0x10c] sm:$0xf] %v4942
      %5087 = vst [vmem:[%s314 + $0x110] sm:$0xf] %v4943
      %5088 = vst [vmem:[%s314 + $0x114] sm:$0xf] %v4944
      %5089 = vst [vmem:[%s314 + $0x118] sm:$0xf] %v4945
      %5090 = vst [vmem:[%s314 + $0x11c] sm:$0xf] %v4946
      %v5091 = vadd.f32 %v4659, %v4660
      %v5092 = vadd.f32 %v5091, %v4661
      %v5093 = vadd.f32 %v5092, %v4662
      %v5094 = vadd.f32 %v5093, %v4663
      %v5095 = vadd.f32 %v5094, %v4664
      %v5096 = vadd.f32 %v5095, %v4665
      %v5097 = vadd.f32 %v5096, %v4666
      %v5098 = vadd.f32 %v5097, %v4667
      %v5099 = vadd.f32 %v5098, %v4668
      %v5100 = vadd.f32 %v5099, %v4669
      %v5101 = vadd.f32 %v5100, %v4670
      %v5102 = vadd.f32 %v5101, %v4671
      %v5103 = vadd.f32 %v5102, %v4672
      %v5104 = vadd.f32 %v5103, %v4673
      %v5105 = vadd.f32 %v5104, %v4674
      %v5106 = vadd.f32 %v5105, %v4675
      %v5107 = vadd.f32 %v5106, %v4676
      %v5108 = vadd.f32 %v5107, %v4677
      %v5109 = vadd.f32 %v5108, %v4678
      %v5110 = vadd.f32 %v5109, %v4679
      %v5111 = vadd.f32 %v5110, %v4680
      %v5112 = vadd.f32 %v5111, %v4681
      %v5113 = vadd.f32 %v5112, %v4682
      %v5114 = vadd.f32 %v5113, %v4683
      %v5115 = vadd.f32 %v5114, %v4684
      %v5116 = vadd.f32 %v5115, %v4685
      %v5117 = vadd.f32 %v5116, %v4686
      %v5118 = vadd.f32 %v5117, %v4687
      %v5119 = vadd.f32 %v5118, %v4688
      %v5120 = vadd.f32 %v5119, %v4689
      %v5121 = vadd.f32 %v5120, %v4690
      %v5122 = vadd.f32 %v5121, %v4691
      %v5123 = vadd.f32 %v5122, %v4692
      %v5124 = vadd.f32 %v5123, %v4693
      %v5125 = vadd.f32 %v5124, %v4694
      %v5126 = vadd.f32 %v5125, %v4695
      %v5127 = vadd.f32 %v5126, %v4696
      %v5128 = vadd.f32 %v5127, %v4697
      %v5129 = vadd.f32 %v5128, %v4698
      %v5130 = vadd.f32 %v5129, %v4699
      %v5131 = vadd.f32 %v5130, %v4700
      %v5132 = vadd.f32 %v5131, %v4701
      %v5133 = vadd.f32 %v5132, %v4702
      %v5134 = vadd.f32 %v5133, %v4703
      %v5135 = vadd.f32 %v5134, %v4704
      %v5136 = vadd.f32 %v5135, %v4705
      %v5137 = vadd.f32 %v5136, %v4706
      %v5138 = vadd.f32 %v5137, %v4707
      %v5139 = vadd.f32 %v5138, %v4708
      %v5140 = vadd.f32 %v5139, %v4709
      %v5141 = vadd.f32 %v5140, %v4710
      %v5142 = vadd.f32 %v5141, %v4711
      %v5143 = vadd.f32 %v5142, %v4712
      %v5144 = vadd.f32 %v5143, %v4713
      %v5145 = vadd.f32 %v5144, %v4714
      %v5146 = vadd.f32 %v5145, %v4715
      %v5147 = vadd.f32 %v5146, %v4716
      %v5148 = vadd.f32 %v5147, %v4717
      %v5149 = vadd.f32 %v5148, %v4718
      %v5150 = vadd.f32 %v5149, %v4719
      %v5151 = vadd.f32 %v5150, %v4720
      %v5152 = vadd.f32 %v5151, %v4721
      %v5153 = vadd.f32 %v5152, %v4722
      %v5154 = vadd.f32 %v5153, %v4723
      %v5155 = vadd.f32 %v5154, %v4724
      %v5156 = vadd.f32 %v5155, %v4725
      %v5157 = vadd.f32 %v5156, %v4726
      %v5158 = vadd.f32 %v5157, %v4727
      %v5159 = vadd.f32 %v5158, %v4728
      %v5160 = vadd.f32 %v5159, %v4729
      %v5161 = vadd.f32 %v5160, %v4730
      %v5162 = vrot.slane %v5161, 4
      %v5163 = vadd.f32 %v5161, %v5162
      %v5164 = vrot.slane %v5163, 2
      %v5165 = vadd.f32 %v5163, %v5164
      %v5166 = vrot.slane %v5165, 1
      %v5167 = vadd.f32 %v5165, %v5166
      %v5168 = vmul.f32 %v4659, %v4659
      %v5169 = vmul.f32 %v4660, %v4660
      %v5170 = vmul.f32 %v4661, %v4661
      %v5171 = vmul.f32 %v4662, %v4662
      %v5172 = vmul.f32 %v4663, %v4663
      %v5173 = vmul.f32 %v4664, %v4664
      %v5174 = vmul.f32 %v4665, %v4665
      %v5175 = vmul.f32 %v4666, %v4666
      %v5176 = vmul.f32 %v4667, %v4667
      %v5177 = vmul.f32 %v4668, %v4668
      %v5178 = vmul.f32 %v4669, %v4669
      %v5179 = vmul.f32 %v4670, %v4670
      %v5180 = vmul.f32 %v4671, %v4671
      %v5181 = vmul.f32 %v4672, %v4672
      %v5182 = vmul.f32 %v4673, %v4673
      %v5183 = vmul.f32 %v4674, %v4674
      %v5184 = vmul.f32 %v4675, %v4675
      %v5185 = vmul.f32 %v4676, %v4676
      %v5186 = vmul.f32 %v4677, %v4677
      %v5187 = vmul.f32 %v4678, %v4678
      %v5188 = vmul.f32 %v4679, %v4679
      %v5189 = vmul.f32 %v4680, %v4680
      %v5190 = vmul.f32 %v4681, %v4681
      %v5191 = vmul.f32 %v4682, %v4682
      %v5192 = vmul.f32 %v4683, %v4683
      %v5193 = vmul.f32 %v4684, %v4684
      %v5194 = vmul.f32 %v4685, %v4685
      %v5195 = vmul.f32 %v4686, %v4686
      %v5196 = vmul.f32 %v4687, %v4687
      %v5197 = vmul.f32 %v4688, %v4688
      %v5198 = vmul.f32 %v4689, %v4689
      %v5199 = vmul.f32 %v4690, %v4690
      %v5200 = vmul.f32 %v4691, %v4691
      %v5201 = vmul.f32 %v4692, %v4692
      %v5202 = vmul.f32 %v4693, %v4693
      %v5203 = vmul.f32 %v4694, %v4694
      %v5204 = vmul.f32 %v4695, %v4695
      %v5205 = vmul.f32 %v4696, %v4696
      %v5206 = vmul.f32 %v4697, %v4697
      %v5207 = vmul.f32 %v4698, %v4698
      %v5208 = vmul.f32 %v4699, %v4699
      %v5209 = vmul.f32 %v4700, %v4700
      %v5210 = vmul.f32 %v4701, %v4701
      %v5211 = vmul.f32 %v4702, %v4702
      %v5212 = vmul.f32 %v4703, %v4703
      %v5213 = vmul.f32 %v4704, %v4704
      %v5214 = vmul.f32 %v4705, %v4705
      %v5215 = vmul.f32 %v4706, %v4706
      %v5216 = vmul.f32 %v4707, %v4707
      %v5217 = vmul.f32 %v4708, %v4708
      %v5218 = vmul.f32 %v4709, %v4709
      %v5219 = vmul.f32 %v4710, %v4710
      %v5220 = vmul.f32 %v4711, %v4711
      %v5221 = vmul.f32 %v4712, %v4712
      %v5222 = vmul.f32 %v4713, %v4713
      %v5223 = vmul.f32 %v4714, %v4714
      %v5224 = vmul.f32 %v4715, %v4715
      %v5225 = vmul.f32 %v4716, %v4716
      %v5226 = vmul.f32 %v4717, %v4717
      %v5227 = vmul.f32 %v4718, %v4718
      %v5228 = vmul.f32 %v4719, %v4719
      %v5229 = vmul.f32 %v4720, %v4720
      %v5230 = vmul.f32 %v4721, %v4721
      %v5231 = vmul.f32 %v4722, %v4722
      %v5232 = vmul.f32 %v4723, %v4723
      %v5233 = vmul.f32 %v4724, %v4724
      %v5234 = vmul.f32 %v4725, %v4725
      %v5235 = vmul.f32 %v4726, %v4726
      %v5236 = vmul.f32 %v4727, %v4727
      %v5237 = vmul.f32 %v4728, %v4728
      %v5238 = vmul.f32 %v4729, %v4729
      %v5239 = vmul.f32 %v4730, %v4730
      %v5240 = vadd.f32 %v5168, %v5169
      %v5241 = vadd.f32 %v5240, %v5170
      %v5242 = vadd.f32 %v5241, %v5171
      %v5243 = vadd.f32 %v5242, %v5172
      %v5244 = vadd.f32 %v5243, %v5173
      %v5245 = vadd.f32 %v5244, %v5174
      %v5246 = vadd.f32 %v5245, %v5175
      %v5247 = vadd.f32 %v5246, %v5176
      %v5248 = vadd.f32 %v5247, %v5177
      %v5249 = vadd.f32 %v5248, %v5178
      %v5250 = vadd.f32 %v5249, %v5179
      %v5251 = vadd.f32 %v5250, %v5180
      %v5252 = vadd.f32 %v5251, %v5181
      %v5253 = vadd.f32 %v5252, %v5182
      %v5254 = vadd.f32 %v5253, %v5183
      %v5255 = vadd.f32 %v5254, %v5184
      %v5256 = vadd.f32 %v5255, %v5185
      %v5257 = vadd.f32 %v5256, %v5186
      %v5258 = vadd.f32 %v5257, %v5187
      %v5259 = vadd.f32 %v5258, %v5188
      %v5260 = vadd.f32 %v5259, %v5189
      %v5261 = vadd.f32 %v5260, %v5190
      %v5262 = vadd.f32 %v5261, %v5191
      %v5263 = vadd.f32 %v5262, %v5192
      %v5264 = vadd.f32 %v5263, %v5193
      %v5265 = vadd.f32 %v5264, %v5194
      %v5266 = vadd.f32 %v5265, %v5195
      %v5267 = vadd.f32 %v5266, %v5196
      %v5268 = vadd.f32 %v5267, %v5197
      %v5269 = vadd.f32 %v5268, %v5198
      %v5270 = vadd.f32 %v5269, %v5199
      %v5271 = vadd.f32 %v5270, %v5200
      %v5272 = vadd.f32 %v5271, %v5201
      %v5273 = vadd.f32 %v5272, %v5202
      %v5274 = vadd.f32 %v5273, %v5203
      %v5275 = vadd.f32 %v5274, %v5204
      %v5276 = vadd.f32 %v5275, %v5205
      %v5277 = vadd.f32 %v5276, %v5206
      %v5278 = vadd.f32 %v5277, %v5207
      %v5279 = vadd.f32 %v5278, %v5208
      %v5280 = vadd.f32 %v5279, %v5209
      %v5281 = vadd.f32 %v5280, %v5210
      %v5282 = vadd.f32 %v5281, %v5211
      %v5283 = vadd.f32 %v5282, %v5212
      %v5284 = vadd.f32 %v5283, %v5213
      %v5285 = vadd.f32 %v5284, %v5214
      %v5286 = vadd.f32 %v5285, %v5215
      %v5287 = vadd.f32 %v5286, %v5216
      %v5288 = vadd.f32 %v5287, %v5217
      %v5289 = vadd.f32 %v5288, %v5218
      %v5290 = vadd.f32 %v5289, %v5219
      %v5291 = vadd.f32 %v5290, %v5220
      %v5292 = vadd.f32 %v5291, %v5221
      %v5293 = vadd.f32 %v5292, %v5222
      %v5294 = vadd.f32 %v5293, %v5223
      %v5295 = vadd.f32 %v5294, %v5224
      %v5296 = vadd.f32 %v5295, %v5225
      %v5297 = vadd.f32 %v5296, %v5226
      %v5298 = vadd.f32 %v5297, %v5227
      %v5299 = vadd.f32 %v5298, %v5228
      %v5300 = vadd.f32 %v5299, %v5229
      %v5301 = vadd.f32 %v5300, %v5230
      %v5302 = vadd.f32 %v5301, %v5231
      %v5303 = vadd.f32 %v5302, %v5232
      %v5304 = vadd.f32 %v5303, %v5233
      %v5305 = vadd.f32 %v5304, %v5234
      %v5306 = vadd.f32 %v5305, %v5235
      %v5307 = vadd.f32 %v5306, %v5236
      %v5308 = vadd.f32 %v5307, %v5237
      %v5309 = vadd.f32 %v5308, %v5238
      %v5310 = vadd.f32 %v5309, %v5239
      %v5311 = vrot.slane %v5310, 4
      %v5312 = vadd.f32 %v5310, %v5311
      %v5313 = vrot.slane %v5312, 2
      %v5314 = vadd.f32 %v5312, %v5313
      %v5315 = vrot.slane %v5314, 1
      %v5316 = vadd.f32 %v5314, %v5315
      %vm5317 = vcmask 1040384
      %v5318 = vsel %vm5317, %v5167, %v5316
      %5319 = vst [vmem:[%s321] sm:$0x3] %v5318
      %p5320 = scmp.lt.s32.totalorder %s22, 1
      %s5321 = scalar_select %p5320, %s22, 1
      %p5322 = scmp.lt.s32.totalorder %s23, 0
      %s5323 = scalar_select %p5322, %s23, 0
      %s5324 = smul.addr %s5321, 72
      %s5325 = sadd.s32 %s5323, %s5324
      %s5326 = smul.addr %s5325, 4
      %s5327 = scalar_lea.vmem %s5, %s5326
      %p5328 = scmp.lt.s32.totalorder %s22, 1
      %s5329 = scalar_select %p5328, %s22, 1
      %p5330 = scmp.lt.s32.totalorder %s23, 0
      %s5331 = scalar_select %p5330, %s23, 0
      %s5332 = sadd.s32 %s5331, %s5329
      %s5333 = smul.addr %s5332, 2
      %s5334 = scalar_lea.vmem %s6, %s5333
      // Predicated region
      $region41: #{bottleneck_forward.5} parent=39 // pred_check
        %p5335 = pneg %p170
      $region42: #{bottleneck_forward.5} parent=39 // pred_check_branch
        %5337 = sbr.rel (%p5335) target = $region44
      $region43: #{bottleneck_forward.5} parent=39 // pred_region
        _
      $region44: #{bottleneck_forward.5} parent=39 // pred_fallthru
        _
      // Predicated region
      $region45: #{bottleneck_forward.5} parent=39 // pred_check
        %p5338 = pneg %p198
      $region46: #{bottleneck_forward.5} parent=39 // pred_check_branch
        %5340 = sbr.rel (%p5338) target = $region48
      $region47: #{bottleneck_forward.5} parent=39 // pred_region
        _
      $region48: #{bottleneck_forward.5} parent=39 // pred_fallthru
        _
    $region40: #{bottleneck_forward.5} parent=5 // pred_fallthru
      _
    %p5341 = scmp.le.s32.totalorder 2, %s13
    // Predicated region
    $region49: #{bottleneck_forward.5} parent=5 // pred_check
      %p5342 = pneg %p5341
    $region50: #{bottleneck_forward.5} parent=5 // pred_check_branch
      %5344 = sbr.rel (%p5342) target = $region52
    $region51: #{bottleneck_forward.5} parent=5 // pred_region
      %s5345 = ssub.s32 %s13, 2
      // Predicated region
      $region53: #{bottleneck_forward.5} parent=51 // pred_check
        %p5346 = pneg %p176
      $region54: #{bottleneck_forward.5} parent=51 // pred_check_branch
        %5348 = sbr.rel (%p5346) target = $region56
      $region55: #{bottleneck_forward.5} parent=51 // pred_region
        %p5349 = scmp.lt.s32.totalorder %s24, 1
        %s5350 = scalar_select %p5349, %s24, 1
        %p5351 = scmp.lt.s32.totalorder %s25, 0
        %s5352 = scalar_select %p5351, %s25, 0
        %s5353 = smul.addr %s5350, 72
        %s5354 = sadd.s32 %s5352, %s5353
        %s5355 = smul.addr %s5354, 4
        %s5356 = scalar_lea.vmem %s5, %s5355
      $region56: #{bottleneck_forward.5} parent=51 // pred_fallthru
        _
      // Predicated region
      $region57: #{bottleneck_forward.5} parent=51 // pred_check
        %p5357 = pneg %p204
      $region58: #{bottleneck_forward.5} parent=51 // pred_check_branch
        %5359 = sbr.rel (%p5357) target = $region60
      $region59: #{bottleneck_forward.5} parent=51 // pred_region
        %p5360 = scmp.lt.s32.totalorder %s24, 1
        %s5361 = scalar_select %p5360, %s24, 1
        %p5362 = scmp.lt.s32.totalorder %s25, 0
        %s5363 = scalar_select %p5362, %s25, 0
        %s5364 = sadd.s32 %s5363, %s5361
        %s5365 = smul.addr %s5364, 2
        %s5366 = scalar_lea.vmem %s6, %s5365
      $region60: #{bottleneck_forward.5} parent=51 // pred_fallthru
        _
    $region52: #{bottleneck_forward.5} parent=5 // pred_fallthru
      _
  $region6: #{bottleneck_forward.5} parent=0 // loop_footer
    %s17 = sadd.s32 1, %s13
  $region7: #{bottleneck_forward.5} parent=0 // loop_footer_branch
    %12 = sbr.rel target = $region3
  $region8: #{bottleneck_forward.5} parent=0 // loop_exit
    _

</llo_original>
